<compile_context>
chip_gen: v6e
topology: v6e:2x2x1
jax: 0.10.0
libtpu: 0.0.40
codegen_flags: <defaults>
</compile_context>

<pallas_src>
import numpy as np
import jax
import jax.numpy as jnp
from jax import lax
from jax.experimental import pallas as pl
from jax.experimental.pallas import tpu as pltpu

VMEM_SPEC = pl.BlockSpec(memory_space=pltpu.MemorySpace.VMEM)


# ------------------------------------------------------------------ kernel --
def _fused_cnn_kernel(xprep_ref, t1_ref, bias1_ref, s1_ref, s1t_ref,
                      gamma_ref, beta_ref, t2_ref, bias2_ref,
                      w3_ref, b3_ref, o_ref, xp2_ref):
    f32 = jnp.float32
    bf16 = jnp.bfloat16
    n_batch = xprep_ref.shape[0]

    # ---- conv1: output rows h = 4*i + r, cols w = 2*wo + qw ------------------
    # acc1[(n, r, qw)] : (8, 96) f32 slab, lane = wo*6 + c
    acc1 = {(n, r, qw): jnp.zeros((8, 96), f32)
            for n in range(n_batch) for r in range(4) for qw in range(2)}
    for dy in range(5):
        w_q0 = t1_ref[dy, 0]                       # (96, 96) bf16
        w_q1 = t1_ref[dy, 1]
        for n in range(n_batch):
            for r in range(4):
                s = r + dy                         # padded input row = 4*i + s
                start = (s % 4) * 9 + s // 4       # row start in mod-4 layout
                lhs = xprep_ref[n, pl.ds(start, 8), :].astype(bf16)
                acc1[(n, r, 0)] = acc1[(n, r, 0)] + jnp.dot(
                    lhs, w_q0, preferred_element_type=f32)
                acc1[(n, r, 1)] = acc1[(n, r, 1)] + jnp.dot(
                    lhs, w_q1, preferred_element_type=f32)

    # conv bias + ReLU, accumulate per-lane sums for BN batch statistics
    bias1 = bias1_ref[...]                         # (1, 96)
    colsum = jnp.zeros((1, 96), f32)
    colsumsq = jnp.zeros((1, 96), f32)
    y1 = {}
    for key in acc1:
        y = jnp.maximum(acc1[key] + bias1, 0.0)
        y1[key] = y
        colsum = colsum + jnp.sum(y, axis=0, keepdims=True)
        colsumsq = colsumsq + jnp.sum(y * y, axis=0, keepdims=True)

    # ---- BatchNorm2d (training mode: biased batch stats, eps = 1e-5) --------
    cnt = float(n_batch * 32 * 32)
    chsum = jnp.dot(colsum, s1_ref[...], preferred_element_type=f32)      # (1, 8)
    chsumsq = jnp.dot(colsumsq, s1_ref[...], preferred_element_type=f32)  # (1, 8)
    mean = chsum / cnt
    var = jnp.maximum(chsumsq / cnt - mean * mean, 0.0)   # clamp: avoid cancellation
    inv = lax.rsqrt(var + 1e-5)
    scale_c = gamma_ref[...] * inv                                        # (1, 8)
    shift_c = beta_ref[...] - mean * scale_c
    scale96 = jnp.dot(scale_c, s1t_ref[...], preferred_element_type=f32)  # (1, 96)
    shift96 = jnp.dot(shift_c, s1t_ref[...], preferred_element_type=f32)
    # TODO(synk): BatchNorm running-stat (momentum) update is training-side
    # bookkeeping, not part of the forward output; it is intentionally skipped.

    # ---- BN apply + 2x2 max-pool (elementwise 4-way max), stage conv2 input -
    # xp2 scratch layout: [n, h-parity, 10 padded rows, 96 lanes]
    zeros_pad = jnp.zeros((10, 96), f32)
    for n in range(n_batch):
        bn = {(r, qw): y1[(n, r, qw)] * scale96 + shift96
              for r in range(4) for qw in range(2)}
        p_even = jnp.maximum(jnp.maximum(bn[(0, 0)], bn[(0, 1)]),
                             jnp.maximum(bn[(1, 0)], bn[(1, 1)]))  # ho = 0,2,..,14
        p_odd = jnp.maximum(jnp.maximum(bn[(2, 0)], bn[(2, 1)]),
                            jnp.maximum(bn[(3, 0)], bn[(3, 1)]))   # ho = 1,3,..,15
        xp2_ref[n, 0, :, :] = zeros_pad
        xp2_ref[n, 1, :, :] = zeros_pad
        xp2_ref[n, 0, pl.ds(1, 8), :] = p_even
        xp2_ref[n, 1, pl.ds(1, 8), :] = p_odd

    # ---- conv2: output rows h2 = 2*i + r2, cols w2 = 2*wo2 + qw --------------
    acc2 = {(n, r2, qw): jnp.zeros((8, 96), f32)
            for n in range(n_batch) for r2 in range(2) for qw in range(2)}
    for dy in range(5):
        w_q0 = t2_ref[dy, 0]                       # (96, 96) bf16
        w_q1 = t2_ref[dy, 1]
        for n in range(n_batch):
            for r2 in range(2):
                s = r2 + dy
                lhs = xp2_ref[n, s % 2, pl.ds(s // 2, 8), :].astype(bf16)
                acc2[(n, r2, 0)] = acc2[(n, r2, 0)] + jnp.dot(
                    lhs, w_q0, preferred_element_type=f32)
                acc2[(n, r2, 1)] = acc2[(n, r2, 1)] + jnp.dot(
                    lhs, w_q1, preferred_element_type=f32)

    # conv2 bias + ReLU + 2x2 max-pool (again a pure elementwise 4-way max)
    bias2 = bias2_ref[...]                         # (1, 96)
    p2 = {}
    for n in range(n_batch):
        z = {(r2, qw): jnp.maximum(acc2[(n, r2, qw)] + bias2, 0.0)
             for r2 in range(2) for qw in range(2)}
        p2[n] = jnp.maximum(jnp.maximum(z[(0, 0)], z[(0, 1)]),
                            jnp.maximum(z[(1, 0)], z[(1, 1)]))     # (8, 96)

    # ---- linear (NCHW flatten folded into the pre-permuted w3 blocks) -------
    b3 = b3_ref[...]                               # (1, 10)
    outs = {n: b3 for n in range(n_batch)}
    for i in range(8):
        w3i = w3_ref[i]                            # (96, 10)
        for n in range(n_batch):
            outs[n] = outs[n] + jnp.dot(p2[n][i:i + 1, :], w3i,
                                        preferred_element_type=f32)
    for n in range(n_batch):
        o_ref[pl.ds(n, 1), :] = outs[n]


# ---------------------------------------------------------- trace-time prep --
def _toeplitz_weights(w_hwio, w_in, w_out):
    """T[dy, qw][win*Cin + ci, wo*Cout + co] = w[dy, dx, ci, co] with
    dx = win - (2*wo + qw) + 2 (zero where the tap falls outside [0, w_in))."""
    k, _, cin, cout = w_hwio.shape
    sel = np.zeros((2, k, w_in, w_out), np.float32)
    for qw in range(2):
        for dx in range(k):
            for wo in range(w_out):
                win = 2 * wo + qw + dx - 2
                if 0 <= win < w_in:
                    sel[qw, dx, win, wo] = 1.0
    t = jnp.einsum('qdvw,ydio->yqviwo', sel, w_hwio)
    return t.reshape(k, 2, w_in * cin, w_out * cout).astype(jnp.bfloat16)


def my_small_cnn_forward(x_nchw, params):
    w1, b1, g1, be1, w2, b2, w3, b3 = params
    n = x_nchw.shape[0]
    assert x_nchw.shape[1:] == (3, 32, 32)

    # NCHW -> NHWC -> (N, H, W*C) lane-dense slabs; pad H by 2; reorder rows by
    # (h mod 4) so every conv/pool row group in the kernel is a contiguous slice.
    x = jnp.transpose(x_nchw, (0, 2, 3, 1)).reshape(n, 32, 32 * 3)
    xpad = jnp.pad(x, ((0, 0), (2, 2), (0, 0)))                      # (N, 36, 96)
    xprep = xpad.reshape(n, 9, 4, 96).transpose(0, 2, 1, 3).reshape(n, 36, 96)

    t1 = _toeplitz_weights(w1, 32, 16)                               # (5,2,96,96)
    t2 = _toeplitz_weights(w2, 16, 8)                                # (5,2,96,96)

    # channel-selection matrices for BN reductions / per-channel broadcasts
    s1 = np.zeros((96, 8), np.float32)
    for wo in range(16):
        for c in range(6):
            s1[wo * 6 + c, c] = 1.0
    s1t = s1.T.copy()
    gamma = jnp.concatenate([g1, jnp.zeros((2,), jnp.float32)]).reshape(1, 8)
    beta = jnp.concatenate([be1, jnp.zeros((2,), jnp.float32)]).reshape(1, 8)

    bias1 = jnp.tile(b1, 16).reshape(1, 96)                          # lane = wo*6+c
    bias2 = jnp.tile(b2, 8).reshape(1, 96)                           # lane = wo2*12+c

    # fold torch's NCHW flatten (index co*64 + ho2*8 + wo2) into the weights:
    # kernel feature row i (= ho2) has lane layout wo2*12 + co
    w3r = w3.reshape(12, 8, 8, 10).transpose(1, 2, 0, 3).reshape(8, 96, 10)
    b3r = b3.reshape(1, 10)

    return pl.pallas_call(
        _fused_cnn_kernel,
        out_shape=jax.ShapeDtypeStruct((n, 10), jnp.float32),
        in_specs=[VMEM_SPEC] * 11,
        out_specs=VMEM_SPEC,
        scratch_shapes=[pltpu.VMEM((n, 2, 10, 96), jnp.float32)],
    )(xprep, t1, bias1, jnp.asarray(s1), jnp.asarray(s1t),
      gamma, beta, t2, bias2, w3r, b3r)


# ------------------------------------------------------- pure-JAX reference --
def reference_forward(x_nchw, params):
    w1, b1, g1, be1, w2, b2, w3, b3 = params

    def conv(x, w_hwio, b):
        w_oihw = jnp.transpose(w_hwio, (3, 2, 0, 1))
        y = lax.conv_general_dilated(x, w_oihw, (1, 1), ((2, 2), (2, 2)),
                                     dimension_numbers=('NCHW', 'OIHW', 'NCHW'),
                                     precision=lax.Precision.HIGHEST)
        return y + b.reshape(1, -1, 1, 1)

    def pool(x):
        return lax.reduce_window(x, -jnp.inf, lax.max,
                                 (1, 1, 2, 2), (1, 1, 2, 2), 'VALID')

    y = jnp.maximum(conv(x_nchw, w1, b1), 0.0)
    mean = jnp.mean(y, axis=(0, 2, 3), keepdims=True)
    var = jnp.mean(y * y, axis=(0, 2, 3), keepdims=True) - mean * mean
    y = (y - mean) * lax.rsqrt(var + 1e-5) * g1.reshape(1, -1, 1, 1) + be1.reshape(1, -1, 1, 1)
    y = pool(y)
    y = jnp.maximum(conv(y, w2, b2), 0.0)
    y = pool(y)
    y = y.reshape(y.shape[0], -1)
    return jnp.dot(y, w3, precision=lax.Precision.HIGHEST) + b3


# --------------------------------------------------------------------- main --
if __name__ == "__main__":
    key = jax.random.PRNGKey(0)
    ks = jax.random.split(key, 8)
    # deterministic synthetic parameters (shapes from MySmallCNN.__init__)
    w1 = jax.random.normal(ks[0], (5, 5, 3, 6), jnp.float32) / np.sqrt(5 * 5 * 3)
    b1 = jax.random.normal(ks[1], (6,), jnp.float32) * 0.1
    g1 = jnp.ones((6,), jnp.float32)          # BatchNorm2d weight init
    be1 = jnp.zeros((6,), jnp.float32)        # BatchNorm2d bias init
    w2 = jax.random.normal(ks[2], (5, 5, 6, 12), jnp.float32) / np.sqrt(5 * 5 * 6)
    b2 = jax.random.normal(ks[3], (12,), jnp.float32) * 0.1
    w3 = jax.random.normal(ks[4], (12 * 8 * 8, 10), jnp.float32) / np.sqrt(12 * 8 * 8)
    b3 = jax.random.normal(ks[5], (10,), jnp.float32) * 0.1
    params = (w1, b1, g1, be1, w2, b2, w3, b3)

    # CIFAR-like input (32x32x3 is required by the 12*8*8 linear layer); batch=2
    x = jax.random.normal(ks[6], (2, 3, 32, 32), jnp.float32)

    out = jax.jit(my_small_cnn_forward)(x, params)
    out = jax.block_until_ready(out)
    assert out.shape == (2, 10) and out.dtype == jnp.float32

    ref = reference_forward(x, params)
    np.testing.assert_allclose(np.asarray(out), np.asarray(ref), rtol=5e-2, atol=5e-2)

    print("KERNEL_OK")
</pallas_src>

<mosaic_0001>
module attributes {stable_mosaic.version = 11 : i64} {
  func.func @_fused_cnn_kernel(%arg0: memref<2x36x96xf32, #tpu.memory_space<vmem>>, %arg1: memref<5x2x96x96xbf16, #tpu.memory_space<vmem>>, %arg2: memref<1x96xf32, #tpu.memory_space<vmem>>, %arg3: memref<96x8xf32, #tpu.memory_space<vmem>>, %arg4: memref<8x96xf32, #tpu.memory_space<vmem>>, %arg5: memref<1x8xf32, #tpu.memory_space<vmem>>, %arg6: memref<1x8xf32, #tpu.memory_space<vmem>>, %arg7: memref<5x2x96x96xbf16, #tpu.memory_space<vmem>>, %arg8: memref<1x96xf32, #tpu.memory_space<vmem>>, %arg9: memref<8x96x10xf32, #tpu.memory_space<vmem>>, %arg10: memref<1x10xf32, #tpu.memory_space<vmem>>, %arg11: memref<2x10xf32, #tpu.memory_space<vmem>>, %arg12: memref<2x2x10x96xf32, #tpu.memory_space<vmem>>) attributes {dimension_semantics = [], scalar_prefetch = 0 : i64, scratch_operands = 1 : i64, tpu.core_type = #tpu.core_type<tc>} {
    %cst = arith.constant 0.000000e+00 : f32
    %0 = vector.broadcast %cst : f32 to vector<8x96xf32>
    %cst_0 = arith.constant 0.000000e+00 : f32
    %1 = vector.broadcast %cst_0 : f32 to vector<8x96xf32>
    %cst_1 = arith.constant 0.000000e+00 : f32
    %2 = vector.broadcast %cst_1 : f32 to vector<8x96xf32>
    %cst_2 = arith.constant 0.000000e+00 : f32
    %3 = vector.broadcast %cst_2 : f32 to vector<8x96xf32>
    %cst_3 = arith.constant 0.000000e+00 : f32
    %4 = vector.broadcast %cst_3 : f32 to vector<8x96xf32>
    %cst_4 = arith.constant 0.000000e+00 : f32
    %5 = vector.broadcast %cst_4 : f32 to vector<8x96xf32>
    %cst_5 = arith.constant 0.000000e+00 : f32
    %6 = vector.broadcast %cst_5 : f32 to vector<8x96xf32>
    %cst_6 = arith.constant 0.000000e+00 : f32
    %7 = vector.broadcast %cst_6 : f32 to vector<8x96xf32>
    %cst_7 = arith.constant 0.000000e+00 : f32
    %8 = vector.broadcast %cst_7 : f32 to vector<8x96xf32>
    %cst_8 = arith.constant 0.000000e+00 : f32
    %9 = vector.broadcast %cst_8 : f32 to vector<8x96xf32>
    %cst_9 = arith.constant 0.000000e+00 : f32
    %10 = vector.broadcast %cst_9 : f32 to vector<8x96xf32>
    %cst_10 = arith.constant 0.000000e+00 : f32
    %11 = vector.broadcast %cst_10 : f32 to vector<8x96xf32>
    %cst_11 = arith.constant 0.000000e+00 : f32
    %12 = vector.broadcast %cst_11 : f32 to vector<8x96xf32>
    %cst_12 = arith.constant 0.000000e+00 : f32
    %13 = vector.broadcast %cst_12 : f32 to vector<8x96xf32>
    %cst_13 = arith.constant 0.000000e+00 : f32
    %14 = vector.broadcast %cst_13 : f32 to vector<8x96xf32>
    %cst_14 = arith.constant 0.000000e+00 : f32
    %15 = vector.broadcast %cst_14 : f32 to vector<8x96xf32>
    %c0 = arith.constant 0 : index
    %c0_15 = arith.constant 0 : index
    %c0_16 = arith.constant 0 : index
    %c0_17 = arith.constant 0 : index
    %16 = vector.load %arg1[%c0, %c0_15, %c0_16, %c0_17] : memref<5x2x96x96xbf16, #tpu.memory_space<vmem>>, vector<1x1x96x96xbf16>
    %17 = vector.shape_cast %16 : vector<1x1x96x96xbf16> to vector<96x96xbf16>
    %c0_18 = arith.constant 0 : index
    %c1 = arith.constant 1 : index
    %c0_19 = arith.constant 0 : index
    %c0_20 = arith.constant 0 : index
    %18 = vector.load %arg1[%c0_18, %c1, %c0_19, %c0_20] : memref<5x2x96x96xbf16, #tpu.memory_space<vmem>>, vector<1x1x96x96xbf16>
    %19 = vector.shape_cast %18 : vector<1x1x96x96xbf16> to vector<96x96xbf16>
    %c0_21 = arith.constant 0 : index
    %c0_22 = arith.constant 0 : index
    %c0_23 = arith.constant 0 : index
    %20 = vector.load %arg0[%c0_21, %c0_22, %c0_23] : memref<2x36x96xf32, #tpu.memory_space<vmem>>, vector<1x8x96xf32>
    %21 = vector.shape_cast %20 : vector<1x8x96xf32> to vector<8x96xf32>
    %22 = arith.truncf %21 : vector<8x96xf32> to vector<8x96xbf16>
    %cst_24 = arith.constant dense<0.000000e+00> : vector<8x96xf32>
    %23 = tpu.matmul %22, %17, %cst_24 {dimension_numbers = #tpu.dot_dimension_numbers<[1], [0], [0], [1], [0, 0, 1, 1], [], []>} : vector<8x96xbf16>, vector<96x96xbf16>, vector<8x96xf32> -> vector<8x96xf32>
    %24 = arith.addf %0, %23 : vector<8x96xf32>
    %cst_25 = arith.constant dense<0.000000e+00> : vector<8x96xf32>
    %25 = tpu.matmul %22, %19, %cst_25 {dimension_numbers = #tpu.dot_dimension_numbers<[1], [0], [0], [1], [0, 0, 1, 1], [], []>} : vector<8x96xbf16>, vector<96x96xbf16>, vector<8x96xf32> -> vector<8x96xf32>
    %26 = arith.addf %1, %25 : vector<8x96xf32>
    %c0_26 = arith.constant 0 : index
    %c9 = arith.constant 9 : index
    %c0_27 = arith.constant 0 : index
    %27 = vector.load %arg0[%c0_26, %c9, %c0_27] : memref<2x36x96xf32, #tpu.memory_space<vmem>>, vector<1x8x96xf32>
    %28 = vector.shape_cast %27 : vector<1x8x96xf32> to vector<8x96xf32>
    %29 = arith.truncf %28 : vector<8x96xf32> to vector<8x96xbf16>
    %cst_28 = arith.constant dense<0.000000e+00> : vector<8x96xf32>
    %30 = tpu.matmul %29, %17, %cst_28 {dimension_numbers = #tpu.dot_dimension_numbers<[1], [0], [0], [1], [0, 0, 1, 1], [], []>} : vector<8x96xbf16>, vector<96x96xbf16>, vector<8x96xf32> -> vector<8x96xf32>
    %31 = arith.addf %2, %30 : vector<8x96xf32>
    %cst_29 = arith.constant dense<0.000000e+00> : vector<8x96xf32>
    %32 = tpu.matmul %29, %19, %cst_29 {dimension_numbers = #tpu.dot_dimension_numbers<[1], [0], [0], [1], [0, 0, 1, 1], [], []>} : vector<8x96xbf16>, vector<96x96xbf16>, vector<8x96xf32> -> vector<8x96xf32>
    %33 = arith.addf %3, %32 : vector<8x96xf32>
    %c0_30 = arith.constant 0 : index
    %c18 = arith.constant 18 : index
    %c0_31 = arith.constant 0 : index
    %34 = vector.load %arg0[%c0_30, %c18, %c0_31] : memref<2x36x96xf32, #tpu.memory_space<vmem>>, vector<1x8x96xf32>
    %35 = vector.shape_cast %34 : vector<1x8x96xf32> to vector<8x96xf32>
    %36 = arith.truncf %35 : vector<8x96xf32> to vector<8x96xbf16>
    %cst_32 = arith.constant dense<0.000000e+00> : vector<8x96xf32>
    %37 = tpu.matmul %36, %17, %cst_32 {dimension_numbers = #tpu.dot_dimension_numbers<[1], [0], [0], [1], [0, 0, 1, 1], [], []>} : vector<8x96xbf16>, vector<96x96xbf16>, vector<8x96xf32> -> vector<8x96xf32>
    %38 = arith.addf %4, %37 : vector<8x96xf32>
    %cst_33 = arith.constant dense<0.000000e+00> : vector<8x96xf32>
    %39 = tpu.matmul %36, %19, %cst_33 {dimension_numbers = #tpu.dot_dimension_numbers<[1], [0], [0], [1], [0, 0, 1, 1], [], []>} : vector<8x96xbf16>, vector<96x96xbf16>, vector<8x96xf32> -> vector<8x96xf32>
    %40 = arith.addf %5, %39 : vector<8x96xf32>
    %c0_34 = arith.constant 0 : index
    %c27 = arith.constant 27 : index
    %c0_35 = arith.constant 0 : index
    %41 = vector.load %arg0[%c0_34, %c27, %c0_35] : memref<2x36x96xf32, #tpu.memory_space<vmem>>, vector<1x8x96xf32>
    %42 = vector.shape_cast %41 : vector<1x8x96xf32> to vector<8x96xf32>
    %43 = arith.truncf %42 : vector<8x96xf32> to vector<8x96xbf16>
    %cst_36 = arith.constant dense<0.000000e+00> : vector<8x96xf32>
    %44 = tpu.matmul %43, %17, %cst_36 {dimension_numbers = #tpu.dot_dimension_numbers<[1], [0], [0], [1], [0, 0, 1, 1], [], []>} : vector<8x96xbf16>, vector<96x96xbf16>, vector<8x96xf32> -> vector<8x96xf32>
    %45 = arith.addf %6, %44 : vector<8x96xf32>
    %cst_37 = arith.constant dense<0.000000e+00> : vector<8x96xf32>
    %46 = tpu.matmul %43, %19, %cst_37 {dimension_numbers = #tpu.dot_dimension_numbers<[1], [0], [0], [1], [0, 0, 1, 1], [], []>} : vector<8x96xbf16>, vector<96x96xbf16>, vector<8x96xf32> -> vector<8x96xf32>
    %47 = arith.addf %7, %46 : vector<8x96xf32>
    %c1_38 = arith.constant 1 : index
    %c0_39 = arith.constant 0 : index
    %c0_40 = arith.constant 0 : index
    %48 = vector.load %arg0[%c1_38, %c0_39, %c0_40] : memref<2x36x96xf32, #tpu.memory_space<vmem>>, vector<1x8x96xf32>
    %49 = vector.shape_cast %48 : vector<1x8x96xf32> to vector<8x96xf32>
    %50 = arith.truncf %49 : vector<8x96xf32> to vector<8x96xbf16>
    %cst_41 = arith.constant dense<0.000000e+00> : vector<8x96xf32>
    %51 = tpu.matmul %50, %17, %cst_41 {dimension_numbers = #tpu.dot_dimension_numbers<[1], [0], [0], [1], [0, 0, 1, 1], [], []>} : vector<8x96xbf16>, vector<96x96xbf16>, vector<8x96xf32> -> vector<8x96xf32>
    %52 = arith.addf %8, %51 : vector<8x96xf32>
    %cst_42 = arith.constant dense<0.000000e+00> : vector<8x96xf32>
    %53 = tpu.matmul %50, %19, %cst_42 {dimension_numbers = #tpu.dot_dimension_numbers<[1], [0], [0], [1], [0, 0, 1, 1], [], []>} : vector<8x96xbf16>, vector<96x96xbf16>, vector<8x96xf32> -> vector<8x96xf32>
    %54 = arith.addf %9, %53 : vector<8x96xf32>
    %c1_43 = arith.constant 1 : index
    %c9_44 = arith.constant 9 : index
    %c0_45 = arith.constant 0 : index
    %55 = vector.load %arg0[%c1_43, %c9_44, %c0_45] : memref<2x36x96xf32, #tpu.memory_space<vmem>>, vector<1x8x96xf32>
    %56 = vector.shape_cast %55 : vector<1x8x96xf32> to vector<8x96xf32>
    %57 = arith.truncf %56 : vector<8x96xf32> to vector<8x96xbf16>
    %cst_46 = arith.constant dense<0.000000e+00> : vector<8x96xf32>
    %58 = tpu.matmul %57, %17, %cst_46 {dimension_numbers = #tpu.dot_dimension_numbers<[1], [0], [0], [1], [0, 0, 1, 1], [], []>} : vector<8x96xbf16>, vector<96x96xbf16>, vector<8x96xf32> -> vector<8x96xf32>
    %59 = arith.addf %10, %58 : vector<8x96xf32>
    %cst_47 = arith.constant dense<0.000000e+00> : vector<8x96xf32>
    %60 = tpu.matmul %57, %19, %cst_47 {dimension_numbers = #tpu.dot_dimension_numbers<[1], [0], [0], [1], [0, 0, 1, 1], [], []>} : vector<8x96xbf16>, vector<96x96xbf16>, vector<8x96xf32> -> vector<8x96xf32>
    %61 = arith.addf %11, %60 : vector<8x96xf32>
    %c1_48 = arith.constant 1 : index
    %c18_49 = arith.constant 18 : index
    %c0_50 = arith.constant 0 : index
    %62 = vector.load %arg0[%c1_48, %c18_49, %c0_50] : memref<2x36x96xf32, #tpu.memory_space<vmem>>, vector<1x8x96xf32>
    %63 = vector.shape_cast %62 : vector<1x8x96xf32> to vector<8x96xf32>
    %64 = arith.truncf %63 : vector<8x96xf32> to vector<8x96xbf16>
    %cst_51 = arith.constant dense<0.000000e+00> : vector<8x96xf32>
    %65 = tpu.matmul %64, %17, %cst_51 {dimension_numbers = #tpu.dot_dimension_numbers<[1], [0], [0], [1], [0, 0, 1, 1], [], []>} : vector<8x96xbf16>, vector<96x96xbf16>, vector<8x96xf32> -> vector<8x96xf32>
    %66 = arith.addf %12, %65 : vector<8x96xf32>
    %cst_52 = arith.constant dense<0.000000e+00> : vector<8x96xf32>
    %67 = tpu.matmul %64, %19, %cst_52 {dimension_numbers = #tpu.dot_dimension_numbers<[1], [0], [0], [1], [0, 0, 1, 1], [], []>} : vector<8x96xbf16>, vector<96x96xbf16>, vector<8x96xf32> -> vector<8x96xf32>
    %68 = arith.addf %13, %67 : vector<8x96xf32>
    %c1_53 = arith.constant 1 : index
    %c27_54 = arith.constant 27 : index
    %c0_55 = arith.constant 0 : index
    %69 = vector.load %arg0[%c1_53, %c27_54, %c0_55] : memref<2x36x96xf32, #tpu.memory_space<vmem>>, vector<1x8x96xf32>
    %70 = vector.shape_cast %69 : vector<1x8x96xf32> to vector<8x96xf32>
    %71 = arith.truncf %70 : vector<8x96xf32> to vector<8x96xbf16>
    %cst_56 = arith.constant dense<0.000000e+00> : vector<8x96xf32>
    %72 = tpu.matmul %71, %17, %cst_56 {dimension_numbers = #tpu.dot_dimension_numbers<[1], [0], [0], [1], [0, 0, 1, 1], [], []>} : vector<8x96xbf16>, vector<96x96xbf16>, vector<8x96xf32> -> vector<8x96xf32>
    %73 = arith.addf %14, %72 : vector<8x96xf32>
    %cst_57 = arith.constant dense<0.000000e+00> : vector<8x96xf32>
    %74 = tpu.matmul %71, %19, %cst_57 {dimension_numbers = #tpu.dot_dimension_numbers<[1], [0], [0], [1], [0, 0, 1, 1], [], []>} : vector<8x96xbf16>, vector<96x96xbf16>, vector<8x96xf32> -> vector<8x96xf32>
    %75 = arith.addf %15, %74 : vector<8x96xf32>
    %c1_58 = arith.constant 1 : index
    %c0_59 = arith.constant 0 : index
    %c0_60 = arith.constant 0 : index
    %c0_61 = arith.constant 0 : index
    %76 = vector.load %arg1[%c1_58, %c0_59, %c0_60, %c0_61] : memref<5x2x96x96xbf16, #tpu.memory_space<vmem>>, vector<1x1x96x96xbf16>
    %77 = vector.shape_cast %76 : vector<1x1x96x96xbf16> to vector<96x96xbf16>
    %c1_62 = arith.constant 1 : index
    %c1_63 = arith.constant 1 : index
    %c0_64 = arith.constant 0 : index
    %c0_65 = arith.constant 0 : index
    %78 = vector.load %arg1[%c1_62, %c1_63, %c0_64, %c0_65] : memref<5x2x96x96xbf16, #tpu.memory_space<vmem>>, vector<1x1x96x96xbf16>
    %79 = vector.shape_cast %78 : vector<1x1x96x96xbf16> to vector<96x96xbf16>
    %c0_66 = arith.constant 0 : index
    %c9_67 = arith.constant 9 : index
    %c0_68 = arith.constant 0 : index
    %80 = vector.load %arg0[%c0_66, %c9_67, %c0_68] : memref<2x36x96xf32, #tpu.memory_space<vmem>>, vector<1x8x96xf32>
    %81 = vector.shape_cast %80 : vector<1x8x96xf32> to vector<8x96xf32>
    %82 = arith.truncf %81 : vector<8x96xf32> to vector<8x96xbf16>
    %cst_69 = arith.constant dense<0.000000e+00> : vector<8x96xf32>
    %83 = tpu.matmul %82, %77, %cst_69 {dimension_numbers = #tpu.dot_dimension_numbers<[1], [0], [0], [1], [0, 0, 1, 1], [], []>} : vector<8x96xbf16>, vector<96x96xbf16>, vector<8x96xf32> -> vector<8x96xf32>
    %84 = arith.addf %24, %83 : vector<8x96xf32>
    %cst_70 = arith.constant dense<0.000000e+00> : vector<8x96xf32>
    %85 = tpu.matmul %82, %79, %cst_70 {dimension_numbers = #tpu.dot_dimension_numbers<[1], [0], [0], [1], [0, 0, 1, 1], [], []>} : vector<8x96xbf16>, vector<96x96xbf16>, vector<8x96xf32> -> vector<8x96xf32>
    %86 = arith.addf %26, %85 : vector<8x96xf32>
    %c0_71 = arith.constant 0 : index
    %c18_72 = arith.constant 18 : index
    %c0_73 = arith.constant 0 : index
    %87 = vector.load %arg0[%c0_71, %c18_72, %c0_73] : memref<2x36x96xf32, #tpu.memory_space<vmem>>, vector<1x8x96xf32>
    %88 = vector.shape_cast %87 : vector<1x8x96xf32> to vector<8x96xf32>
    %89 = arith.truncf %88 : vector<8x96xf32> to vector<8x96xbf16>
    %cst_74 = arith.constant dense<0.000000e+00> : vector<8x96xf32>
    %90 = tpu.matmul %89, %77, %cst_74 {dimension_numbers = #tpu.dot_dimension_numbers<[1], [0], [0], [1], [0, 0, 1, 1], [], []>} : vector<8x96xbf16>, vector<96x96xbf16>, vector<8x96xf32> -> vector<8x96xf32>
    %91 = arith.addf %31, %90 : vector<8x96xf32>
    %cst_75 = arith.constant dense<0.000000e+00> : vector<8x96xf32>
    %92 = tpu.matmul %89, %79, %cst_75 {dimension_numbers = #tpu.dot_dimension_numbers<[1], [0], [0], [1], [0, 0, 1, 1], [], []>} : vector<8x96xbf16>, vector<96x96xbf16>, vector<8x96xf32> -> vector<8x96xf32>
    %93 = arith.addf %33, %92 : vector<8x96xf32>
    %c0_76 = arith.constant 0 : index
    %c27_77 = arith.constant 27 : index
    %c0_78 = arith.constant 0 : index
    %94 = vector.load %arg0[%c0_76, %c27_77, %c0_78] : memref<2x36x96xf32, #tpu.memory_space<vmem>>, vector<1x8x96xf32>
    %95 = vector.shape_cast %94 : vector<1x8x96xf32> to vector<8x96xf32>
    %96 = arith.truncf %95 : vector<8x96xf32> to vector<8x96xbf16>
    %cst_79 = arith.constant dense<0.000000e+00> : vector<8x96xf32>
    %97 = tpu.matmul %96, %77, %cst_79 {dimension_numbers = #tpu.dot_dimension_numbers<[1], [0], [0], [1], [0, 0, 1, 1], [], []>} : vector<8x96xbf16>, vector<96x96xbf16>, vector<8x96xf32> -> vector<8x96xf32>
    %98 = arith.addf %38, %97 : vector<8x96xf32>
    %cst_80 = arith.constant dense<0.000000e+00> : vector<8x96xf32>
    %99 = tpu.matmul %96, %79, %cst_80 {dimension_numbers = #tpu.dot_dimension_numbers<[1], [0], [0], [1], [0, 0, 1, 1], [], []>} : vector<8x96xbf16>, vector<96x96xbf16>, vector<8x96xf32> -> vector<8x96xf32>
    %100 = arith.addf %40, %99 : vector<8x96xf32>
    %c0_81 = arith.constant 0 : index
    %c1_82 = arith.constant 1 : index
    %c0_83 = arith.constant 0 : index
    %101 = vector.load %arg0[%c0_81, %c1_82, %c0_83] : memref<2x36x96xf32, #tpu.memory_space<vmem>>, vector<1x8x96xf32>
    %102 = vector.shape_cast %101 : vector<1x8x96xf32> to vector<8x96xf32>
    %103 = arith.truncf %102 : vector<8x96xf32> to vector<8x96xbf16>
    %cst_84 = arith.constant dense<0.000000e+00> : vector<8x96xf32>
    %104 = tpu.matmul %103, %77, %cst_84 {dimension_numbers = #tpu.dot_dimension_numbers<[1], [0], [0], [1], [0, 0, 1, 1], [], []>} : vector<8x96xbf16>, vector<96x96xbf16>, vector<8x96xf32> -> vector<8x96xf32>
    %105 = arith.addf %45, %104 : vector<8x96xf32>
    %cst_85 = arith.constant dense<0.000000e+00> : vector<8x96xf32>
    %106 = tpu.matmul %103, %79, %cst_85 {dimension_numbers = #tpu.dot_dimension_numbers<[1], [0], [0], [1], [0, 0, 1, 1], [], []>} : vector<8x96xbf16>, vector<96x96xbf16>, vector<8x96xf32> -> vector<8x96xf32>
    %107 = arith.addf %47, %106 : vector<8x96xf32>
    %c1_86 = arith.constant 1 : index
    %c9_87 = arith.constant 9 : index
    %c0_88 = arith.constant 0 : index
    %108 = vector.load %arg0[%c1_86, %c9_87, %c0_88] : memref<2x36x96xf32, #tpu.memory_space<vmem>>, vector<1x8x96xf32>
    %109 = vector.shape_cast %108 : vector<1x8x96xf32> to vector<8x96xf32>
    %110 = arith.truncf %109 : vector<8x96xf32> to vector<8x96xbf16>
    %cst_89 = arith.constant dense<0.000000e+00> : vector<8x96xf32>
    %111 = tpu.matmul %110, %77, %cst_89 {dimension_numbers = #tpu.dot_dimension_numbers<[1], [0], [0], [1], [0, 0, 1, 1], [], []>} : vector<8x96xbf16>, vector<96x96xbf16>, vector<8x96xf32> -> vector<8x96xf32>
    %112 = arith.addf %52, %111 : vector<8x96xf32>
    %cst_90 = arith.constant dense<0.000000e+00> : vector<8x96xf32>
    %113 = tpu.matmul %110, %79, %cst_90 {dimension_numbers = #tpu.dot_dimension_numbers<[1], [0], [0], [1], [0, 0, 1, 1], [], []>} : vector<8x96xbf16>, vector<96x96xbf16>, vector<8x96xf32> -> vector<8x96xf32>
    %114 = arith.addf %54, %113 : vector<8x96xf32>
    %c1_91 = arith.constant 1 : index
    %c18_92 = arith.constant 18 : index
    %c0_93 = arith.constant 0 : index
    %115 = vector.load %arg0[%c1_91, %c18_92, %c0_93] : memref<2x36x96xf32, #tpu.memory_space<vmem>>, vector<1x8x96xf32>
    %116 = vector.shape_cast %115 : vector<1x8x96xf32> to vector<8x96xf32>
    %117 = arith.truncf %116 : vector<8x96xf32> to vector<8x96xbf16>
    %cst_94 = arith.constant dense<0.000000e+00> : vector<8x96xf32>
    %118 = tpu.matmul %117, %77, %cst_94 {dimension_numbers = #tpu.dot_dimension_numbers<[1], [0], [0], [1], [0, 0, 1, 1], [], []>} : vector<8x96xbf16>, vector<96x96xbf16>, vector<8x96xf32> -> vector<8x96xf32>
    %119 = arith.addf %59, %118 : vector<8x96xf32>
    %cst_95 = arith.constant dense<0.000000e+00> : vector<8x96xf32>
    %120 = tpu.matmul %117, %79, %cst_95 {dimension_numbers = #tpu.dot_dimension_numbers<[1], [0], [0], [1], [0, 0, 1, 1], [], []>} : vector<8x96xbf16>, vector<96x96xbf16>, vector<8x96xf32> -> vector<8x96xf32>
    %121 = arith.addf %61, %120 : vector<8x96xf32>
    %c1_96 = arith.constant 1 : index
    %c27_97 = arith.constant 27 : index
    %c0_98 = arith.constant 0 : index
    %122 = vector.load %arg0[%c1_96, %c27_97, %c0_98] : memref<2x36x96xf32, #tpu.memory_space<vmem>>, vector<1x8x96xf32>
    %123 = vector.shape_cast %122 : vector<1x8x96xf32> to vector<8x96xf32>
    %124 = arith.truncf %123 : vector<8x96xf32> to vector<8x96xbf16>
    %cst_99 = arith.constant dense<0.000000e+00> : vector<8x96xf32>
    %125 = tpu.matmul %124, %77, %cst_99 {dimension_numbers = #tpu.dot_dimension_numbers<[1], [0], [0], [1], [0, 0, 1, 1], [], []>} : vector<8x96xbf16>, vector<96x96xbf16>, vector<8x96xf32> -> vector<8x96xf32>
    %126 = arith.addf %66, %125 : vector<8x96xf32>
    %cst_100 = arith.constant dense<0.000000e+00> : vector<8x96xf32>
    %127 = tpu.matmul %124, %79, %cst_100 {dimension_numbers = #tpu.dot_dimension_numbers<[1], [0], [0], [1], [0, 0, 1, 1], [], []>} : vector<8x96xbf16>, vector<96x96xbf16>, vector<8x96xf32> -> vector<8x96xf32>
    %128 = arith.addf %68, %127 : vector<8x96xf32>
    %c1_101 = arith.constant 1 : index
    %c1_102 = arith.constant 1 : index
    %c0_103 = arith.constant 0 : index
    %129 = vector.load %arg0[%c1_101, %c1_102, %c0_103] : memref<2x36x96xf32, #tpu.memory_space<vmem>>, vector<1x8x96xf32>
    %130 = vector.shape_cast %129 : vector<1x8x96xf32> to vector<8x96xf32>
    %131 = arith.truncf %130 : vector<8x96xf32> to vector<8x96xbf16>
    %cst_104 = arith.constant dense<0.000000e+00> : vector<8x96xf32>
    %132 = tpu.matmul %131, %77, %cst_104 {dimension_numbers = #tpu.dot_dimension_numbers<[1], [0], [0], [1], [0, 0, 1, 1], [], []>} : vector<8x96xbf16>, vector<96x96xbf16>, vector<8x96xf32> -> vector<8x96xf32>
    %133 = arith.addf %73, %132 : vector<8x96xf32>
    %cst_105 = arith.constant dense<0.000000e+00> : vector<8x96xf32>
    %134 = tpu.matmul %131, %79, %cst_105 {dimension_numbers = #tpu.dot_dimension_numbers<[1], [0], [0], [1], [0, 0, 1, 1], [], []>} : vector<8x96xbf16>, vector<96x96xbf16>, vector<8x96xf32> -> vector<8x96xf32>
    %135 = arith.addf %75, %134 : vector<8x96xf32>
    %c2 = arith.constant 2 : index
    %c0_106 = arith.constant 0 : index
    %c0_107 = arith.constant 0 : index
    %c0_108 = arith.constant 0 : index
    %136 = vector.load %arg1[%c2, %c0_106, %c0_107, %c0_108] : memref<5x2x96x96xbf16, #tpu.memory_space<vmem>>, vector<1x1x96x96xbf16>
    %137 = vector.shape_cast %136 : vector<1x1x96x96xbf16> to vector<96x96xbf16>
    %c2_109 = arith.constant 2 : index
    %c1_110 = arith.constant 1 : index
    %c0_111 = arith.constant 0 : index
    %c0_112 = arith.constant 0 : index
    %138 = vector.load %arg1[%c2_109, %c1_110, %c0_111, %c0_112] : memref<5x2x96x96xbf16, #tpu.memory_space<vmem>>, vector<1x1x96x96xbf16>
    %139 = vector.shape_cast %138 : vector<1x1x96x96xbf16> to vector<96x96xbf16>
    %c0_113 = arith.constant 0 : index
    %c18_114 = arith.constant 18 : index
    %c0_115 = arith.constant 0 : index
    %140 = vector.load %arg0[%c0_113, %c18_114, %c0_115] : memref<2x36x96xf32, #tpu.memory_space<vmem>>, vector<1x8x96xf32>
    %141 = vector.shape_cast %140 : vector<1x8x96xf32> to vector<8x96xf32>
    %142 = arith.truncf %141 : vector<8x96xf32> to vector<8x96xbf16>
    %cst_116 = arith.constant dense<0.000000e+00> : vector<8x96xf32>
    %143 = tpu.matmul %142, %137, %cst_116 {dimension_numbers = #tpu.dot_dimension_numbers<[1], [0], [0], [1], [0, 0, 1, 1], [], []>} : vector<8x96xbf16>, vector<96x96xbf16>, vector<8x96xf32> -> vector<8x96xf32>
    %144 = arith.addf %84, %143 : vector<8x96xf32>
    %cst_117 = arith.constant dense<0.000000e+00> : vector<8x96xf32>
    %145 = tpu.matmul %142, %139, %cst_117 {dimension_numbers = #tpu.dot_dimension_numbers<[1], [0], [0], [1], [0, 0, 1, 1], [], []>} : vector<8x96xbf16>, vector<96x96xbf16>, vector<8x96xf32> -> vector<8x96xf32>
    %146 = arith.addf %86, %145 : vector<8x96xf32>
    %c0_118 = arith.constant 0 : index
    %c27_119 = arith.constant 27 : index
    %c0_120 = arith.constant 0 : index
    %147 = vector.load %arg0[%c0_118, %c27_119, %c0_120] : memref<2x36x96xf32, #tpu.memory_space<vmem>>, vector<1x8x96xf32>
    %148 = vector.shape_cast %147 : vector<1x8x96xf32> to vector<8x96xf32>
    %149 = arith.truncf %148 : vector<8x96xf32> to vector<8x96xbf16>
    %cst_121 = arith.constant dense<0.000000e+00> : vector<8x96xf32>
    %150 = tpu.matmul %149, %137, %cst_121 {dimension_numbers = #tpu.dot_dimension_numbers<[1], [0], [0], [1], [0, 0, 1, 1], [], []>} : vector<8x96xbf16>, vector<96x96xbf16>, vector<8x96xf32> -> vector<8x96xf32>
    %151 = arith.addf %91, %150 : vector<8x96xf32>
    %cst_122 = arith.constant dense<0.000000e+00> : vector<8x96xf32>
    %152 = tpu.matmul %149, %139, %cst_122 {dimension_numbers = #tpu.dot_dimension_numbers<[1], [0], [0], [1], [0, 0, 1, 1], [], []>} : vector<8x96xbf16>, vector<96x96xbf16>, vector<8x96xf32> -> vector<8x96xf32>
    %153 = arith.addf %93, %152 : vector<8x96xf32>
    %c0_123 = arith.constant 0 : index
    %c1_124 = arith.constant 1 : index
    %c0_125 = arith.constant 0 : index
    %154 = vector.load %arg0[%c0_123, %c1_124, %c0_125] : memref<2x36x96xf32, #tpu.memory_space<vmem>>, vector<1x8x96xf32>
    %155 = vector.shape_cast %154 : vector<1x8x96xf32> to vector<8x96xf32>
    %156 = arith.truncf %155 : vector<8x96xf32> to vector<8x96xbf16>
    %cst_126 = arith.constant dense<0.000000e+00> : vector<8x96xf32>
    %157 = tpu.matmul %156, %137, %cst_126 {dimension_numbers = #tpu.dot_dimension_numbers<[1], [0], [0], [1], [0, 0, 1, 1], [], []>} : vector<8x96xbf16>, vector<96x96xbf16>, vector<8x96xf32> -> vector<8x96xf32>
    %158 = arith.addf %98, %157 : vector<8x96xf32>
    %cst_127 = arith.constant dense<0.000000e+00> : vector<8x96xf32>
    %159 = tpu.matmul %156, %139, %cst_127 {dimension_numbers = #tpu.dot_dimension_numbers<[1], [0], [0], [1], [0, 0, 1, 1], [], []>} : vector<8x96xbf16>, vector<96x96xbf16>, vector<8x96xf32> -> vector<8x96xf32>
    %160 = arith.addf %100, %159 : vector<8x96xf32>
    %c0_128 = arith.constant 0 : index
    %c10 = arith.constant 10 : index
    %c0_129 = arith.constant 0 : index
    %161 = vector.load %arg0[%c0_128, %c10, %c0_129] : memref<2x36x96xf32, #tpu.memory_space<vmem>>, vector<1x8x96xf32>
    %162 = vector.shape_cast %161 : vector<1x8x96xf32> to vector<8x96xf32>
    %163 = arith.truncf %162 : vector<8x96xf32> to vector<8x96xbf16>
    %cst_130 = arith.constant dense<0.000000e+00> : vector<8x96xf32>
    %164 = tpu.matmul %163, %137, %cst_130 {dimension_numbers = #tpu.dot_dimension_numbers<[1], [0], [0], [1], [0, 0, 1, 1], [], []>} : vector<8x96xbf16>, vector<96x96xbf16>, vector<8x96xf32> -> vector<8x96xf32>
    %165 = arith.addf %105, %164 : vector<8x96xf32>
    %cst_131 = arith.constant dense<0.000000e+00> : vector<8x96xf32>
    %166 = tpu.matmul %163, %139, %cst_131 {dimension_numbers = #tpu.dot_dimension_numbers<[1], [0], [0], [1], [0, 0, 1, 1], [], []>} : vector<8x96xbf16>, vector<96x96xbf16>, vector<8x96xf32> -> vector<8x96xf32>
    %167 = arith.addf %107, %166 : vector<8x96xf32>
    %c1_132 = arith.constant 1 : index
    %c18_133 = arith.constant 18 : index
    %c0_134 = arith.constant 0 : index
    %168 = vector.load %arg0[%c1_132, %c18_133, %c0_134] : memref<2x36x96xf32, #tpu.memory_space<vmem>>, vector<1x8x96xf32>
    %169 = vector.shape_cast %168 : vector<1x8x96xf32> to vector<8x96xf32>
    %170 = arith.truncf %169 : vector<8x96xf32> to vector<8x96xbf16>
    %cst_135 = arith.constant dense<0.000000e+00> : vector<8x96xf32>
    %171 = tpu.matmul %170, %137, %cst_135 {dimension_numbers = #tpu.dot_dimension_numbers<[1], [0], [0], [1], [0, 0, 1, 1], [], []>} : vector<8x96xbf16>, vector<96x96xbf16>, vector<8x96xf32> -> vector<8x96xf32>
    %172 = arith.addf %112, %171 : vector<8x96xf32>
    %cst_136 = arith.constant dense<0.000000e+00> : vector<8x96xf32>
    %173 = tpu.matmul %170, %139, %cst_136 {dimension_numbers = #tpu.dot_dimension_numbers<[1], [0], [0], [1], [0, 0, 1, 1], [], []>} : vector<8x96xbf16>, vector<96x96xbf16>, vector<8x96xf32> -> vector<8x96xf32>
    %174 = arith.addf %114, %173 : vector<8x96xf32>
    %c1_137 = arith.constant 1 : index
    %c27_138 = arith.constant 27 : index
    %c0_139 = arith.constant 0 : index
    %175 = vector.load %arg0[%c1_137, %c27_138, %c0_139] : memref<2x36x96xf32, #tpu.memory_space<vmem>>, vector<1x8x96xf32>
    %176 = vector.shape_cast %175 : vector<1x8x96xf32> to vector<8x96xf32>
    %177 = arith.truncf %176 : vector<8x96xf32> to vector<8x96xbf16>
    %cst_140 = arith.constant dense<0.000000e+00> : vector<8x96xf32>
    %178 = tpu.matmul %177, %137, %cst_140 {dimension_numbers = #tpu.dot_dimension_numbers<[1], [0], [0], [1], [0, 0, 1, 1], [], []>} : vector<8x96xbf16>, vector<96x96xbf16>, vector<8x96xf32> -> vector<8x96xf32>
    %179 = arith.addf %119, %178 : vector<8x96xf32>
    %cst_141 = arith.constant dense<0.000000e+00> : vector<8x96xf32>
    %180 = tpu.matmul %177, %139, %cst_141 {dimension_numbers = #tpu.dot_dimension_numbers<[1], [0], [0], [1], [0, 0, 1, 1], [], []>} : vector<8x96xbf16>, vector<96x96xbf16>, vector<8x96xf32> -> vector<8x96xf32>
    %181 = arith.addf %121, %180 : vector<8x96xf32>
    %c1_142 = arith.constant 1 : index
    %c1_143 = arith.constant 1 : index
    %c0_144 = arith.constant 0 : index
    %182 = vector.load %arg0[%c1_142, %c1_143, %c0_144] : memref<2x36x96xf32, #tpu.memory_space<vmem>>, vector<1x8x96xf32>
    %183 = vector.shape_cast %182 : vector<1x8x96xf32> to vector<8x96xf32>
    %184 = arith.truncf %183 : vector<8x96xf32> to vector<8x96xbf16>
    %cst_145 = arith.constant dense<0.000000e+00> : vector<8x96xf32>
    %185 = tpu.matmul %184, %137, %cst_145 {dimension_numbers = #tpu.dot_dimension_numbers<[1], [0], [0], [1], [0, 0, 1, 1], [], []>} : vector<8x96xbf16>, vector<96x96xbf16>, vector<8x96xf32> -> vector<8x96xf32>
    %186 = arith.addf %126, %185 : vector<8x96xf32>
    %cst_146 = arith.constant dense<0.000000e+00> : vector<8x96xf32>
    %187 = tpu.matmul %184, %139, %cst_146 {dimension_numbers = #tpu.dot_dimension_numbers<[1], [0], [0], [1], [0, 0, 1, 1], [], []>} : vector<8x96xbf16>, vector<96x96xbf16>, vector<8x96xf32> -> vector<8x96xf32>
    %188 = arith.addf %128, %187 : vector<8x96xf32>
    %c1_147 = arith.constant 1 : index
    %c10_148 = arith.constant 10 : index
    %c0_149 = arith.constant 0 : index
    %189 = vector.load %arg0[%c1_147, %c10_148, %c0_149] : memref<2x36x96xf32, #tpu.memory_space<vmem>>, vector<1x8x96xf32>
    %190 = vector.shape_cast %189 : vector<1x8x96xf32> to vector<8x96xf32>
    %191 = arith.truncf %190 : vector<8x96xf32> to vector<8x96xbf16>
    %cst_150 = arith.constant dense<0.000000e+00> : vector<8x96xf32>
    %192 = tpu.matmul %191, %137, %cst_150 {dimension_numbers = #tpu.dot_dimension_numbers<[1], [0], [0], [1], [0, 0, 1, 1], [], []>} : vector<8x96xbf16>, vector<96x96xbf16>, vector<8x96xf32> -> vector<8x96xf32>
    %193 = arith.addf %133, %192 : vector<8x96xf32>
    %cst_151 = arith.constant dense<0.000000e+00> : vector<8x96xf32>
    %194 = tpu.matmul %191, %139, %cst_151 {dimension_numbers = #tpu.dot_dimension_numbers<[1], [0], [0], [1], [0, 0, 1, 1], [], []>} : vector<8x96xbf16>, vector<96x96xbf16>, vector<8x96xf32> -> vector<8x96xf32>
    %195 = arith.addf %135, %194 : vector<8x96xf32>
    %c3 = arith.constant 3 : index
    %c0_152 = arith.constant 0 : index
    %c0_153 = arith.constant 0 : index
    %c0_154 = arith.constant 0 : index
    %196 = vector.load %arg1[%c3, %c0_152, %c0_153, %c0_154] : memref<5x2x96x96xbf16, #tpu.memory_space<vmem>>, vector<1x1x96x96xbf16>
    %197 = vector.shape_cast %196 : vector<1x1x96x96xbf16> to vector<96x96xbf16>
    %c3_155 = arith.constant 3 : index
    %c1_156 = arith.constant 1 : index
    %c0_157 = arith.constant 0 : index
    %c0_158 = arith.constant 0 : index
    %198 = vector.load %arg1[%c3_155, %c1_156, %c0_157, %c0_158] : memref<5x2x96x96xbf16, #tpu.memory_space<vmem>>, vector<1x1x96x96xbf16>
    %199 = vector.shape_cast %198 : vector<1x1x96x96xbf16> to vector<96x96xbf16>
    %c0_159 = arith.constant 0 : index
    %c27_160 = arith.constant 27 : index
    %c0_161 = arith.constant 0 : index
    %200 = vector.load %arg0[%c0_159, %c27_160, %c0_161] : memref<2x36x96xf32, #tpu.memory_space<vmem>>, vector<1x8x96xf32>
    %201 = vector.shape_cast %200 : vector<1x8x96xf32> to vector<8x96xf32>
    %202 = arith.truncf %201 : vector<8x96xf32> to vector<8x96xbf16>
    %cst_162 = arith.constant dense<0.000000e+00> : vector<8x96xf32>
    %203 = tpu.matmul %202, %197, %cst_162 {dimension_numbers = #tpu.dot_dimension_numbers<[1], [0], [0], [1], [0, 0, 1, 1], [], []>} : vector<8x96xbf16>, vector<96x96xbf16>, vector<8x96xf32> -> vector<8x96xf32>
    %204 = arith.addf %144, %203 : vector<8x96xf32>
    %cst_163 = arith.constant dense<0.000000e+00> : vector<8x96xf32>
    %205 = tpu.matmul %202, %199, %cst_163 {dimension_numbers = #tpu.dot_dimension_numbers<[1], [0], [0], [1], [0, 0, 1, 1], [], []>} : vector<8x96xbf16>, vector<96x96xbf16>, vector<8x96xf32> -> vector<8x96xf32>
    %206 = arith.addf %146, %205 : vector<8x96xf32>
    %c0_164 = arith.constant 0 : index
    %c1_165 = arith.constant 1 : index
    %c0_166 = arith.constant 0 : index
    %207 = vector.load %arg0[%c0_164, %c1_165, %c0_166] : memref<2x36x96xf32, #tpu.memory_space<vmem>>, vector<1x8x96xf32>
    %208 = vector.shape_cast %207 : vector<1x8x96xf32> to vector<8x96xf32>
    %209 = arith.truncf %208 : vector<8x96xf32> to vector<8x96xbf16>
    %cst_167 = arith.constant dense<0.000000e+00> : vector<8x96xf32>
    %210 = tpu.matmul %209, %197, %cst_167 {dimension_numbers = #tpu.dot_dimension_numbers<[1], [0], [0], [1], [0, 0, 1, 1], [], []>} : vector<8x96xbf16>, vector<96x96xbf16>, vector<8x96xf32> -> vector<8x96xf32>
    %211 = arith.addf %151, %210 : vector<8x96xf32>
    %cst_168 = arith.constant dense<0.000000e+00> : vector<8x96xf32>
    %212 = tpu.matmul %209, %199, %cst_168 {dimension_numbers = #tpu.dot_dimension_numbers<[1], [0], [0], [1], [0, 0, 1, 1], [], []>} : vector<8x96xbf16>, vector<96x96xbf16>, vector<8x96xf32> -> vector<8x96xf32>
    %213 = arith.addf %153, %212 : vector<8x96xf32>
    %c0_169 = arith.constant 0 : index
    %c10_170 = arith.constant 10 : index
    %c0_171 = arith.constant 0 : index
    %214 = vector.load %arg0[%c0_169, %c10_170, %c0_171] : memref<2x36x96xf32, #tpu.memory_space<vmem>>, vector<1x8x96xf32>
    %215 = vector.shape_cast %214 : vector<1x8x96xf32> to vector<8x96xf32>
    %216 = arith.truncf %215 : vector<8x96xf32> to vector<8x96xbf16>
    %cst_172 = arith.constant dense<0.000000e+00> : vector<8x96xf32>
    %217 = tpu.matmul %216, %197, %cst_172 {dimension_numbers = #tpu.dot_dimension_numbers<[1], [0], [0], [1], [0, 0, 1, 1], [], []>} : vector<8x96xbf16>, vector<96x96xbf16>, vector<8x96xf32> -> vector<8x96xf32>
    %218 = arith.addf %158, %217 : vector<8x96xf32>
    %cst_173 = arith.constant dense<0.000000e+00> : vector<8x96xf32>
    %219 = tpu.matmul %216, %199, %cst_173 {dimension_numbers = #tpu.dot_dimension_numbers<[1], [0], [0], [1], [0, 0, 1, 1], [], []>} : vector<8x96xbf16>, vector<96x96xbf16>, vector<8x96xf32> -> vector<8x96xf32>
    %220 = arith.addf %160, %219 : vector<8x96xf32>
    %c0_174 = arith.constant 0 : index
    %c19 = arith.constant 19 : index
    %c0_175 = arith.constant 0 : index
    %221 = vector.load %arg0[%c0_174, %c19, %c0_175] : memref<2x36x96xf32, #tpu.memory_space<vmem>>, vector<1x8x96xf32>
    %222 = vector.shape_cast %221 : vector<1x8x96xf32> to vector<8x96xf32>
    %223 = arith.truncf %222 : vector<8x96xf32> to vector<8x96xbf16>
    %cst_176 = arith.constant dense<0.000000e+00> : vector<8x96xf32>
    %224 = tpu.matmul %223, %197, %cst_176 {dimension_numbers = #tpu.dot_dimension_numbers<[1], [0], [0], [1], [0, 0, 1, 1], [], []>} : vector<8x96xbf16>, vector<96x96xbf16>, vector<8x96xf32> -> vector<8x96xf32>
    %225 = arith.addf %165, %224 : vector<8x96xf32>
    %cst_177 = arith.constant dense<0.000000e+00> : vector<8x96xf32>
    %226 = tpu.matmul %223, %199, %cst_177 {dimension_numbers = #tpu.dot_dimension_numbers<[1], [0], [0], [1], [0, 0, 1, 1], [], []>} : vector<8x96xbf16>, vector<96x96xbf16>, vector<8x96xf32> -> vector<8x96xf32>
    %227 = arith.addf %167, %226 : vector<8x96xf32>
    %c1_178 = arith.constant 1 : index
    %c27_179 = arith.constant 27 : index
    %c0_180 = arith.constant 0 : index
    %228 = vector.load %arg0[%c1_178, %c27_179, %c0_180] : memref<2x36x96xf32, #tpu.memory_space<vmem>>, vector<1x8x96xf32>
    %229 = vector.shape_cast %228 : vector<1x8x96xf32> to vector<8x96xf32>
    %230 = arith.truncf %229 : vector<8x96xf32> to vector<8x96xbf16>
    %cst_181 = arith.constant dense<0.000000e+00> : vector<8x96xf32>
    %231 = tpu.matmul %230, %197, %cst_181 {dimension_numbers = #tpu.dot_dimension_numbers<[1], [0], [0], [1], [0, 0, 1, 1], [], []>} : vector<8x96xbf16>, vector<96x96xbf16>, vector<8x96xf32> -> vector<8x96xf32>
    %232 = arith.addf %172, %231 : vector<8x96xf32>
    %cst_182 = arith.constant dense<0.000000e+00> : vector<8x96xf32>
    %233 = tpu.matmul %230, %199, %cst_182 {dimension_numbers = #tpu.dot_dimension_numbers<[1], [0], [0], [1], [0, 0, 1, 1], [], []>} : vector<8x96xbf16>, vector<96x96xbf16>, vector<8x96xf32> -> vector<8x96xf32>
    %234 = arith.addf %174, %233 : vector<8x96xf32>
    %c1_183 = arith.constant 1 : index
    %c1_184 = arith.constant 1 : index
    %c0_185 = arith.constant 0 : index
    %235 = vector.load %arg0[%c1_183, %c1_184, %c0_185] : memref<2x36x96xf32, #tpu.memory_space<vmem>>, vector<1x8x96xf32>
    %236 = vector.shape_cast %235 : vector<1x8x96xf32> to vector<8x96xf32>
    %237 = arith.truncf %236 : vector<8x96xf32> to vector<8x96xbf16>
    %cst_186 = arith.constant dense<0.000000e+00> : vector<8x96xf32>
    %238 = tpu.matmul %237, %197, %cst_186 {dimension_numbers = #tpu.dot_dimension_numbers<[1], [0], [0], [1], [0, 0, 1, 1], [], []>} : vector<8x96xbf16>, vector<96x96xbf16>, vector<8x96xf32> -> vector<8x96xf32>
    %239 = arith.addf %179, %238 : vector<8x96xf32>
    %cst_187 = arith.constant dense<0.000000e+00> : vector<8x96xf32>
    %240 = tpu.matmul %237, %199, %cst_187 {dimension_numbers = #tpu.dot_dimension_numbers<[1], [0], [0], [1], [0, 0, 1, 1], [], []>} : vector<8x96xbf16>, vector<96x96xbf16>, vector<8x96xf32> -> vector<8x96xf32>
    %241 = arith.addf %181, %240 : vector<8x96xf32>
    %c1_188 = arith.constant 1 : index
    %c10_189 = arith.constant 10 : index
    %c0_190 = arith.constant 0 : index
    %242 = vector.load %arg0[%c1_188, %c10_189, %c0_190] : memref<2x36x96xf32, #tpu.memory_space<vmem>>, vector<1x8x96xf32>
    %243 = vector.shape_cast %242 : vector<1x8x96xf32> to vector<8x96xf32>
    %244 = arith.truncf %243 : vector<8x96xf32> to vector<8x96xbf16>
    %cst_191 = arith.constant dense<0.000000e+00> : vector<8x96xf32>
    %245 = tpu.matmul %244, %197, %cst_191 {dimension_numbers = #tpu.dot_dimension_numbers<[1], [0], [0], [1], [0, 0, 1, 1], [], []>} : vector<8x96xbf16>, vector<96x96xbf16>, vector<8x96xf32> -> vector<8x96xf32>
    %246 = arith.addf %186, %245 : vector<8x96xf32>
    %cst_192 = arith.constant dense<0.000000e+00> : vector<8x96xf32>
    %247 = tpu.matmul %244, %199, %cst_192 {dimension_numbers = #tpu.dot_dimension_numbers<[1], [0], [0], [1], [0, 0, 1, 1], [], []>} : vector<8x96xbf16>, vector<96x96xbf16>, vector<8x96xf32> -> vector<8x96xf32>
    %248 = arith.addf %188, %247 : vector<8x96xf32>
    %c1_193 = arith.constant 1 : index
    %c19_194 = arith.constant 19 : index
    %c0_195 = arith.constant 0 : index
    %249 = vector.load %arg0[%c1_193, %c19_194, %c0_195] : memref<2x36x96xf32, #tpu.memory_space<vmem>>, vector<1x8x96xf32>
    %250 = vector.shape_cast %249 : vector<1x8x96xf32> to vector<8x96xf32>
    %251 = arith.truncf %250 : vector<8x96xf32> to vector<8x96xbf16>
    %cst_196 = arith.constant dense<0.000000e+00> : vector<8x96xf32>
    %252 = tpu.matmul %251, %197, %cst_196 {dimension_numbers = #tpu.dot_dimension_numbers<[1], [0], [0], [1], [0, 0, 1, 1], [], []>} : vector<8x96xbf16>, vector<96x96xbf16>, vector<8x96xf32> -> vector<8x96xf32>
    %253 = arith.addf %193, %252 : vector<8x96xf32>
    %cst_197 = arith.constant dense<0.000000e+00> : vector<8x96xf32>
    %254 = tpu.matmul %251, %199, %cst_197 {dimension_numbers = #tpu.dot_dimension_numbers<[1], [0], [0], [1], [0, 0, 1, 1], [], []>} : vector<8x96xbf16>, vector<96x96xbf16>, vector<8x96xf32> -> vector<8x96xf32>
    %255 = arith.addf %195, %254 : vector<8x96xf32>
    %c4 = arith.constant 4 : index
    %c0_198 = arith.constant 0 : index
    %c0_199 = arith.constant 0 : index
    %c0_200 = arith.constant 0 : index
    %256 = vector.load %arg1[%c4, %c0_198, %c0_199, %c0_200] : memref<5x2x96x96xbf16, #tpu.memory_space<vmem>>, vector<1x1x96x96xbf16>
    %257 = vector.shape_cast %256 : vector<1x1x96x96xbf16> to vector<96x96xbf16>
    %c4_201 = arith.constant 4 : index
    %c1_202 = arith.constant 1 : index
    %c0_203 = arith.constant 0 : index
    %c0_204 = arith.constant 0 : index
    %258 = vector.load %arg1[%c4_201, %c1_202, %c0_203, %c0_204] : memref<5x2x96x96xbf16, #tpu.memory_space<vmem>>, vector<1x1x96x96xbf16>
    %259 = vector.shape_cast %258 : vector<1x1x96x96xbf16> to vector<96x96xbf16>
    %c0_205 = arith.constant 0 : index
    %c1_206 = arith.constant 1 : index
    %c0_207 = arith.constant 0 : index
    %260 = vector.load %arg0[%c0_205, %c1_206, %c0_207] : memref<2x36x96xf32, #tpu.memory_space<vmem>>, vector<1x8x96xf32>
    %261 = vector.shape_cast %260 : vector<1x8x96xf32> to vector<8x96xf32>
    %262 = arith.truncf %261 : vector<8x96xf32> to vector<8x96xbf16>
    %cst_208 = arith.constant dense<0.000000e+00> : vector<8x96xf32>
    %263 = tpu.matmul %262, %257, %cst_208 {dimension_numbers = #tpu.dot_dimension_numbers<[1], [0], [0], [1], [0, 0, 1, 1], [], []>} : vector<8x96xbf16>, vector<96x96xbf16>, vector<8x96xf32> -> vector<8x96xf32>
    %264 = arith.addf %204, %263 : vector<8x96xf32>
    %cst_209 = arith.constant dense<0.000000e+00> : vector<8x96xf32>
    %265 = tpu.matmul %262, %259, %cst_209 {dimension_numbers = #tpu.dot_dimension_numbers<[1], [0], [0], [1], [0, 0, 1, 1], [], []>} : vector<8x96xbf16>, vector<96x96xbf16>, vector<8x96xf32> -> vector<8x96xf32>
    %266 = arith.addf %206, %265 : vector<8x96xf32>
    %c0_210 = arith.constant 0 : index
    %c10_211 = arith.constant 10 : index
    %c0_212 = arith.constant 0 : index
    %267 = vector.load %arg0[%c0_210, %c10_211, %c0_212] : memref<2x36x96xf32, #tpu.memory_space<vmem>>, vector<1x8x96xf32>
    %268 = vector.shape_cast %267 : vector<1x8x96xf32> to vector<8x96xf32>
    %269 = arith.truncf %268 : vector<8x96xf32> to vector<8x96xbf16>
    %cst_213 = arith.constant dense<0.000000e+00> : vector<8x96xf32>
    %270 = tpu.matmul %269, %257, %cst_213 {dimension_numbers = #tpu.dot_dimension_numbers<[1], [0], [0], [1], [0, 0, 1, 1], [], []>} : vector<8x96xbf16>, vector<96x96xbf16>, vector<8x96xf32> -> vector<8x96xf32>
    %271 = arith.addf %211, %270 : vector<8x96xf32>
    %cst_214 = arith.constant dense<0.000000e+00> : vector<8x96xf32>
    %272 = tpu.matmul %269, %259, %cst_214 {dimension_numbers = #tpu.dot_dimension_numbers<[1], [0], [0], [1], [0, 0, 1, 1], [], []>} : vector<8x96xbf16>, vector<96x96xbf16>, vector<8x96xf32> -> vector<8x96xf32>
    %273 = arith.addf %213, %272 : vector<8x96xf32>
    %c0_215 = arith.constant 0 : index
    %c19_216 = arith.constant 19 : index
    %c0_217 = arith.constant 0 : index
    %274 = vector.load %arg0[%c0_215, %c19_216, %c0_217] : memref<2x36x96xf32, #tpu.memory_space<vmem>>, vector<1x8x96xf32>
    %275 = vector.shape_cast %274 : vector<1x8x96xf32> to vector<8x96xf32>
    %276 = arith.truncf %275 : vector<8x96xf32> to vector<8x96xbf16>
    %cst_218 = arith.constant dense<0.000000e+00> : vector<8x96xf32>
    %277 = tpu.matmul %276, %257, %cst_218 {dimension_numbers = #tpu.dot_dimension_numbers<[1], [0], [0], [1], [0, 0, 1, 1], [], []>} : vector<8x96xbf16>, vector<96x96xbf16>, vector<8x96xf32> -> vector<8x96xf32>
    %278 = arith.addf %218, %277 : vector<8x96xf32>
    %cst_219 = arith.constant dense<0.000000e+00> : vector<8x96xf32>
    %279 = tpu.matmul %276, %259, %cst_219 {dimension_numbers = #tpu.dot_dimension_numbers<[1], [0], [0], [1], [0, 0, 1, 1], [], []>} : vector<8x96xbf16>, vector<96x96xbf16>, vector<8x96xf32> -> vector<8x96xf32>
    %280 = arith.addf %220, %279 : vector<8x96xf32>
    %c0_220 = arith.constant 0 : index
    %c28 = arith.constant 28 : index
    %c0_221 = arith.constant 0 : index
    %281 = vector.load %arg0[%c0_220, %c28, %c0_221] : memref<2x36x96xf32, #tpu.memory_space<vmem>>, vector<1x8x96xf32>
    %282 = vector.shape_cast %281 : vector<1x8x96xf32> to vector<8x96xf32>
    %283 = arith.truncf %282 : vector<8x96xf32> to vector<8x96xbf16>
    %cst_222 = arith.constant dense<0.000000e+00> : vector<8x96xf32>
    %284 = tpu.matmul %283, %257, %cst_222 {dimension_numbers = #tpu.dot_dimension_numbers<[1], [0], [0], [1], [0, 0, 1, 1], [], []>} : vector<8x96xbf16>, vector<96x96xbf16>, vector<8x96xf32> -> vector<8x96xf32>
    %285 = arith.addf %225, %284 : vector<8x96xf32>
    %cst_223 = arith.constant dense<0.000000e+00> : vector<8x96xf32>
    %286 = tpu.matmul %283, %259, %cst_223 {dimension_numbers = #tpu.dot_dimension_numbers<[1], [0], [0], [1], [0, 0, 1, 1], [], []>} : vector<8x96xbf16>, vector<96x96xbf16>, vector<8x96xf32> -> vector<8x96xf32>
    %287 = arith.addf %227, %286 : vector<8x96xf32>
    %c1_224 = arith.constant 1 : index
    %c1_225 = arith.constant 1 : index
    %c0_226 = arith.constant 0 : index
    %288 = vector.load %arg0[%c1_224, %c1_225, %c0_226] : memref<2x36x96xf32, #tpu.memory_space<vmem>>, vector<1x8x96xf32>
    %289 = vector.shape_cast %288 : vector<1x8x96xf32> to vector<8x96xf32>
    %290 = arith.truncf %289 : vector<8x96xf32> to vector<8x96xbf16>
    %cst_227 = arith.constant dense<0.000000e+00> : vector<8x96xf32>
    %291 = tpu.matmul %290, %257, %cst_227 {dimension_numbers = #tpu.dot_dimension_numbers<[1], [0], [0], [1], [0, 0, 1, 1], [], []>} : vector<8x96xbf16>, vector<96x96xbf16>, vector<8x96xf32> -> vector<8x96xf32>
    %292 = arith.addf %232, %291 : vector<8x96xf32>
    %cst_228 = arith.constant dense<0.000000e+00> : vector<8x96xf32>
    %293 = tpu.matmul %290, %259, %cst_228 {dimension_numbers = #tpu.dot_dimension_numbers<[1], [0], [0], [1], [0, 0, 1, 1], [], []>} : vector<8x96xbf16>, vector<96x96xbf16>, vector<8x96xf32> -> vector<8x96xf32>
    %294 = arith.addf %234, %293 : vector<8x96xf32>
    %c1_229 = arith.constant 1 : index
    %c10_230 = arith.constant 10 : index
    %c0_231 = arith.constant 0 : index
    %295 = vector.load %arg0[%c1_229, %c10_230, %c0_231] : memref<2x36x96xf32, #tpu.memory_space<vmem>>, vector<1x8x96xf32>
    %296 = vector.shape_cast %295 : vector<1x8x96xf32> to vector<8x96xf32>
    %297 = arith.truncf %296 : vector<8x96xf32> to vector<8x96xbf16>
    %cst_232 = arith.constant dense<0.000000e+00> : vector<8x96xf32>
    %298 = tpu.matmul %297, %257, %cst_232 {dimension_numbers = #tpu.dot_dimension_numbers<[1], [0], [0], [1], [0, 0, 1, 1], [], []>} : vector<8x96xbf16>, vector<96x96xbf16>, vector<8x96xf32> -> vector<8x96xf32>
    %299 = arith.addf %239, %298 : vector<8x96xf32>
    %cst_233 = arith.constant dense<0.000000e+00> : vector<8x96xf32>
    %300 = tpu.matmul %297, %259, %cst_233 {dimension_numbers = #tpu.dot_dimension_numbers<[1], [0], [0], [1], [0, 0, 1, 1], [], []>} : vector<8x96xbf16>, vector<96x96xbf16>, vector<8x96xf32> -> vector<8x96xf32>
    %301 = arith.addf %241, %300 : vector<8x96xf32>
    %c1_234 = arith.constant 1 : index
    %c19_235 = arith.constant 19 : index
    %c0_236 = arith.constant 0 : index
    %302 = vector.load %arg0[%c1_234, %c19_235, %c0_236] : memref<2x36x96xf32, #tpu.memory_space<vmem>>, vector<1x8x96xf32>
    %303 = vector.shape_cast %302 : vector<1x8x96xf32> to vector<8x96xf32>
    %304 = arith.truncf %303 : vector<8x96xf32> to vector<8x96xbf16>
    %cst_237 = arith.constant dense<0.000000e+00> : vector<8x96xf32>
    %305 = tpu.matmul %304, %257, %cst_237 {dimension_numbers = #tpu.dot_dimension_numbers<[1], [0], [0], [1], [0, 0, 1, 1], [], []>} : vector<8x96xbf16>, vector<96x96xbf16>, vector<8x96xf32> -> vector<8x96xf32>
    %306 = arith.addf %246, %305 : vector<8x96xf32>
    %cst_238 = arith.constant dense<0.000000e+00> : vector<8x96xf32>
    %307 = tpu.matmul %304, %259, %cst_238 {dimension_numbers = #tpu.dot_dimension_numbers<[1], [0], [0], [1], [0, 0, 1, 1], [], []>} : vector<8x96xbf16>, vector<96x96xbf16>, vector<8x96xf32> -> vector<8x96xf32>
    %308 = arith.addf %248, %307 : vector<8x96xf32>
    %c1_239 = arith.constant 1 : index
    %c28_240 = arith.constant 28 : index
    %c0_241 = arith.constant 0 : index
    %309 = vector.load %arg0[%c1_239, %c28_240, %c0_241] : memref<2x36x96xf32, #tpu.memory_space<vmem>>, vector<1x8x96xf32>
    %310 = vector.shape_cast %309 : vector<1x8x96xf32> to vector<8x96xf32>
    %311 = arith.truncf %310 : vector<8x96xf32> to vector<8x96xbf16>
    %cst_242 = arith.constant dense<0.000000e+00> : vector<8x96xf32>
    %312 = tpu.matmul %311, %257, %cst_242 {dimension_numbers = #tpu.dot_dimension_numbers<[1], [0], [0], [1], [0, 0, 1, 1], [], []>} : vector<8x96xbf16>, vector<96x96xbf16>, vector<8x96xf32> -> vector<8x96xf32>
    %313 = arith.addf %253, %312 : vector<8x96xf32>
    %cst_243 = arith.constant dense<0.000000e+00> : vector<8x96xf32>
    %314 = tpu.matmul %311, %259, %cst_243 {dimension_numbers = #tpu.dot_dimension_numbers<[1], [0], [0], [1], [0, 0, 1, 1], [], []>} : vector<8x96xbf16>, vector<96x96xbf16>, vector<8x96xf32> -> vector<8x96xf32>
    %315 = arith.addf %255, %314 : vector<8x96xf32>
    %c0_244 = arith.constant 0 : index
    %c0_245 = arith.constant 0 : index
    %316 = vector.load %arg2[%c0_244, %c0_245] : memref<1x96xf32, #tpu.memory_space<vmem>>, vector<1x96xf32>
    %cst_246 = arith.constant 0.000000e+00 : f32
    %317 = vector.broadcast %cst_246 : f32 to vector<1x96xf32>
    %cst_247 = arith.constant 0.000000e+00 : f32
    %318 = vector.broadcast %cst_247 : f32 to vector<1x96xf32>
    %319 = vector.broadcast %316 : vector<1x96xf32> to vector<8x96xf32>
    %320 = arith.addf %264, %319 : vector<8x96xf32>
    %cst_248 = arith.constant 0.000000e+00 : f32
    %321 = vector.broadcast %cst_248 : f32 to vector<8x96xf32>
    %322 = arith.maximumf %320, %321 : vector<8x96xf32>
    %cst_249 = arith.constant dense<0.000000e+00> : vector<96xf32>
    %323 = vector.multi_reduction <add>, %322, %cst_249 [0] : vector<8x96xf32> to vector<96xf32>
    %324 = vector.shape_cast %323 : vector<96xf32> to vector<1x96xf32>
    %325 = arith.addf %317, %324 : vector<1x96xf32>
    %326 = arith.mulf %322, %322 : vector<8x96xf32>
    %cst_250 = arith.constant dense<0.000000e+00> : vector<96xf32>
    %327 = vector.multi_reduction <add>, %326, %cst_250 [0] : vector<8x96xf32> to vector<96xf32>
    %328 = vector.shape_cast %327 : vector<96xf32> to vector<1x96xf32>
    %329 = arith.addf %318, %328 : vector<1x96xf32>
    %330 = vector.broadcast %316 : vector<1x96xf32> to vector<8x96xf32>
    %331 = arith.addf %266, %330 : vector<8x96xf32>
    %cst_251 = arith.constant 0.000000e+00 : f32
    %332 = vector.broadcast %cst_251 : f32 to vector<8x96xf32>
    %333 = arith.maximumf %331, %332 : vector<8x96xf32>
    %cst_252 = arith.constant dense<0.000000e+00> : vector<96xf32>
    %334 = vector.multi_reduction <add>, %333, %cst_252 [0] : vector<8x96xf32> to vector<96xf32>
    %335 = vector.shape_cast %334 : vector<96xf32> to vector<1x96xf32>
    %336 = arith.addf %325, %335 : vector<1x96xf32>
    %337 = arith.mulf %333, %333 : vector<8x96xf32>
    %cst_253 = arith.constant dense<0.000000e+00> : vector<96xf32>
    %338 = vector.multi_reduction <add>, %337, %cst_253 [0] : vector<8x96xf32> to vector<96xf32>
    %339 = vector.shape_cast %338 : vector<96xf32> to vector<1x96xf32>
    %340 = arith.addf %329, %339 : vector<1x96xf32>
    %341 = vector.broadcast %316 : vector<1x96xf32> to vector<8x96xf32>
    %342 = arith.addf %271, %341 : vector<8x96xf32>
    %cst_254 = arith.constant 0.000000e+00 : f32
    %343 = vector.broadcast %cst_254 : f32 to vector<8x96xf32>
    %344 = arith.maximumf %342, %343 : vector<8x96xf32>
    %cst_255 = arith.constant dense<0.000000e+00> : vector<96xf32>
    %345 = vector.multi_reduction <add>, %344, %cst_255 [0] : vector<8x96xf32> to vector<96xf32>
    %346 = vector.shape_cast %345 : vector<96xf32> to vector<1x96xf32>
    %347 = arith.addf %336, %346 : vector<1x96xf32>
    %348 = arith.mulf %344, %344 : vector<8x96xf32>
    %cst_256 = arith.constant dense<0.000000e+00> : vector<96xf32>
    %349 = vector.multi_reduction <add>, %348, %cst_256 [0] : vector<8x96xf32> to vector<96xf32>
    %350 = vector.shape_cast %349 : vector<96xf32> to vector<1x96xf32>
    %351 = arith.addf %340, %350 : vector<1x96xf32>
    %352 = vector.broadcast %316 : vector<1x96xf32> to vector<8x96xf32>
    %353 = arith.addf %273, %352 : vector<8x96xf32>
    %cst_257 = arith.constant 0.000000e+00 : f32
    %354 = vector.broadcast %cst_257 : f32 to vector<8x96xf32>
    %355 = arith.maximumf %353, %354 : vector<8x96xf32>
    %cst_258 = arith.constant dense<0.000000e+00> : vector<96xf32>
    %356 = vector.multi_reduction <add>, %355, %cst_258 [0] : vector<8x96xf32> to vector<96xf32>
    %357 = vector.shape_cast %356 : vector<96xf32> to vector<1x96xf32>
    %358 = arith.addf %347, %357 : vector<1x96xf32>
    %359 = arith.mulf %355, %355 : vector<8x96xf32>
    %cst_259 = arith.constant dense<0.000000e+00> : vector<96xf32>
    %360 = vector.multi_reduction <add>, %359, %cst_259 [0] : vector<8x96xf32> to vector<96xf32>
    %361 = vector.shape_cast %360 : vector<96xf32> to vector<1x96xf32>
    %362 = arith.addf %351, %361 : vector<1x96xf32>
    %363 = vector.broadcast %316 : vector<1x96xf32> to vector<8x96xf32>
    %364 = arith.addf %278, %363 : vector<8x96xf32>
    %cst_260 = arith.constant 0.000000e+00 : f32
    %365 = vector.broadcast %cst_260 : f32 to vector<8x96xf32>
    %366 = arith.maximumf %364, %365 : vector<8x96xf32>
    %cst_261 = arith.constant dense<0.000000e+00> : vector<96xf32>
    %367 = vector.multi_reduction <add>, %366, %cst_261 [0] : vector<8x96xf32> to vector<96xf32>
    %368 = vector.shape_cast %367 : vector<96xf32> to vector<1x96xf32>
    %369 = arith.addf %358, %368 : vector<1x96xf32>
    %370 = arith.mulf %366, %366 : vector<8x96xf32>
    %cst_262 = arith.constant dense<0.000000e+00> : vector<96xf32>
    %371 = vector.multi_reduction <add>, %370, %cst_262 [0] : vector<8x96xf32> to vector<96xf32>
    %372 = vector.shape_cast %371 : vector<96xf32> to vector<1x96xf32>
    %373 = arith.addf %362, %372 : vector<1x96xf32>
    %374 = vector.broadcast %316 : vector<1x96xf32> to vector<8x96xf32>
    %375 = arith.addf %280, %374 : vector<8x96xf32>
    %cst_263 = arith.constant 0.000000e+00 : f32
    %376 = vector.broadcast %cst_263 : f32 to vector<8x96xf32>
    %377 = arith.maximumf %375, %376 : vector<8x96xf32>
    %cst_264 = arith.constant dense<0.000000e+00> : vector<96xf32>
    %378 = vector.multi_reduction <add>, %377, %cst_264 [0] : vector<8x96xf32> to vector<96xf32>
    %379 = vector.shape_cast %378 : vector<96xf32> to vector<1x96xf32>
    %380 = arith.addf %369, %379 : vector<1x96xf32>
    %381 = arith.mulf %377, %377 : vector<8x96xf32>
    %cst_265 = arith.constant dense<0.000000e+00> : vector<96xf32>
    %382 = vector.multi_reduction <add>, %381, %cst_265 [0] : vector<8x96xf32> to vector<96xf32>
    %383 = vector.shape_cast %382 : vector<96xf32> to vector<1x96xf32>
    %384 = arith.addf %373, %383 : vector<1x96xf32>
    %385 = vector.broadcast %316 : vector<1x96xf32> to vector<8x96xf32>
    %386 = arith.addf %285, %385 : vector<8x96xf32>
    %cst_266 = arith.constant 0.000000e+00 : f32
    %387 = vector.broadcast %cst_266 : f32 to vector<8x96xf32>
    %388 = arith.maximumf %386, %387 : vector<8x96xf32>
    %cst_267 = arith.constant dense<0.000000e+00> : vector<96xf32>
    %389 = vector.multi_reduction <add>, %388, %cst_267 [0] : vector<8x96xf32> to vector<96xf32>
    %390 = vector.shape_cast %389 : vector<96xf32> to vector<1x96xf32>
    %391 = arith.addf %380, %390 : vector<1x96xf32>
    %392 = arith.mulf %388, %388 : vector<8x96xf32>
    %cst_268 = arith.constant dense<0.000000e+00> : vector<96xf32>
    %393 = vector.multi_reduction <add>, %392, %cst_268 [0] : vector<8x96xf32> to vector<96xf32>
    %394 = vector.shape_cast %393 : vector<96xf32> to vector<1x96xf32>
    %395 = arith.addf %384, %394 : vector<1x96xf32>
    %396 = vector.broadcast %316 : vector<1x96xf32> to vector<8x96xf32>
    %397 = arith.addf %287, %396 : vector<8x96xf32>
    %cst_269 = arith.constant 0.000000e+00 : f32
    %398 = vector.broadcast %cst_269 : f32 to vector<8x96xf32>
    %399 = arith.maximumf %397, %398 : vector<8x96xf32>
    %cst_270 = arith.constant dense<0.000000e+00> : vector<96xf32>
    %400 = vector.multi_reduction <add>, %399, %cst_270 [0] : vector<8x96xf32> to vector<96xf32>
    %401 = vector.shape_cast %400 : vector<96xf32> to vector<1x96xf32>
    %402 = arith.addf %391, %401 : vector<1x96xf32>
    %403 = arith.mulf %399, %399 : vector<8x96xf32>
    %cst_271 = arith.constant dense<0.000000e+00> : vector<96xf32>
    %404 = vector.multi_reduction <add>, %403, %cst_271 [0] : vector<8x96xf32> to vector<96xf32>
    %405 = vector.shape_cast %404 : vector<96xf32> to vector<1x96xf32>
    %406 = arith.addf %395, %405 : vector<1x96xf32>
    %407 = vector.broadcast %316 : vector<1x96xf32> to vector<8x96xf32>
    %408 = arith.addf %292, %407 : vector<8x96xf32>
    %cst_272 = arith.constant 0.000000e+00 : f32
    %409 = vector.broadcast %cst_272 : f32 to vector<8x96xf32>
    %410 = arith.maximumf %408, %409 : vector<8x96xf32>
    %cst_273 = arith.constant dense<0.000000e+00> : vector<96xf32>
    %411 = vector.multi_reduction <add>, %410, %cst_273 [0] : vector<8x96xf32> to vector<96xf32>
    %412 = vector.shape_cast %411 : vector<96xf32> to vector<1x96xf32>
    %413 = arith.addf %402, %412 : vector<1x96xf32>
    %414 = arith.mulf %410, %410 : vector<8x96xf32>
    %cst_274 = arith.constant dense<0.000000e+00> : vector<96xf32>
    %415 = vector.multi_reduction <add>, %414, %cst_274 [0] : vector<8x96xf32> to vector<96xf32>
    %416 = vector.shape_cast %415 : vector<96xf32> to vector<1x96xf32>
    %417 = arith.addf %406, %416 : vector<1x96xf32>
    %418 = vector.broadcast %316 : vector<1x96xf32> to vector<8x96xf32>
    %419 = arith.addf %294, %418 : vector<8x96xf32>
    %cst_275 = arith.constant 0.000000e+00 : f32
    %420 = vector.broadcast %cst_275 : f32 to vector<8x96xf32>
    %421 = arith.maximumf %419, %420 : vector<8x96xf32>
    %cst_276 = arith.constant dense<0.000000e+00> : vector<96xf32>
    %422 = vector.multi_reduction <add>, %421, %cst_276 [0] : vector<8x96xf32> to vector<96xf32>
    %423 = vector.shape_cast %422 : vector<96xf32> to vector<1x96xf32>
    %424 = arith.addf %413, %423 : vector<1x96xf32>
    %425 = arith.mulf %421, %421 : vector<8x96xf32>
    %cst_277 = arith.constant dense<0.000000e+00> : vector<96xf32>
    %426 = vector.multi_reduction <add>, %425, %cst_277 [0] : vector<8x96xf32> to vector<96xf32>
    %427 = vector.shape_cast %426 : vector<96xf32> to vector<1x96xf32>
    %428 = arith.addf %417, %427 : vector<1x96xf32>
    %429 = vector.broadcast %316 : vector<1x96xf32> to vector<8x96xf32>
    %430 = arith.addf %299, %429 : vector<8x96xf32>
    %cst_278 = arith.constant 0.000000e+00 : f32
    %431 = vector.broadcast %cst_278 : f32 to vector<8x96xf32>
    %432 = arith.maximumf %430, %431 : vector<8x96xf32>
    %cst_279 = arith.constant dense<0.000000e+00> : vector<96xf32>
    %433 = vector.multi_reduction <add>, %432, %cst_279 [0] : vector<8x96xf32> to vector<96xf32>
    %434 = vector.shape_cast %433 : vector<96xf32> to vector<1x96xf32>
    %435 = arith.addf %424, %434 : vector<1x96xf32>
    %436 = arith.mulf %432, %432 : vector<8x96xf32>
    %cst_280 = arith.constant dense<0.000000e+00> : vector<96xf32>
    %437 = vector.multi_reduction <add>, %436, %cst_280 [0] : vector<8x96xf32> to vector<96xf32>
    %438 = vector.shape_cast %437 : vector<96xf32> to vector<1x96xf32>
    %439 = arith.addf %428, %438 : vector<1x96xf32>
    %440 = vector.broadcast %316 : vector<1x96xf32> to vector<8x96xf32>
    %441 = arith.addf %301, %440 : vector<8x96xf32>
    %cst_281 = arith.constant 0.000000e+00 : f32
    %442 = vector.broadcast %cst_281 : f32 to vector<8x96xf32>
    %443 = arith.maximumf %441, %442 : vector<8x96xf32>
    %cst_282 = arith.constant dense<0.000000e+00> : vector<96xf32>
    %444 = vector.multi_reduction <add>, %443, %cst_282 [0] : vector<8x96xf32> to vector<96xf32>
    %445 = vector.shape_cast %444 : vector<96xf32> to vector<1x96xf32>
    %446 = arith.addf %435, %445 : vector<1x96xf32>
    %447 = arith.mulf %443, %443 : vector<8x96xf32>
    %cst_283 = arith.constant dense<0.000000e+00> : vector<96xf32>
    %448 = vector.multi_reduction <add>, %447, %cst_283 [0] : vector<8x96xf32> to vector<96xf32>
    %449 = vector.shape_cast %448 : vector<96xf32> to vector<1x96xf32>
    %450 = arith.addf %439, %449 : vector<1x96xf32>
    %451 = vector.broadcast %316 : vector<1x96xf32> to vector<8x96xf32>
    %452 = arith.addf %306, %451 : vector<8x96xf32>
    %cst_284 = arith.constant 0.000000e+00 : f32
    %453 = vector.broadcast %cst_284 : f32 to vector<8x96xf32>
    %454 = arith.maximumf %452, %453 : vector<8x96xf32>
    %cst_285 = arith.constant dense<0.000000e+00> : vector<96xf32>
    %455 = vector.multi_reduction <add>, %454, %cst_285 [0] : vector<8x96xf32> to vector<96xf32>
    %456 = vector.shape_cast %455 : vector<96xf32> to vector<1x96xf32>
    %457 = arith.addf %446, %456 : vector<1x96xf32>
    %458 = arith.mulf %454, %454 : vector<8x96xf32>
    %cst_286 = arith.constant dense<0.000000e+00> : vector<96xf32>
    %459 = vector.multi_reduction <add>, %458, %cst_286 [0] : vector<8x96xf32> to vector<96xf32>
    %460 = vector.shape_cast %459 : vector<96xf32> to vector<1x96xf32>
    %461 = arith.addf %450, %460 : vector<1x96xf32>
    %462 = vector.broadcast %316 : vector<1x96xf32> to vector<8x96xf32>
    %463 = arith.addf %308, %462 : vector<8x96xf32>
    %cst_287 = arith.constant 0.000000e+00 : f32
    %464 = vector.broadcast %cst_287 : f32 to vector<8x96xf32>
    %465 = arith.maximumf %463, %464 : vector<8x96xf32>
    %cst_288 = arith.constant dense<0.000000e+00> : vector<96xf32>
    %466 = vector.multi_reduction <add>, %465, %cst_288 [0] : vector<8x96xf32> to vector<96xf32>
    %467 = vector.shape_cast %466 : vector<96xf32> to vector<1x96xf32>
    %468 = arith.addf %457, %467 : vector<1x96xf32>
    %469 = arith.mulf %465, %465 : vector<8x96xf32>
    %cst_289 = arith.constant dense<0.000000e+00> : vector<96xf32>
    %470 = vector.multi_reduction <add>, %469, %cst_289 [0] : vector<8x96xf32> to vector<96xf32>
    %471 = vector.shape_cast %470 : vector<96xf32> to vector<1x96xf32>
    %472 = arith.addf %461, %471 : vector<1x96xf32>
    %473 = vector.broadcast %316 : vector<1x96xf32> to vector<8x96xf32>
    %474 = arith.addf %313, %473 : vector<8x96xf32>
    %cst_290 = arith.constant 0.000000e+00 : f32
    %475 = vector.broadcast %cst_290 : f32 to vector<8x96xf32>
    %476 = arith.maximumf %474, %475 : vector<8x96xf32>
    %cst_291 = arith.constant dense<0.000000e+00> : vector<96xf32>
    %477 = vector.multi_reduction <add>, %476, %cst_291 [0] : vector<8x96xf32> to vector<96xf32>
    %478 = vector.shape_cast %477 : vector<96xf32> to vector<1x96xf32>
    %479 = arith.addf %468, %478 : vector<1x96xf32>
    %480 = arith.mulf %476, %476 : vector<8x96xf32>
    %cst_292 = arith.constant dense<0.000000e+00> : vector<96xf32>
    %481 = vector.multi_reduction <add>, %480, %cst_292 [0] : vector<8x96xf32> to vector<96xf32>
    %482 = vector.shape_cast %481 : vector<96xf32> to vector<1x96xf32>
    %483 = arith.addf %472, %482 : vector<1x96xf32>
    %484 = vector.broadcast %316 : vector<1x96xf32> to vector<8x96xf32>
    %485 = arith.addf %315, %484 : vector<8x96xf32>
    %cst_293 = arith.constant 0.000000e+00 : f32
    %486 = vector.broadcast %cst_293 : f32 to vector<8x96xf32>
    %487 = arith.maximumf %485, %486 : vector<8x96xf32>
    %cst_294 = arith.constant dense<0.000000e+00> : vector<96xf32>
    %488 = vector.multi_reduction <add>, %487, %cst_294 [0] : vector<8x96xf32> to vector<96xf32>
    %489 = vector.shape_cast %488 : vector<96xf32> to vector<1x96xf32>
    %490 = arith.addf %479, %489 : vector<1x96xf32>
    %491 = arith.mulf %487, %487 : vector<8x96xf32>
    %cst_295 = arith.constant dense<0.000000e+00> : vector<96xf32>
    %492 = vector.multi_reduction <add>, %491, %cst_295 [0] : vector<8x96xf32> to vector<96xf32>
    %493 = vector.shape_cast %492 : vector<96xf32> to vector<1x96xf32>
    %494 = arith.addf %483, %493 : vector<1x96xf32>
    %c0_296 = arith.constant 0 : index
    %c0_297 = arith.constant 0 : index
    %495 = vector.load %arg3[%c0_296, %c0_297] : memref<96x8xf32, #tpu.memory_space<vmem>>, vector<96x8xf32>
    %cst_298 = arith.constant dense<0.000000e+00> : vector<1x8xf32>
    %496 = tpu.matmul %490, %495, %cst_298 {dimension_numbers = #tpu.dot_dimension_numbers<[1], [0], [0], [1], [0, 0, 1, 1], [], []>} : vector<1x96xf32>, vector<96x8xf32>, vector<1x8xf32> -> vector<1x8xf32>
    %c0_299 = arith.constant 0 : index
    %c0_300 = arith.constant 0 : index
    %497 = vector.load %arg3[%c0_299, %c0_300] : memref<96x8xf32, #tpu.memory_space<vmem>>, vector<96x8xf32>
    %cst_301 = arith.constant dense<0.000000e+00> : vector<1x8xf32>
    %498 = tpu.matmul %494, %497, %cst_301 {dimension_numbers = #tpu.dot_dimension_numbers<[1], [0], [0], [1], [0, 0, 1, 1], [], []>} : vector<1x96xf32>, vector<96x8xf32>, vector<1x8xf32> -> vector<1x8xf32>
    %cst_302 = arith.constant 2.048000e+03 : f32
    %499 = vector.broadcast %cst_302 : f32 to vector<1x8xf32>
    %500 = arith.divf %496, %499 : vector<1x8xf32>
    %cst_303 = arith.constant 2.048000e+03 : f32
    %501 = vector.broadcast %cst_303 : f32 to vector<1x8xf32>
    %502 = arith.divf %498, %501 : vector<1x8xf32>
    %503 = arith.mulf %500, %500 : vector<1x8xf32>
    %504 = arith.subf %502, %503 : vector<1x8xf32>
    %cst_304 = arith.constant 0.000000e+00 : f32
    %505 = vector.broadcast %cst_304 : f32 to vector<1x8xf32>
    %506 = arith.maximumf %504, %505 : vector<1x8xf32>
    %cst_305 = arith.constant 9.99999974E-6 : f32
    %507 = vector.broadcast %cst_305 : f32 to vector<1x8xf32>
    %508 = arith.addf %506, %507 : vector<1x8xf32>
    %509 = math.rsqrt %508 : vector<1x8xf32>
    %c0_306 = arith.constant 0 : index
    %c0_307 = arith.constant 0 : index
    %510 = vector.load %arg5[%c0_306, %c0_307] : memref<1x8xf32, #tpu.memory_space<vmem>>, vector<1x8xf32>
    %511 = arith.mulf %510, %509 : vector<1x8xf32>
    %c0_308 = arith.constant 0 : index
    %c0_309 = arith.constant 0 : index
    %512 = vector.load %arg6[%c0_308, %c0_309] : memref<1x8xf32, #tpu.memory_space<vmem>>, vector<1x8xf32>
    %513 = arith.mulf %500, %511 : vector<1x8xf32>
    %514 = arith.subf %512, %513 : vector<1x8xf32>
    %c0_310 = arith.constant 0 : index
    %c0_311 = arith.constant 0 : index
    %515 = vector.load %arg4[%c0_310, %c0_311] : memref<8x96xf32, #tpu.memory_space<vmem>>, vector<8x96xf32>
    %cst_312 = arith.constant dense<0.000000e+00> : vector<1x96xf32>
    %516 = tpu.matmul %511, %515, %cst_312 {dimension_numbers = #tpu.dot_dimension_numbers<[1], [0], [0], [1], [0, 0, 1, 1], [], []>} : vector<1x8xf32>, vector<8x96xf32>, vector<1x96xf32> -> vector<1x96xf32>
    %c0_313 = arith.constant 0 : index
    %c0_314 = arith.constant 0 : index
    %517 = vector.load %arg4[%c0_313, %c0_314] : memref<8x96xf32, #tpu.memory_space<vmem>>, vector<8x96xf32>
    %cst_315 = arith.constant dense<0.000000e+00> : vector<1x96xf32>
    %518 = tpu.matmul %514, %517, %cst_315 {dimension_numbers = #tpu.dot_dimension_numbers<[1], [0], [0], [1], [0, 0, 1, 1], [], []>} : vector<1x8xf32>, vector<8x96xf32>, vector<1x96xf32> -> vector<1x96xf32>
    %cst_316 = arith.constant 0.000000e+00 : f32
    %519 = vector.broadcast %cst_316 : f32 to vector<10x96xf32>
    %520 = vector.broadcast %516 : vector<1x96xf32> to vector<8x96xf32>
    %521 = arith.mulf %322, %520 : vector<8x96xf32>
    %522 = vector.broadcast %518 : vector<1x96xf32> to vector<8x96xf32>
    %523 = arith.addf %521, %522 : vector<8x96xf32>
    %524 = vector.broadcast %516 : vector<1x96xf32> to vector<8x96xf32>
    %525 = arith.mulf %333, %524 : vector<8x96xf32>
    %526 = vector.broadcast %518 : vector<1x96xf32> to vector<8x96xf32>
    %527 = arith.addf %525, %526 : vector<8x96xf32>
    %528 = vector.broadcast %516 : vector<1x96xf32> to vector<8x96xf32>
    %529 = arith.mulf %344, %528 : vector<8x96xf32>
    %530 = vector.broadcast %518 : vector<1x96xf32> to vector<8x96xf32>
    %531 = arith.addf %529, %530 : vector<8x96xf32>
    %532 = vector.broadcast %516 : vector<1x96xf32> to vector<8x96xf32>
    %533 = arith.mulf %355, %532 : vector<8x96xf32>
    %534 = vector.broadcast %518 : vector<1x96xf32> to vector<8x96xf32>
    %535 = arith.addf %533, %534 : vector<8x96xf32>
    %536 = vector.broadcast %516 : vector<1x96xf32> to vector<8x96xf32>
    %537 = arith.mulf %366, %536 : vector<8x96xf32>
    %538 = vector.broadcast %518 : vector<1x96xf32> to vector<8x96xf32>
    %539 = arith.addf %537, %538 : vector<8x96xf32>
    %540 = vector.broadcast %516 : vector<1x96xf32> to vector<8x96xf32>
    %541 = arith.mulf %377, %540 : vector<8x96xf32>
    %542 = vector.broadcast %518 : vector<1x96xf32> to vector<8x96xf32>
    %543 = arith.addf %541, %542 : vector<8x96xf32>
    %544 = vector.broadcast %516 : vector<1x96xf32> to vector<8x96xf32>
    %545 = arith.mulf %388, %544 : vector<8x96xf32>
    %546 = vector.broadcast %518 : vector<1x96xf32> to vector<8x96xf32>
    %547 = arith.addf %545, %546 : vector<8x96xf32>
    %548 = vector.broadcast %516 : vector<1x96xf32> to vector<8x96xf32>
    %549 = arith.mulf %399, %548 : vector<8x96xf32>
    %550 = vector.broadcast %518 : vector<1x96xf32> to vector<8x96xf32>
    %551 = arith.addf %549, %550 : vector<8x96xf32>
    %552 = arith.maximumf %523, %527 : vector<8x96xf32>
    %553 = arith.maximumf %531, %535 : vector<8x96xf32>
    %554 = arith.maximumf %552, %553 : vector<8x96xf32>
    %555 = arith.maximumf %539, %543 : vector<8x96xf32>
    %556 = arith.maximumf %547, %551 : vector<8x96xf32>
    %557 = arith.maximumf %555, %556 : vector<8x96xf32>
    %c0_317 = arith.constant 0 : index
    %c0_318 = arith.constant 0 : index
    %c0_319 = arith.constant 0 : index
    %c0_320 = arith.constant 0 : index
    %558 = vector.load %arg12[%c0_317, %c0_318, %c0_319, %c0_320] : memref<2x2x10x96xf32, #tpu.memory_space<vmem>>, vector<1x1x10x96xf32>
    %559 = vector.shape_cast %558 : vector<1x1x10x96xf32> to vector<10x96xf32>
    %560 = vector.shape_cast %519 : vector<10x96xf32> to vector<1x1x10x96xf32>
    tpu.vector_store %arg12[%c0_317, %c0_318, %c0_319, %c0_320], %560 {strides = array<i32>} : memref<2x2x10x96xf32, #tpu.memory_space<vmem>>, vector<1x1x10x96xf32>,
    %c0_321 = arith.constant 0 : index
    %c1_322 = arith.constant 1 : index
    %c0_323 = arith.constant 0 : index
    %c0_324 = arith.constant 0 : index
    %561 = vector.load %arg12[%c0_321, %c1_322, %c0_323, %c0_324] : memref<2x2x10x96xf32, #tpu.memory_space<vmem>>, vector<1x1x10x96xf32>
    %562 = vector.shape_cast %561 : vector<1x1x10x96xf32> to vector<10x96xf32>
    %563 = vector.shape_cast %519 : vector<10x96xf32> to vector<1x1x10x96xf32>
    tpu.vector_store %arg12[%c0_321, %c1_322, %c0_323, %c0_324], %563 {strides = array<i32>} : memref<2x2x10x96xf32, #tpu.memory_space<vmem>>, vector<1x1x10x96xf32>,
    %c0_325 = arith.constant 0 : index
    %c0_326 = arith.constant 0 : index
    %c1_327 = arith.constant 1 : index
    %c0_328 = arith.constant 0 : index
    %564 = vector.load %arg12[%c0_325, %c0_326, %c1_327, %c0_328] : memref<2x2x10x96xf32, #tpu.memory_space<vmem>>, vector<1x1x8x96xf32>
    %565 = vector.shape_cast %564 : vector<1x1x8x96xf32> to vector<8x96xf32>
    %566 = vector.shape_cast %554 : vector<8x96xf32> to vector<1x1x8x96xf32>
    tpu.vector_store %arg12[%c0_325, %c0_326, %c1_327, %c0_328], %566 {strides = array<i32>} : memref<2x2x10x96xf32, #tpu.memory_space<vmem>>, vector<1x1x8x96xf32>,
    %c0_329 = arith.constant 0 : index
    %c1_330 = arith.constant 1 : index
    %c1_331 = arith.constant 1 : index
    %c0_332 = arith.constant 0 : index
    %567 = vector.load %arg12[%c0_329, %c1_330, %c1_331, %c0_332] : memref<2x2x10x96xf32, #tpu.memory_space<vmem>>, vector<1x1x8x96xf32>
    %568 = vector.shape_cast %567 : vector<1x1x8x96xf32> to vector<8x96xf32>
    %569 = vector.shape_cast %557 : vector<8x96xf32> to vector<1x1x8x96xf32>
    tpu.vector_store %arg12[%c0_329, %c1_330, %c1_331, %c0_332], %569 {strides = array<i32>} : memref<2x2x10x96xf32, #tpu.memory_space<vmem>>, vector<1x1x8x96xf32>,
    %570 = vector.broadcast %516 : vector<1x96xf32> to vector<8x96xf32>
    %571 = arith.mulf %410, %570 : vector<8x96xf32>
    %572 = vector.broadcast %518 : vector<1x96xf32> to vector<8x96xf32>
    %573 = arith.addf %571, %572 : vector<8x96xf32>
    %574 = vector.broadcast %516 : vector<1x96xf32> to vector<8x96xf32>
    %575 = arith.mulf %421, %574 : vector<8x96xf32>
    %576 = vector.broadcast %518 : vector<1x96xf32> to vector<8x96xf32>
    %577 = arith.addf %575, %576 : vector<8x96xf32>
    %578 = vector.broadcast %516 : vector<1x96xf32> to vector<8x96xf32>
    %579 = arith.mulf %432, %578 : vector<8x96xf32>
    %580 = vector.broadcast %518 : vector<1x96xf32> to vector<8x96xf32>
    %581 = arith.addf %579, %580 : vector<8x96xf32>
    %582 = vector.broadcast %516 : vector<1x96xf32> to vector<8x96xf32>
    %583 = arith.mulf %443, %582 : vector<8x96xf32>
    %584 = vector.broadcast %518 : vector<1x96xf32> to vector<8x96xf32>
    %585 = arith.addf %583, %584 : vector<8x96xf32>
    %586 = vector.broadcast %516 : vector<1x96xf32> to vector<8x96xf32>
    %587 = arith.mulf %454, %586 : vector<8x96xf32>
    %588 = vector.broadcast %518 : vector<1x96xf32> to vector<8x96xf32>
    %589 = arith.addf %587, %588 : vector<8x96xf32>
    %590 = vector.broadcast %516 : vector<1x96xf32> to vector<8x96xf32>
    %591 = arith.mulf %465, %590 : vector<8x96xf32>
    %592 = vector.broadcast %518 : vector<1x96xf32> to vector<8x96xf32>
    %593 = arith.addf %591, %592 : vector<8x96xf32>
    %594 = vector.broadcast %516 : vector<1x96xf32> to vector<8x96xf32>
    %595 = arith.mulf %476, %594 : vector<8x96xf32>
    %596 = vector.broadcast %518 : vector<1x96xf32> to vector<8x96xf32>
    %597 = arith.addf %595, %596 : vector<8x96xf32>
    %598 = vector.broadcast %516 : vector<1x96xf32> to vector<8x96xf32>
    %599 = arith.mulf %487, %598 : vector<8x96xf32>
    %600 = vector.broadcast %518 : vector<1x96xf32> to vector<8x96xf32>
    %601 = arith.addf %599, %600 : vector<8x96xf32>
    %602 = arith.maximumf %573, %577 : vector<8x96xf32>
    %603 = arith.maximumf %581, %585 : vector<8x96xf32>
    %604 = arith.maximumf %602, %603 : vector<8x96xf32>
    %605 = arith.maximumf %589, %593 : vector<8x96xf32>
    %606 = arith.maximumf %597, %601 : vector<8x96xf32>
    %607 = arith.maximumf %605, %606 : vector<8x96xf32>
    %c1_333 = arith.constant 1 : index
    %c0_334 = arith.constant 0 : index
    %c0_335 = arith.constant 0 : index
    %c0_336 = arith.constant 0 : index
    %608 = vector.load %arg12[%c1_333, %c0_334, %c0_335, %c0_336] : memref<2x2x10x96xf32, #tpu.memory_space<vmem>>, vector<1x1x10x96xf32>
    %609 = vector.shape_cast %608 : vector<1x1x10x96xf32> to vector<10x96xf32>
    %610 = vector.shape_cast %519 : vector<10x96xf32> to vector<1x1x10x96xf32>
    tpu.vector_store %arg12[%c1_333, %c0_334, %c0_335, %c0_336], %610 {strides = array<i32>} : memref<2x2x10x96xf32, #tpu.memory_space<vmem>>, vector<1x1x10x96xf32>,
    %c1_337 = arith.constant 1 : index
    %c1_338 = arith.constant 1 : index
    %c0_339 = arith.constant 0 : index
    %c0_340 = arith.constant 0 : index
    %611 = vector.load %arg12[%c1_337, %c1_338, %c0_339, %c0_340] : memref<2x2x10x96xf32, #tpu.memory_space<vmem>>, vector<1x1x10x96xf32>
    %612 = vector.shape_cast %611 : vector<1x1x10x96xf32> to vector<10x96xf32>
    %613 = vector.shape_cast %519 : vector<10x96xf32> to vector<1x1x10x96xf32>
    tpu.vector_store %arg12[%c1_337, %c1_338, %c0_339, %c0_340], %613 {strides = array<i32>} : memref<2x2x10x96xf32, #tpu.memory_space<vmem>>, vector<1x1x10x96xf32>,
    %c1_341 = arith.constant 1 : index
    %c0_342 = arith.constant 0 : index
    %c1_343 = arith.constant 1 : index
    %c0_344 = arith.constant 0 : index
    %614 = vector.load %arg12[%c1_341, %c0_342, %c1_343, %c0_344] : memref<2x2x10x96xf32, #tpu.memory_space<vmem>>, vector<1x1x8x96xf32>
    %615 = vector.shape_cast %614 : vector<1x1x8x96xf32> to vector<8x96xf32>
    %616 = vector.shape_cast %604 : vector<8x96xf32> to vector<1x1x8x96xf32>
    tpu.vector_store %arg12[%c1_341, %c0_342, %c1_343, %c0_344], %616 {strides = array<i32>} : memref<2x2x10x96xf32, #tpu.memory_space<vmem>>, vector<1x1x8x96xf32>,
    %c1_345 = arith.constant 1 : index
    %c1_346 = arith.constant 1 : index
    %c1_347 = arith.constant 1 : index
    %c0_348 = arith.constant 0 : index
    %617 = vector.load %arg12[%c1_345, %c1_346, %c1_347, %c0_348] : memref<2x2x10x96xf32, #tpu.memory_space<vmem>>, vector<1x1x8x96xf32>
    %618 = vector.shape_cast %617 : vector<1x1x8x96xf32> to vector<8x96xf32>
    %619 = vector.shape_cast %607 : vector<8x96xf32> to vector<1x1x8x96xf32>
    tpu.vector_store %arg12[%c1_345, %c1_346, %c1_347, %c0_348], %619 {strides = array<i32>} : memref<2x2x10x96xf32, #tpu.memory_space<vmem>>, vector<1x1x8x96xf32>,
    %cst_349 = arith.constant 0.000000e+00 : f32
    %620 = vector.broadcast %cst_349 : f32 to vector<8x96xf32>
    %cst_350 = arith.constant 0.000000e+00 : f32
    %621 = vector.broadcast %cst_350 : f32 to vector<8x96xf32>
    %cst_351 = arith.constant 0.000000e+00 : f32
    %622 = vector.broadcast %cst_351 : f32 to vector<8x96xf32>
    %cst_352 = arith.constant 0.000000e+00 : f32
    %623 = vector.broadcast %cst_352 : f32 to vector<8x96xf32>
    %cst_353 = arith.constant 0.000000e+00 : f32
    %624 = vector.broadcast %cst_353 : f32 to vector<8x96xf32>
    %cst_354 = arith.constant 0.000000e+00 : f32
    %625 = vector.broadcast %cst_354 : f32 to vector<8x96xf32>
    %cst_355 = arith.constant 0.000000e+00 : f32
    %626 = vector.broadcast %cst_355 : f32 to vector<8x96xf32>
    %cst_356 = arith.constant 0.000000e+00 : f32
    %627 = vector.broadcast %cst_356 : f32 to vector<8x96xf32>
    %c0_357 = arith.constant 0 : index
    %c0_358 = arith.constant 0 : index
    %c0_359 = arith.constant 0 : index
    %c0_360 = arith.constant 0 : index
    %628 = vector.load %arg7[%c0_357, %c0_358, %c0_359, %c0_360] : memref<5x2x96x96xbf16, #tpu.memory_space<vmem>>, vector<1x1x96x96xbf16>
    %629 = vector.shape_cast %628 : vector<1x1x96x96xbf16> to vector<96x96xbf16>
    %c0_361 = arith.constant 0 : index
    %c1_362 = arith.constant 1 : index
    %c0_363 = arith.constant 0 : index
    %c0_364 = arith.constant 0 : index
    %630 = vector.load %arg7[%c0_361, %c1_362, %c0_363, %c0_364] : memref<5x2x96x96xbf16, #tpu.memory_space<vmem>>, vector<1x1x96x96xbf16>
    %631 = vector.shape_cast %630 : vector<1x1x96x96xbf16> to vector<96x96xbf16>
    %c0_365 = arith.constant 0 : index
    %c0_366 = arith.constant 0 : index
    %c0_367 = arith.constant 0 : index
    %c0_368 = arith.constant 0 : index
    %632 = vector.load %arg12[%c0_365, %c0_366, %c0_367, %c0_368] : memref<2x2x10x96xf32, #tpu.memory_space<vmem>>, vector<1x1x8x96xf32>
    %633 = vector.shape_cast %632 : vector<1x1x8x96xf32> to vector<8x96xf32>
    %634 = arith.truncf %633 : vector<8x96xf32> to vector<8x96xbf16>
    %cst_369 = arith.constant dense<0.000000e+00> : vector<8x96xf32>
    %635 = tpu.matmul %634, %629, %cst_369 {dimension_numbers = #tpu.dot_dimension_numbers<[1], [0], [0], [1], [0, 0, 1, 1], [], []>} : vector<8x96xbf16>, vector<96x96xbf16>, vector<8x96xf32> -> vector<8x96xf32>
    %636 = arith.addf %620, %635 : vector<8x96xf32>
    %cst_370 = arith.constant dense<0.000000e+00> : vector<8x96xf32>
    %637 = tpu.matmul %634, %631, %cst_370 {dimension_numbers = #tpu.dot_dimension_numbers<[1], [0], [0], [1], [0, 0, 1, 1], [], []>} : vector<8x96xbf16>, vector<96x96xbf16>, vector<8x96xf32> -> vector<8x96xf32>
    %638 = arith.addf %621, %637 : vector<8x96xf32>
    %c0_371 = arith.constant 0 : index
    %c1_372 = arith.constant 1 : index
    %c0_373 = arith.constant 0 : index
    %c0_374 = arith.constant 0 : index
    %639 = vector.load %arg12[%c0_371, %c1_372, %c0_373, %c0_374] : memref<2x2x10x96xf32, #tpu.memory_space<vmem>>, vector<1x1x8x96xf32>
    %640 = vector.shape_cast %639 : vector<1x1x8x96xf32> to vector<8x96xf32>
    %641 = arith.truncf %640 : vector<8x96xf32> to vector<8x96xbf16>
    %cst_375 = arith.constant dense<0.000000e+00> : vector<8x96xf32>
    %642 = tpu.matmul %641, %629, %cst_375 {dimension_numbers = #tpu.dot_dimension_numbers<[1], [0], [0], [1], [0, 0, 1, 1], [], []>} : vector<8x96xbf16>, vector<96x96xbf16>, vector<8x96xf32> -> vector<8x96xf32>
    %643 = arith.addf %622, %642 : vector<8x96xf32>
    %cst_376 = arith.constant dense<0.000000e+00> : vector<8x96xf32>
    %644 = tpu.matmul %641, %631, %cst_376 {dimension_numbers = #tpu.dot_dimension_numbers<[1], [0], [0], [1], [0, 0, 1, 1], [], []>} : vector<8x96xbf16>, vector<96x96xbf16>, vector<8x96xf32> -> vector<8x96xf32>
    %645 = arith.addf %623, %644 : vector<8x96xf32>
    %c1_377 = arith.constant 1 : index
    %c0_378 = arith.constant 0 : index
    %c0_379 = arith.constant 0 : index
    %c0_380 = arith.constant 0 : index
    %646 = vector.load %arg12[%c1_377, %c0_378, %c0_379, %c0_380] : memref<2x2x10x96xf32, #tpu.memory_space<vmem>>, vector<1x1x8x96xf32>
    %647 = vector.shape_cast %646 : vector<1x1x8x96xf32> to vector<8x96xf32>
    %648 = arith.truncf %647 : vector<8x96xf32> to vector<8x96xbf16>
    %cst_381 = arith.constant dense<0.000000e+00> : vector<8x96xf32>
    %649 = tpu.matmul %648, %629, %cst_381 {dimension_numbers = #tpu.dot_dimension_numbers<[1], [0], [0], [1], [0, 0, 1, 1], [], []>} : vector<8x96xbf16>, vector<96x96xbf16>, vector<8x96xf32> -> vector<8x96xf32>
    %650 = arith.addf %624, %649 : vector<8x96xf32>
    %cst_382 = arith.constant dense<0.000000e+00> : vector<8x96xf32>
    %651 = tpu.matmul %648, %631, %cst_382 {dimension_numbers = #tpu.dot_dimension_numbers<[1], [0], [0], [1], [0, 0, 1, 1], [], []>} : vector<8x96xbf16>, vector<96x96xbf16>, vector<8x96xf32> -> vector<8x96xf32>
    %652 = arith.addf %625, %651 : vector<8x96xf32>
    %c1_383 = arith.constant 1 : index
    %c1_384 = arith.constant 1 : index
    %c0_385 = arith.constant 0 : index
    %c0_386 = arith.constant 0 : index
    %653 = vector.load %arg12[%c1_383, %c1_384, %c0_385, %c0_386] : memref<2x2x10x96xf32, #tpu.memory_space<vmem>>, vector<1x1x8x96xf32>
    %654 = vector.shape_cast %653 : vector<1x1x8x96xf32> to vector<8x96xf32>
    %655 = arith.truncf %654 : vector<8x96xf32> to vector<8x96xbf16>
    %cst_387 = arith.constant dense<0.000000e+00> : vector<8x96xf32>
    %656 = tpu.matmul %655, %629, %cst_387 {dimension_numbers = #tpu.dot_dimension_numbers<[1], [0], [0], [1], [0, 0, 1, 1], [], []>} : vector<8x96xbf16>, vector<96x96xbf16>, vector<8x96xf32> -> vector<8x96xf32>
    %657 = arith.addf %626, %656 : vector<8x96xf32>
    %cst_388 = arith.constant dense<0.000000e+00> : vector<8x96xf32>
    %658 = tpu.matmul %655, %631, %cst_388 {dimension_numbers = #tpu.dot_dimension_numbers<[1], [0], [0], [1], [0, 0, 1, 1], [], []>} : vector<8x96xbf16>, vector<96x96xbf16>, vector<8x96xf32> -> vector<8x96xf32>
    %659 = arith.addf %627, %658 : vector<8x96xf32>
    %c1_389 = arith.constant 1 : index
    %c0_390 = arith.constant 0 : index
    %c0_391 = arith.constant 0 : index
    %c0_392 = arith.constant 0 : index
    %660 = vector.load %arg7[%c1_389, %c0_390, %c0_391, %c0_392] : memref<5x2x96x96xbf16, #tpu.memory_space<vmem>>, vector<1x1x96x96xbf16>
    %661 = vector.shape_cast %660 : vector<1x1x96x96xbf16> to vector<96x96xbf16>
    %c1_393 = arith.constant 1 : index
    %c1_394 = arith.constant 1 : index
    %c0_395 = arith.constant 0 : index
    %c0_396 = arith.constant 0 : index
    %662 = vector.load %arg7[%c1_393, %c1_394, %c0_395, %c0_396] : memref<5x2x96x96xbf16, #tpu.memory_space<vmem>>, vector<1x1x96x96xbf16>
    %663 = vector.shape_cast %662 : vector<1x1x96x96xbf16> to vector<96x96xbf16>
    %c0_397 = arith.constant 0 : index
    %c1_398 = arith.constant 1 : index
    %c0_399 = arith.constant 0 : index
    %c0_400 = arith.constant 0 : index
    %664 = vector.load %arg12[%c0_397, %c1_398, %c0_399, %c0_400] : memref<2x2x10x96xf32, #tpu.memory_space<vmem>>, vector<1x1x8x96xf32>
    %665 = vector.shape_cast %664 : vector<1x1x8x96xf32> to vector<8x96xf32>
    %666 = arith.truncf %665 : vector<8x96xf32> to vector<8x96xbf16>
    %cst_401 = arith.constant dense<0.000000e+00> : vector<8x96xf32>
    %667 = tpu.matmul %666, %661, %cst_401 {dimension_numbers = #tpu.dot_dimension_numbers<[1], [0], [0], [1], [0, 0, 1, 1], [], []>} : vector<8x96xbf16>, vector<96x96xbf16>, vector<8x96xf32> -> vector<8x96xf32>
    %668 = arith.addf %636, %667 : vector<8x96xf32>
    %cst_402 = arith.constant dense<0.000000e+00> : vector<8x96xf32>
    %669 = tpu.matmul %666, %663, %cst_402 {dimension_numbers = #tpu.dot_dimension_numbers<[1], [0], [0], [1], [0, 0, 1, 1], [], []>} : vector<8x96xbf16>, vector<96x96xbf16>, vector<8x96xf32> -> vector<8x96xf32>
    %670 = arith.addf %638, %669 : vector<8x96xf32>
    %c0_403 = arith.constant 0 : index
    %c0_404 = arith.constant 0 : index
    %c1_405 = arith.constant 1 : index
    %c0_406 = arith.constant 0 : index
    %671 = vector.load %arg12[%c0_403, %c0_404, %c1_405, %c0_406] : memref<2x2x10x96xf32, #tpu.memory_space<vmem>>, vector<1x1x8x96xf32>
    %672 = vector.shape_cast %671 : vector<1x1x8x96xf32> to vector<8x96xf32>
    %673 = arith.truncf %672 : vector<8x96xf32> to vector<8x96xbf16>
    %cst_407 = arith.constant dense<0.000000e+00> : vector<8x96xf32>
    %674 = tpu.matmul %673, %661, %cst_407 {dimension_numbers = #tpu.dot_dimension_numbers<[1], [0], [0], [1], [0, 0, 1, 1], [], []>} : vector<8x96xbf16>, vector<96x96xbf16>, vector<8x96xf32> -> vector<8x96xf32>
    %675 = arith.addf %643, %674 : vector<8x96xf32>
    %cst_408 = arith.constant dense<0.000000e+00> : vector<8x96xf32>
    %676 = tpu.matmul %673, %663, %cst_408 {dimension_numbers = #tpu.dot_dimension_numbers<[1], [0], [0], [1], [0, 0, 1, 1], [], []>} : vector<8x96xbf16>, vector<96x96xbf16>, vector<8x96xf32> -> vector<8x96xf32>
    %677 = arith.addf %645, %676 : vector<8x96xf32>
    %c1_409 = arith.constant 1 : index
    %c1_410 = arith.constant 1 : index
    %c0_411 = arith.constant 0 : index
    %c0_412 = arith.constant 0 : index
    %678 = vector.load %arg12[%c1_409, %c1_410, %c0_411, %c0_412] : memref<2x2x10x96xf32, #tpu.memory_space<vmem>>, vector<1x1x8x96xf32>
    %679 = vector.shape_cast %678 : vector<1x1x8x96xf32> to vector<8x96xf32>
    %680 = arith.truncf %679 : vector<8x96xf32> to vector<8x96xbf16>
    %cst_413 = arith.constant dense<0.000000e+00> : vector<8x96xf32>
    %681 = tpu.matmul %680, %661, %cst_413 {dimension_numbers = #tpu.dot_dimension_numbers<[1], [0], [0], [1], [0, 0, 1, 1], [], []>} : vector<8x96xbf16>, vector<96x96xbf16>, vector<8x96xf32> -> vector<8x96xf32>
    %682 = arith.addf %650, %681 : vector<8x96xf32>
    %cst_414 = arith.constant dense<0.000000e+00> : vector<8x96xf32>
    %683 = tpu.matmul %680, %663, %cst_414 {dimension_numbers = #tpu.dot_dimension_numbers<[1], [0], [0], [1], [0, 0, 1, 1], [], []>} : vector<8x96xbf16>, vector<96x96xbf16>, vector<8x96xf32> -> vector<8x96xf32>
    %684 = arith.addf %652, %683 : vector<8x96xf32>
    %c1_415 = arith.constant 1 : index
    %c0_416 = arith.constant 0 : index
    %c1_417 = arith.constant 1 : index
    %c0_418 = arith.constant 0 : index
    %685 = vector.load %arg12[%c1_415, %c0_416, %c1_417, %c0_418] : memref<2x2x10x96xf32, #tpu.memory_space<vmem>>, vector<1x1x8x96xf32>
    %686 = vector.shape_cast %685 : vector<1x1x8x96xf32> to vector<8x96xf32>
    %687 = arith.truncf %686 : vector<8x96xf32> to vector<8x96xbf16>
    %cst_419 = arith.constant dense<0.000000e+00> : vector<8x96xf32>
    %688 = tpu.matmul %687, %661, %cst_419 {dimension_numbers = #tpu.dot_dimension_numbers<[1], [0], [0], [1], [0, 0, 1, 1], [], []>} : vector<8x96xbf16>, vector<96x96xbf16>, vector<8x96xf32> -> vector<8x96xf32>
    %689 = arith.addf %657, %688 : vector<8x96xf32>
    %cst_420 = arith.constant dense<0.000000e+00> : vector<8x96xf32>
    %690 = tpu.matmul %687, %663, %cst_420 {dimension_numbers = #tpu.dot_dimension_numbers<[1], [0], [0], [1], [0, 0, 1, 1], [], []>} : vector<8x96xbf16>, vector<96x96xbf16>, vector<8x96xf32> -> vector<8x96xf32>
    %691 = arith.addf %659, %690 : vector<8x96xf32>
    %c2_421 = arith.constant 2 : index
    %c0_422 = arith.constant 0 : index
    %c0_423 = arith.constant 0 : index
    %c0_424 = arith.constant 0 : index
    %692 = vector.load %arg7[%c2_421, %c0_422, %c0_423, %c0_424] : memref<5x2x96x96xbf16, #tpu.memory_space<vmem>>, vector<1x1x96x96xbf16>
    %693 = vector.shape_cast %692 : vector<1x1x96x96xbf16> to vector<96x96xbf16>
    %c2_425 = arith.constant 2 : index
    %c1_426 = arith.constant 1 : index
    %c0_427 = arith.constant 0 : index
    %c0_428 = arith.constant 0 : index
    %694 = vector.load %arg7[%c2_425, %c1_426, %c0_427, %c0_428] : memref<5x2x96x96xbf16, #tpu.memory_space<vmem>>, vector<1x1x96x96xbf16>
    %695 = vector.shape_cast %694 : vector<1x1x96x96xbf16> to vector<96x96xbf16>
    %c0_429 = arith.constant 0 : index
    %c0_430 = arith.constant 0 : index
    %c1_431 = arith.constant 1 : index
    %c0_432 = arith.constant 0 : index
    %696 = vector.load %arg12[%c0_429, %c0_430, %c1_431, %c0_432] : memref<2x2x10x96xf32, #tpu.memory_space<vmem>>, vector<1x1x8x96xf32>
    %697 = vector.shape_cast %696 : vector<1x1x8x96xf32> to vector<8x96xf32>
    %698 = arith.truncf %697 : vector<8x96xf32> to vector<8x96xbf16>
    %cst_433 = arith.constant dense<0.000000e+00> : vector<8x96xf32>
    %699 = tpu.matmul %698, %693, %cst_433 {dimension_numbers = #tpu.dot_dimension_numbers<[1], [0], [0], [1], [0, 0, 1, 1], [], []>} : vector<8x96xbf16>, vector<96x96xbf16>, vector<8x96xf32> -> vector<8x96xf32>
    %700 = arith.addf %668, %699 : vector<8x96xf32>
    %cst_434 = arith.constant dense<0.000000e+00> : vector<8x96xf32>
    %701 = tpu.matmul %698, %695, %cst_434 {dimension_numbers = #tpu.dot_dimension_numbers<[1], [0], [0], [1], [0, 0, 1, 1], [], []>} : vector<8x96xbf16>, vector<96x96xbf16>, vector<8x96xf32> -> vector<8x96xf32>
    %702 = arith.addf %670, %701 : vector<8x96xf32>
    %c0_435 = arith.constant 0 : index
    %c1_436 = arith.constant 1 : index
    %c1_437 = arith.constant 1 : index
    %c0_438 = arith.constant 0 : index
    %703 = vector.load %arg12[%c0_435, %c1_436, %c1_437, %c0_438] : memref<2x2x10x96xf32, #tpu.memory_space<vmem>>, vector<1x1x8x96xf32>
    %704 = vector.shape_cast %703 : vector<1x1x8x96xf32> to vector<8x96xf32>
    %705 = arith.truncf %704 : vector<8x96xf32> to vector<8x96xbf16>
    %cst_439 = arith.constant dense<0.000000e+00> : vector<8x96xf32>
    %706 = tpu.matmul %705, %693, %cst_439 {dimension_numbers = #tpu.dot_dimension_numbers<[1], [0], [0], [1], [0, 0, 1, 1], [], []>} : vector<8x96xbf16>, vector<96x96xbf16>, vector<8x96xf32> -> vector<8x96xf32>
    %707 = arith.addf %675, %706 : vector<8x96xf32>
    %cst_440 = arith.constant dense<0.000000e+00> : vector<8x96xf32>
    %708 = tpu.matmul %705, %695, %cst_440 {dimension_numbers = #tpu.dot_dimension_numbers<[1], [0], [0], [1], [0, 0, 1, 1], [], []>} : vector<8x96xbf16>, vector<96x96xbf16>, vector<8x96xf32> -> vector<8x96xf32>
    %709 = arith.addf %677, %708 : vector<8x96xf32>
    %c1_441 = arith.constant 1 : index
    %c0_442 = arith.constant 0 : index
    %c1_443 = arith.constant 1 : index
    %c0_444 = arith.constant 0 : index
    %710 = vector.load %arg12[%c1_441, %c0_442, %c1_443, %c0_444] : memref<2x2x10x96xf32, #tpu.memory_space<vmem>>, vector<1x1x8x96xf32>
    %711 = vector.shape_cast %710 : vector<1x1x8x96xf32> to vector<8x96xf32>
    %712 = arith.truncf %711 : vector<8x96xf32> to vector<8x96xbf16>
    %cst_445 = arith.constant dense<0.000000e+00> : vector<8x96xf32>
    %713 = tpu.matmul %712, %693, %cst_445 {dimension_numbers = #tpu.dot_dimension_numbers<[1], [0], [0], [1], [0, 0, 1, 1], [], []>} : vector<8x96xbf16>, vector<96x96xbf16>, vector<8x96xf32> -> vector<8x96xf32>
    %714 = arith.addf %682, %713 : vector<8x96xf32>
    %cst_446 = arith.constant dense<0.000000e+00> : vector<8x96xf32>
    %715 = tpu.matmul %712, %695, %cst_446 {dimension_numbers = #tpu.dot_dimension_numbers<[1], [0], [0], [1], [0, 0, 1, 1], [], []>} : vector<8x96xbf16>, vector<96x96xbf16>, vector<8x96xf32> -> vector<8x96xf32>
    %716 = arith.addf %684, %715 : vector<8x96xf32>
    %c1_447 = arith.constant 1 : index
    %c1_448 = arith.constant 1 : index
    %c1_449 = arith.constant 1 : index
    %c0_450 = arith.constant 0 : index
    %717 = vector.load %arg12[%c1_447, %c1_448, %c1_449, %c0_450] : memref<2x2x10x96xf32, #tpu.memory_space<vmem>>, vector<1x1x8x96xf32>
    %718 = vector.shape_cast %717 : vector<1x1x8x96xf32> to vector<8x96xf32>
    %719 = arith.truncf %718 : vector<8x96xf32> to vector<8x96xbf16>
    %cst_451 = arith.constant dense<0.000000e+00> : vector<8x96xf32>
    %720 = tpu.matmul %719, %693, %cst_451 {dimension_numbers = #tpu.dot_dimension_numbers<[1], [0], [0], [1], [0, 0, 1, 1], [], []>} : vector<8x96xbf16>, vector<96x96xbf16>, vector<8x96xf32> -> vector<8x96xf32>
    %721 = arith.addf %689, %720 : vector<8x96xf32>
    %cst_452 = arith.constant dense<0.000000e+00> : vector<8x96xf32>
    %722 = tpu.matmul %719, %695, %cst_452 {dimension_numbers = #tpu.dot_dimension_numbers<[1], [0], [0], [1], [0, 0, 1, 1], [], []>} : vector<8x96xbf16>, vector<96x96xbf16>, vector<8x96xf32> -> vector<8x96xf32>
    %723 = arith.addf %691, %722 : vector<8x96xf32>
    %c3_453 = arith.constant 3 : index
    %c0_454 = arith.constant 0 : index
    %c0_455 = arith.constant 0 : index
    %c0_456 = arith.constant 0 : index
    %724 = vector.load %arg7[%c3_453, %c0_454, %c0_455, %c0_456] : memref<5x2x96x96xbf16, #tpu.memory_space<vmem>>, vector<1x1x96x96xbf16>
    %725 = vector.shape_cast %724 : vector<1x1x96x96xbf16> to vector<96x96xbf16>
    %c3_457 = arith.constant 3 : index
    %c1_458 = arith.constant 1 : index
    %c0_459 = arith.constant 0 : index
    %c0_460 = arith.constant 0 : index
    %726 = vector.load %arg7[%c3_457, %c1_458, %c0_459, %c0_460] : memref<5x2x96x96xbf16, #tpu.memory_space<vmem>>, vector<1x1x96x96xbf16>
    %727 = vector.shape_cast %726 : vector<1x1x96x96xbf16> to vector<96x96xbf16>
    %c0_461 = arith.constant 0 : index
    %c1_462 = arith.constant 1 : index
    %c1_463 = arith.constant 1 : index
    %c0_464 = arith.constant 0 : index
    %728 = vector.load %arg12[%c0_461, %c1_462, %c1_463, %c0_464] : memref<2x2x10x96xf32, #tpu.memory_space<vmem>>, vector<1x1x8x96xf32>
    %729 = vector.shape_cast %728 : vector<1x1x8x96xf32> to vector<8x96xf32>
    %730 = arith.truncf %729 : vector<8x96xf32> to vector<8x96xbf16>
    %cst_465 = arith.constant dense<0.000000e+00> : vector<8x96xf32>
    %731 = tpu.matmul %730, %725, %cst_465 {dimension_numbers = #tpu.dot_dimension_numbers<[1], [0], [0], [1], [0, 0, 1, 1], [], []>} : vector<8x96xbf16>, vector<96x96xbf16>, vector<8x96xf32> -> vector<8x96xf32>
    %732 = arith.addf %700, %731 : vector<8x96xf32>
    %cst_466 = arith.constant dense<0.000000e+00> : vector<8x96xf32>
    %733 = tpu.matmul %730, %727, %cst_466 {dimension_numbers = #tpu.dot_dimension_numbers<[1], [0], [0], [1], [0, 0, 1, 1], [], []>} : vector<8x96xbf16>, vector<96x96xbf16>, vector<8x96xf32> -> vector<8x96xf32>
    %734 = arith.addf %702, %733 : vector<8x96xf32>
    %c0_467 = arith.constant 0 : index
    %c0_468 = arith.constant 0 : index
    %c2_469 = arith.constant 2 : index
    %c0_470 = arith.constant 0 : index
    %735 = vector.load %arg12[%c0_467, %c0_468, %c2_469, %c0_470] : memref<2x2x10x96xf32, #tpu.memory_space<vmem>>, vector<1x1x8x96xf32>
    %736 = vector.shape_cast %735 : vector<1x1x8x96xf32> to vector<8x96xf32>
    %737 = arith.truncf %736 : vector<8x96xf32> to vector<8x96xbf16>
    %cst_471 = arith.constant dense<0.000000e+00> : vector<8x96xf32>
    %738 = tpu.matmul %737, %725, %cst_471 {dimension_numbers = #tpu.dot_dimension_numbers<[1], [0], [0], [1], [0, 0, 1, 1], [], []>} : vector<8x96xbf16>, vector<96x96xbf16>, vector<8x96xf32> -> vector<8x96xf32>
    %739 = arith.addf %707, %738 : vector<8x96xf32>
    %cst_472 = arith.constant dense<0.000000e+00> : vector<8x96xf32>
    %740 = tpu.matmul %737, %727, %cst_472 {dimension_numbers = #tpu.dot_dimension_numbers<[1], [0], [0], [1], [0, 0, 1, 1], [], []>} : vector<8x96xbf16>, vector<96x96xbf16>, vector<8x96xf32> -> vector<8x96xf32>
    %741 = arith.addf %709, %740 : vector<8x96xf32>
    %c1_473 = arith.constant 1 : index
    %c1_474 = arith.constant 1 : index
    %c1_475 = arith.constant 1 : index
    %c0_476 = arith.constant 0 : index
    %742 = vector.load %arg12[%c1_473, %c1_474, %c1_475, %c0_476] : memref<2x2x10x96xf32, #tpu.memory_space<vmem>>, vector<1x1x8x96xf32>
    %743 = vector.shape_cast %742 : vector<1x1x8x96xf32> to vector<8x96xf32>
    %744 = arith.truncf %743 : vector<8x96xf32> to vector<8x96xbf16>
    %cst_477 = arith.constant dense<0.000000e+00> : vector<8x96xf32>
    %745 = tpu.matmul %744, %725, %cst_477 {dimension_numbers = #tpu.dot_dimension_numbers<[1], [0], [0], [1], [0, 0, 1, 1], [], []>} : vector<8x96xbf16>, vector<96x96xbf16>, vector<8x96xf32> -> vector<8x96xf32>
    %746 = arith.addf %714, %745 : vector<8x96xf32>
    %cst_478 = arith.constant dense<0.000000e+00> : vector<8x96xf32>
    %747 = tpu.matmul %744, %727, %cst_478 {dimension_numbers = #tpu.dot_dimension_numbers<[1], [0], [0], [1], [0, 0, 1, 1], [], []>} : vector<8x96xbf16>, vector<96x96xbf16>, vector<8x96xf32> -> vector<8x96xf32>
    %748 = arith.addf %716, %747 : vector<8x96xf32>
    %c1_479 = arith.constant 1 : index
    %c0_480 = arith.constant 0 : index
    %c2_481 = arith.constant 2 : index
    %c0_482 = arith.constant 0 : index
    %749 = vector.load %arg12[%c1_479, %c0_480, %c2_481, %c0_482] : memref<2x2x10x96xf32, #tpu.memory_space<vmem>>, vector<1x1x8x96xf32>
    %750 = vector.shape_cast %749 : vector<1x1x8x96xf32> to vector<8x96xf32>
    %751 = arith.truncf %750 : vector<8x96xf32> to vector<8x96xbf16>
    %cst_483 = arith.constant dense<0.000000e+00> : vector<8x96xf32>
    %752 = tpu.matmul %751, %725, %cst_483 {dimension_numbers = #tpu.dot_dimension_numbers<[1], [0], [0], [1], [0, 0, 1, 1], [], []>} : vector<8x96xbf16>, vector<96x96xbf16>, vector<8x96xf32> -> vector<8x96xf32>
    %753 = arith.addf %721, %752 : vector<8x96xf32>
    %cst_484 = arith.constant dense<0.000000e+00> : vector<8x96xf32>
    %754 = tpu.matmul %751, %727, %cst_484 {dimension_numbers = #tpu.dot_dimension_numbers<[1], [0], [0], [1], [0, 0, 1, 1], [], []>} : vector<8x96xbf16>, vector<96x96xbf16>, vector<8x96xf32> -> vector<8x96xf32>
    %755 = arith.addf %723, %754 : vector<8x96xf32>
    %c4_485 = arith.constant 4 : index
    %c0_486 = arith.constant 0 : index
    %c0_487 = arith.constant 0 : index
    %c0_488 = arith.constant 0 : index
    %756 = vector.load %arg7[%c4_485, %c0_486, %c0_487, %c0_488] : memref<5x2x96x96xbf16, #tpu.memory_space<vmem>>, vector<1x1x96x96xbf16>
    %757 = vector.shape_cast %756 : vector<1x1x96x96xbf16> to vector<96x96xbf16>
    %c4_489 = arith.constant 4 : index
    %c1_490 = arith.constant 1 : index
    %c0_491 = arith.constant 0 : index
    %c0_492 = arith.constant 0 : index
    %758 = vector.load %arg7[%c4_489, %c1_490, %c0_491, %c0_492] : memref<5x2x96x96xbf16, #tpu.memory_space<vmem>>, vector<1x1x96x96xbf16>
    %759 = vector.shape_cast %758 : vector<1x1x96x96xbf16> to vector<96x96xbf16>
    %c0_493 = arith.constant 0 : index
    %c0_494 = arith.constant 0 : index
    %c2_495 = arith.constant 2 : index
    %c0_496 = arith.constant 0 : index
    %760 = vector.load %arg12[%c0_493, %c0_494, %c2_495, %c0_496] : memref<2x2x10x96xf32, #tpu.memory_space<vmem>>, vector<1x1x8x96xf32>
    %761 = vector.shape_cast %760 : vector<1x1x8x96xf32> to vector<8x96xf32>
    %762 = arith.truncf %761 : vector<8x96xf32> to vector<8x96xbf16>
    %cst_497 = arith.constant dense<0.000000e+00> : vector<8x96xf32>
    %763 = tpu.matmul %762, %757, %cst_497 {dimension_numbers = #tpu.dot_dimension_numbers<[1], [0], [0], [1], [0, 0, 1, 1], [], []>} : vector<8x96xbf16>, vector<96x96xbf16>, vector<8x96xf32> -> vector<8x96xf32>
    %764 = arith.addf %732, %763 : vector<8x96xf32>
    %cst_498 = arith.constant dense<0.000000e+00> : vector<8x96xf32>
    %765 = tpu.matmul %762, %759, %cst_498 {dimension_numbers = #tpu.dot_dimension_numbers<[1], [0], [0], [1], [0, 0, 1, 1], [], []>} : vector<8x96xbf16>, vector<96x96xbf16>, vector<8x96xf32> -> vector<8x96xf32>
    %766 = arith.addf %734, %765 : vector<8x96xf32>
    %c0_499 = arith.constant 0 : index
    %c1_500 = arith.constant 1 : index
    %c2_501 = arith.constant 2 : index
    %c0_502 = arith.constant 0 : index
    %767 = vector.load %arg12[%c0_499, %c1_500, %c2_501, %c0_502] : memref<2x2x10x96xf32, #tpu.memory_space<vmem>>, vector<1x1x8x96xf32>
    %768 = vector.shape_cast %767 : vector<1x1x8x96xf32> to vector<8x96xf32>
    %769 = arith.truncf %768 : vector<8x96xf32> to vector<8x96xbf16>
    %cst_503 = arith.constant dense<0.000000e+00> : vector<8x96xf32>
    %770 = tpu.matmul %769, %757, %cst_503 {dimension_numbers = #tpu.dot_dimension_numbers<[1], [0], [0], [1], [0, 0, 1, 1], [], []>} : vector<8x96xbf16>, vector<96x96xbf16>, vector<8x96xf32> -> vector<8x96xf32>
    %771 = arith.addf %739, %770 : vector<8x96xf32>
    %cst_504 = arith.constant dense<0.000000e+00> : vector<8x96xf32>
    %772 = tpu.matmul %769, %759, %cst_504 {dimension_numbers = #tpu.dot_dimension_numbers<[1], [0], [0], [1], [0, 0, 1, 1], [], []>} : vector<8x96xbf16>, vector<96x96xbf16>, vector<8x96xf32> -> vector<8x96xf32>
    %773 = arith.addf %741, %772 : vector<8x96xf32>
    %c1_505 = arith.constant 1 : index
    %c0_506 = arith.constant 0 : index
    %c2_507 = arith.constant 2 : index
    %c0_508 = arith.constant 0 : index
    %774 = vector.load %arg12[%c1_505, %c0_506, %c2_507, %c0_508] : memref<2x2x10x96xf32, #tpu.memory_space<vmem>>, vector<1x1x8x96xf32>
    %775 = vector.shape_cast %774 : vector<1x1x8x96xf32> to vector<8x96xf32>
    %776 = arith.truncf %775 : vector<8x96xf32> to vector<8x96xbf16>
    %cst_509 = arith.constant dense<0.000000e+00> : vector<8x96xf32>
    %777 = tpu.matmul %776, %757, %cst_509 {dimension_numbers = #tpu.dot_dimension_numbers<[1], [0], [0], [1], [0, 0, 1, 1], [], []>} : vector<8x96xbf16>, vector<96x96xbf16>, vector<8x96xf32> -> vector<8x96xf32>
    %778 = arith.addf %746, %777 : vector<8x96xf32>
    %cst_510 = arith.constant dense<0.000000e+00> : vector<8x96xf32>
    %779 = tpu.matmul %776, %759, %cst_510 {dimension_numbers = #tpu.dot_dimension_numbers<[1], [0], [0], [1], [0, 0, 1, 1], [], []>} : vector<8x96xbf16>, vector<96x96xbf16>, vector<8x96xf32> -> vector<8x96xf32>
    %780 = arith.addf %748, %779 : vector<8x96xf32>
    %c1_511 = arith.constant 1 : index
    %c1_512 = arith.constant 1 : index
    %c2_513 = arith.constant 2 : index
    %c0_514 = arith.constant 0 : index
    %781 = vector.load %arg12[%c1_511, %c1_512, %c2_513, %c0_514] : memref<2x2x10x96xf32, #tpu.memory_space<vmem>>, vector<1x1x8x96xf32>
    %782 = vector.shape_cast %781 : vector<1x1x8x96xf32> to vector<8x96xf32>
    %783 = arith.truncf %782 : vector<8x96xf32> to vector<8x96xbf16>
    %cst_515 = arith.constant dense<0.000000e+00> : vector<8x96xf32>
    %784 = tpu.matmul %783, %757, %cst_515 {dimension_numbers = #tpu.dot_dimension_numbers<[1], [0], [0], [1], [0, 0, 1, 1], [], []>} : vector<8x96xbf16>, vector<96x96xbf16>, vector<8x96xf32> -> vector<8x96xf32>
    %785 = arith.addf %753, %784 : vector<8x96xf32>
    %cst_516 = arith.constant dense<0.000000e+00> : vector<8x96xf32>
    %786 = tpu.matmul %783, %759, %cst_516 {dimension_numbers = #tpu.dot_dimension_numbers<[1], [0], [0], [1], [0, 0, 1, 1], [], []>} : vector<8x96xbf16>, vector<96x96xbf16>, vector<8x96xf32> -> vector<8x96xf32>
    %787 = arith.addf %755, %786 : vector<8x96xf32>
    %c0_517 = arith.constant 0 : index
    %c0_518 = arith.constant 0 : index
    %788 = vector.load %arg8[%c0_517, %c0_518] : memref<1x96xf32, #tpu.memory_space<vmem>>, vector<1x96xf32>
    %789 = vector.broadcast %788 : vector<1x96xf32> to vector<8x96xf32>
    %790 = arith.addf %764, %789 : vector<8x96xf32>
    %cst_519 = arith.constant 0.000000e+00 : f32
    %791 = vector.broadcast %cst_519 : f32 to vector<8x96xf32>
    %792 = arith.maximumf %790, %791 : vector<8x96xf32>
    %793 = vector.broadcast %788 : vector<1x96xf32> to vector<8x96xf32>
    %794 = arith.addf %766, %793 : vector<8x96xf32>
    %cst_520 = arith.constant 0.000000e+00 : f32
    %795 = vector.broadcast %cst_520 : f32 to vector<8x96xf32>
    %796 = arith.maximumf %794, %795 : vector<8x96xf32>
    %797 = vector.broadcast %788 : vector<1x96xf32> to vector<8x96xf32>
    %798 = arith.addf %771, %797 : vector<8x96xf32>
    %cst_521 = arith.constant 0.000000e+00 : f32
    %799 = vector.broadcast %cst_521 : f32 to vector<8x96xf32>
    %800 = arith.maximumf %798, %799 : vector<8x96xf32>
    %801 = vector.broadcast %788 : vector<1x96xf32> to vector<8x96xf32>
    %802 = arith.addf %773, %801 : vector<8x96xf32>
    %cst_522 = arith.constant 0.000000e+00 : f32
    %803 = vector.broadcast %cst_522 : f32 to vector<8x96xf32>
    %804 = arith.maximumf %802, %803 : vector<8x96xf32>
    %805 = arith.maximumf %792, %796 : vector<8x96xf32>
    %806 = arith.maximumf %800, %804 : vector<8x96xf32>
    %807 = arith.maximumf %805, %806 : vector<8x96xf32>
    %808 = vector.broadcast %788 : vector<1x96xf32> to vector<8x96xf32>
    %809 = arith.addf %778, %808 : vector<8x96xf32>
    %cst_523 = arith.constant 0.000000e+00 : f32
    %810 = vector.broadcast %cst_523 : f32 to vector<8x96xf32>
    %811 = arith.maximumf %809, %810 : vector<8x96xf32>
    %812 = vector.broadcast %788 : vector<1x96xf32> to vector<8x96xf32>
    %813 = arith.addf %780, %812 : vector<8x96xf32>
    %cst_524 = arith.constant 0.000000e+00 : f32
    %814 = vector.broadcast %cst_524 : f32 to vector<8x96xf32>
    %815 = arith.maximumf %813, %814 : vector<8x96xf32>
    %816 = vector.broadcast %788 : vector<1x96xf32> to vector<8x96xf32>
    %817 = arith.addf %785, %816 : vector<8x96xf32>
    %cst_525 = arith.constant 0.000000e+00 : f32
    %818 = vector.broadcast %cst_525 : f32 to vector<8x96xf32>
    %819 = arith.maximumf %817, %818 : vector<8x96xf32>
    %820 = vector.broadcast %788 : vector<1x96xf32> to vector<8x96xf32>
    %821 = arith.addf %787, %820 : vector<8x96xf32>
    %cst_526 = arith.constant 0.000000e+00 : f32
    %822 = vector.broadcast %cst_526 : f32 to vector<8x96xf32>
    %823 = arith.maximumf %821, %822 : vector<8x96xf32>
    %824 = arith.maximumf %811, %815 : vector<8x96xf32>
    %825 = arith.maximumf %819, %823 : vector<8x96xf32>
    %826 = arith.maximumf %824, %825 : vector<8x96xf32>
    %c0_527 = arith.constant 0 : index
    %c0_528 = arith.constant 0 : index
    %827 = vector.load %arg10[%c0_527, %c0_528] : memref<1x10xf32, #tpu.memory_space<vmem>>, vector<1x10xf32>
    %c0_529 = arith.constant 0 : index
    %c0_530 = arith.constant 0 : index
    %c0_531 = arith.constant 0 : index
    %828 = vector.load %arg9[%c0_529, %c0_530, %c0_531] : memref<8x96x10xf32, #tpu.memory_space<vmem>>, vector<1x96x10xf32>
    %829 = vector.shape_cast %828 : vector<1x96x10xf32> to vector<96x10xf32>
    %830 = vector.extract_strided_slice %807 {offsets = [0, 0], sizes = [1, 96], strides = [1, 1]} : vector<8x96xf32> to vector<1x96xf32>
    %cst_532 = arith.constant dense<0.000000e+00> : vector<1x10xf32>
    %831 = tpu.matmul %830, %829, %cst_532 {dimension_numbers = #tpu.dot_dimension_numbers<[1], [0], [0], [1], [0, 0, 1, 1], [], []>} : vector<1x96xf32>, vector<96x10xf32>, vector<1x10xf32> -> vector<1x10xf32>
    %832 = arith.addf %827, %831 : vector<1x10xf32>
    %833 = vector.extract_strided_slice %826 {offsets = [0, 0], sizes = [1, 96], strides = [1, 1]} : vector<8x96xf32> to vector<1x96xf32>
    %cst_533 = arith.constant dense<0.000000e+00> : vector<1x10xf32>
    %834 = tpu.matmul %833, %829, %cst_533 {dimension_numbers = #tpu.dot_dimension_numbers<[1], [0], [0], [1], [0, 0, 1, 1], [], []>} : vector<1x96xf32>, vector<96x10xf32>, vector<1x10xf32> -> vector<1x10xf32>
    %835 = arith.addf %827, %834 : vector<1x10xf32>
    %c1_534 = arith.constant 1 : index
    %c0_535 = arith.constant 0 : index
    %c0_536 = arith.constant 0 : index
    %836 = vector.load %arg9[%c1_534, %c0_535, %c0_536] : memref<8x96x10xf32, #tpu.memory_space<vmem>>, vector<1x96x10xf32>
    %837 = vector.shape_cast %836 : vector<1x96x10xf32> to vector<96x10xf32>
    %838 = vector.extract_strided_slice %807 {offsets = [1, 0], sizes = [1, 96], strides = [1, 1]} : vector<8x96xf32> to vector<1x96xf32>
    %cst_537 = arith.constant dense<0.000000e+00> : vector<1x10xf32>
    %839 = tpu.matmul %838, %837, %cst_537 {dimension_numbers = #tpu.dot_dimension_numbers<[1], [0], [0], [1], [0, 0, 1, 1], [], []>} : vector<1x96xf32>, vector<96x10xf32>, vector<1x10xf32> -> vector<1x10xf32>
    %840 = arith.addf %832, %839 : vector<1x10xf32>
    %841 = vector.extract_strided_slice %826 {offsets = [1, 0], sizes = [1, 96], strides = [1, 1]} : vector<8x96xf32> to vector<1x96xf32>
    %cst_538 = arith.constant dense<0.000000e+00> : vector<1x10xf32>
    %842 = tpu.matmul %841, %837, %cst_538 {dimension_numbers = #tpu.dot_dimension_numbers<[1], [0], [0], [1], [0, 0, 1, 1], [], []>} : vector<1x96xf32>, vector<96x10xf32>, vector<1x10xf32> -> vector<1x10xf32>
    %843 = arith.addf %835, %842 : vector<1x10xf32>
    %c2_539 = arith.constant 2 : index
    %c0_540 = arith.constant 0 : index
    %c0_541 = arith.constant 0 : index
    %844 = vector.load %arg9[%c2_539, %c0_540, %c0_541] : memref<8x96x10xf32, #tpu.memory_space<vmem>>, vector<1x96x10xf32>
    %845 = vector.shape_cast %844 : vector<1x96x10xf32> to vector<96x10xf32>
    %846 = vector.extract_strided_slice %807 {offsets = [2, 0], sizes = [1, 96], strides = [1, 1]} : vector<8x96xf32> to vector<1x96xf32>
    %cst_542 = arith.constant dense<0.000000e+00> : vector<1x10xf32>
    %847 = tpu.matmul %846, %845, %cst_542 {dimension_numbers = #tpu.dot_dimension_numbers<[1], [0], [0], [1], [0, 0, 1, 1], [], []>} : vector<1x96xf32>, vector<96x10xf32>, vector<1x10xf32> -> vector<1x10xf32>
    %848 = arith.addf %840, %847 : vector<1x10xf32>
    %849 = vector.extract_strided_slice %826 {offsets = [2, 0], sizes = [1, 96], strides = [1, 1]} : vector<8x96xf32> to vector<1x96xf32>
    %cst_543 = arith.constant dense<0.000000e+00> : vector<1x10xf32>
    %850 = tpu.matmul %849, %845, %cst_543 {dimension_numbers = #tpu.dot_dimension_numbers<[1], [0], [0], [1], [0, 0, 1, 1], [], []>} : vector<1x96xf32>, vector<96x10xf32>, vector<1x10xf32> -> vector<1x10xf32>
    %851 = arith.addf %843, %850 : vector<1x10xf32>
    %c3_544 = arith.constant 3 : index
    %c0_545 = arith.constant 0 : index
    %c0_546 = arith.constant 0 : index
    %852 = vector.load %arg9[%c3_544, %c0_545, %c0_546] : memref<8x96x10xf32, #tpu.memory_space<vmem>>, vector<1x96x10xf32>
    %853 = vector.shape_cast %852 : vector<1x96x10xf32> to vector<96x10xf32>
    %854 = vector.extract_strided_slice %807 {offsets = [3, 0], sizes = [1, 96], strides = [1, 1]} : vector<8x96xf32> to vector<1x96xf32>
    %cst_547 = arith.constant dense<0.000000e+00> : vector<1x10xf32>
    %855 = tpu.matmul %854, %853, %cst_547 {dimension_numbers = #tpu.dot_dimension_numbers<[1], [0], [0], [1], [0, 0, 1, 1], [], []>} : vector<1x96xf32>, vector<96x10xf32>, vector<1x10xf32> -> vector<1x10xf32>
    %856 = arith.addf %848, %855 : vector<1x10xf32>
    %857 = vector.extract_strided_slice %826 {offsets = [3, 0], sizes = [1, 96], strides = [1, 1]} : vector<8x96xf32> to vector<1x96xf32>
    %cst_548 = arith.constant dense<0.000000e+00> : vector<1x10xf32>
    %858 = tpu.matmul %857, %853, %cst_548 {dimension_numbers = #tpu.dot_dimension_numbers<[1], [0], [0], [1], [0, 0, 1, 1], [], []>} : vector<1x96xf32>, vector<96x10xf32>, vector<1x10xf32> -> vector<1x10xf32>
    %859 = arith.addf %851, %858 : vector<1x10xf32>
    %c4_549 = arith.constant 4 : index
    %c0_550 = arith.constant 0 : index
    %c0_551 = arith.constant 0 : index
    %860 = vector.load %arg9[%c4_549, %c0_550, %c0_551] : memref<8x96x10xf32, #tpu.memory_space<vmem>>, vector<1x96x10xf32>
    %861 = vector.shape_cast %860 : vector<1x96x10xf32> to vector<96x10xf32>
    %862 = vector.extract_strided_slice %807 {offsets = [4, 0], sizes = [1, 96], strides = [1, 1]} : vector<8x96xf32> to vector<1x96xf32>
    %cst_552 = arith.constant dense<0.000000e+00> : vector<1x10xf32>
    %863 = tpu.matmul %862, %861, %cst_552 {dimension_numbers = #tpu.dot_dimension_numbers<[1], [0], [0], [1], [0, 0, 1, 1], [], []>} : vector<1x96xf32>, vector<96x10xf32>, vector<1x10xf32> -> vector<1x10xf32>
    %864 = arith.addf %856, %863 : vector<1x10xf32>
    %865 = vector.extract_strided_slice %826 {offsets = [4, 0], sizes = [1, 96], strides = [1, 1]} : vector<8x96xf32> to vector<1x96xf32>
    %cst_553 = arith.constant dense<0.000000e+00> : vector<1x10xf32>
    %866 = tpu.matmul %865, %861, %cst_553 {dimension_numbers = #tpu.dot_dimension_numbers<[1], [0], [0], [1], [0, 0, 1, 1], [], []>} : vector<1x96xf32>, vector<96x10xf32>, vector<1x10xf32> -> vector<1x10xf32>
    %867 = arith.addf %859, %866 : vector<1x10xf32>
    %c5 = arith.constant 5 : index
    %c0_554 = arith.constant 0 : index
    %c0_555 = arith.constant 0 : index
    %868 = vector.load %arg9[%c5, %c0_554, %c0_555] : memref<8x96x10xf32, #tpu.memory_space<vmem>>, vector<1x96x10xf32>
    %869 = vector.shape_cast %868 : vector<1x96x10xf32> to vector<96x10xf32>
    %870 = vector.extract_strided_slice %807 {offsets = [5, 0], sizes = [1, 96], strides = [1, 1]} : vector<8x96xf32> to vector<1x96xf32>
    %cst_556 = arith.constant dense<0.000000e+00> : vector<1x10xf32>
    %871 = tpu.matmul %870, %869, %cst_556 {dimension_numbers = #tpu.dot_dimension_numbers<[1], [0], [0], [1], [0, 0, 1, 1], [], []>} : vector<1x96xf32>, vector<96x10xf32>, vector<1x10xf32> -> vector<1x10xf32>
    %872 = arith.addf %864, %871 : vector<1x10xf32>
    %873 = vector.extract_strided_slice %826 {offsets = [5, 0], sizes = [1, 96], strides = [1, 1]} : vector<8x96xf32> to vector<1x96xf32>
    %cst_557 = arith.constant dense<0.000000e+00> : vector<1x10xf32>
    %874 = tpu.matmul %873, %869, %cst_557 {dimension_numbers = #tpu.dot_dimension_numbers<[1], [0], [0], [1], [0, 0, 1, 1], [], []>} : vector<1x96xf32>, vector<96x10xf32>, vector<1x10xf32> -> vector<1x10xf32>
    %875 = arith.addf %867, %874 : vector<1x10xf32>
    %c6 = arith.constant 6 : index
    %c0_558 = arith.constant 0 : index
    %c0_559 = arith.constant 0 : index
    %876 = vector.load %arg9[%c6, %c0_558, %c0_559] : memref<8x96x10xf32, #tpu.memory_space<vmem>>, vector<1x96x10xf32>
    %877 = vector.shape_cast %876 : vector<1x96x10xf32> to vector<96x10xf32>
    %878 = vector.extract_strided_slice %807 {offsets = [6, 0], sizes = [1, 96], strides = [1, 1]} : vector<8x96xf32> to vector<1x96xf32>
    %cst_560 = arith.constant dense<0.000000e+00> : vector<1x10xf32>
    %879 = tpu.matmul %878, %877, %cst_560 {dimension_numbers = #tpu.dot_dimension_numbers<[1], [0], [0], [1], [0, 0, 1, 1], [], []>} : vector<1x96xf32>, vector<96x10xf32>, vector<1x10xf32> -> vector<1x10xf32>
    %880 = arith.addf %872, %879 : vector<1x10xf32>
    %881 = vector.extract_strided_slice %826 {offsets = [6, 0], sizes = [1, 96], strides = [1, 1]} : vector<8x96xf32> to vector<1x96xf32>
    %cst_561 = arith.constant dense<0.000000e+00> : vector<1x10xf32>
    %882 = tpu.matmul %881, %877, %cst_561 {dimension_numbers = #tpu.dot_dimension_numbers<[1], [0], [0], [1], [0, 0, 1, 1], [], []>} : vector<1x96xf32>, vector<96x10xf32>, vector<1x10xf32> -> vector<1x10xf32>
    %883 = arith.addf %875, %882 : vector<1x10xf32>
    %c7 = arith.constant 7 : index
    %c0_562 = arith.constant 0 : index
    %c0_563 = arith.constant 0 : index
    %884 = vector.load %arg9[%c7, %c0_562, %c0_563] : memref<8x96x10xf32, #tpu.memory_space<vmem>>, vector<1x96x10xf32>
    %885 = vector.shape_cast %884 : vector<1x96x10xf32> to vector<96x10xf32>
    %886 = vector.extract_strided_slice %807 {offsets = [7, 0], sizes = [1, 96], strides = [1, 1]} : vector<8x96xf32> to vector<1x96xf32>
    %cst_564 = arith.constant dense<0.000000e+00> : vector<1x10xf32>
    %887 = tpu.matmul %886, %885, %cst_564 {dimension_numbers = #tpu.dot_dimension_numbers<[1], [0], [0], [1], [0, 0, 1, 1], [], []>} : vector<1x96xf32>, vector<96x10xf32>, vector<1x10xf32> -> vector<1x10xf32>
    %888 = arith.addf %880, %887 : vector<1x10xf32>
    %889 = vector.extract_strided_slice %826 {offsets = [7, 0], sizes = [1, 96], strides = [1, 1]} : vector<8x96xf32> to vector<1x96xf32>
    %cst_565 = arith.constant dense<0.000000e+00> : vector<1x10xf32>
    %890 = tpu.matmul %889, %885, %cst_565 {dimension_numbers = #tpu.dot_dimension_numbers<[1], [0], [0], [1], [0, 0, 1, 1], [], []>} : vector<1x96xf32>, vector<96x10xf32>, vector<1x10xf32> -> vector<1x10xf32>
    %891 = arith.addf %883, %890 : vector<1x10xf32>
    %c0_566 = arith.constant 0 : index
    %c0_567 = arith.constant 0 : index
    %892 = vector.load %arg11[%c0_566, %c0_567] : memref<2x10xf32, #tpu.memory_space<vmem>>, vector<1x10xf32>
    tpu.vector_store %arg11[%c0_566, %c0_567], %888 {strides = array<i32>} : memref<2x10xf32, #tpu.memory_space<vmem>>, vector<1x10xf32>,
    %c1_568 = arith.constant 1 : index
    %c0_569 = arith.constant 0 : index
    %893 = vector.load %arg11[%c1_568, %c0_569] : memref<2x10xf32, #tpu.memory_space<vmem>>, vector<1x10xf32>
    tpu.vector_store %arg11[%c1_568, %c0_569], %891 {strides = array<i32>} : memref<2x10xf32, #tpu.memory_space<vmem>>, vector<1x10xf32>,
    return
  }
}

</mosaic_0001>

<llo_original>
// kernel: tile.13
$region0: #{tile.13}
  #allocation0 [shape = 's32[1]{0}', space=sflag, size = 0x4, scoped, tag = 'scoped memory for tile.13']
  %s0 = inlined_call_operand.vmem [shape: f32[6], index: 0, kind: input, shape index: {}]
  %s1 = inlined_call_operand.vmem [shape: f32[16,6], index: 1, kind: output, shape index: {}]
  // Predicated region
  $region2: #{tile.13} parent=0 // pred_check
    _
  $region3: #{tile.13} parent=0 // pred_check_branch
    %3 = sbr.rel (0) target = $region5
  $region4: #{tile.13} parent=0 // pred_region
    _
  $region5: #{tile.13} parent=0 // pred_fallthru
    _
  %v4 = vld [vmem:[%s0] ss:$0 sm:$0xff]
  %5 = vst [vmem:[%s1] sm:$0xff] %v4
  %s6 = scalar_lea.vmem %s1, 8
  %7 = vst [vmem:[%s6] sm:$0xff] %v4

// kernel: tile.14
$region0: #{tile.14}
  %s0 = inlined_call_operand.vmem [shape: f32[16,6], index: 0, kind: input, shape index: {}]
  %s1 = inlined_call_operand.vmem [shape: f32[1,96], index: 1, kind: output, shape index: {}]
  $region1: #{tile.14} parent=0
    #allocation0 [shape = 'u8[4096]{0}', space=vmem, size = 0x1000, scoped, tag = 'scoped mem for output reshape']
    %v2 = vld [vmem:[%s0] sm:$0x1]
    %vm3 = vcmask 48128
    %4 = vst.msk [vmem:[#allocation0] sm:$0x1] %vm3, %v2
    %s5 = scalar_lea.vmem %s0, 15
    %v6 = vld [vmem:[%s5] sm:$0x1]
    %7 = vrot.lane.b32.xlu0 %v6, 90
    %v8 = vpop.permute.xlu0 %7
    %vm9 = vcmask 786128
    %10 = vst.msk [vmem:[#allocation0] sm:$0x1] %vm9, %v8
    %s11 = scalar_lea.vmem %s0, 14
    %v12 = vld [vmem:[%s11] sm:$0x1]
    %13 = vrot.lane.b32.xlu0 %v12, 84
    %v14 = vpop.permute.xlu0 %13
    %vm15 = vcmask 736928
    %16 = vst.msk [vmem:[#allocation0] sm:$0x1] %vm15, %v14
    %s17 = scalar_lea.vmem %s0, 13
    %v18 = vld [vmem:[%s17] sm:$0x1]
    %19 = vrot.lane.b32.xlu0 %v18, 78
    %v20 = vpop.permute.xlu0 %19
    %vm21 = vcmask 687728
    %22 = vst.msk [vmem:[#allocation0] sm:$0x1] %vm21, %v20
    %s23 = scalar_lea.vmem %s0, 12
    %v24 = vld [vmem:[%s23] sm:$0x1]
    %25 = vrot.lane.b32.xlu0 %v24, 72
    %v26 = vpop.permute.xlu0 %25
    %vm27 = vcmask 638528
    %28 = vst.msk [vmem:[#allocation0] sm:$0x1] %vm27, %v26
    %s29 = scalar_lea.vmem %s0, 11
    %v30 = vld [vmem:[%s29] sm:$0x1]
    %31 = vrot.lane.b32.xlu0 %v30, 66
    %v32 = vpop.permute.xlu0 %31
    %vm33 = vcmask 589328
    %34 = vst.msk [vmem:[#allocation0] sm:$0x1] %vm33, %v32
    %s35 = scalar_lea.vmem %s0, 10
    %v36 = vld [vmem:[%s35] sm:$0x1]
    %37 = vrot.lane.b32.xlu0 %v36, 60
    %v38 = vpop.permute.xlu0 %37
    %vm39 = vcmask 540128
    %40 = vst.msk [vmem:[#allocation0] sm:$0x1] %vm39, %v38
    %s41 = scalar_lea.vmem %s0, 9
    %v42 = vld [vmem:[%s41] sm:$0x1]
    %43 = vrot.lane.b32.xlu0 %v42, 54
    %v44 = vpop.permute.xlu0 %43
    %vm45 = vcmask 490928
    %46 = vst.msk [vmem:[#allocation0] sm:$0x1] %vm45, %v44
    %s47 = scalar_lea.vmem %s0, 8
    %v48 = vld [vmem:[%s47] sm:$0x1]
    %49 = vrot.lane.b32.xlu0 %v48, 48
    %v50 = vpop.permute.xlu0 %49
    %vm51 = vcmask 441728
    %52 = vst.msk [vmem:[#allocation0] sm:$0x1] %vm51, %v50
    %s53 = scalar_lea.vmem %s0, 7
    %v54 = vld [vmem:[%s53] sm:$0x1]
    %55 = vrot.lane.b32.xlu0 %v54, 42
    %v56 = vpop.permute.xlu0 %55
    %vm57 = vcmask 392528
    %58 = vst.msk [vmem:[#allocation0] sm:$0x1] %vm57, %v56
    %s59 = scalar_lea.vmem %s0, 6
    %v60 = vld [vmem:[%s59] sm:$0x1]
    %61 = vrot.lane.b32.xlu0 %v60, 36
    %v62 = vpop.permute.xlu0 %61
    %vm63 = vcmask 343328
    %64 = vst.msk [vmem:[#allocation0] sm:$0x1] %vm63, %v62
    %s65 = scalar_lea.vmem %s0, 5
    %v66 = vld [vmem:[%s65] sm:$0x1]
    %67 = vrot.lane.b32.xlu0 %v66, 30
    %v68 = vpop.permute.xlu0 %67
    %vm69 = vcmask 294128
    %70 = vst.msk [vmem:[#allocation0] sm:$0x1] %vm69, %v68
    %s71 = scalar_lea.vmem %s0, 4
    %v72 = vld [vmem:[%s71] sm:$0x1]
    %73 = vrot.lane.b32.xlu0 %v72, 24
    %v74 = vpop.permute.xlu0 %73
    %vm75 = vcmask 244928
    %76 = vst.msk [vmem:[#allocation0] sm:$0x1] %vm75, %v74
    %s77 = scalar_lea.vmem %s0, 3
    %v78 = vld [vmem:[%s77] sm:$0x1]
    %79 = vrot.lane.b32.xlu0 %v78, 18
    %v80 = vpop.permute.xlu0 %79
    %vm81 = vcmask 195728
    %82 = vst.msk [vmem:[#allocation0] sm:$0x1] %vm81, %v80
    %s83 = scalar_lea.vmem %s0, 2
    %v84 = vld [vmem:[%s83] sm:$0x1]
    %85 = vrot.lane.b32.xlu0 %v84, 12
    %v86 = vpop.permute.xlu0 %85
    %vm87 = vcmask 146528
    %88 = vst.msk [vmem:[#allocation0] sm:$0x1] %vm87, %v86
    %s89 = scalar_lea.vmem %s0, 1
    %v90 = vld [vmem:[%s89] sm:$0x1]
    %91 = vrot.lane.b32.xlu0 %v90, 6
    %v92 = vpop.permute.xlu0 %91
    %vm93 = vcmask 97328
    %94 = vst.msk [vmem:[#allocation0] sm:$0x1] %vm93, %v92
    %s96 = sshll.u32 1, 1
    %s97 = ssub.s32 %s96, 1
    %v99 = vld [vmem:[#allocation0] sm:%s97]
    %s100 = sshll.u32 1, 1
    %s101 = ssub.s32 %s100, 1
    %102 = vst [vmem:[%s1] sm:%s101] %v99

// kernel: tile.18
$region0: #{tile.18}
  #allocation0 [shape = 's32[1]{0}', space=sflag, size = 0x4, scoped, tag = 'scoped memory for tile.18']
  %s0 = inlined_call_operand.vmem [shape: f32[12], index: 0, kind: input, shape index: {}]
  %s1 = inlined_call_operand.vmem [shape: f32[8,12], index: 1, kind: output, shape index: {}]
  // Predicated region
  $region2: #{tile.18} parent=0 // pred_check
    _
  $region3: #{tile.18} parent=0 // pred_check_branch
    %3 = sbr.rel (0) target = $region5
  $region4: #{tile.18} parent=0 // pred_region
    _
  $region5: #{tile.18} parent=0 // pred_fallthru
    _
  %v4 = vld [vmem:[%s0] ss:$0 sm:$0xff]
  %5 = vst [vmem:[%s1] sm:$0xff] %v4

// kernel: tile.19
$region0: #{tile.19}
  %s0 = inlined_call_operand.vmem [shape: f32[8,12], index: 0, kind: input, shape index: {}]
  %s1 = inlined_call_operand.vmem [shape: f32[1,96], index: 1, kind: output, shape index: {}]
  $region1: #{tile.19} parent=0
    #allocation0 [shape = 'u8[4096]{0}', space=vmem, size = 0x1000, scoped, tag = 'scoped mem for output reshape']
    %v2 = vld [vmem:[%s0] sm:$0x1]
    %vm3 = vcmask 97280
    %4 = vst.msk [vmem:[#allocation0] sm:$0x1] %vm3, %v2
    %s5 = scalar_lea.vmem %s0, 7
    %v6 = vld [vmem:[%s5] sm:$0x1]
    %7 = vrot.lane.b32.xlu0 %v6, 84
    %v8 = vpop.permute.xlu0 %7
    %vm9 = vcmask 786080
    %10 = vst.msk [vmem:[#allocation0] sm:$0x1] %vm9, %v8
    %s11 = scalar_lea.vmem %s0, 6
    %v12 = vld [vmem:[%s11] sm:$0x1]
    %13 = vrot.lane.b32.xlu0 %v12, 72
    %v14 = vpop.permute.xlu0 %13
    %vm15 = vcmask 687680
    %16 = vst.msk [vmem:[#allocation0] sm:$0x1] %vm15, %v14
    %s17 = scalar_lea.vmem %s0, 5
    %v18 = vld [vmem:[%s17] sm:$0x1]
    %19 = vrot.lane.b32.xlu0 %v18, 60
    %v20 = vpop.permute.xlu0 %19
    %vm21 = vcmask 589280
    %22 = vst.msk [vmem:[#allocation0] sm:$0x1] %vm21, %v20
    %s23 = scalar_lea.vmem %s0, 4
    %v24 = vld [vmem:[%s23] sm:$0x1]
    %25 = vrot.lane.b32.xlu0 %v24, 48
    %v26 = vpop.permute.xlu0 %25
    %vm27 = vcmask 490880
    %28 = vst.msk [vmem:[#allocation0] sm:$0x1] %vm27, %v26
    %s29 = scalar_lea.vmem %s0, 3
    %v30 = vld [vmem:[%s29] sm:$0x1]
    %31 = vrot.lane.b32.xlu0 %v30, 36
    %v32 = vpop.permute.xlu0 %31
    %vm33 = vcmask 392480
    %34 = vst.msk [vmem:[#allocation0] sm:$0x1] %vm33, %v32
    %s35 = scalar_lea.vmem %s0, 2
    %v36 = vld [vmem:[%s35] sm:$0x1]
    %37 = vrot.lane.b32.xlu0 %v36, 24
    %v38 = vpop.permute.xlu0 %37
    %vm39 = vcmask 294080
    %40 = vst.msk [vmem:[#allocation0] sm:$0x1] %vm39, %v38
    %s41 = scalar_lea.vmem %s0, 1
    %v42 = vld [vmem:[%s41] sm:$0x1]
    %43 = vrot.lane.b32.xlu0 %v42, 12
    %v44 = vpop.permute.xlu0 %43
    %vm45 = vcmask 195680
    %46 = vst.msk [vmem:[#allocation0] sm:$0x1] %vm45, %v44
    %s48 = sshll.u32 1, 1
    %s49 = ssub.s32 %s48, 1
    %v51 = vld [vmem:[#allocation0] sm:%s49]
    %s52 = sshll.u32 1, 1
    %s53 = ssub.s32 %s52, 1
    %54 = vst [vmem:[%s1] sm:%s53] %v51

// kernel: my_small_cnn_forward.1
$region0: #{my_small_cnn_forward.1}
  #allocation0 [shape = 'u32[]', space=smem, size = 0x4, offset = 0x4, fixed_abs, tag = 'smem constant byte address 0x4 - core index']
  #allocation1 [shape = 'u32[144,128]{1,0:T(1,128)}', space=vmem, size = 0x12000, scoped, tag = 'internal scratch']
  #allocation2 [shape = 'f32[2,2,10,96]{3,2,1,0:T(8,128)}', space=vmem, size = 0x8000, scoped, tag = 'scratch operand']
  %s0 = inlined_call_operand.vmem [shape: f32[2,36,96], index: 0, kind: input, shape index: {}]
  %s1 = inlined_call_operand.vmem [shape: bf16[5,2,96,96], index: 1, kind: input, shape index: {}]
  %s2 = inlined_call_operand.vmem [shape: f32[1,96], index: 2, kind: input, shape index: {}]
  %s3 = inlined_call_operand.vmem [shape: f32[96,8], index: 3, kind: input, shape index: {}]
  %s4 = inlined_call_operand.vmem [shape: f32[8,96], index: 4, kind: input, shape index: {}]
  %s5 = inlined_call_operand.vmem [shape: f32[1,8], index: 5, kind: input, shape index: {}]
  %s6 = inlined_call_operand.vmem [shape: f32[1,8], index: 6, kind: input, shape index: {}]
  %s7 = inlined_call_operand.vmem [shape: bf16[5,2,96,96], index: 7, kind: input, shape index: {}]
  %s8 = inlined_call_operand.vmem [shape: f32[1,96], index: 8, kind: input, shape index: {}]
  %s9 = inlined_call_operand.vmem [shape: f32[8,96,10], index: 9, kind: input, shape index: {}]
  %s10 = inlined_call_operand.vmem [shape: f32[1,10], index: 10, kind: input, shape index: {}]
  %s11 = inlined_call_operand.hbm [shape: f32[2,10], index: 11, kind: output, shape index: {}]
  %s12 = sld [smem:[#allocation0]]
  $region54: #{my_small_cnn_forward.1} parent=0
    _
  %s14 = ssub.s32 1, %s12
  %s15 = scalar_select 0, %s14, %s12
  $region1: #{my_small_cnn_forward.1} parent=0
    #allocation3 [shape = 'u8[1024]{0}', space=vmem, size = 0x400, scoped, tag = 'output window, operand 0, single buffered']
    #allocation4 [shape = 's32[1]{0}', space=sflag, size = 0x4, scoped, tag = 'scoped memory for my_small_cnn_forward.1']
    %16 = vsyncpa [#allocation4], 0
    // Predicated region
    $region2: #{my_small_cnn_forward.1} parent=1 // pred_check
      _
    $region3: #{my_small_cnn_forward.1} parent=1 // pred_check_branch
      %18 = sbr.rel (0) target = $region5
    $region4: #{my_small_cnn_forward.1} parent=1 // pred_region
      _
    $region5: #{my_small_cnn_forward.1} parent=1 // pred_fallthru
      _
    // Predicated region
    $region6: #{my_small_cnn_forward.1} parent=1 // pred_check
      _
    $region7: #{my_small_cnn_forward.1} parent=1 // pred_check_branch
      %20 = sbr.rel (0) target = $region9
    $region8: #{my_small_cnn_forward.1} parent=1 // pred_region
      _
    $region9: #{my_small_cnn_forward.1} parent=1 // pred_fallthru
      _
    // Predicated region
    $region10: #{my_small_cnn_forward.1} parent=1 // pred_check
      _
    $region11: #{my_small_cnn_forward.1} parent=1 // pred_check_branch
      %22 = sbr.rel (0) target = $region13
    $region12: #{my_small_cnn_forward.1} parent=1 // pred_region
      _
    $region13: #{my_small_cnn_forward.1} parent=1 // pred_fallthru
      _
    // Predicated region
    $region14: #{my_small_cnn_forward.1} parent=1 // pred_check
      _
    $region15: #{my_small_cnn_forward.1} parent=1 // pred_check_branch
      %24 = sbr.rel (0) target = $region17
    $region16: #{my_small_cnn_forward.1} parent=1 // pred_region
      _
    $region17: #{my_small_cnn_forward.1} parent=1 // pred_fallthru
      _
    // Predicated region
    $region18: #{my_small_cnn_forward.1} parent=1 // pred_check
      _
    $region19: #{my_small_cnn_forward.1} parent=1 // pred_check_branch
      %26 = sbr.rel (0) target = $region21
    $region20: #{my_small_cnn_forward.1} parent=1 // pred_region
      _
    $region21: #{my_small_cnn_forward.1} parent=1 // pred_fallthru
      _
    // Predicated region
    $region22: #{my_small_cnn_forward.1} parent=1 // pred_check
      _
    $region23: #{my_small_cnn_forward.1} parent=1 // pred_check_branch
      %28 = sbr.rel (0) target = $region25
    $region24: #{my_small_cnn_forward.1} parent=1 // pred_region
      _
    $region25: #{my_small_cnn_forward.1} parent=1 // pred_fallthru
      _
    // Predicated region
    $region26: #{my_small_cnn_forward.1} parent=1 // pred_check
      _
    $region27: #{my_small_cnn_forward.1} parent=1 // pred_check_branch
      %30 = sbr.rel (0) target = $region29
    $region28: #{my_small_cnn_forward.1} parent=1 // pred_region
      _
    $region29: #{my_small_cnn_forward.1} parent=1 // pred_fallthru
      _
    // Predicated region
    $region30: #{my_small_cnn_forward.1} parent=1 // pred_check
      _
    $region31: #{my_small_cnn_forward.1} parent=1 // pred_check_branch
      %32 = sbr.rel (0) target = $region33
    $region32: #{my_small_cnn_forward.1} parent=1 // pred_region
      _
    $region33: #{my_small_cnn_forward.1} parent=1 // pred_fallthru
      _
    // Predicated region
    $region34: #{my_small_cnn_forward.1} parent=1 // pred_check
      _
    $region35: #{my_small_cnn_forward.1} parent=1 // pred_check_branch
      %34 = sbr.rel (0) target = $region37
    $region36: #{my_small_cnn_forward.1} parent=1 // pred_region
      _
    $region37: #{my_small_cnn_forward.1} parent=1 // pred_fallthru
      _
    // Predicated region
    $region38: #{my_small_cnn_forward.1} parent=1 // pred_check
      _
    $region39: #{my_small_cnn_forward.1} parent=1 // pred_check_branch
      %36 = sbr.rel (0) target = $region41
    $region40: #{my_small_cnn_forward.1} parent=1 // pred_region
      _
    $region41: #{my_small_cnn_forward.1} parent=1 // pred_fallthru
      _
    // Predicated region
    $region42: #{my_small_cnn_forward.1} parent=1 // pred_check
      _
    $region43: #{my_small_cnn_forward.1} parent=1 // pred_check_branch
      %38 = sbr.rel (0) target = $region45
    $region44: #{my_small_cnn_forward.1} parent=1 // pred_region
      _
    $region45: #{my_small_cnn_forward.1} parent=1 // pred_fallthru
      _
    %v40 = vld [vmem:[%s1] sm:$0xf]
    %v41 = vld [vmem:[%s1 + $0x4] sm:$0xf]
    %v42 = vld [vmem:[%s1 + $0x8] sm:$0xf]
    %v43 = vld [vmem:[%s1 + $0xc] sm:$0xf]
    %v44 = vld [vmem:[%s1 + $0x10] sm:$0xf]
    %v45 = vld [vmem:[%s1 + $0x14] sm:$0xf]
    %v46 = vld [vmem:[%s1 + $0x18] sm:$0xf]
    %v47 = vld [vmem:[%s1 + $0x1c] sm:$0xf]
    %v48 = vld [vmem:[%s1 + $0x20] sm:$0xf]
    %v49 = vld [vmem:[%s1 + $0x24] sm:$0xf]
    %v50 = vld [vmem:[%s1 + $0x28] sm:$0xf]
    %v51 = vld [vmem:[%s1 + $0x2c] sm:$0xf]
    %s52 = scalar_lea.vmem %s1, 48
    %v53 = vld [vmem:[%s52] sm:$0xf]
    %v54 = vld [vmem:[%s52 + $0x4] sm:$0xf]
    %v55 = vld [vmem:[%s52 + $0x8] sm:$0xf]
    %v56 = vld [vmem:[%s52 + $0xc] sm:$0xf]
    %v57 = vld [vmem:[%s52 + $0x10] sm:$0xf]
    %v58 = vld [vmem:[%s52 + $0x14] sm:$0xf]
    %v59 = vld [vmem:[%s52 + $0x18] sm:$0xf]
    %v60 = vld [vmem:[%s52 + $0x1c] sm:$0xf]
    %v61 = vld [vmem:[%s52 + $0x20] sm:$0xf]
    %v62 = vld [vmem:[%s52 + $0x24] sm:$0xf]
    %v63 = vld [vmem:[%s52 + $0x28] sm:$0xf]
    %v64 = vld [vmem:[%s52 + $0x2c] sm:$0xf]
    %v65 = vld [vmem:[%s0] sm:$0xff]
    %v66 = vpack.c.bf16 %v65, %v65
    %v67 = vld [vmem:[%s0 + $0x9] sm:$0xff]
    %v68 = vpack.c.bf16 %v67, %v67
    %v69 = vld [vmem:[%s0 + $0x12] sm:$0xff]
    %v70 = vpack.c.bf16 %v69, %v69
    %v71 = vld [vmem:[%s0 + $0x1b] sm:$0xff]
    %v72 = vpack.c.bf16 %v71, %v71
    %s73 = scalar_lea.vmem %s0, 40
    %v74 = vld [vmem:[%s73] sm:$0xff]
    %v75 = vpack.c.bf16 %v74, %v74
    %v76 = vld [vmem:[%s73 + $0x9] sm:$0xff]
    %v77 = vpack.c.bf16 %v76, %v76
    %v78 = vld [vmem:[%s73 + $0x12] sm:$0xff]
    %v79 = vpack.c.bf16 %v78, %v78
    %v80 = vld [vmem:[%s73 + $0x1b] sm:$0xff]
    %v81 = vpack.c.bf16 %v80, %v80
    %s82 = scalar_lea.vmem %s1, 96
    %v83 = vld [vmem:[%s82] sm:$0xf]
    %v84 = vld [vmem:[%s82 + $0x4] sm:$0xf]
    %v85 = vld [vmem:[%s82 + $0x8] sm:$0xf]
    %v86 = vld [vmem:[%s82 + $0xc] sm:$0xf]
    %v87 = vld [vmem:[%s82 + $0x10] sm:$0xf]
    %v88 = vld [vmem:[%s82 + $0x14] sm:$0xf]
    %v89 = vld [vmem:[%s82 + $0x18] sm:$0xf]
    %v90 = vld [vmem:[%s82 + $0x1c] sm:$0xf]
    %v91 = vld [vmem:[%s82 + $0x20] sm:$0xf]
    %v92 = vld [vmem:[%s82 + $0x24] sm:$0xf]
    %v93 = vld [vmem:[%s82 + $0x28] sm:$0xf]
    %v94 = vld [vmem:[%s82 + $0x2c] sm:$0xf]
    %s95 = scalar_lea.vmem %s1, 144
    %v96 = vld [vmem:[%s95] sm:$0xf]
    %v97 = vld [vmem:[%s95 + $0x4] sm:$0xf]
    %v98 = vld [vmem:[%s95 + $0x8] sm:$0xf]
    %v99 = vld [vmem:[%s95 + $0xc] sm:$0xf]
    %v100 = vld [vmem:[%s95 + $0x10] sm:$0xf]
    %v101 = vld [vmem:[%s95 + $0x14] sm:$0xf]
    %v102 = vld [vmem:[%s95 + $0x18] sm:$0xf]
    %v103 = vld [vmem:[%s95 + $0x1c] sm:$0xf]
    %v104 = vld [vmem:[%s95 + $0x20] sm:$0xf]
    %v105 = vld [vmem:[%s95 + $0x24] sm:$0xf]
    %v106 = vld [vmem:[%s95 + $0x28] sm:$0xf]
    %v107 = vld [vmem:[%s95 + $0x2c] sm:$0xf]
    %v120 = vunpack.c.l.b16 %v83
    %v121 = vunpack.c.l.b16 %v84
    %v122 = vunpack.c.l.b16 %v85
    %v123 = vunpack.c.l.b16 %v86
    %v124 = vunpack.c.l.b16 %v87
    %v125 = vunpack.c.l.b16 %v88
    %v126 = vunpack.c.l.b16 %v89
    %v127 = vunpack.c.l.b16 %v90
    %v128 = vunpack.c.l.b16 %v91
    %v129 = vunpack.c.l.b16 %v92
    %v130 = vunpack.c.l.b16 %v93
    %v131 = vunpack.c.l.b16 %v94
    %v132 = vpack.c.b16 %v121, %v120
    %v133 = vpack.c.b16 %v123, %v122
    %v134 = vpack.c.b16 %v125, %v124
    %v135 = vpack.c.b16 %v127, %v126
    %v136 = vpack.c.b16 %v129, %v128
    %v137 = vpack.c.b16 %v131, %v130
    %vm144 = vcmask 785408
    %v146 = vsel %vm144, %v68, 0
    %148 = vmatprep.subr.bf16.mxu0 0
    %149 = vmatpush1.bf16.msra.mxu0 0
    %150 = vmatprep.subr.bf16.mxu0 0
    %151 = vmatpush1.bf16.msra.mxu0 0
    %152 = vmatprep.subr.bf16.mxu0 0
    %153 = vmatpush1.bf16.msra.mxu0 %v137
    %154 = vmatprep.subr.bf16.mxu0 0
    %155 = vmatpush1.bf16.msra.mxu0 %v136
    %156 = vmatprep.subr.bf16.mxu0 0
    %157 = vmatpush1.bf16.msra.mxu0 %v135
    %158 = vmatprep.subr.bf16.mxu0 0
    %159 = vmatpush1.bf16.msra.mxu0 %v134
    %160 = vmatprep.subr.bf16.mxu0 0
    %161 = vmatpush1.bf16.msra.mxu0 %v133
    %162 = vmatprep.subr.bf16.mxu0 0
    %163 = vmatpush1.bf16.msra.mxu0 %v132
    %164 = vmatprep.subr.bf16.mxu0 0
    %165 = vmatpush2.bf16.msra.mxu0 0
    %166 = vmatprep.subr.bf16.mxu0 0
    %167 = vmatpush2.bf16.msra.mxu0 0
    %168 = vmatprep.subr.bf16.mxu0 0
    %169 = vmatpush2.bf16.msra.mxu0 0
    %170 = vmatprep.subr.bf16.mxu0 0
    %171 = vmatpush2.bf16.msra.mxu0 0
    %172 = vmatprep.subr.bf16.mxu0 0
    %173 = vmatpush2.bf16.msra.mxu0 0
    %174 = vmatprep.subr.bf16.mxu0 0
    %175 = vmatpush2.bf16.msra.mxu0 0
    %176 = vmatprep.subr.bf16.mxu0 0
    %177 = vmatpush2.bf16.msra.mxu0 0
    %178 = vmatprep.subr.bf16.mxu0 0
    %179 = vmatpush2.bf16.msra.mxu0 0
    %180 = vmatprep.mubr.bf16.mxu0 0
    %181 = vmatmul.mubr.bf16.gmra.mxu0 %v146
    %v182 = vpop.f32.mrf.mxu0
    %v183 = vadd.f32 0.0, %v182
    %v184 = vpop.f32.mrf.mxu0
    %v185 = vpop.f32.mrf.mxu0
    %v186 = vpop.f32.mrf.mxu0
    %187 = vdwg.mxu0
    %v200 = vunpack.c.l.b16 %v40
    %v201 = vunpack.c.l.b16 %v41
    %v202 = vunpack.c.l.b16 %v42
    %v203 = vunpack.c.l.b16 %v43
    %v204 = vunpack.c.l.b16 %v44
    %v205 = vunpack.c.l.b16 %v45
    %v206 = vunpack.c.l.b16 %v46
    %v207 = vunpack.c.l.b16 %v47
    %v208 = vunpack.c.l.b16 %v48
    %v209 = vunpack.c.l.b16 %v49
    %v210 = vunpack.c.l.b16 %v50
    %v211 = vunpack.c.l.b16 %v51
    %v212 = vpack.c.b16 %v201, %v200
    %v213 = vpack.c.b16 %v203, %v202
    %v214 = vpack.c.b16 %v205, %v204
    %v215 = vpack.c.b16 %v207, %v206
    %v216 = vpack.c.b16 %v209, %v208
    %v217 = vpack.c.b16 %v211, %v210
    %v225 = vsel %vm144, %v66, 0
    %227 = vmatprep.subr.bf16.mxu0 0
    %228 = vmatpush1.bf16.msra.mxu0 0
    %229 = vmatprep.subr.bf16.mxu0 0
    %230 = vmatpush1.bf16.msra.mxu0 0
    %231 = vmatprep.subr.bf16.mxu0 0
    %232 = vmatpush1.bf16.msra.mxu0 %v217
    %233 = vmatprep.subr.bf16.mxu0 0
    %234 = vmatpush1.bf16.msra.mxu0 %v216
    %235 = vmatprep.subr.bf16.mxu0 0
    %236 = vmatpush1.bf16.msra.mxu0 %v215
    %237 = vmatprep.subr.bf16.mxu0 0
    %238 = vmatpush1.bf16.msra.mxu0 %v214
    %239 = vmatprep.subr.bf16.mxu0 0
    %240 = vmatpush1.bf16.msra.mxu0 %v213
    %241 = vmatprep.subr.bf16.mxu0 0
    %242 = vmatpush1.bf16.msra.mxu0 %v212
    %243 = vmatprep.subr.bf16.mxu0 0
    %244 = vmatpush2.bf16.msra.mxu0 0
    %245 = vmatprep.subr.bf16.mxu0 0
    %246 = vmatpush2.bf16.msra.mxu0 0
    %247 = vmatprep.subr.bf16.mxu0 0
    %248 = vmatpush2.bf16.msra.mxu0 0
    %249 = vmatprep.subr.bf16.mxu0 0
    %250 = vmatpush2.bf16.msra.mxu0 0
    %251 = vmatprep.subr.bf16.mxu0 0
    %252 = vmatpush2.bf16.msra.mxu0 0
    %253 = vmatprep.subr.bf16.mxu0 0
    %254 = vmatpush2.bf16.msra.mxu0 0
    %255 = vmatprep.subr.bf16.mxu0 0
    %256 = vmatpush2.bf16.msra.mxu0 0
    %257 = vmatprep.subr.bf16.mxu0 0
    %258 = vmatpush2.bf16.msra.mxu0 0
    %259 = vmatprep.mubr.bf16.mxu0 0
    %260 = vmatmul.mubr.bf16.gmra.mxu0 %v225
    %v261 = vpop.f32.mrf.mxu0
    %v262 = vadd.f32 %v183, %v261
    %v263 = vpop.f32.mrf.mxu0
    %v264 = vpop.f32.mrf.mxu0
    %v265 = vpop.f32.mrf.mxu0
    %266 = vdwg.mxu0
    %v279 = vunpack.c.l.b16 %v96
    %v280 = vunpack.c.l.b16 %v97
    %v281 = vunpack.c.l.b16 %v98
    %v282 = vunpack.c.l.b16 %v99
    %v283 = vunpack.c.l.b16 %v100
    %v284 = vunpack.c.l.b16 %v101
    %v285 = vunpack.c.l.b16 %v102
    %v286 = vunpack.c.l.b16 %v103
    %v287 = vunpack.c.l.b16 %v104
    %v288 = vunpack.c.l.b16 %v105
    %v289 = vunpack.c.l.b16 %v106
    %v290 = vunpack.c.l.b16 %v107
    %v291 = vpack.c.b16 %v280, %v279
    %v292 = vpack.c.b16 %v282, %v281
    %v293 = vpack.c.b16 %v284, %v283
    %v294 = vpack.c.b16 %v286, %v285
    %v295 = vpack.c.b16 %v288, %v287
    %v296 = vpack.c.b16 %v290, %v289
    %303 = vmatprep.subr.bf16.mxu0 0
    %304 = vmatpush1.bf16.msra.mxu0 0
    %305 = vmatprep.subr.bf16.mxu0 0
    %306 = vmatpush1.bf16.msra.mxu0 0
    %307 = vmatprep.subr.bf16.mxu0 0
    %308 = vmatpush1.bf16.msra.mxu0 %v296
    %309 = vmatprep.subr.bf16.mxu0 0
    %310 = vmatpush1.bf16.msra.mxu0 %v295
    %311 = vmatprep.subr.bf16.mxu0 0
    %312 = vmatpush1.bf16.msra.mxu0 %v294
    %313 = vmatprep.subr.bf16.mxu0 0
    %314 = vmatpush1.bf16.msra.mxu0 %v293
    %315 = vmatprep.subr.bf16.mxu0 0
    %316 = vmatpush1.bf16.msra.mxu0 %v292
    %317 = vmatprep.subr.bf16.mxu0 0
    %318 = vmatpush1.bf16.msra.mxu0 %v291
    %319 = vmatprep.subr.bf16.mxu0 0
    %320 = vmatpush2.bf16.msra.mxu0 0
    %321 = vmatprep.subr.bf16.mxu0 0
    %322 = vmatpush2.bf16.msra.mxu0 0
    %323 = vmatprep.subr.bf16.mxu0 0
    %324 = vmatpush2.bf16.msra.mxu0 0
    %325 = vmatprep.subr.bf16.mxu0 0
    %326 = vmatpush2.bf16.msra.mxu0 0
    %327 = vmatprep.subr.bf16.mxu0 0
    %328 = vmatpush2.bf16.msra.mxu0 0
    %329 = vmatprep.subr.bf16.mxu0 0
    %330 = vmatpush2.bf16.msra.mxu0 0
    %331 = vmatprep.subr.bf16.mxu0 0
    %332 = vmatpush2.bf16.msra.mxu0 0
    %333 = vmatprep.subr.bf16.mxu0 0
    %334 = vmatpush2.bf16.msra.mxu0 0
    %335 = vmatprep.mubr.bf16.mxu0 0
    %336 = vmatmul.mubr.bf16.gmra.mxu0 %v146
    %v337 = vpop.f32.mrf.mxu0
    %v338 = vadd.f32 0.0, %v337
    %v339 = vpop.f32.mrf.mxu0
    %v340 = vpop.f32.mrf.mxu0
    %v341 = vpop.f32.mrf.mxu0
    %342 = vdwg.mxu0
    %v355 = vunpack.c.l.b16 %v53
    %v356 = vunpack.c.l.b16 %v54
    %v357 = vunpack.c.l.b16 %v55
    %v358 = vunpack.c.l.b16 %v56
    %v359 = vunpack.c.l.b16 %v57
    %v360 = vunpack.c.l.b16 %v58
    %v361 = vunpack.c.l.b16 %v59
    %v362 = vunpack.c.l.b16 %v60
    %v363 = vunpack.c.l.b16 %v61
    %v364 = vunpack.c.l.b16 %v62
    %v365 = vunpack.c.l.b16 %v63
    %v366 = vunpack.c.l.b16 %v64
    %v367 = vpack.c.b16 %v356, %v355
    %v368 = vpack.c.b16 %v358, %v357
    %v369 = vpack.c.b16 %v360, %v359
    %v370 = vpack.c.b16 %v362, %v361
    %v371 = vpack.c.b16 %v364, %v363
    %v372 = vpack.c.b16 %v366, %v365
    %379 = vmatprep.subr.bf16.mxu0 0
    %380 = vmatpush1.bf16.msra.mxu0 0
    %381 = vmatprep.subr.bf16.mxu0 0
    %382 = vmatpush1.bf16.msra.mxu0 0
    %383 = vmatprep.subr.bf16.mxu0 0
    %384 = vmatpush1.bf16.msra.mxu0 %v372
    %385 = vmatprep.subr.bf16.mxu0 0
    %386 = vmatpush1.bf16.msra.mxu0 %v371
    %387 = vmatprep.subr.bf16.mxu0 0
    %388 = vmatpush1.bf16.msra.mxu0 %v370
    %389 = vmatprep.subr.bf16.mxu0 0
    %390 = vmatpush1.bf16.msra.mxu0 %v369
    %391 = vmatprep.subr.bf16.mxu0 0
    %392 = vmatpush1.bf16.msra.mxu0 %v368
    %393 = vmatprep.subr.bf16.mxu0 0
    %394 = vmatpush1.bf16.msra.mxu0 %v367
    %395 = vmatprep.subr.bf16.mxu0 0
    %396 = vmatpush2.bf16.msra.mxu0 0
    %397 = vmatprep.subr.bf16.mxu0 0
    %398 = vmatpush2.bf16.msra.mxu0 0
    %399 = vmatprep.subr.bf16.mxu0 0
    %400 = vmatpush2.bf16.msra.mxu0 0
    %401 = vmatprep.subr.bf16.mxu0 0
    %402 = vmatpush2.bf16.msra.mxu0 0
    %403 = vmatprep.subr.bf16.mxu0 0
    %404 = vmatpush2.bf16.msra.mxu0 0
    %405 = vmatprep.subr.bf16.mxu0 0
    %406 = vmatpush2.bf16.msra.mxu0 0
    %407 = vmatprep.subr.bf16.mxu0 0
    %408 = vmatpush2.bf16.msra.mxu0 0
    %409 = vmatprep.subr.bf16.mxu0 0
    %410 = vmatpush2.bf16.msra.mxu0 0
    %411 = vmatprep.mubr.bf16.mxu0 0
    %412 = vmatmul.mubr.bf16.gmra.mxu0 %v225
    %v413 = vpop.f32.mrf.mxu0
    %v414 = vadd.f32 %v338, %v413
    %v415 = vpop.f32.mrf.mxu0
    %v416 = vpop.f32.mrf.mxu0
    %v417 = vpop.f32.mrf.mxu0
    %418 = vdwg.mxu0
    %v420 = vsel %vm144, %v70, 0
    %422 = vmatprep.subr.bf16.mxu0 0
    %423 = vmatpush1.bf16.msra.mxu0 0
    %424 = vmatprep.subr.bf16.mxu0 0
    %425 = vmatpush1.bf16.msra.mxu0 0
    %426 = vmatprep.subr.bf16.mxu0 0
    %427 = vmatpush1.bf16.msra.mxu0 %v137
    %428 = vmatprep.subr.bf16.mxu0 0
    %429 = vmatpush1.bf16.msra.mxu0 %v136
    %430 = vmatprep.subr.bf16.mxu0 0
    %431 = vmatpush1.bf16.msra.mxu0 %v135
    %432 = vmatprep.subr.bf16.mxu0 0
    %433 = vmatpush1.bf16.msra.mxu0 %v134
    %434 = vmatprep.subr.bf16.mxu0 0
    %435 = vmatpush1.bf16.msra.mxu0 %v133
    %436 = vmatprep.subr.bf16.mxu0 0
    %437 = vmatpush1.bf16.msra.mxu0 %v132
    %438 = vmatprep.subr.bf16.mxu0 0
    %439 = vmatpush2.bf16.msra.mxu0 0
    %440 = vmatprep.subr.bf16.mxu0 0
    %441 = vmatpush2.bf16.msra.mxu0 0
    %442 = vmatprep.subr.bf16.mxu0 0
    %443 = vmatpush2.bf16.msra.mxu0 0
    %444 = vmatprep.subr.bf16.mxu0 0
    %445 = vmatpush2.bf16.msra.mxu0 0
    %446 = vmatprep.subr.bf16.mxu0 0
    %447 = vmatpush2.bf16.msra.mxu0 0
    %448 = vmatprep.subr.bf16.mxu0 0
    %449 = vmatpush2.bf16.msra.mxu0 0
    %450 = vmatprep.subr.bf16.mxu0 0
    %451 = vmatpush2.bf16.msra.mxu0 0
    %452 = vmatprep.subr.bf16.mxu0 0
    %453 = vmatpush2.bf16.msra.mxu0 0
    %454 = vmatprep.mubr.bf16.mxu0 0
    %455 = vmatmul.mubr.bf16.gmra.mxu0 %v420
    %v456 = vpop.f32.mrf.mxu0
    %v457 = vadd.f32 0.0, %v456
    %v458 = vpop.f32.mrf.mxu0
    %v459 = vpop.f32.mrf.mxu0
    %v460 = vpop.f32.mrf.mxu0
    %461 = vdwg.mxu0
    %462 = vmatprep.subr.bf16.mxu0 0
    %463 = vmatpush1.bf16.msra.mxu0 0
    %464 = vmatprep.subr.bf16.mxu0 0
    %465 = vmatpush1.bf16.msra.mxu0 0
    %466 = vmatprep.subr.bf16.mxu0 0
    %467 = vmatpush1.bf16.msra.mxu0 %v217
    %468 = vmatprep.subr.bf16.mxu0 0
    %469 = vmatpush1.bf16.msra.mxu0 %v216
    %470 = vmatprep.subr.bf16.mxu0 0
    %471 = vmatpush1.bf16.msra.mxu0 %v215
    %472 = vmatprep.subr.bf16.mxu0 0
    %473 = vmatpush1.bf16.msra.mxu0 %v214
    %474 = vmatprep.subr.bf16.mxu0 0
    %475 = vmatpush1.bf16.msra.mxu0 %v213
    %476 = vmatprep.subr.bf16.mxu0 0
    %477 = vmatpush1.bf16.msra.mxu0 %v212
    %478 = vmatprep.subr.bf16.mxu0 0
    %479 = vmatpush2.bf16.msra.mxu0 0
    %480 = vmatprep.subr.bf16.mxu0 0
    %481 = vmatpush2.bf16.msra.mxu0 0
    %482 = vmatprep.subr.bf16.mxu0 0
    %483 = vmatpush2.bf16.msra.mxu0 0
    %484 = vmatprep.subr.bf16.mxu0 0
    %485 = vmatpush2.bf16.msra.mxu0 0
    %486 = vmatprep.subr.bf16.mxu0 0
    %487 = vmatpush2.bf16.msra.mxu0 0
    %488 = vmatprep.subr.bf16.mxu0 0
    %489 = vmatpush2.bf16.msra.mxu0 0
    %490 = vmatprep.subr.bf16.mxu0 0
    %491 = vmatpush2.bf16.msra.mxu0 0
    %492 = vmatprep.subr.bf16.mxu0 0
    %493 = vmatpush2.bf16.msra.mxu0 0
    %494 = vmatprep.mubr.bf16.mxu0 0
    %495 = vmatmul.mubr.bf16.gmra.mxu0 %v146
    %v496 = vpop.f32.mrf.mxu0
    %v497 = vadd.f32 %v457, %v496
    %v498 = vpop.f32.mrf.mxu0
    %v499 = vpop.f32.mrf.mxu0
    %v500 = vpop.f32.mrf.mxu0
    %501 = vdwg.mxu0
    %502 = vmatprep.subr.bf16.mxu0 0
    %503 = vmatpush1.bf16.msra.mxu0 0
    %504 = vmatprep.subr.bf16.mxu0 0
    %505 = vmatpush1.bf16.msra.mxu0 0
    %506 = vmatprep.subr.bf16.mxu0 0
    %507 = vmatpush1.bf16.msra.mxu0 %v296
    %508 = vmatprep.subr.bf16.mxu0 0
    %509 = vmatpush1.bf16.msra.mxu0 %v295
    %510 = vmatprep.subr.bf16.mxu0 0
    %511 = vmatpush1.bf16.msra.mxu0 %v294
    %512 = vmatprep.subr.bf16.mxu0 0
    %513 = vmatpush1.bf16.msra.mxu0 %v293
    %514 = vmatprep.subr.bf16.mxu0 0
    %515 = vmatpush1.bf16.msra.mxu0 %v292
    %516 = vmatprep.subr.bf16.mxu0 0
    %517 = vmatpush1.bf16.msra.mxu0 %v291
    %518 = vmatprep.subr.bf16.mxu0 0
    %519 = vmatpush2.bf16.msra.mxu0 0
    %520 = vmatprep.subr.bf16.mxu0 0
    %521 = vmatpush2.bf16.msra.mxu0 0
    %522 = vmatprep.subr.bf16.mxu0 0
    %523 = vmatpush2.bf16.msra.mxu0 0
    %524 = vmatprep.subr.bf16.mxu0 0
    %525 = vmatpush2.bf16.msra.mxu0 0
    %526 = vmatprep.subr.bf16.mxu0 0
    %527 = vmatpush2.bf16.msra.mxu0 0
    %528 = vmatprep.subr.bf16.mxu0 0
    %529 = vmatpush2.bf16.msra.mxu0 0
    %530 = vmatprep.subr.bf16.mxu0 0
    %531 = vmatpush2.bf16.msra.mxu0 0
    %532 = vmatprep.subr.bf16.mxu0 0
    %533 = vmatpush2.bf16.msra.mxu0 0
    %534 = vmatprep.mubr.bf16.mxu0 0
    %535 = vmatmul.mubr.bf16.gmra.mxu0 %v420
    %v536 = vpop.f32.mrf.mxu0
    %v537 = vadd.f32 0.0, %v536
    %v538 = vpop.f32.mrf.mxu0
    %v539 = vpop.f32.mrf.mxu0
    %v540 = vpop.f32.mrf.mxu0
    %541 = vdwg.mxu0
    %542 = vmatprep.subr.bf16.mxu0 0
    %543 = vmatpush1.bf16.msra.mxu0 0
    %544 = vmatprep.subr.bf16.mxu0 0
    %545 = vmatpush1.bf16.msra.mxu0 0
    %546 = vmatprep.subr.bf16.mxu0 0
    %547 = vmatpush1.bf16.msra.mxu0 %v372
    %548 = vmatprep.subr.bf16.mxu0 0
    %549 = vmatpush1.bf16.msra.mxu0 %v371
    %550 = vmatprep.subr.bf16.mxu0 0
    %551 = vmatpush1.bf16.msra.mxu0 %v370
    %552 = vmatprep.subr.bf16.mxu0 0
    %553 = vmatpush1.bf16.msra.mxu0 %v369
    %554 = vmatprep.subr.bf16.mxu0 0
    %555 = vmatpush1.bf16.msra.mxu0 %v368
    %556 = vmatprep.subr.bf16.mxu0 0
    %557 = vmatpush1.bf16.msra.mxu0 %v367
    %558 = vmatprep.subr.bf16.mxu0 0
    %559 = vmatpush2.bf16.msra.mxu0 0
    %560 = vmatprep.subr.bf16.mxu0 0
    %561 = vmatpush2.bf16.msra.mxu0 0
    %562 = vmatprep.subr.bf16.mxu0 0
    %563 = vmatpush2.bf16.msra.mxu0 0
    %564 = vmatprep.subr.bf16.mxu0 0
    %565 = vmatpush2.bf16.msra.mxu0 0
    %566 = vmatprep.subr.bf16.mxu0 0
    %567 = vmatpush2.bf16.msra.mxu0 0
    %568 = vmatprep.subr.bf16.mxu0 0
    %569 = vmatpush2.bf16.msra.mxu0 0
    %570 = vmatprep.subr.bf16.mxu0 0
    %571 = vmatpush2.bf16.msra.mxu0 0
    %572 = vmatprep.subr.bf16.mxu0 0
    %573 = vmatpush2.bf16.msra.mxu0 0
    %574 = vmatprep.mubr.bf16.mxu0 0
    %575 = vmatmul.mubr.bf16.gmra.mxu0 %v146
    %v576 = vpop.f32.mrf.mxu0
    %v577 = vadd.f32 %v537, %v576
    %v578 = vpop.f32.mrf.mxu0
    %v579 = vpop.f32.mrf.mxu0
    %v580 = vpop.f32.mrf.mxu0
    %581 = vdwg.mxu0
    %v583 = vsel %vm144, %v72, 0
    %585 = vmatprep.subr.bf16.mxu0 0
    %586 = vmatpush1.bf16.msra.mxu0 0
    %587 = vmatprep.subr.bf16.mxu0 0
    %588 = vmatpush1.bf16.msra.mxu0 0
    %589 = vmatprep.subr.bf16.mxu0 0
    %590 = vmatpush1.bf16.msra.mxu0 %v137
    %591 = vmatprep.subr.bf16.mxu0 0
    %592 = vmatpush1.bf16.msra.mxu0 %v136
    %593 = vmatprep.subr.bf16.mxu0 0
    %594 = vmatpush1.bf16.msra.mxu0 %v135
    %595 = vmatprep.subr.bf16.mxu0 0
    %596 = vmatpush1.bf16.msra.mxu0 %v134
    %597 = vmatprep.subr.bf16.mxu0 0
    %598 = vmatpush1.bf16.msra.mxu0 %v133
    %599 = vmatprep.subr.bf16.mxu0 0
    %600 = vmatpush1.bf16.msra.mxu0 %v132
    %601 = vmatprep.subr.bf16.mxu0 0
    %602 = vmatpush2.bf16.msra.mxu0 0
    %603 = vmatprep.subr.bf16.mxu0 0
    %604 = vmatpush2.bf16.msra.mxu0 0
    %605 = vmatprep.subr.bf16.mxu0 0
    %606 = vmatpush2.bf16.msra.mxu0 0
    %607 = vmatprep.subr.bf16.mxu0 0
    %608 = vmatpush2.bf16.msra.mxu0 0
    %609 = vmatprep.subr.bf16.mxu0 0
    %610 = vmatpush2.bf16.msra.mxu0 0
    %611 = vmatprep.subr.bf16.mxu0 0
    %612 = vmatpush2.bf16.msra.mxu0 0
    %613 = vmatprep.subr.bf16.mxu0 0
    %614 = vmatpush2.bf16.msra.mxu0 0
    %615 = vmatprep.subr.bf16.mxu0 0
    %616 = vmatpush2.bf16.msra.mxu0 0
    %617 = vmatprep.mubr.bf16.mxu0 0
    %618 = vmatmul.mubr.bf16.gmra.mxu0 %v583
    %v619 = vpop.f32.mrf.mxu0
    %v620 = vadd.f32 0.0, %v619
    %v621 = vpop.f32.mrf.mxu0
    %v622 = vpop.f32.mrf.mxu0
    %v623 = vpop.f32.mrf.mxu0
    %624 = vdwg.mxu0
    %625 = vmatprep.subr.bf16.mxu0 0
    %626 = vmatpush1.bf16.msra.mxu0 0
    %627 = vmatprep.subr.bf16.mxu0 0
    %628 = vmatpush1.bf16.msra.mxu0 0
    %629 = vmatprep.subr.bf16.mxu0 0
    %630 = vmatpush1.bf16.msra.mxu0 %v217
    %631 = vmatprep.subr.bf16.mxu0 0
    %632 = vmatpush1.bf16.msra.mxu0 %v216
    %633 = vmatprep.subr.bf16.mxu0 0
    %634 = vmatpush1.bf16.msra.mxu0 %v215
    %635 = vmatprep.subr.bf16.mxu0 0
    %636 = vmatpush1.bf16.msra.mxu0 %v214
    %637 = vmatprep.subr.bf16.mxu0 0
    %638 = vmatpush1.bf16.msra.mxu0 %v213
    %639 = vmatprep.subr.bf16.mxu0 0
    %640 = vmatpush1.bf16.msra.mxu0 %v212
    %641 = vmatprep.subr.bf16.mxu0 0
    %642 = vmatpush2.bf16.msra.mxu0 0
    %643 = vmatprep.subr.bf16.mxu0 0
    %644 = vmatpush2.bf16.msra.mxu0 0
    %645 = vmatprep.subr.bf16.mxu0 0
    %646 = vmatpush2.bf16.msra.mxu0 0
    %647 = vmatprep.subr.bf16.mxu0 0
    %648 = vmatpush2.bf16.msra.mxu0 0
    %649 = vmatprep.subr.bf16.mxu0 0
    %650 = vmatpush2.bf16.msra.mxu0 0
    %651 = vmatprep.subr.bf16.mxu0 0
    %652 = vmatpush2.bf16.msra.mxu0 0
    %653 = vmatprep.subr.bf16.mxu0 0
    %654 = vmatpush2.bf16.msra.mxu0 0
    %655 = vmatprep.subr.bf16.mxu0 0
    %656 = vmatpush2.bf16.msra.mxu0 0
    %657 = vmatprep.mubr.bf16.mxu0 0
    %658 = vmatmul.mubr.bf16.gmra.mxu0 %v420
    %v659 = vpop.f32.mrf.mxu0
    %v660 = vadd.f32 %v620, %v659
    %v661 = vpop.f32.mrf.mxu0
    %v662 = vpop.f32.mrf.mxu0
    %v663 = vpop.f32.mrf.mxu0
    %664 = vdwg.mxu0
    %665 = vmatprep.subr.bf16.mxu0 0
    %666 = vmatpush1.bf16.msra.mxu0 0
    %667 = vmatprep.subr.bf16.mxu0 0
    %668 = vmatpush1.bf16.msra.mxu0 0
    %669 = vmatprep.subr.bf16.mxu0 0
    %670 = vmatpush1.bf16.msra.mxu0 %v296
    %671 = vmatprep.subr.bf16.mxu0 0
    %672 = vmatpush1.bf16.msra.mxu0 %v295
    %673 = vmatprep.subr.bf16.mxu0 0
    %674 = vmatpush1.bf16.msra.mxu0 %v294
    %675 = vmatprep.subr.bf16.mxu0 0
    %676 = vmatpush1.bf16.msra.mxu0 %v293
    %677 = vmatprep.subr.bf16.mxu0 0
    %678 = vmatpush1.bf16.msra.mxu0 %v292
    %679 = vmatprep.subr.bf16.mxu0 0
    %680 = vmatpush1.bf16.msra.mxu0 %v291
    %681 = vmatprep.subr.bf16.mxu0 0
    %682 = vmatpush2.bf16.msra.mxu0 0
    %683 = vmatprep.subr.bf16.mxu0 0
    %684 = vmatpush2.bf16.msra.mxu0 0
    %685 = vmatprep.subr.bf16.mxu0 0
    %686 = vmatpush2.bf16.msra.mxu0 0
    %687 = vmatprep.subr.bf16.mxu0 0
    %688 = vmatpush2.bf16.msra.mxu0 0
    %689 = vmatprep.subr.bf16.mxu0 0
    %690 = vmatpush2.bf16.msra.mxu0 0
    %691 = vmatprep.subr.bf16.mxu0 0
    %692 = vmatpush2.bf16.msra.mxu0 0
    %693 = vmatprep.subr.bf16.mxu0 0
    %694 = vmatpush2.bf16.msra.mxu0 0
    %695 = vmatprep.subr.bf16.mxu0 0
    %696 = vmatpush2.bf16.msra.mxu0 0
    %697 = vmatprep.mubr.bf16.mxu0 0
    %698 = vmatmul.mubr.bf16.gmra.mxu0 %v583
    %v699 = vpop.f32.mrf.mxu0
    %v700 = vadd.f32 0.0, %v699
    %v701 = vpop.f32.mrf.mxu0
    %v702 = vpop.f32.mrf.mxu0
    %v703 = vpop.f32.mrf.mxu0
    %704 = vdwg.mxu0
    %705 = vmatprep.subr.bf16.mxu0 0
    %706 = vmatpush1.bf16.msra.mxu0 0
    %707 = vmatprep.subr.bf16.mxu0 0
    %708 = vmatpush1.bf16.msra.mxu0 0
    %709 = vmatprep.subr.bf16.mxu0 0
    %710 = vmatpush1.bf16.msra.mxu0 %v372
    %711 = vmatprep.subr.bf16.mxu0 0
    %712 = vmatpush1.bf16.msra.mxu0 %v371
    %713 = vmatprep.subr.bf16.mxu0 0
    %714 = vmatpush1.bf16.msra.mxu0 %v370
    %715 = vmatprep.subr.bf16.mxu0 0
    %716 = vmatpush1.bf16.msra.mxu0 %v369
    %717 = vmatprep.subr.bf16.mxu0 0
    %718 = vmatpush1.bf16.msra.mxu0 %v368
    %719 = vmatprep.subr.bf16.mxu0 0
    %720 = vmatpush1.bf16.msra.mxu0 %v367
    %721 = vmatprep.subr.bf16.mxu0 0
    %722 = vmatpush2.bf16.msra.mxu0 0
    %723 = vmatprep.subr.bf16.mxu0 0
    %724 = vmatpush2.bf16.msra.mxu0 0
    %725 = vmatprep.subr.bf16.mxu0 0
    %726 = vmatpush2.bf16.msra.mxu0 0
    %727 = vmatprep.subr.bf16.mxu0 0
    %728 = vmatpush2.bf16.msra.mxu0 0
    %729 = vmatprep.subr.bf16.mxu0 0
    %730 = vmatpush2.bf16.msra.mxu0 0
    %731 = vmatprep.subr.bf16.mxu0 0
    %732 = vmatpush2.bf16.msra.mxu0 0
    %733 = vmatprep.subr.bf16.mxu0 0
    %734 = vmatpush2.bf16.msra.mxu0 0
    %735 = vmatprep.subr.bf16.mxu0 0
    %736 = vmatpush2.bf16.msra.mxu0 0
    %737 = vmatprep.mubr.bf16.mxu0 0
    %738 = vmatmul.mubr.bf16.gmra.mxu0 %v420
    %v739 = vpop.f32.mrf.mxu0
    %v740 = vadd.f32 %v700, %v739
    %v741 = vpop.f32.mrf.mxu0
    %v742 = vpop.f32.mrf.mxu0
    %v743 = vpop.f32.mrf.mxu0
    %744 = vdwg.mxu0
    %v745 = vld [vmem:[%s0 + $0x1] sm:$0xff]
    %v746 = vpack.c.bf16 %v745, %v745
    %v748 = vsel %vm144, %v746, 0
    %750 = vmatprep.subr.bf16.mxu0 0
    %751 = vmatpush1.bf16.msra.mxu0 0
    %752 = vmatprep.subr.bf16.mxu0 0
    %753 = vmatpush1.bf16.msra.mxu0 0
    %754 = vmatprep.subr.bf16.mxu0 0
    %755 = vmatpush1.bf16.msra.mxu0 %v137
    %756 = vmatprep.subr.bf16.mxu0 0
    %757 = vmatpush1.bf16.msra.mxu0 %v136
    %758 = vmatprep.subr.bf16.mxu0 0
    %759 = vmatpush1.bf16.msra.mxu0 %v135
    %760 = vmatprep.subr.bf16.mxu0 0
    %761 = vmatpush1.bf16.msra.mxu0 %v134
    %762 = vmatprep.subr.bf16.mxu0 0
    %763 = vmatpush1.bf16.msra.mxu0 %v133
    %764 = vmatprep.subr.bf16.mxu0 0
    %765 = vmatpush1.bf16.msra.mxu0 %v132
    %766 = vmatprep.subr.bf16.mxu0 0
    %767 = vmatpush2.bf16.msra.mxu0 0
    %768 = vmatprep.subr.bf16.mxu0 0
    %769 = vmatpush2.bf16.msra.mxu0 0
    %770 = vmatprep.subr.bf16.mxu0 0
    %771 = vmatpush2.bf16.msra.mxu0 0
    %772 = vmatprep.subr.bf16.mxu0 0
    %773 = vmatpush2.bf16.msra.mxu0 0
    %774 = vmatprep.subr.bf16.mxu0 0
    %775 = vmatpush2.bf16.msra.mxu0 0
    %776 = vmatprep.subr.bf16.mxu0 0
    %777 = vmatpush2.bf16.msra.mxu0 0
    %778 = vmatprep.subr.bf16.mxu0 0
    %779 = vmatpush2.bf16.msra.mxu0 0
    %780 = vmatprep.subr.bf16.mxu0 0
    %781 = vmatpush2.bf16.msra.mxu0 0
    %782 = vmatprep.mubr.bf16.mxu0 0
    %783 = vmatmul.mubr.bf16.gmra.mxu0 %v748
    %v784 = vpop.f32.mrf.mxu0
    %v785 = vadd.f32 0.0, %v784
    %v786 = vpop.f32.mrf.mxu0
    %v787 = vpop.f32.mrf.mxu0
    %v788 = vpop.f32.mrf.mxu0
    %789 = vdwg.mxu0
    %790 = vmatprep.subr.bf16.mxu0 0
    %791 = vmatpush1.bf16.msra.mxu0 0
    %792 = vmatprep.subr.bf16.mxu0 0
    %793 = vmatpush1.bf16.msra.mxu0 0
    %794 = vmatprep.subr.bf16.mxu0 0
    %795 = vmatpush1.bf16.msra.mxu0 %v217
    %796 = vmatprep.subr.bf16.mxu0 0
    %797 = vmatpush1.bf16.msra.mxu0 %v216
    %798 = vmatprep.subr.bf16.mxu0 0
    %799 = vmatpush1.bf16.msra.mxu0 %v215
    %800 = vmatprep.subr.bf16.mxu0 0
    %801 = vmatpush1.bf16.msra.mxu0 %v214
    %802 = vmatprep.subr.bf16.mxu0 0
    %803 = vmatpush1.bf16.msra.mxu0 %v213
    %804 = vmatprep.subr.bf16.mxu0 0
    %805 = vmatpush1.bf16.msra.mxu0 %v212
    %806 = vmatprep.subr.bf16.mxu0 0
    %807 = vmatpush2.bf16.msra.mxu0 0
    %808 = vmatprep.subr.bf16.mxu0 0
    %809 = vmatpush2.bf16.msra.mxu0 0
    %810 = vmatprep.subr.bf16.mxu0 0
    %811 = vmatpush2.bf16.msra.mxu0 0
    %812 = vmatprep.subr.bf16.mxu0 0
    %813 = vmatpush2.bf16.msra.mxu0 0
    %814 = vmatprep.subr.bf16.mxu0 0
    %815 = vmatpush2.bf16.msra.mxu0 0
    %816 = vmatprep.subr.bf16.mxu0 0
    %817 = vmatpush2.bf16.msra.mxu0 0
    %818 = vmatprep.subr.bf16.mxu0 0
    %819 = vmatpush2.bf16.msra.mxu0 0
    %820 = vmatprep.subr.bf16.mxu0 0
    %821 = vmatpush2.bf16.msra.mxu0 0
    %822 = vmatprep.mubr.bf16.mxu0 0
    %823 = vmatmul.mubr.bf16.gmra.mxu0 %v583
    %v824 = vpop.f32.mrf.mxu0
    %v825 = vadd.f32 %v785, %v824
    %v826 = vpop.f32.mrf.mxu0
    %v827 = vpop.f32.mrf.mxu0
    %v828 = vpop.f32.mrf.mxu0
    %829 = vdwg.mxu0
    %830 = vmatprep.subr.bf16.mxu0 0
    %831 = vmatpush1.bf16.msra.mxu0 0
    %832 = vmatprep.subr.bf16.mxu0 0
    %833 = vmatpush1.bf16.msra.mxu0 0
    %834 = vmatprep.subr.bf16.mxu0 0
    %835 = vmatpush1.bf16.msra.mxu0 %v296
    %836 = vmatprep.subr.bf16.mxu0 0
    %837 = vmatpush1.bf16.msra.mxu0 %v295
    %838 = vmatprep.subr.bf16.mxu0 0
    %839 = vmatpush1.bf16.msra.mxu0 %v294
    %840 = vmatprep.subr.bf16.mxu0 0
    %841 = vmatpush1.bf16.msra.mxu0 %v293
    %842 = vmatprep.subr.bf16.mxu0 0
    %843 = vmatpush1.bf16.msra.mxu0 %v292
    %844 = vmatprep.subr.bf16.mxu0 0
    %845 = vmatpush1.bf16.msra.mxu0 %v291
    %846 = vmatprep.subr.bf16.mxu0 0
    %847 = vmatpush2.bf16.msra.mxu0 0
    %848 = vmatprep.subr.bf16.mxu0 0
    %849 = vmatpush2.bf16.msra.mxu0 0
    %850 = vmatprep.subr.bf16.mxu0 0
    %851 = vmatpush2.bf16.msra.mxu0 0
    %852 = vmatprep.subr.bf16.mxu0 0
    %853 = vmatpush2.bf16.msra.mxu0 0
    %854 = vmatprep.subr.bf16.mxu0 0
    %855 = vmatpush2.bf16.msra.mxu0 0
    %856 = vmatprep.subr.bf16.mxu0 0
    %857 = vmatpush2.bf16.msra.mxu0 0
    %858 = vmatprep.subr.bf16.mxu0 0
    %859 = vmatpush2.bf16.msra.mxu0 0
    %860 = vmatprep.subr.bf16.mxu0 0
    %861 = vmatpush2.bf16.msra.mxu0 0
    %862 = vmatprep.mubr.bf16.mxu0 0
    %863 = vmatmul.mubr.bf16.gmra.mxu0 %v748
    %v864 = vpop.f32.mrf.mxu0
    %v865 = vadd.f32 0.0, %v864
    %v866 = vpop.f32.mrf.mxu0
    %v867 = vpop.f32.mrf.mxu0
    %v868 = vpop.f32.mrf.mxu0
    %869 = vdwg.mxu0
    %870 = vmatprep.subr.bf16.mxu0 0
    %871 = vmatpush1.bf16.msra.mxu0 0
    %872 = vmatprep.subr.bf16.mxu0 0
    %873 = vmatpush1.bf16.msra.mxu0 0
    %874 = vmatprep.subr.bf16.mxu0 0
    %875 = vmatpush1.bf16.msra.mxu0 %v372
    %876 = vmatprep.subr.bf16.mxu0 0
    %877 = vmatpush1.bf16.msra.mxu0 %v371
    %878 = vmatprep.subr.bf16.mxu0 0
    %879 = vmatpush1.bf16.msra.mxu0 %v370
    %880 = vmatprep.subr.bf16.mxu0 0
    %881 = vmatpush1.bf16.msra.mxu0 %v369
    %882 = vmatprep.subr.bf16.mxu0 0
    %883 = vmatpush1.bf16.msra.mxu0 %v368
    %884 = vmatprep.subr.bf16.mxu0 0
    %885 = vmatpush1.bf16.msra.mxu0 %v367
    %886 = vmatprep.subr.bf16.mxu0 0
    %887 = vmatpush2.bf16.msra.mxu0 0
    %888 = vmatprep.subr.bf16.mxu0 0
    %889 = vmatpush2.bf16.msra.mxu0 0
    %890 = vmatprep.subr.bf16.mxu0 0
    %891 = vmatpush2.bf16.msra.mxu0 0
    %892 = vmatprep.subr.bf16.mxu0 0
    %893 = vmatpush2.bf16.msra.mxu0 0
    %894 = vmatprep.subr.bf16.mxu0 0
    %895 = vmatpush2.bf16.msra.mxu0 0
    %896 = vmatprep.subr.bf16.mxu0 0
    %897 = vmatpush2.bf16.msra.mxu0 0
    %898 = vmatprep.subr.bf16.mxu0 0
    %899 = vmatpush2.bf16.msra.mxu0 0
    %900 = vmatprep.subr.bf16.mxu0 0
    %901 = vmatpush2.bf16.msra.mxu0 0
    %902 = vmatprep.mubr.bf16.mxu0 0
    %903 = vmatmul.mubr.bf16.gmra.mxu0 %v583
    %v904 = vpop.f32.mrf.mxu0
    %v905 = vadd.f32 %v865, %v904
    %v906 = vpop.f32.mrf.mxu0
    %v907 = vpop.f32.mrf.mxu0
    %v908 = vpop.f32.mrf.mxu0
    %909 = vdwg.mxu0
    %v911 = vsel %vm144, %v77, 0
    %913 = vmatprep.subr.bf16.mxu0 0
    %914 = vmatpush1.bf16.msra.mxu0 0
    %915 = vmatprep.subr.bf16.mxu0 0
    %916 = vmatpush1.bf16.msra.mxu0 0
    %917 = vmatprep.subr.bf16.mxu0 0
    %918 = vmatpush1.bf16.msra.mxu0 %v137
    %919 = vmatprep.subr.bf16.mxu0 0
    %920 = vmatpush1.bf16.msra.mxu0 %v136
    %921 = vmatprep.subr.bf16.mxu0 0
    %922 = vmatpush1.bf16.msra.mxu0 %v135
    %923 = vmatprep.subr.bf16.mxu0 0
    %924 = vmatpush1.bf16.msra.mxu0 %v134
    %925 = vmatprep.subr.bf16.mxu0 0
    %926 = vmatpush1.bf16.msra.mxu0 %v133
    %927 = vmatprep.subr.bf16.mxu0 0
    %928 = vmatpush1.bf16.msra.mxu0 %v132
    %929 = vmatprep.subr.bf16.mxu0 0
    %930 = vmatpush2.bf16.msra.mxu0 0
    %931 = vmatprep.subr.bf16.mxu0 0
    %932 = vmatpush2.bf16.msra.mxu0 0
    %933 = vmatprep.subr.bf16.mxu0 0
    %934 = vmatpush2.bf16.msra.mxu0 0
    %935 = vmatprep.subr.bf16.mxu0 0
    %936 = vmatpush2.bf16.msra.mxu0 0
    %937 = vmatprep.subr.bf16.mxu0 0
    %938 = vmatpush2.bf16.msra.mxu0 0
    %939 = vmatprep.subr.bf16.mxu0 0
    %940 = vmatpush2.bf16.msra.mxu0 0
    %941 = vmatprep.subr.bf16.mxu0 0
    %942 = vmatpush2.bf16.msra.mxu0 0
    %943 = vmatprep.subr.bf16.mxu0 0
    %944 = vmatpush2.bf16.msra.mxu0 0
    %945 = vmatprep.mubr.bf16.mxu0 0
    %946 = vmatmul.mubr.bf16.gmra.mxu0 %v911
    %v947 = vpop.f32.mrf.mxu0
    %v948 = vadd.f32 0.0, %v947
    %v949 = vpop.f32.mrf.mxu0
    %v950 = vpop.f32.mrf.mxu0
    %v951 = vpop.f32.mrf.mxu0
    %952 = vdwg.mxu0
    %v954 = vsel %vm144, %v75, 0
    %956 = vmatprep.subr.bf16.mxu0 0
    %957 = vmatpush1.bf16.msra.mxu0 0
    %958 = vmatprep.subr.bf16.mxu0 0
    %959 = vmatpush1.bf16.msra.mxu0 0
    %960 = vmatprep.subr.bf16.mxu0 0
    %961 = vmatpush1.bf16.msra.mxu0 %v217
    %962 = vmatprep.subr.bf16.mxu0 0
    %963 = vmatpush1.bf16.msra.mxu0 %v216
    %964 = vmatprep.subr.bf16.mxu0 0
    %965 = vmatpush1.bf16.msra.mxu0 %v215
    %966 = vmatprep.subr.bf16.mxu0 0
    %967 = vmatpush1.bf16.msra.mxu0 %v214
    %968 = vmatprep.subr.bf16.mxu0 0
    %969 = vmatpush1.bf16.msra.mxu0 %v213
    %970 = vmatprep.subr.bf16.mxu0 0
    %971 = vmatpush1.bf16.msra.mxu0 %v212
    %972 = vmatprep.subr.bf16.mxu0 0
    %973 = vmatpush2.bf16.msra.mxu0 0
    %974 = vmatprep.subr.bf16.mxu0 0
    %975 = vmatpush2.bf16.msra.mxu0 0
    %976 = vmatprep.subr.bf16.mxu0 0
    %977 = vmatpush2.bf16.msra.mxu0 0
    %978 = vmatprep.subr.bf16.mxu0 0
    %979 = vmatpush2.bf16.msra.mxu0 0
    %980 = vmatprep.subr.bf16.mxu0 0
    %981 = vmatpush2.bf16.msra.mxu0 0
    %982 = vmatprep.subr.bf16.mxu0 0
    %983 = vmatpush2.bf16.msra.mxu0 0
    %984 = vmatprep.subr.bf16.mxu0 0
    %985 = vmatpush2.bf16.msra.mxu0 0
    %986 = vmatprep.subr.bf16.mxu0 0
    %987 = vmatpush2.bf16.msra.mxu0 0
    %988 = vmatprep.mubr.bf16.mxu0 0
    %989 = vmatmul.mubr.bf16.gmra.mxu0 %v954
    %v990 = vpop.f32.mrf.mxu0
    %v991 = vadd.f32 %v948, %v990
    %v992 = vpop.f32.mrf.mxu0
    %v993 = vpop.f32.mrf.mxu0
    %v994 = vpop.f32.mrf.mxu0
    %995 = vdwg.mxu0
    %996 = vmatprep.subr.bf16.mxu0 0
    %997 = vmatpush1.bf16.msra.mxu0 0
    %998 = vmatprep.subr.bf16.mxu0 0
    %999 = vmatpush1.bf16.msra.mxu0 0
    %1000 = vmatprep.subr.bf16.mxu0 0
    %1001 = vmatpush1.bf16.msra.mxu0 %v296
    %1002 = vmatprep.subr.bf16.mxu0 0
    %1003 = vmatpush1.bf16.msra.mxu0 %v295
    %1004 = vmatprep.subr.bf16.mxu0 0
    %1005 = vmatpush1.bf16.msra.mxu0 %v294
    %1006 = vmatprep.subr.bf16.mxu0 0
    %1007 = vmatpush1.bf16.msra.mxu0 %v293
    %1008 = vmatprep.subr.bf16.mxu0 0
    %1009 = vmatpush1.bf16.msra.mxu0 %v292
    %1010 = vmatprep.subr.bf16.mxu0 0
    %1011 = vmatpush1.bf16.msra.mxu0 %v291
    %1012 = vmatprep.subr.bf16.mxu0 0
    %1013 = vmatpush2.bf16.msra.mxu0 0
    %1014 = vmatprep.subr.bf16.mxu0 0
    %1015 = vmatpush2.bf16.msra.mxu0 0
    %1016 = vmatprep.subr.bf16.mxu0 0
    %1017 = vmatpush2.bf16.msra.mxu0 0
    %1018 = vmatprep.subr.bf16.mxu0 0
    %1019 = vmatpush2.bf16.msra.mxu0 0
    %1020 = vmatprep.subr.bf16.mxu0 0
    %1021 = vmatpush2.bf16.msra.mxu0 0
    %1022 = vmatprep.subr.bf16.mxu0 0
    %1023 = vmatpush2.bf16.msra.mxu0 0
    %1024 = vmatprep.subr.bf16.mxu0 0
    %1025 = vmatpush2.bf16.msra.mxu0 0
    %1026 = vmatprep.subr.bf16.mxu0 0
    %1027 = vmatpush2.bf16.msra.mxu0 0
    %1028 = vmatprep.mubr.bf16.mxu0 0
    %1029 = vmatmul.mubr.bf16.gmra.mxu0 %v911
    %v1030 = vpop.f32.mrf.mxu0
    %v1031 = vadd.f32 0.0, %v1030
    %v1032 = vpop.f32.mrf.mxu0
    %v1033 = vpop.f32.mrf.mxu0
    %v1034 = vpop.f32.mrf.mxu0
    %1035 = vdwg.mxu0
    %1036 = vmatprep.subr.bf16.mxu0 0
    %1037 = vmatpush1.bf16.msra.mxu0 0
    %1038 = vmatprep.subr.bf16.mxu0 0
    %1039 = vmatpush1.bf16.msra.mxu0 0
    %1040 = vmatprep.subr.bf16.mxu0 0
    %1041 = vmatpush1.bf16.msra.mxu0 %v372
    %1042 = vmatprep.subr.bf16.mxu0 0
    %1043 = vmatpush1.bf16.msra.mxu0 %v371
    %1044 = vmatprep.subr.bf16.mxu0 0
    %1045 = vmatpush1.bf16.msra.mxu0 %v370
    %1046 = vmatprep.subr.bf16.mxu0 0
    %1047 = vmatpush1.bf16.msra.mxu0 %v369
    %1048 = vmatprep.subr.bf16.mxu0 0
    %1049 = vmatpush1.bf16.msra.mxu0 %v368
    %1050 = vmatprep.subr.bf16.mxu0 0
    %1051 = vmatpush1.bf16.msra.mxu0 %v367
    %1052 = vmatprep.subr.bf16.mxu0 0
    %1053 = vmatpush2.bf16.msra.mxu0 0
    %1054 = vmatprep.subr.bf16.mxu0 0
    %1055 = vmatpush2.bf16.msra.mxu0 0
    %1056 = vmatprep.subr.bf16.mxu0 0
    %1057 = vmatpush2.bf16.msra.mxu0 0
    %1058 = vmatprep.subr.bf16.mxu0 0
    %1059 = vmatpush2.bf16.msra.mxu0 0
    %1060 = vmatprep.subr.bf16.mxu0 0
    %1061 = vmatpush2.bf16.msra.mxu0 0
    %1062 = vmatprep.subr.bf16.mxu0 0
    %1063 = vmatpush2.bf16.msra.mxu0 0
    %1064 = vmatprep.subr.bf16.mxu0 0
    %1065 = vmatpush2.bf16.msra.mxu0 0
    %1066 = vmatprep.subr.bf16.mxu0 0
    %1067 = vmatpush2.bf16.msra.mxu0 0
    %1068 = vmatprep.mubr.bf16.mxu0 0
    %1069 = vmatmul.mubr.bf16.gmra.mxu0 %v954
    %v1070 = vpop.f32.mrf.mxu0
    %v1071 = vadd.f32 %v1031, %v1070
    %v1072 = vpop.f32.mrf.mxu0
    %v1073 = vpop.f32.mrf.mxu0
    %v1074 = vpop.f32.mrf.mxu0
    %1075 = vdwg.mxu0
    %v1077 = vsel %vm144, %v79, 0
    %1079 = vmatprep.subr.bf16.mxu0 0
    %1080 = vmatpush1.bf16.msra.mxu0 0
    %1081 = vmatprep.subr.bf16.mxu0 0
    %1082 = vmatpush1.bf16.msra.mxu0 0
    %1083 = vmatprep.subr.bf16.mxu0 0
    %1084 = vmatpush1.bf16.msra.mxu0 %v137
    %1085 = vmatprep.subr.bf16.mxu0 0
    %1086 = vmatpush1.bf16.msra.mxu0 %v136
    %1087 = vmatprep.subr.bf16.mxu0 0
    %1088 = vmatpush1.bf16.msra.mxu0 %v135
    %1089 = vmatprep.subr.bf16.mxu0 0
    %1090 = vmatpush1.bf16.msra.mxu0 %v134
    %1091 = vmatprep.subr.bf16.mxu0 0
    %1092 = vmatpush1.bf16.msra.mxu0 %v133
    %1093 = vmatprep.subr.bf16.mxu0 0
    %1094 = vmatpush1.bf16.msra.mxu0 %v132
    %1095 = vmatprep.subr.bf16.mxu0 0
    %1096 = vmatpush2.bf16.msra.mxu0 0
    %1097 = vmatprep.subr.bf16.mxu0 0
    %1098 = vmatpush2.bf16.msra.mxu0 0
    %1099 = vmatprep.subr.bf16.mxu0 0
    %1100 = vmatpush2.bf16.msra.mxu0 0
    %1101 = vmatprep.subr.bf16.mxu0 0
    %1102 = vmatpush2.bf16.msra.mxu0 0
    %1103 = vmatprep.subr.bf16.mxu0 0
    %1104 = vmatpush2.bf16.msra.mxu0 0
    %1105 = vmatprep.subr.bf16.mxu0 0
    %1106 = vmatpush2.bf16.msra.mxu0 0
    %1107 = vmatprep.subr.bf16.mxu0 0
    %1108 = vmatpush2.bf16.msra.mxu0 0
    %1109 = vmatprep.subr.bf16.mxu0 0
    %1110 = vmatpush2.bf16.msra.mxu0 0
    %1111 = vmatprep.mubr.bf16.mxu0 0
    %1112 = vmatmul.mubr.bf16.gmra.mxu0 %v1077
    %v1113 = vpop.f32.mrf.mxu0
    %v1114 = vadd.f32 0.0, %v1113
    %v1115 = vpop.f32.mrf.mxu0
    %v1116 = vpop.f32.mrf.mxu0
    %v1117 = vpop.f32.mrf.mxu0
    %1118 = vdwg.mxu0
    %1119 = vmatprep.subr.bf16.mxu0 0
    %1120 = vmatpush1.bf16.msra.mxu0 0
    %1121 = vmatprep.subr.bf16.mxu0 0
    %1122 = vmatpush1.bf16.msra.mxu0 0
    %1123 = vmatprep.subr.bf16.mxu0 0
    %1124 = vmatpush1.bf16.msra.mxu0 %v217
    %1125 = vmatprep.subr.bf16.mxu0 0
    %1126 = vmatpush1.bf16.msra.mxu0 %v216
    %1127 = vmatprep.subr.bf16.mxu0 0
    %1128 = vmatpush1.bf16.msra.mxu0 %v215
    %1129 = vmatprep.subr.bf16.mxu0 0
    %1130 = vmatpush1.bf16.msra.mxu0 %v214
    %1131 = vmatprep.subr.bf16.mxu0 0
    %1132 = vmatpush1.bf16.msra.mxu0 %v213
    %1133 = vmatprep.subr.bf16.mxu0 0
    %1134 = vmatpush1.bf16.msra.mxu0 %v212
    %1135 = vmatprep.subr.bf16.mxu0 0
    %1136 = vmatpush2.bf16.msra.mxu0 0
    %1137 = vmatprep.subr.bf16.mxu0 0
    %1138 = vmatpush2.bf16.msra.mxu0 0
    %1139 = vmatprep.subr.bf16.mxu0 0
    %1140 = vmatpush2.bf16.msra.mxu0 0
    %1141 = vmatprep.subr.bf16.mxu0 0
    %1142 = vmatpush2.bf16.msra.mxu0 0
    %1143 = vmatprep.subr.bf16.mxu0 0
    %1144 = vmatpush2.bf16.msra.mxu0 0
    %1145 = vmatprep.subr.bf16.mxu0 0
    %1146 = vmatpush2.bf16.msra.mxu0 0
    %1147 = vmatprep.subr.bf16.mxu0 0
    %1148 = vmatpush2.bf16.msra.mxu0 0
    %1149 = vmatprep.subr.bf16.mxu0 0
    %1150 = vmatpush2.bf16.msra.mxu0 0
    %1151 = vmatprep.mubr.bf16.mxu0 0
    %1152 = vmatmul.mubr.bf16.gmra.mxu0 %v911
    %v1153 = vpop.f32.mrf.mxu0
    %v1154 = vadd.f32 %v1114, %v1153
    %v1155 = vpop.f32.mrf.mxu0
    %v1156 = vpop.f32.mrf.mxu0
    %v1157 = vpop.f32.mrf.mxu0
    %1158 = vdwg.mxu0
    %1159 = vmatprep.subr.bf16.mxu0 0
    %1160 = vmatpush1.bf16.msra.mxu0 0
    %1161 = vmatprep.subr.bf16.mxu0 0
    %1162 = vmatpush1.bf16.msra.mxu0 0
    %1163 = vmatprep.subr.bf16.mxu0 0
    %1164 = vmatpush1.bf16.msra.mxu0 %v296
    %1165 = vmatprep.subr.bf16.mxu0 0
    %1166 = vmatpush1.bf16.msra.mxu0 %v295
    %1167 = vmatprep.subr.bf16.mxu0 0
    %1168 = vmatpush1.bf16.msra.mxu0 %v294
    %1169 = vmatprep.subr.bf16.mxu0 0
    %1170 = vmatpush1.bf16.msra.mxu0 %v293
    %1171 = vmatprep.subr.bf16.mxu0 0
    %1172 = vmatpush1.bf16.msra.mxu0 %v292
    %1173 = vmatprep.subr.bf16.mxu0 0
    %1174 = vmatpush1.bf16.msra.mxu0 %v291
    %1175 = vmatprep.subr.bf16.mxu0 0
    %1176 = vmatpush2.bf16.msra.mxu0 0
    %1177 = vmatprep.subr.bf16.mxu0 0
    %1178 = vmatpush2.bf16.msra.mxu0 0
    %1179 = vmatprep.subr.bf16.mxu0 0
    %1180 = vmatpush2.bf16.msra.mxu0 0
    %1181 = vmatprep.subr.bf16.mxu0 0
    %1182 = vmatpush2.bf16.msra.mxu0 0
    %1183 = vmatprep.subr.bf16.mxu0 0
    %1184 = vmatpush2.bf16.msra.mxu0 0
    %1185 = vmatprep.subr.bf16.mxu0 0
    %1186 = vmatpush2.bf16.msra.mxu0 0
    %1187 = vmatprep.subr.bf16.mxu0 0
    %1188 = vmatpush2.bf16.msra.mxu0 0
    %1189 = vmatprep.subr.bf16.mxu0 0
    %1190 = vmatpush2.bf16.msra.mxu0 0
    %1191 = vmatprep.mubr.bf16.mxu0 0
    %1192 = vmatmul.mubr.bf16.gmra.mxu0 %v1077
    %v1193 = vpop.f32.mrf.mxu0
    %v1194 = vadd.f32 0.0, %v1193
    %v1195 = vpop.f32.mrf.mxu0
    %v1196 = vpop.f32.mrf.mxu0
    %v1197 = vpop.f32.mrf.mxu0
    %1198 = vdwg.mxu0
    %1199 = vmatprep.subr.bf16.mxu0 0
    %1200 = vmatpush1.bf16.msra.mxu0 0
    %1201 = vmatprep.subr.bf16.mxu0 0
    %1202 = vmatpush1.bf16.msra.mxu0 0
    %1203 = vmatprep.subr.bf16.mxu0 0
    %1204 = vmatpush1.bf16.msra.mxu0 %v372
    %1205 = vmatprep.subr.bf16.mxu0 0
    %1206 = vmatpush1.bf16.msra.mxu0 %v371
    %1207 = vmatprep.subr.bf16.mxu0 0
    %1208 = vmatpush1.bf16.msra.mxu0 %v370
    %1209 = vmatprep.subr.bf16.mxu0 0
    %1210 = vmatpush1.bf16.msra.mxu0 %v369
    %1211 = vmatprep.subr.bf16.mxu0 0
    %1212 = vmatpush1.bf16.msra.mxu0 %v368
    %1213 = vmatprep.subr.bf16.mxu0 0
    %1214 = vmatpush1.bf16.msra.mxu0 %v367
    %1215 = vmatprep.subr.bf16.mxu0 0
    %1216 = vmatpush2.bf16.msra.mxu0 0
    %1217 = vmatprep.subr.bf16.mxu0 0
    %1218 = vmatpush2.bf16.msra.mxu0 0
    %1219 = vmatprep.subr.bf16.mxu0 0
    %1220 = vmatpush2.bf16.msra.mxu0 0
    %1221 = vmatprep.subr.bf16.mxu0 0
    %1222 = vmatpush2.bf16.msra.mxu0 0
    %1223 = vmatprep.subr.bf16.mxu0 0
    %1224 = vmatpush2.bf16.msra.mxu0 0
    %1225 = vmatprep.subr.bf16.mxu0 0
    %1226 = vmatpush2.bf16.msra.mxu0 0
    %1227 = vmatprep.subr.bf16.mxu0 0
    %1228 = vmatpush2.bf16.msra.mxu0 0
    %1229 = vmatprep.subr.bf16.mxu0 0
    %1230 = vmatpush2.bf16.msra.mxu0 0
    %1231 = vmatprep.mubr.bf16.mxu0 0
    %1232 = vmatmul.mubr.bf16.gmra.mxu0 %v911
    %v1233 = vpop.f32.mrf.mxu0
    %v1234 = vadd.f32 %v1194, %v1233
    %v1235 = vpop.f32.mrf.mxu0
    %v1236 = vpop.f32.mrf.mxu0
    %v1237 = vpop.f32.mrf.mxu0
    %1238 = vdwg.mxu0
    %v1240 = vsel %vm144, %v81, 0
    %1242 = vmatprep.subr.bf16.mxu0 0
    %1243 = vmatpush1.bf16.msra.mxu0 0
    %1244 = vmatprep.subr.bf16.mxu0 0
    %1245 = vmatpush1.bf16.msra.mxu0 0
    %1246 = vmatprep.subr.bf16.mxu0 0
    %1247 = vmatpush1.bf16.msra.mxu0 %v137
    %1248 = vmatprep.subr.bf16.mxu0 0
    %1249 = vmatpush1.bf16.msra.mxu0 %v136
    %1250 = vmatprep.subr.bf16.mxu0 0
    %1251 = vmatpush1.bf16.msra.mxu0 %v135
    %1252 = vmatprep.subr.bf16.mxu0 0
    %1253 = vmatpush1.bf16.msra.mxu0 %v134
    %1254 = vmatprep.subr.bf16.mxu0 0
    %1255 = vmatpush1.bf16.msra.mxu0 %v133
    %1256 = vmatprep.subr.bf16.mxu0 0
    %1257 = vmatpush1.bf16.msra.mxu0 %v132
    %1258 = vmatprep.subr.bf16.mxu0 0
    %1259 = vmatpush2.bf16.msra.mxu0 0
    %1260 = vmatprep.subr.bf16.mxu0 0
    %1261 = vmatpush2.bf16.msra.mxu0 0
    %1262 = vmatprep.subr.bf16.mxu0 0
    %1263 = vmatpush2.bf16.msra.mxu0 0
    %1264 = vmatprep.subr.bf16.mxu0 0
    %1265 = vmatpush2.bf16.msra.mxu0 0
    %1266 = vmatprep.subr.bf16.mxu0 0
    %1267 = vmatpush2.bf16.msra.mxu0 0
    %1268 = vmatprep.subr.bf16.mxu0 0
    %1269 = vmatpush2.bf16.msra.mxu0 0
    %1270 = vmatprep.subr.bf16.mxu0 0
    %1271 = vmatpush2.bf16.msra.mxu0 0
    %1272 = vmatprep.subr.bf16.mxu0 0
    %1273 = vmatpush2.bf16.msra.mxu0 0
    %1274 = vmatprep.mubr.bf16.mxu0 0
    %1275 = vmatmul.mubr.bf16.gmra.mxu0 %v1240
    %v1276 = vpop.f32.mrf.mxu0
    %v1277 = vadd.f32 0.0, %v1276
    %v1278 = vpop.f32.mrf.mxu0
    %v1279 = vpop.f32.mrf.mxu0
    %v1280 = vpop.f32.mrf.mxu0
    %1281 = vdwg.mxu0
    %1282 = vmatprep.subr.bf16.mxu0 0
    %1283 = vmatpush1.bf16.msra.mxu0 0
    %1284 = vmatprep.subr.bf16.mxu0 0
    %1285 = vmatpush1.bf16.msra.mxu0 0
    %1286 = vmatprep.subr.bf16.mxu0 0
    %1287 = vmatpush1.bf16.msra.mxu0 %v217
    %1288 = vmatprep.subr.bf16.mxu0 0
    %1289 = vmatpush1.bf16.msra.mxu0 %v216
    %1290 = vmatprep.subr.bf16.mxu0 0
    %1291 = vmatpush1.bf16.msra.mxu0 %v215
    %1292 = vmatprep.subr.bf16.mxu0 0
    %1293 = vmatpush1.bf16.msra.mxu0 %v214
    %1294 = vmatprep.subr.bf16.mxu0 0
    %1295 = vmatpush1.bf16.msra.mxu0 %v213
    %1296 = vmatprep.subr.bf16.mxu0 0
    %1297 = vmatpush1.bf16.msra.mxu0 %v212
    %1298 = vmatprep.subr.bf16.mxu0 0
    %1299 = vmatpush2.bf16.msra.mxu0 0
    %1300 = vmatprep.subr.bf16.mxu0 0
    %1301 = vmatpush2.bf16.msra.mxu0 0
    %1302 = vmatprep.subr.bf16.mxu0 0
    %1303 = vmatpush2.bf16.msra.mxu0 0
    %1304 = vmatprep.subr.bf16.mxu0 0
    %1305 = vmatpush2.bf16.msra.mxu0 0
    %1306 = vmatprep.subr.bf16.mxu0 0
    %1307 = vmatpush2.bf16.msra.mxu0 0
    %1308 = vmatprep.subr.bf16.mxu0 0
    %1309 = vmatpush2.bf16.msra.mxu0 0
    %1310 = vmatprep.subr.bf16.mxu0 0
    %1311 = vmatpush2.bf16.msra.mxu0 0
    %1312 = vmatprep.subr.bf16.mxu0 0
    %1313 = vmatpush2.bf16.msra.mxu0 0
    %1314 = vmatprep.mubr.bf16.mxu0 0
    %1315 = vmatmul.mubr.bf16.gmra.mxu0 %v1077
    %v1316 = vpop.f32.mrf.mxu0
    %v1317 = vadd.f32 %v1277, %v1316
    %v1318 = vpop.f32.mrf.mxu0
    %v1319 = vpop.f32.mrf.mxu0
    %v1320 = vpop.f32.mrf.mxu0
    %1321 = vdwg.mxu0
    %1322 = vmatprep.subr.bf16.mxu0 0
    %1323 = vmatpush1.bf16.msra.mxu0 0
    %1324 = vmatprep.subr.bf16.mxu0 0
    %1325 = vmatpush1.bf16.msra.mxu0 0
    %1326 = vmatprep.subr.bf16.mxu0 0
    %1327 = vmatpush1.bf16.msra.mxu0 %v296
    %1328 = vmatprep.subr.bf16.mxu0 0
    %1329 = vmatpush1.bf16.msra.mxu0 %v295
    %1330 = vmatprep.subr.bf16.mxu0 0
    %1331 = vmatpush1.bf16.msra.mxu0 %v294
    %1332 = vmatprep.subr.bf16.mxu0 0
    %1333 = vmatpush1.bf16.msra.mxu0 %v293
    %1334 = vmatprep.subr.bf16.mxu0 0
    %1335 = vmatpush1.bf16.msra.mxu0 %v292
    %1336 = vmatprep.subr.bf16.mxu0 0
    %1337 = vmatpush1.bf16.msra.mxu0 %v291
    %1338 = vmatprep.subr.bf16.mxu0 0
    %1339 = vmatpush2.bf16.msra.mxu0 0
    %1340 = vmatprep.subr.bf16.mxu0 0
    %1341 = vmatpush2.bf16.msra.mxu0 0
    %1342 = vmatprep.subr.bf16.mxu0 0
    %1343 = vmatpush2.bf16.msra.mxu0 0
    %1344 = vmatprep.subr.bf16.mxu0 0
    %1345 = vmatpush2.bf16.msra.mxu0 0
    %1346 = vmatprep.subr.bf16.mxu0 0
    %1347 = vmatpush2.bf16.msra.mxu0 0
    %1348 = vmatprep.subr.bf16.mxu0 0
    %1349 = vmatpush2.bf16.msra.mxu0 0
    %1350 = vmatprep.subr.bf16.mxu0 0
    %1351 = vmatpush2.bf16.msra.mxu0 0
    %1352 = vmatprep.subr.bf16.mxu0 0
    %1353 = vmatpush2.bf16.msra.mxu0 0
    %1354 = vmatprep.mubr.bf16.mxu0 0
    %1355 = vmatmul.mubr.bf16.gmra.mxu0 %v1240
    %v1356 = vpop.f32.mrf.mxu0
    %v1357 = vadd.f32 0.0, %v1356
    %v1358 = vpop.f32.mrf.mxu0
    %v1359 = vpop.f32.mrf.mxu0
    %v1360 = vpop.f32.mrf.mxu0
    %1361 = vdwg.mxu0
    %1362 = vmatprep.subr.bf16.mxu0 0
    %1363 = vmatpush1.bf16.msra.mxu0 0
    %1364 = vmatprep.subr.bf16.mxu0 0
    %1365 = vmatpush1.bf16.msra.mxu0 0
    %1366 = vmatprep.subr.bf16.mxu0 0
    %1367 = vmatpush1.bf16.msra.mxu0 %v372
    %1368 = vmatprep.subr.bf16.mxu0 0
    %1369 = vmatpush1.bf16.msra.mxu0 %v371
    %1370 = vmatprep.subr.bf16.mxu0 0
    %1371 = vmatpush1.bf16.msra.mxu0 %v370
    %1372 = vmatprep.subr.bf16.mxu0 0
    %1373 = vmatpush1.bf16.msra.mxu0 %v369
    %1374 = vmatprep.subr.bf16.mxu0 0
    %1375 = vmatpush1.bf16.msra.mxu0 %v368
    %1376 = vmatprep.subr.bf16.mxu0 0
    %1377 = vmatpush1.bf16.msra.mxu0 %v367
    %1378 = vmatprep.subr.bf16.mxu0 0
    %1379 = vmatpush2.bf16.msra.mxu0 0
    %1380 = vmatprep.subr.bf16.mxu0 0
    %1381 = vmatpush2.bf16.msra.mxu0 0
    %1382 = vmatprep.subr.bf16.mxu0 0
    %1383 = vmatpush2.bf16.msra.mxu0 0
    %1384 = vmatprep.subr.bf16.mxu0 0
    %1385 = vmatpush2.bf16.msra.mxu0 0
    %1386 = vmatprep.subr.bf16.mxu0 0
    %1387 = vmatpush2.bf16.msra.mxu0 0
    %1388 = vmatprep.subr.bf16.mxu0 0
    %1389 = vmatpush2.bf16.msra.mxu0 0
    %1390 = vmatprep.subr.bf16.mxu0 0
    %1391 = vmatpush2.bf16.msra.mxu0 0
    %1392 = vmatprep.subr.bf16.mxu0 0
    %1393 = vmatpush2.bf16.msra.mxu0 0
    %1394 = vmatprep.mubr.bf16.mxu0 0
    %1395 = vmatmul.mubr.bf16.gmra.mxu0 %v1077
    %v1396 = vpop.f32.mrf.mxu0
    %v1397 = vadd.f32 %v1357, %v1396
    %v1398 = vpop.f32.mrf.mxu0
    %v1399 = vpop.f32.mrf.mxu0
    %v1400 = vpop.f32.mrf.mxu0
    %1401 = vdwg.mxu0
    %v1402 = vld [vmem:[%s73 + $0x1] sm:$0xff]
    %v1403 = vpack.c.bf16 %v1402, %v1402
    %v1405 = vsel %vm144, %v1403, 0
    %1407 = vmatprep.subr.bf16.mxu0 0
    %1408 = vmatpush1.bf16.msra.mxu0 0
    %1409 = vmatprep.subr.bf16.mxu0 0
    %1410 = vmatpush1.bf16.msra.mxu0 0
    %1411 = vmatprep.subr.bf16.mxu0 0
    %1412 = vmatpush1.bf16.msra.mxu0 %v137
    %1413 = vmatprep.subr.bf16.mxu0 0
    %1414 = vmatpush1.bf16.msra.mxu0 %v136
    %1415 = vmatprep.subr.bf16.mxu0 0
    %1416 = vmatpush1.bf16.msra.mxu0 %v135
    %1417 = vmatprep.subr.bf16.mxu0 0
    %1418 = vmatpush1.bf16.msra.mxu0 %v134
    %1419 = vmatprep.subr.bf16.mxu0 0
    %1420 = vmatpush1.bf16.msra.mxu0 %v133
    %1421 = vmatprep.subr.bf16.mxu0 0
    %1422 = vmatpush1.bf16.msra.mxu0 %v132
    %1423 = vmatprep.subr.bf16.mxu0 0
    %1424 = vmatpush2.bf16.msra.mxu0 0
    %1425 = vmatprep.subr.bf16.mxu0 0
    %1426 = vmatpush2.bf16.msra.mxu0 0
    %1427 = vmatprep.subr.bf16.mxu0 0
    %1428 = vmatpush2.bf16.msra.mxu0 0
    %1429 = vmatprep.subr.bf16.mxu0 0
    %1430 = vmatpush2.bf16.msra.mxu0 0
    %1431 = vmatprep.subr.bf16.mxu0 0
    %1432 = vmatpush2.bf16.msra.mxu0 0
    %1433 = vmatprep.subr.bf16.mxu0 0
    %1434 = vmatpush2.bf16.msra.mxu0 0
    %1435 = vmatprep.subr.bf16.mxu0 0
    %1436 = vmatpush2.bf16.msra.mxu0 0
    %1437 = vmatprep.subr.bf16.mxu0 0
    %1438 = vmatpush2.bf16.msra.mxu0 0
    %1439 = vmatprep.mubr.bf16.mxu0 0
    %1440 = vmatmul.mubr.bf16.gmra.mxu0 %v1405
    %v1441 = vpop.f32.mrf.mxu0
    %v1442 = vadd.f32 0.0, %v1441
    %v1443 = vpop.f32.mrf.mxu0
    %v1444 = vpop.f32.mrf.mxu0
    %v1445 = vpop.f32.mrf.mxu0
    %1446 = vdwg.mxu0
    %1447 = vmatprep.subr.bf16.mxu0 0
    %1448 = vmatpush1.bf16.msra.mxu0 0
    %1449 = vmatprep.subr.bf16.mxu0 0
    %1450 = vmatpush1.bf16.msra.mxu0 0
    %1451 = vmatprep.subr.bf16.mxu0 0
    %1452 = vmatpush1.bf16.msra.mxu0 %v217
    %1453 = vmatprep.subr.bf16.mxu0 0
    %1454 = vmatpush1.bf16.msra.mxu0 %v216
    %1455 = vmatprep.subr.bf16.mxu0 0
    %1456 = vmatpush1.bf16.msra.mxu0 %v215
    %1457 = vmatprep.subr.bf16.mxu0 0
    %1458 = vmatpush1.bf16.msra.mxu0 %v214
    %1459 = vmatprep.subr.bf16.mxu0 0
    %1460 = vmatpush1.bf16.msra.mxu0 %v213
    %1461 = vmatprep.subr.bf16.mxu0 0
    %1462 = vmatpush1.bf16.msra.mxu0 %v212
    %1463 = vmatprep.subr.bf16.mxu0 0
    %1464 = vmatpush2.bf16.msra.mxu0 0
    %1465 = vmatprep.subr.bf16.mxu0 0
    %1466 = vmatpush2.bf16.msra.mxu0 0
    %1467 = vmatprep.subr.bf16.mxu0 0
    %1468 = vmatpush2.bf16.msra.mxu0 0
    %1469 = vmatprep.subr.bf16.mxu0 0
    %1470 = vmatpush2.bf16.msra.mxu0 0
    %1471 = vmatprep.subr.bf16.mxu0 0
    %1472 = vmatpush2.bf16.msra.mxu0 0
    %1473 = vmatprep.subr.bf16.mxu0 0
    %1474 = vmatpush2.bf16.msra.mxu0 0
    %1475 = vmatprep.subr.bf16.mxu0 0
    %1476 = vmatpush2.bf16.msra.mxu0 0
    %1477 = vmatprep.subr.bf16.mxu0 0
    %1478 = vmatpush2.bf16.msra.mxu0 0
    %1479 = vmatprep.mubr.bf16.mxu0 0
    %1480 = vmatmul.mubr.bf16.gmra.mxu0 %v1240
    %v1481 = vpop.f32.mrf.mxu0
    %v1482 = vadd.f32 %v1442, %v1481
    %v1483 = vpop.f32.mrf.mxu0
    %v1484 = vpop.f32.mrf.mxu0
    %v1485 = vpop.f32.mrf.mxu0
    %1486 = vdwg.mxu0
    %1487 = vmatprep.subr.bf16.mxu0 0
    %1488 = vmatpush1.bf16.msra.mxu0 0
    %1489 = vmatprep.subr.bf16.mxu0 0
    %1490 = vmatpush1.bf16.msra.mxu0 0
    %1491 = vmatprep.subr.bf16.mxu0 0
    %1492 = vmatpush1.bf16.msra.mxu0 %v296
    %1493 = vmatprep.subr.bf16.mxu0 0
    %1494 = vmatpush1.bf16.msra.mxu0 %v295
    %1495 = vmatprep.subr.bf16.mxu0 0
    %1496 = vmatpush1.bf16.msra.mxu0 %v294
    %1497 = vmatprep.subr.bf16.mxu0 0
    %1498 = vmatpush1.bf16.msra.mxu0 %v293
    %1499 = vmatprep.subr.bf16.mxu0 0
    %1500 = vmatpush1.bf16.msra.mxu0 %v292
    %1501 = vmatprep.subr.bf16.mxu0 0
    %1502 = vmatpush1.bf16.msra.mxu0 %v291
    %1503 = vmatprep.subr.bf16.mxu0 0
    %1504 = vmatpush2.bf16.msra.mxu0 0
    %1505 = vmatprep.subr.bf16.mxu0 0
    %1506 = vmatpush2.bf16.msra.mxu0 0
    %1507 = vmatprep.subr.bf16.mxu0 0
    %1508 = vmatpush2.bf16.msra.mxu0 0
    %1509 = vmatprep.subr.bf16.mxu0 0
    %1510 = vmatpush2.bf16.msra.mxu0 0
    %1511 = vmatprep.subr.bf16.mxu0 0
    %1512 = vmatpush2.bf16.msra.mxu0 0
    %1513 = vmatprep.subr.bf16.mxu0 0
    %1514 = vmatpush2.bf16.msra.mxu0 0
    %1515 = vmatprep.subr.bf16.mxu0 0
    %1516 = vmatpush2.bf16.msra.mxu0 0
    %1517 = vmatprep.subr.bf16.mxu0 0
    %1518 = vmatpush2.bf16.msra.mxu0 0
    %1519 = vmatprep.mubr.bf16.mxu0 0
    %1520 = vmatmul.mubr.bf16.gmra.mxu0 %v1405
    %v1521 = vpop.f32.mrf.mxu0
    %v1522 = vadd.f32 0.0, %v1521
    %v1523 = vpop.f32.mrf.mxu0
    %v1524 = vpop.f32.mrf.mxu0
    %v1525 = vpop.f32.mrf.mxu0
    %1526 = vdwg.mxu0
    %1527 = vmatprep.subr.bf16.mxu0 0
    %1528 = vmatpush1.bf16.msra.mxu0 0
    %1529 = vmatprep.subr.bf16.mxu0 0
    %1530 = vmatpush1.bf16.msra.mxu0 0
    %1531 = vmatprep.subr.bf16.mxu0 0
    %1532 = vmatpush1.bf16.msra.mxu0 %v372
    %1533 = vmatprep.subr.bf16.mxu0 0
    %1534 = vmatpush1.bf16.msra.mxu0 %v371
    %1535 = vmatprep.subr.bf16.mxu0 0
    %1536 = vmatpush1.bf16.msra.mxu0 %v370
    %1537 = vmatprep.subr.bf16.mxu0 0
    %1538 = vmatpush1.bf16.msra.mxu0 %v369
    %1539 = vmatprep.subr.bf16.mxu0 0
    %1540 = vmatpush1.bf16.msra.mxu0 %v368
    %1541 = vmatprep.subr.bf16.mxu0 0
    %1542 = vmatpush1.bf16.msra.mxu0 %v367
    %1543 = vmatprep.subr.bf16.mxu0 0
    %1544 = vmatpush2.bf16.msra.mxu0 0
    %1545 = vmatprep.subr.bf16.mxu0 0
    %1546 = vmatpush2.bf16.msra.mxu0 0
    %1547 = vmatprep.subr.bf16.mxu0 0
    %1548 = vmatpush2.bf16.msra.mxu0 0
    %1549 = vmatprep.subr.bf16.mxu0 0
    %1550 = vmatpush2.bf16.msra.mxu0 0
    %1551 = vmatprep.subr.bf16.mxu0 0
    %1552 = vmatpush2.bf16.msra.mxu0 0
    %1553 = vmatprep.subr.bf16.mxu0 0
    %1554 = vmatpush2.bf16.msra.mxu0 0
    %1555 = vmatprep.subr.bf16.mxu0 0
    %1556 = vmatpush2.bf16.msra.mxu0 0
    %1557 = vmatprep.subr.bf16.mxu0 0
    %1558 = vmatpush2.bf16.msra.mxu0 0
    %1559 = vmatprep.mubr.bf16.mxu0 0
    %1560 = vmatmul.mubr.bf16.gmra.mxu0 %v1240
    %v1561 = vpop.f32.mrf.mxu0
    %v1562 = vadd.f32 %v1522, %v1561
    %v1563 = vpop.f32.mrf.mxu0
    %v1564 = vpop.f32.mrf.mxu0
    %v1565 = vpop.f32.mrf.mxu0
    %1566 = vdwg.mxu0
    %s1567 = scalar_lea.vmem %s1, 192
    %v1568 = vld [vmem:[%s1567] sm:$0xf]
    %v1569 = vld [vmem:[%s1567 + $0x4] sm:$0xf]
    %v1570 = vld [vmem:[%s1567 + $0x8] sm:$0xf]
    %v1571 = vld [vmem:[%s1567 + $0xc] sm:$0xf]
    %v1572 = vld [vmem:[%s1567 + $0x10] sm:$0xf]
    %v1573 = vld [vmem:[%s1567 + $0x14] sm:$0xf]
    %v1574 = vld [vmem:[%s1567 + $0x18] sm:$0xf]
    %v1575 = vld [vmem:[%s1567 + $0x1c] sm:$0xf]
    %v1576 = vld [vmem:[%s1567 + $0x20] sm:$0xf]
    %v1577 = vld [vmem:[%s1567 + $0x24] sm:$0xf]
    %v1578 = vld [vmem:[%s1567 + $0x28] sm:$0xf]
    %v1579 = vld [vmem:[%s1567 + $0x2c] sm:$0xf]
    %s1580 = scalar_lea.vmem %s1, 240
    %v1581 = vld [vmem:[%s1580] sm:$0xf]
    %v1582 = vld [vmem:[%s1580 + $0x4] sm:$0xf]
    %v1583 = vld [vmem:[%s1580 + $0x8] sm:$0xf]
    %v1584 = vld [vmem:[%s1580 + $0xc] sm:$0xf]
    %v1585 = vld [vmem:[%s1580 + $0x10] sm:$0xf]
    %v1586 = vld [vmem:[%s1580 + $0x14] sm:$0xf]
    %v1587 = vld [vmem:[%s1580 + $0x18] sm:$0xf]
    %v1588 = vld [vmem:[%s1580 + $0x1c] sm:$0xf]
    %v1589 = vld [vmem:[%s1580 + $0x20] sm:$0xf]
    %v1590 = vld [vmem:[%s1580 + $0x24] sm:$0xf]
    %v1591 = vld [vmem:[%s1580 + $0x28] sm:$0xf]
    %v1592 = vld [vmem:[%s1580 + $0x2c] sm:$0xf]
    %v1605 = vunpack.c.l.b16 %v1568
    %v1606 = vunpack.c.l.b16 %v1569
    %v1607 = vunpack.c.l.b16 %v1570
    %v1608 = vunpack.c.l.b16 %v1571
    %v1609 = vunpack.c.l.b16 %v1572
    %v1610 = vunpack.c.l.b16 %v1573
    %v1611 = vunpack.c.l.b16 %v1574
    %v1612 = vunpack.c.l.b16 %v1575
    %v1613 = vunpack.c.l.b16 %v1576
    %v1614 = vunpack.c.l.b16 %v1577
    %v1615 = vunpack.c.l.b16 %v1578
    %v1616 = vunpack.c.l.b16 %v1579
    %v1617 = vpack.c.b16 %v1606, %v1605
    %v1618 = vpack.c.b16 %v1608, %v1607
    %v1619 = vpack.c.b16 %v1610, %v1609
    %v1620 = vpack.c.b16 %v1612, %v1611
    %v1621 = vpack.c.b16 %v1614, %v1613
    %v1622 = vpack.c.b16 %v1616, %v1615
    %1629 = vmatprep.subr.bf16.mxu0 0
    %1630 = vmatpush1.bf16.msra.mxu0 0
    %1631 = vmatprep.subr.bf16.mxu0 0
    %1632 = vmatpush1.bf16.msra.mxu0 0
    %1633 = vmatprep.subr.bf16.mxu0 0
    %1634 = vmatpush1.bf16.msra.mxu0 %v1622
    %1635 = vmatprep.subr.bf16.mxu0 0
    %1636 = vmatpush1.bf16.msra.mxu0 %v1621
    %1637 = vmatprep.subr.bf16.mxu0 0
    %1638 = vmatpush1.bf16.msra.mxu0 %v1620
    %1639 = vmatprep.subr.bf16.mxu0 0
    %1640 = vmatpush1.bf16.msra.mxu0 %v1619
    %1641 = vmatprep.subr.bf16.mxu0 0
    %1642 = vmatpush1.bf16.msra.mxu0 %v1618
    %1643 = vmatprep.subr.bf16.mxu0 0
    %1644 = vmatpush1.bf16.msra.mxu0 %v1617
    %1645 = vmatprep.subr.bf16.mxu0 0
    %1646 = vmatpush2.bf16.msra.mxu0 0
    %1647 = vmatprep.subr.bf16.mxu0 0
    %1648 = vmatpush2.bf16.msra.mxu0 0
    %1649 = vmatprep.subr.bf16.mxu0 0
    %1650 = vmatpush2.bf16.msra.mxu0 0
    %1651 = vmatprep.subr.bf16.mxu0 0
    %1652 = vmatpush2.bf16.msra.mxu0 0
    %1653 = vmatprep.subr.bf16.mxu0 0
    %1654 = vmatpush2.bf16.msra.mxu0 0
    %1655 = vmatprep.subr.bf16.mxu0 0
    %1656 = vmatpush2.bf16.msra.mxu0 0
    %1657 = vmatprep.subr.bf16.mxu0 0
    %1658 = vmatpush2.bf16.msra.mxu0 0
    %1659 = vmatprep.subr.bf16.mxu0 0
    %1660 = vmatpush2.bf16.msra.mxu0 0
    %1661 = vmatprep.mubr.bf16.mxu0 0
    %1662 = vmatmul.mubr.bf16.gmra.mxu0 %v420
    %v1663 = vpop.f32.mrf.mxu0
    %v1664 = vadd.f32 0.0, %v1663
    %v1665 = vpop.f32.mrf.mxu0
    %v1666 = vpop.f32.mrf.mxu0
    %v1667 = vpop.f32.mrf.mxu0
    %1668 = vdwg.mxu0
    %v1669 = vadd.f32 %v262, %v1664
    %v1682 = vunpack.c.l.b16 %v1581
    %v1683 = vunpack.c.l.b16 %v1582
    %v1684 = vunpack.c.l.b16 %v1583
    %v1685 = vunpack.c.l.b16 %v1584
    %v1686 = vunpack.c.l.b16 %v1585
    %v1687 = vunpack.c.l.b16 %v1586
    %v1688 = vunpack.c.l.b16 %v1587
    %v1689 = vunpack.c.l.b16 %v1588
    %v1690 = vunpack.c.l.b16 %v1589
    %v1691 = vunpack.c.l.b16 %v1590
    %v1692 = vunpack.c.l.b16 %v1591
    %v1693 = vunpack.c.l.b16 %v1592
    %v1694 = vpack.c.b16 %v1683, %v1682
    %v1695 = vpack.c.b16 %v1685, %v1684
    %v1696 = vpack.c.b16 %v1687, %v1686
    %v1697 = vpack.c.b16 %v1689, %v1688
    %v1698 = vpack.c.b16 %v1691, %v1690
    %v1699 = vpack.c.b16 %v1693, %v1692
    %1706 = vmatprep.subr.bf16.mxu0 0
    %1707 = vmatpush1.bf16.msra.mxu0 0
    %1708 = vmatprep.subr.bf16.mxu0 0
    %1709 = vmatpush1.bf16.msra.mxu0 0
    %1710 = vmatprep.subr.bf16.mxu0 0
    %1711 = vmatpush1.bf16.msra.mxu0 %v1699
    %1712 = vmatprep.subr.bf16.mxu0 0
    %1713 = vmatpush1.bf16.msra.mxu0 %v1698
    %1714 = vmatprep.subr.bf16.mxu0 0
    %1715 = vmatpush1.bf16.msra.mxu0 %v1697
    %1716 = vmatprep.subr.bf16.mxu0 0
    %1717 = vmatpush1.bf16.msra.mxu0 %v1696
    %1718 = vmatprep.subr.bf16.mxu0 0
    %1719 = vmatpush1.bf16.msra.mxu0 %v1695
    %1720 = vmatprep.subr.bf16.mxu0 0
    %1721 = vmatpush1.bf16.msra.mxu0 %v1694
    %1722 = vmatprep.subr.bf16.mxu0 0
    %1723 = vmatpush2.bf16.msra.mxu0 0
    %1724 = vmatprep.subr.bf16.mxu0 0
    %1725 = vmatpush2.bf16.msra.mxu0 0
    %1726 = vmatprep.subr.bf16.mxu0 0
    %1727 = vmatpush2.bf16.msra.mxu0 0
    %1728 = vmatprep.subr.bf16.mxu0 0
    %1729 = vmatpush2.bf16.msra.mxu0 0
    %1730 = vmatprep.subr.bf16.mxu0 0
    %1731 = vmatpush2.bf16.msra.mxu0 0
    %1732 = vmatprep.subr.bf16.mxu0 0
    %1733 = vmatpush2.bf16.msra.mxu0 0
    %1734 = vmatprep.subr.bf16.mxu0 0
    %1735 = vmatpush2.bf16.msra.mxu0 0
    %1736 = vmatprep.subr.bf16.mxu0 0
    %1737 = vmatpush2.bf16.msra.mxu0 0
    %1738 = vmatprep.mubr.bf16.mxu0 0
    %1739 = vmatmul.mubr.bf16.gmra.mxu0 %v420
    %v1740 = vpop.f32.mrf.mxu0
    %v1741 = vadd.f32 0.0, %v1740
    %v1742 = vpop.f32.mrf.mxu0
    %v1743 = vpop.f32.mrf.mxu0
    %v1744 = vpop.f32.mrf.mxu0
    %1745 = vdwg.mxu0
    %v1746 = vadd.f32 %v414, %v1741
    %1747 = vmatprep.subr.bf16.mxu0 0
    %1748 = vmatpush1.bf16.msra.mxu0 0
    %1749 = vmatprep.subr.bf16.mxu0 0
    %1750 = vmatpush1.bf16.msra.mxu0 0
    %1751 = vmatprep.subr.bf16.mxu0 0
    %1752 = vmatpush1.bf16.msra.mxu0 %v1622
    %1753 = vmatprep.subr.bf16.mxu0 0
    %1754 = vmatpush1.bf16.msra.mxu0 %v1621
    %1755 = vmatprep.subr.bf16.mxu0 0
    %1756 = vmatpush1.bf16.msra.mxu0 %v1620
    %1757 = vmatprep.subr.bf16.mxu0 0
    %1758 = vmatpush1.bf16.msra.mxu0 %v1619
    %1759 = vmatprep.subr.bf16.mxu0 0
    %1760 = vmatpush1.bf16.msra.mxu0 %v1618
    %1761 = vmatprep.subr.bf16.mxu0 0
    %1762 = vmatpush1.bf16.msra.mxu0 %v1617
    %1763 = vmatprep.subr.bf16.mxu0 0
    %1764 = vmatpush2.bf16.msra.mxu0 0
    %1765 = vmatprep.subr.bf16.mxu0 0
    %1766 = vmatpush2.bf16.msra.mxu0 0
    %1767 = vmatprep.subr.bf16.mxu0 0
    %1768 = vmatpush2.bf16.msra.mxu0 0
    %1769 = vmatprep.subr.bf16.mxu0 0
    %1770 = vmatpush2.bf16.msra.mxu0 0
    %1771 = vmatprep.subr.bf16.mxu0 0
    %1772 = vmatpush2.bf16.msra.mxu0 0
    %1773 = vmatprep.subr.bf16.mxu0 0
    %1774 = vmatpush2.bf16.msra.mxu0 0
    %1775 = vmatprep.subr.bf16.mxu0 0
    %1776 = vmatpush2.bf16.msra.mxu0 0
    %1777 = vmatprep.subr.bf16.mxu0 0
    %1778 = vmatpush2.bf16.msra.mxu0 0
    %1779 = vmatprep.mubr.bf16.mxu0 0
    %1780 = vmatmul.mubr.bf16.gmra.mxu0 %v583
    %v1781 = vpop.f32.mrf.mxu0
    %v1782 = vadd.f32 0.0, %v1781
    %v1783 = vpop.f32.mrf.mxu0
    %v1784 = vpop.f32.mrf.mxu0
    %v1785 = vpop.f32.mrf.mxu0
    %1786 = vdwg.mxu0
    %v1787 = vadd.f32 %v497, %v1782
    %1788 = vmatprep.subr.bf16.mxu0 0
    %1789 = vmatpush1.bf16.msra.mxu0 0
    %1790 = vmatprep.subr.bf16.mxu0 0
    %1791 = vmatpush1.bf16.msra.mxu0 0
    %1792 = vmatprep.subr.bf16.mxu0 0
    %1793 = vmatpush1.bf16.msra.mxu0 %v1699
    %1794 = vmatprep.subr.bf16.mxu0 0
    %1795 = vmatpush1.bf16.msra.mxu0 %v1698
    %1796 = vmatprep.subr.bf16.mxu0 0
    %1797 = vmatpush1.bf16.msra.mxu0 %v1697
    %1798 = vmatprep.subr.bf16.mxu0 0
    %1799 = vmatpush1.bf16.msra.mxu0 %v1696
    %1800 = vmatprep.subr.bf16.mxu0 0
    %1801 = vmatpush1.bf16.msra.mxu0 %v1695
    %1802 = vmatprep.subr.bf16.mxu0 0
    %1803 = vmatpush1.bf16.msra.mxu0 %v1694
    %1804 = vmatprep.subr.bf16.mxu0 0
    %1805 = vmatpush2.bf16.msra.mxu0 0
    %1806 = vmatprep.subr.bf16.mxu0 0
    %1807 = vmatpush2.bf16.msra.mxu0 0
    %1808 = vmatprep.subr.bf16.mxu0 0
    %1809 = vmatpush2.bf16.msra.mxu0 0
    %1810 = vmatprep.subr.bf16.mxu0 0
    %1811 = vmatpush2.bf16.msra.mxu0 0
    %1812 = vmatprep.subr.bf16.mxu0 0
    %1813 = vmatpush2.bf16.msra.mxu0 0
    %1814 = vmatprep.subr.bf16.mxu0 0
    %1815 = vmatpush2.bf16.msra.mxu0 0
    %1816 = vmatprep.subr.bf16.mxu0 0
    %1817 = vmatpush2.bf16.msra.mxu0 0
    %1818 = vmatprep.subr.bf16.mxu0 0
    %1819 = vmatpush2.bf16.msra.mxu0 0
    %1820 = vmatprep.mubr.bf16.mxu0 0
    %1821 = vmatmul.mubr.bf16.gmra.mxu0 %v583
    %v1822 = vpop.f32.mrf.mxu0
    %v1823 = vadd.f32 0.0, %v1822
    %v1824 = vpop.f32.mrf.mxu0
    %v1825 = vpop.f32.mrf.mxu0
    %v1826 = vpop.f32.mrf.mxu0
    %1827 = vdwg.mxu0
    %v1828 = vadd.f32 %v577, %v1823
    %1829 = vmatprep.subr.bf16.mxu0 0
    %1830 = vmatpush1.bf16.msra.mxu0 0
    %1831 = vmatprep.subr.bf16.mxu0 0
    %1832 = vmatpush1.bf16.msra.mxu0 0
    %1833 = vmatprep.subr.bf16.mxu0 0
    %1834 = vmatpush1.bf16.msra.mxu0 %v1622
    %1835 = vmatprep.subr.bf16.mxu0 0
    %1836 = vmatpush1.bf16.msra.mxu0 %v1621
    %1837 = vmatprep.subr.bf16.mxu0 0
    %1838 = vmatpush1.bf16.msra.mxu0 %v1620
    %1839 = vmatprep.subr.bf16.mxu0 0
    %1840 = vmatpush1.bf16.msra.mxu0 %v1619
    %1841 = vmatprep.subr.bf16.mxu0 0
    %1842 = vmatpush1.bf16.msra.mxu0 %v1618
    %1843 = vmatprep.subr.bf16.mxu0 0
    %1844 = vmatpush1.bf16.msra.mxu0 %v1617
    %1845 = vmatprep.subr.bf16.mxu0 0
    %1846 = vmatpush2.bf16.msra.mxu0 0
    %1847 = vmatprep.subr.bf16.mxu0 0
    %1848 = vmatpush2.bf16.msra.mxu0 0
    %1849 = vmatprep.subr.bf16.mxu0 0
    %1850 = vmatpush2.bf16.msra.mxu0 0
    %1851 = vmatprep.subr.bf16.mxu0 0
    %1852 = vmatpush2.bf16.msra.mxu0 0
    %1853 = vmatprep.subr.bf16.mxu0 0
    %1854 = vmatpush2.bf16.msra.mxu0 0
    %1855 = vmatprep.subr.bf16.mxu0 0
    %1856 = vmatpush2.bf16.msra.mxu0 0
    %1857 = vmatprep.subr.bf16.mxu0 0
    %1858 = vmatpush2.bf16.msra.mxu0 0
    %1859 = vmatprep.subr.bf16.mxu0 0
    %1860 = vmatpush2.bf16.msra.mxu0 0
    %1861 = vmatprep.mubr.bf16.mxu0 0
    %1862 = vmatmul.mubr.bf16.gmra.mxu0 %v748
    %v1863 = vpop.f32.mrf.mxu0
    %v1864 = vadd.f32 0.0, %v1863
    %v1865 = vpop.f32.mrf.mxu0
    %v1866 = vpop.f32.mrf.mxu0
    %v1867 = vpop.f32.mrf.mxu0
    %1868 = vdwg.mxu0
    %v1869 = vadd.f32 %v660, %v1864
    %1870 = vmatprep.subr.bf16.mxu0 0
    %1871 = vmatpush1.bf16.msra.mxu0 0
    %1872 = vmatprep.subr.bf16.mxu0 0
    %1873 = vmatpush1.bf16.msra.mxu0 0
    %1874 = vmatprep.subr.bf16.mxu0 0
    %1875 = vmatpush1.bf16.msra.mxu0 %v1699
    %1876 = vmatprep.subr.bf16.mxu0 0
    %1877 = vmatpush1.bf16.msra.mxu0 %v1698
    %1878 = vmatprep.subr.bf16.mxu0 0
    %1879 = vmatpush1.bf16.msra.mxu0 %v1697
    %1880 = vmatprep.subr.bf16.mxu0 0
    %1881 = vmatpush1.bf16.msra.mxu0 %v1696
    %1882 = vmatprep.subr.bf16.mxu0 0
    %1883 = vmatpush1.bf16.msra.mxu0 %v1695
    %1884 = vmatprep.subr.bf16.mxu0 0
    %1885 = vmatpush1.bf16.msra.mxu0 %v1694
    %1886 = vmatprep.subr.bf16.mxu0 0
    %1887 = vmatpush2.bf16.msra.mxu0 0
    %1888 = vmatprep.subr.bf16.mxu0 0
    %1889 = vmatpush2.bf16.msra.mxu0 0
    %1890 = vmatprep.subr.bf16.mxu0 0
    %1891 = vmatpush2.bf16.msra.mxu0 0
    %1892 = vmatprep.subr.bf16.mxu0 0
    %1893 = vmatpush2.bf16.msra.mxu0 0
    %1894 = vmatprep.subr.bf16.mxu0 0
    %1895 = vmatpush2.bf16.msra.mxu0 0
    %1896 = vmatprep.subr.bf16.mxu0 0
    %1897 = vmatpush2.bf16.msra.mxu0 0
    %1898 = vmatprep.subr.bf16.mxu0 0
    %1899 = vmatpush2.bf16.msra.mxu0 0
    %1900 = vmatprep.subr.bf16.mxu0 0
    %1901 = vmatpush2.bf16.msra.mxu0 0
    %1902 = vmatprep.mubr.bf16.mxu0 0
    %1903 = vmatmul.mubr.bf16.gmra.mxu0 %v748
    %v1904 = vpop.f32.mrf.mxu0
    %v1905 = vadd.f32 0.0, %v1904
    %v1906 = vpop.f32.mrf.mxu0
    %v1907 = vpop.f32.mrf.mxu0
    %v1908 = vpop.f32.mrf.mxu0
    %1909 = vdwg.mxu0
    %v1910 = vadd.f32 %v740, %v1905
    %v1911 = vld [vmem:[%s0 + $0xa] sm:$0xff]
    %v1912 = vpack.c.bf16 %v1911, %v1911
    %v1914 = vsel %vm144, %v1912, 0
    %1916 = vmatprep.subr.bf16.mxu0 0
    %1917 = vmatpush1.bf16.msra.mxu0 0
    %1918 = vmatprep.subr.bf16.mxu0 0
    %1919 = vmatpush1.bf16.msra.mxu0 0
    %1920 = vmatprep.subr.bf16.mxu0 0
    %1921 = vmatpush1.bf16.msra.mxu0 %v1622
    %1922 = vmatprep.subr.bf16.mxu0 0
    %1923 = vmatpush1.bf16.msra.mxu0 %v1621
    %1924 = vmatprep.subr.bf16.mxu0 0
    %1925 = vmatpush1.bf16.msra.mxu0 %v1620
    %1926 = vmatprep.subr.bf16.mxu0 0
    %1927 = vmatpush1.bf16.msra.mxu0 %v1619
    %1928 = vmatprep.subr.bf16.mxu0 0
    %1929 = vmatpush1.bf16.msra.mxu0 %v1618
    %1930 = vmatprep.subr.bf16.mxu0 0
    %1931 = vmatpush1.bf16.msra.mxu0 %v1617
    %1932 = vmatprep.subr.bf16.mxu0 0
    %1933 = vmatpush2.bf16.msra.mxu0 0
    %1934 = vmatprep.subr.bf16.mxu0 0
    %1935 = vmatpush2.bf16.msra.mxu0 0
    %1936 = vmatprep.subr.bf16.mxu0 0
    %1937 = vmatpush2.bf16.msra.mxu0 0
    %1938 = vmatprep.subr.bf16.mxu0 0
    %1939 = vmatpush2.bf16.msra.mxu0 0
    %1940 = vmatprep.subr.bf16.mxu0 0
    %1941 = vmatpush2.bf16.msra.mxu0 0
    %1942 = vmatprep.subr.bf16.mxu0 0
    %1943 = vmatpush2.bf16.msra.mxu0 0
    %1944 = vmatprep.subr.bf16.mxu0 0
    %1945 = vmatpush2.bf16.msra.mxu0 0
    %1946 = vmatprep.subr.bf16.mxu0 0
    %1947 = vmatpush2.bf16.msra.mxu0 0
    %1948 = vmatprep.mubr.bf16.mxu0 0
    %1949 = vmatmul.mubr.bf16.gmra.mxu0 %v1914
    %v1950 = vpop.f32.mrf.mxu0
    %v1951 = vadd.f32 0.0, %v1950
    %v1952 = vpop.f32.mrf.mxu0
    %v1953 = vpop.f32.mrf.mxu0
    %v1954 = vpop.f32.mrf.mxu0
    %1955 = vdwg.mxu0
    %v1956 = vadd.f32 %v825, %v1951
    %1957 = vmatprep.subr.bf16.mxu0 0
    %1958 = vmatpush1.bf16.msra.mxu0 0
    %1959 = vmatprep.subr.bf16.mxu0 0
    %1960 = vmatpush1.bf16.msra.mxu0 0
    %1961 = vmatprep.subr.bf16.mxu0 0
    %1962 = vmatpush1.bf16.msra.mxu0 %v1699
    %1963 = vmatprep.subr.bf16.mxu0 0
    %1964 = vmatpush1.bf16.msra.mxu0 %v1698
    %1965 = vmatprep.subr.bf16.mxu0 0
    %1966 = vmatpush1.bf16.msra.mxu0 %v1697
    %1967 = vmatprep.subr.bf16.mxu0 0
    %1968 = vmatpush1.bf16.msra.mxu0 %v1696
    %1969 = vmatprep.subr.bf16.mxu0 0
    %1970 = vmatpush1.bf16.msra.mxu0 %v1695
    %1971 = vmatprep.subr.bf16.mxu0 0
    %1972 = vmatpush1.bf16.msra.mxu0 %v1694
    %1973 = vmatprep.subr.bf16.mxu0 0
    %1974 = vmatpush2.bf16.msra.mxu0 0
    %1975 = vmatprep.subr.bf16.mxu0 0
    %1976 = vmatpush2.bf16.msra.mxu0 0
    %1977 = vmatprep.subr.bf16.mxu0 0
    %1978 = vmatpush2.bf16.msra.mxu0 0
    %1979 = vmatprep.subr.bf16.mxu0 0
    %1980 = vmatpush2.bf16.msra.mxu0 0
    %1981 = vmatprep.subr.bf16.mxu0 0
    %1982 = vmatpush2.bf16.msra.mxu0 0
    %1983 = vmatprep.subr.bf16.mxu0 0
    %1984 = vmatpush2.bf16.msra.mxu0 0
    %1985 = vmatprep.subr.bf16.mxu0 0
    %1986 = vmatpush2.bf16.msra.mxu0 0
    %1987 = vmatprep.subr.bf16.mxu0 0
    %1988 = vmatpush2.bf16.msra.mxu0 0
    %1989 = vmatprep.mubr.bf16.mxu0 0
    %1990 = vmatmul.mubr.bf16.gmra.mxu0 %v1914
    %v1991 = vpop.f32.mrf.mxu0
    %v1992 = vadd.f32 0.0, %v1991
    %v1993 = vpop.f32.mrf.mxu0
    %v1994 = vpop.f32.mrf.mxu0
    %v1995 = vpop.f32.mrf.mxu0
    %1996 = vdwg.mxu0
    %v1997 = vadd.f32 %v905, %v1992
    %1998 = vmatprep.subr.bf16.mxu0 0
    %1999 = vmatpush1.bf16.msra.mxu0 0
    %2000 = vmatprep.subr.bf16.mxu0 0
    %2001 = vmatpush1.bf16.msra.mxu0 0
    %2002 = vmatprep.subr.bf16.mxu0 0
    %2003 = vmatpush1.bf16.msra.mxu0 %v1622
    %2004 = vmatprep.subr.bf16.mxu0 0
    %2005 = vmatpush1.bf16.msra.mxu0 %v1621
    %2006 = vmatprep.subr.bf16.mxu0 0
    %2007 = vmatpush1.bf16.msra.mxu0 %v1620
    %2008 = vmatprep.subr.bf16.mxu0 0
    %2009 = vmatpush1.bf16.msra.mxu0 %v1619
    %2010 = vmatprep.subr.bf16.mxu0 0
    %2011 = vmatpush1.bf16.msra.mxu0 %v1618
    %2012 = vmatprep.subr.bf16.mxu0 0
    %2013 = vmatpush1.bf16.msra.mxu0 %v1617
    %2014 = vmatprep.subr.bf16.mxu0 0
    %2015 = vmatpush2.bf16.msra.mxu0 0
    %2016 = vmatprep.subr.bf16.mxu0 0
    %2017 = vmatpush2.bf16.msra.mxu0 0
    %2018 = vmatprep.subr.bf16.mxu0 0
    %2019 = vmatpush2.bf16.msra.mxu0 0
    %2020 = vmatprep.subr.bf16.mxu0 0
    %2021 = vmatpush2.bf16.msra.mxu0 0
    %2022 = vmatprep.subr.bf16.mxu0 0
    %2023 = vmatpush2.bf16.msra.mxu0 0
    %2024 = vmatprep.subr.bf16.mxu0 0
    %2025 = vmatpush2.bf16.msra.mxu0 0
    %2026 = vmatprep.subr.bf16.mxu0 0
    %2027 = vmatpush2.bf16.msra.mxu0 0
    %2028 = vmatprep.subr.bf16.mxu0 0
    %2029 = vmatpush2.bf16.msra.mxu0 0
    %2030 = vmatprep.mubr.bf16.mxu0 0
    %2031 = vmatmul.mubr.bf16.gmra.mxu0 %v1077
    %v2032 = vpop.f32.mrf.mxu0
    %v2033 = vadd.f32 0.0, %v2032
    %v2034 = vpop.f32.mrf.mxu0
    %v2035 = vpop.f32.mrf.mxu0
    %v2036 = vpop.f32.mrf.mxu0
    %2037 = vdwg.mxu0
    %v2038 = vadd.f32 %v991, %v2033
    %2039 = vmatprep.subr.bf16.mxu0 0
    %2040 = vmatpush1.bf16.msra.mxu0 0
    %2041 = vmatprep.subr.bf16.mxu0 0
    %2042 = vmatpush1.bf16.msra.mxu0 0
    %2043 = vmatprep.subr.bf16.mxu0 0
    %2044 = vmatpush1.bf16.msra.mxu0 %v1699
    %2045 = vmatprep.subr.bf16.mxu0 0
    %2046 = vmatpush1.bf16.msra.mxu0 %v1698
    %2047 = vmatprep.subr.bf16.mxu0 0
    %2048 = vmatpush1.bf16.msra.mxu0 %v1697
    %2049 = vmatprep.subr.bf16.mxu0 0
    %2050 = vmatpush1.bf16.msra.mxu0 %v1696
    %2051 = vmatprep.subr.bf16.mxu0 0
    %2052 = vmatpush1.bf16.msra.mxu0 %v1695
    %2053 = vmatprep.subr.bf16.mxu0 0
    %2054 = vmatpush1.bf16.msra.mxu0 %v1694
    %2055 = vmatprep.subr.bf16.mxu0 0
    %2056 = vmatpush2.bf16.msra.mxu0 0
    %2057 = vmatprep.subr.bf16.mxu0 0
    %2058 = vmatpush2.bf16.msra.mxu0 0
    %2059 = vmatprep.subr.bf16.mxu0 0
    %2060 = vmatpush2.bf16.msra.mxu0 0
    %2061 = vmatprep.subr.bf16.mxu0 0
    %2062 = vmatpush2.bf16.msra.mxu0 0
    %2063 = vmatprep.subr.bf16.mxu0 0
    %2064 = vmatpush2.bf16.msra.mxu0 0
    %2065 = vmatprep.subr.bf16.mxu0 0
    %2066 = vmatpush2.bf16.msra.mxu0 0
    %2067 = vmatprep.subr.bf16.mxu0 0
    %2068 = vmatpush2.bf16.msra.mxu0 0
    %2069 = vmatprep.subr.bf16.mxu0 0
    %2070 = vmatpush2.bf16.msra.mxu0 0
    %2071 = vmatprep.mubr.bf16.mxu0 0
    %2072 = vmatmul.mubr.bf16.gmra.mxu0 %v1077
    %v2073 = vpop.f32.mrf.mxu0
    %v2074 = vadd.f32 0.0, %v2073
    %v2075 = vpop.f32.mrf.mxu0
    %v2076 = vpop.f32.mrf.mxu0
    %v2077 = vpop.f32.mrf.mxu0
    %2078 = vdwg.mxu0
    %v2079 = vadd.f32 %v1071, %v2074
    %2080 = vmatprep.subr.bf16.mxu0 0
    %2081 = vmatpush1.bf16.msra.mxu0 0
    %2082 = vmatprep.subr.bf16.mxu0 0
    %2083 = vmatpush1.bf16.msra.mxu0 0
    %2084 = vmatprep.subr.bf16.mxu0 0
    %2085 = vmatpush1.bf16.msra.mxu0 %v1622
    %2086 = vmatprep.subr.bf16.mxu0 0
    %2087 = vmatpush1.bf16.msra.mxu0 %v1621
    %2088 = vmatprep.subr.bf16.mxu0 0
    %2089 = vmatpush1.bf16.msra.mxu0 %v1620
    %2090 = vmatprep.subr.bf16.mxu0 0
    %2091 = vmatpush1.bf16.msra.mxu0 %v1619
    %2092 = vmatprep.subr.bf16.mxu0 0
    %2093 = vmatpush1.bf16.msra.mxu0 %v1618
    %2094 = vmatprep.subr.bf16.mxu0 0
    %2095 = vmatpush1.bf16.msra.mxu0 %v1617
    %2096 = vmatprep.subr.bf16.mxu0 0
    %2097 = vmatpush2.bf16.msra.mxu0 0
    %2098 = vmatprep.subr.bf16.mxu0 0
    %2099 = vmatpush2.bf16.msra.mxu0 0
    %2100 = vmatprep.subr.bf16.mxu0 0
    %2101 = vmatpush2.bf16.msra.mxu0 0
    %2102 = vmatprep.subr.bf16.mxu0 0
    %2103 = vmatpush2.bf16.msra.mxu0 0
    %2104 = vmatprep.subr.bf16.mxu0 0
    %2105 = vmatpush2.bf16.msra.mxu0 0
    %2106 = vmatprep.subr.bf16.mxu0 0
    %2107 = vmatpush2.bf16.msra.mxu0 0
    %2108 = vmatprep.subr.bf16.mxu0 0
    %2109 = vmatpush2.bf16.msra.mxu0 0
    %2110 = vmatprep.subr.bf16.mxu0 0
    %2111 = vmatpush2.bf16.msra.mxu0 0
    %2112 = vmatprep.mubr.bf16.mxu0 0
    %2113 = vmatmul.mubr.bf16.gmra.mxu0 %v1240
    %v2114 = vpop.f32.mrf.mxu0
    %v2115 = vadd.f32 0.0, %v2114
    %v2116 = vpop.f32.mrf.mxu0
    %v2117 = vpop.f32.mrf.mxu0
    %v2118 = vpop.f32.mrf.mxu0
    %2119 = vdwg.mxu0
    %v2120 = vadd.f32 %v1154, %v2115
    %2121 = vmatprep.subr.bf16.mxu0 0
    %2122 = vmatpush1.bf16.msra.mxu0 0
    %2123 = vmatprep.subr.bf16.mxu0 0
    %2124 = vmatpush1.bf16.msra.mxu0 0
    %2125 = vmatprep.subr.bf16.mxu0 0
    %2126 = vmatpush1.bf16.msra.mxu0 %v1699
    %2127 = vmatprep.subr.bf16.mxu0 0
    %2128 = vmatpush1.bf16.msra.mxu0 %v1698
    %2129 = vmatprep.subr.bf16.mxu0 0
    %2130 = vmatpush1.bf16.msra.mxu0 %v1697
    %2131 = vmatprep.subr.bf16.mxu0 0
    %2132 = vmatpush1.bf16.msra.mxu0 %v1696
    %2133 = vmatprep.subr.bf16.mxu0 0
    %2134 = vmatpush1.bf16.msra.mxu0 %v1695
    %2135 = vmatprep.subr.bf16.mxu0 0
    %2136 = vmatpush1.bf16.msra.mxu0 %v1694
    %2137 = vmatprep.subr.bf16.mxu0 0
    %2138 = vmatpush2.bf16.msra.mxu0 0
    %2139 = vmatprep.subr.bf16.mxu0 0
    %2140 = vmatpush2.bf16.msra.mxu0 0
    %2141 = vmatprep.subr.bf16.mxu0 0
    %2142 = vmatpush2.bf16.msra.mxu0 0
    %2143 = vmatprep.subr.bf16.mxu0 0
    %2144 = vmatpush2.bf16.msra.mxu0 0
    %2145 = vmatprep.subr.bf16.mxu0 0
    %2146 = vmatpush2.bf16.msra.mxu0 0
    %2147 = vmatprep.subr.bf16.mxu0 0
    %2148 = vmatpush2.bf16.msra.mxu0 0
    %2149 = vmatprep.subr.bf16.mxu0 0
    %2150 = vmatpush2.bf16.msra.mxu0 0
    %2151 = vmatprep.subr.bf16.mxu0 0
    %2152 = vmatpush2.bf16.msra.mxu0 0
    %2153 = vmatprep.mubr.bf16.mxu0 0
    %2154 = vmatmul.mubr.bf16.gmra.mxu0 %v1240
    %v2155 = vpop.f32.mrf.mxu0
    %v2156 = vadd.f32 0.0, %v2155
    %v2157 = vpop.f32.mrf.mxu0
    %v2158 = vpop.f32.mrf.mxu0
    %v2159 = vpop.f32.mrf.mxu0
    %2160 = vdwg.mxu0
    %v2161 = vadd.f32 %v1234, %v2156
    %2162 = vmatprep.subr.bf16.mxu0 0
    %2163 = vmatpush1.bf16.msra.mxu0 0
    %2164 = vmatprep.subr.bf16.mxu0 0
    %2165 = vmatpush1.bf16.msra.mxu0 0
    %2166 = vmatprep.subr.bf16.mxu0 0
    %2167 = vmatpush1.bf16.msra.mxu0 %v1622
    %2168 = vmatprep.subr.bf16.mxu0 0
    %2169 = vmatpush1.bf16.msra.mxu0 %v1621
    %2170 = vmatprep.subr.bf16.mxu0 0
    %2171 = vmatpush1.bf16.msra.mxu0 %v1620
    %2172 = vmatprep.subr.bf16.mxu0 0
    %2173 = vmatpush1.bf16.msra.mxu0 %v1619
    %2174 = vmatprep.subr.bf16.mxu0 0
    %2175 = vmatpush1.bf16.msra.mxu0 %v1618
    %2176 = vmatprep.subr.bf16.mxu0 0
    %2177 = vmatpush1.bf16.msra.mxu0 %v1617
    %2178 = vmatprep.subr.bf16.mxu0 0
    %2179 = vmatpush2.bf16.msra.mxu0 0
    %2180 = vmatprep.subr.bf16.mxu0 0
    %2181 = vmatpush2.bf16.msra.mxu0 0
    %2182 = vmatprep.subr.bf16.mxu0 0
    %2183 = vmatpush2.bf16.msra.mxu0 0
    %2184 = vmatprep.subr.bf16.mxu0 0
    %2185 = vmatpush2.bf16.msra.mxu0 0
    %2186 = vmatprep.subr.bf16.mxu0 0
    %2187 = vmatpush2.bf16.msra.mxu0 0
    %2188 = vmatprep.subr.bf16.mxu0 0
    %2189 = vmatpush2.bf16.msra.mxu0 0
    %2190 = vmatprep.subr.bf16.mxu0 0
    %2191 = vmatpush2.bf16.msra.mxu0 0
    %2192 = vmatprep.subr.bf16.mxu0 0
    %2193 = vmatpush2.bf16.msra.mxu0 0
    %2194 = vmatprep.mubr.bf16.mxu0 0
    %2195 = vmatmul.mubr.bf16.gmra.mxu0 %v1405
    %v2196 = vpop.f32.mrf.mxu0
    %v2197 = vadd.f32 0.0, %v2196
    %v2198 = vpop.f32.mrf.mxu0
    %v2199 = vpop.f32.mrf.mxu0
    %v2200 = vpop.f32.mrf.mxu0
    %2201 = vdwg.mxu0
    %v2202 = vadd.f32 %v1317, %v2197
    %2203 = vmatprep.subr.bf16.mxu0 0
    %2204 = vmatpush1.bf16.msra.mxu0 0
    %2205 = vmatprep.subr.bf16.mxu0 0
    %2206 = vmatpush1.bf16.msra.mxu0 0
    %2207 = vmatprep.subr.bf16.mxu0 0
    %2208 = vmatpush1.bf16.msra.mxu0 %v1699
    %2209 = vmatprep.subr.bf16.mxu0 0
    %2210 = vmatpush1.bf16.msra.mxu0 %v1698
    %2211 = vmatprep.subr.bf16.mxu0 0
    %2212 = vmatpush1.bf16.msra.mxu0 %v1697
    %2213 = vmatprep.subr.bf16.mxu0 0
    %2214 = vmatpush1.bf16.msra.mxu0 %v1696
    %2215 = vmatprep.subr.bf16.mxu0 0
    %2216 = vmatpush1.bf16.msra.mxu0 %v1695
    %2217 = vmatprep.subr.bf16.mxu0 0
    %2218 = vmatpush1.bf16.msra.mxu0 %v1694
    %2219 = vmatprep.subr.bf16.mxu0 0
    %2220 = vmatpush2.bf16.msra.mxu0 0
    %2221 = vmatprep.subr.bf16.mxu0 0
    %2222 = vmatpush2.bf16.msra.mxu0 0
    %2223 = vmatprep.subr.bf16.mxu0 0
    %2224 = vmatpush2.bf16.msra.mxu0 0
    %2225 = vmatprep.subr.bf16.mxu0 0
    %2226 = vmatpush2.bf16.msra.mxu0 0
    %2227 = vmatprep.subr.bf16.mxu0 0
    %2228 = vmatpush2.bf16.msra.mxu0 0
    %2229 = vmatprep.subr.bf16.mxu0 0
    %2230 = vmatpush2.bf16.msra.mxu0 0
    %2231 = vmatprep.subr.bf16.mxu0 0
    %2232 = vmatpush2.bf16.msra.mxu0 0
    %2233 = vmatprep.subr.bf16.mxu0 0
    %2234 = vmatpush2.bf16.msra.mxu0 0
    %2235 = vmatprep.mubr.bf16.mxu0 0
    %2236 = vmatmul.mubr.bf16.gmra.mxu0 %v1405
    %v2237 = vpop.f32.mrf.mxu0
    %v2238 = vadd.f32 0.0, %v2237
    %v2239 = vpop.f32.mrf.mxu0
    %v2240 = vpop.f32.mrf.mxu0
    %v2241 = vpop.f32.mrf.mxu0
    %2242 = vdwg.mxu0
    %v2243 = vadd.f32 %v1397, %v2238
    %v2244 = vld [vmem:[%s73 + $0xa] sm:$0xff]
    %v2245 = vpack.c.bf16 %v2244, %v2244
    %v2247 = vsel %vm144, %v2245, 0
    %2249 = vmatprep.subr.bf16.mxu0 0
    %2250 = vmatpush1.bf16.msra.mxu0 0
    %2251 = vmatprep.subr.bf16.mxu0 0
    %2252 = vmatpush1.bf16.msra.mxu0 0
    %2253 = vmatprep.subr.bf16.mxu0 0
    %2254 = vmatpush1.bf16.msra.mxu0 %v1622
    %2255 = vmatprep.subr.bf16.mxu0 0
    %2256 = vmatpush1.bf16.msra.mxu0 %v1621
    %2257 = vmatprep.subr.bf16.mxu0 0
    %2258 = vmatpush1.bf16.msra.mxu0 %v1620
    %2259 = vmatprep.subr.bf16.mxu0 0
    %2260 = vmatpush1.bf16.msra.mxu0 %v1619
    %2261 = vmatprep.subr.bf16.mxu0 0
    %2262 = vmatpush1.bf16.msra.mxu0 %v1618
    %2263 = vmatprep.subr.bf16.mxu0 0
    %2264 = vmatpush1.bf16.msra.mxu0 %v1617
    %2265 = vmatprep.subr.bf16.mxu0 0
    %2266 = vmatpush2.bf16.msra.mxu0 0
    %2267 = vmatprep.subr.bf16.mxu0 0
    %2268 = vmatpush2.bf16.msra.mxu0 0
    %2269 = vmatprep.subr.bf16.mxu0 0
    %2270 = vmatpush2.bf16.msra.mxu0 0
    %2271 = vmatprep.subr.bf16.mxu0 0
    %2272 = vmatpush2.bf16.msra.mxu0 0
    %2273 = vmatprep.subr.bf16.mxu0 0
    %2274 = vmatpush2.bf16.msra.mxu0 0
    %2275 = vmatprep.subr.bf16.mxu0 0
    %2276 = vmatpush2.bf16.msra.mxu0 0
    %2277 = vmatprep.subr.bf16.mxu0 0
    %2278 = vmatpush2.bf16.msra.mxu0 0
    %2279 = vmatprep.subr.bf16.mxu0 0
    %2280 = vmatpush2.bf16.msra.mxu0 0
    %2281 = vmatprep.mubr.bf16.mxu0 0
    %2282 = vmatmul.mubr.bf16.gmra.mxu0 %v2247
    %v2283 = vpop.f32.mrf.mxu0
    %v2284 = vadd.f32 0.0, %v2283
    %v2285 = vpop.f32.mrf.mxu0
    %v2286 = vpop.f32.mrf.mxu0
    %v2287 = vpop.f32.mrf.mxu0
    %2288 = vdwg.mxu0
    %v2289 = vadd.f32 %v1482, %v2284
    %2290 = vmatprep.subr.bf16.mxu0 0
    %2291 = vmatpush1.bf16.msra.mxu0 0
    %2292 = vmatprep.subr.bf16.mxu0 0
    %2293 = vmatpush1.bf16.msra.mxu0 0
    %2294 = vmatprep.subr.bf16.mxu0 0
    %2295 = vmatpush1.bf16.msra.mxu0 %v1699
    %2296 = vmatprep.subr.bf16.mxu0 0
    %2297 = vmatpush1.bf16.msra.mxu0 %v1698
    %2298 = vmatprep.subr.bf16.mxu0 0
    %2299 = vmatpush1.bf16.msra.mxu0 %v1697
    %2300 = vmatprep.subr.bf16.mxu0 0
    %2301 = vmatpush1.bf16.msra.mxu0 %v1696
    %2302 = vmatprep.subr.bf16.mxu0 0
    %2303 = vmatpush1.bf16.msra.mxu0 %v1695
    %2304 = vmatprep.subr.bf16.mxu0 0
    %2305 = vmatpush1.bf16.msra.mxu0 %v1694
    %2306 = vmatprep.subr.bf16.mxu0 0
    %2307 = vmatpush2.bf16.msra.mxu0 0
    %2308 = vmatprep.subr.bf16.mxu0 0
    %2309 = vmatpush2.bf16.msra.mxu0 0
    %2310 = vmatprep.subr.bf16.mxu0 0
    %2311 = vmatpush2.bf16.msra.mxu0 0
    %2312 = vmatprep.subr.bf16.mxu0 0
    %2313 = vmatpush2.bf16.msra.mxu0 0
    %2314 = vmatprep.subr.bf16.mxu0 0
    %2315 = vmatpush2.bf16.msra.mxu0 0
    %2316 = vmatprep.subr.bf16.mxu0 0
    %2317 = vmatpush2.bf16.msra.mxu0 0
    %2318 = vmatprep.subr.bf16.mxu0 0
    %2319 = vmatpush2.bf16.msra.mxu0 0
    %2320 = vmatprep.subr.bf16.mxu0 0
    %2321 = vmatpush2.bf16.msra.mxu0 0
    %2322 = vmatprep.mubr.bf16.mxu0 0
    %2323 = vmatmul.mubr.bf16.gmra.mxu0 %v2247
    %v2324 = vpop.f32.mrf.mxu0
    %v2325 = vadd.f32 0.0, %v2324
    %v2326 = vpop.f32.mrf.mxu0
    %v2327 = vpop.f32.mrf.mxu0
    %v2328 = vpop.f32.mrf.mxu0
    %2329 = vdwg.mxu0
    %v2330 = vadd.f32 %v1562, %v2325
    %s2331 = scalar_lea.vmem %s1, 288
    %v2332 = vld [vmem:[%s2331] sm:$0xf]
    %v2333 = vld [vmem:[%s2331 + $0x4] sm:$0xf]
    %v2334 = vld [vmem:[%s2331 + $0x8] sm:$0xf]
    %v2335 = vld [vmem:[%s2331 + $0xc] sm:$0xf]
    %v2336 = vld [vmem:[%s2331 + $0x10] sm:$0xf]
    %v2337 = vld [vmem:[%s2331 + $0x14] sm:$0xf]
    %v2338 = vld [vmem:[%s2331 + $0x18] sm:$0xf]
    %v2339 = vld [vmem:[%s2331 + $0x1c] sm:$0xf]
    %v2340 = vld [vmem:[%s2331 + $0x20] sm:$0xf]
    %v2341 = vld [vmem:[%s2331 + $0x24] sm:$0xf]
    %v2342 = vld [vmem:[%s2331 + $0x28] sm:$0xf]
    %v2343 = vld [vmem:[%s2331 + $0x2c] sm:$0xf]
    %s2344 = scalar_lea.vmem %s1, 336
    %v2345 = vld [vmem:[%s2344] sm:$0xf]
    %v2346 = vld [vmem:[%s2344 + $0x4] sm:$0xf]
    %v2347 = vld [vmem:[%s2344 + $0x8] sm:$0xf]
    %v2348 = vld [vmem:[%s2344 + $0xc] sm:$0xf]
    %v2349 = vld [vmem:[%s2344 + $0x10] sm:$0xf]
    %v2350 = vld [vmem:[%s2344 + $0x14] sm:$0xf]
    %v2351 = vld [vmem:[%s2344 + $0x18] sm:$0xf]
    %v2352 = vld [vmem:[%s2344 + $0x1c] sm:$0xf]
    %v2353 = vld [vmem:[%s2344 + $0x20] sm:$0xf]
    %v2354 = vld [vmem:[%s2344 + $0x24] sm:$0xf]
    %v2355 = vld [vmem:[%s2344 + $0x28] sm:$0xf]
    %v2356 = vld [vmem:[%s2344 + $0x2c] sm:$0xf]
    %v2369 = vunpack.c.l.b16 %v2332
    %v2370 = vunpack.c.l.b16 %v2333
    %v2371 = vunpack.c.l.b16 %v2334
    %v2372 = vunpack.c.l.b16 %v2335
    %v2373 = vunpack.c.l.b16 %v2336
    %v2374 = vunpack.c.l.b16 %v2337
    %v2375 = vunpack.c.l.b16 %v2338
    %v2376 = vunpack.c.l.b16 %v2339
    %v2377 = vunpack.c.l.b16 %v2340
    %v2378 = vunpack.c.l.b16 %v2341
    %v2379 = vunpack.c.l.b16 %v2342
    %v2380 = vunpack.c.l.b16 %v2343
    %v2381 = vpack.c.b16 %v2370, %v2369
    %v2382 = vpack.c.b16 %v2372, %v2371
    %v2383 = vpack.c.b16 %v2374, %v2373
    %v2384 = vpack.c.b16 %v2376, %v2375
    %v2385 = vpack.c.b16 %v2378, %v2377
    %v2386 = vpack.c.b16 %v2380, %v2379
    %2393 = vmatprep.subr.bf16.mxu0 0
    %2394 = vmatpush1.bf16.msra.mxu0 0
    %2395 = vmatprep.subr.bf16.mxu0 0
    %2396 = vmatpush1.bf16.msra.mxu0 0
    %2397 = vmatprep.subr.bf16.mxu0 0
    %2398 = vmatpush1.bf16.msra.mxu0 %v2386
    %2399 = vmatprep.subr.bf16.mxu0 0
    %2400 = vmatpush1.bf16.msra.mxu0 %v2385
    %2401 = vmatprep.subr.bf16.mxu0 0
    %2402 = vmatpush1.bf16.msra.mxu0 %v2384
    %2403 = vmatprep.subr.bf16.mxu0 0
    %2404 = vmatpush1.bf16.msra.mxu0 %v2383
    %2405 = vmatprep.subr.bf16.mxu0 0
    %2406 = vmatpush1.bf16.msra.mxu0 %v2382
    %2407 = vmatprep.subr.bf16.mxu0 0
    %2408 = vmatpush1.bf16.msra.mxu0 %v2381
    %2409 = vmatprep.subr.bf16.mxu0 0
    %2410 = vmatpush2.bf16.msra.mxu0 0
    %2411 = vmatprep.subr.bf16.mxu0 0
    %2412 = vmatpush2.bf16.msra.mxu0 0
    %2413 = vmatprep.subr.bf16.mxu0 0
    %2414 = vmatpush2.bf16.msra.mxu0 0
    %2415 = vmatprep.subr.bf16.mxu0 0
    %2416 = vmatpush2.bf16.msra.mxu0 0
    %2417 = vmatprep.subr.bf16.mxu0 0
    %2418 = vmatpush2.bf16.msra.mxu0 0
    %2419 = vmatprep.subr.bf16.mxu0 0
    %2420 = vmatpush2.bf16.msra.mxu0 0
    %2421 = vmatprep.subr.bf16.mxu0 0
    %2422 = vmatpush2.bf16.msra.mxu0 0
    %2423 = vmatprep.subr.bf16.mxu0 0
    %2424 = vmatpush2.bf16.msra.mxu0 0
    %2425 = vmatprep.mubr.bf16.mxu0 0
    %2426 = vmatmul.mubr.bf16.gmra.mxu0 %v583
    %v2427 = vpop.f32.mrf.mxu0
    %v2428 = vadd.f32 0.0, %v2427
    %v2429 = vpop.f32.mrf.mxu0
    %v2430 = vpop.f32.mrf.mxu0
    %v2431 = vpop.f32.mrf.mxu0
    %2432 = vdwg.mxu0
    %v2433 = vadd.f32 %v1669, %v2428
    %v2446 = vunpack.c.l.b16 %v2345
    %v2447 = vunpack.c.l.b16 %v2346
    %v2448 = vunpack.c.l.b16 %v2347
    %v2449 = vunpack.c.l.b16 %v2348
    %v2450 = vunpack.c.l.b16 %v2349
    %v2451 = vunpack.c.l.b16 %v2350
    %v2452 = vunpack.c.l.b16 %v2351
    %v2453 = vunpack.c.l.b16 %v2352
    %v2454 = vunpack.c.l.b16 %v2353
    %v2455 = vunpack.c.l.b16 %v2354
    %v2456 = vunpack.c.l.b16 %v2355
    %v2457 = vunpack.c.l.b16 %v2356
    %v2458 = vpack.c.b16 %v2447, %v2446
    %v2459 = vpack.c.b16 %v2449, %v2448
    %v2460 = vpack.c.b16 %v2451, %v2450
    %v2461 = vpack.c.b16 %v2453, %v2452
    %v2462 = vpack.c.b16 %v2455, %v2454
    %v2463 = vpack.c.b16 %v2457, %v2456
    %2470 = vmatprep.subr.bf16.mxu0 0
    %2471 = vmatpush1.bf16.msra.mxu0 0
    %2472 = vmatprep.subr.bf16.mxu0 0
    %2473 = vmatpush1.bf16.msra.mxu0 0
    %2474 = vmatprep.subr.bf16.mxu0 0
    %2475 = vmatpush1.bf16.msra.mxu0 %v2463
    %2476 = vmatprep.subr.bf16.mxu0 0
    %2477 = vmatpush1.bf16.msra.mxu0 %v2462
    %2478 = vmatprep.subr.bf16.mxu0 0
    %2479 = vmatpush1.bf16.msra.mxu0 %v2461
    %2480 = vmatprep.subr.bf16.mxu0 0
    %2481 = vmatpush1.bf16.msra.mxu0 %v2460
    %2482 = vmatprep.subr.bf16.mxu0 0
    %2483 = vmatpush1.bf16.msra.mxu0 %v2459
    %2484 = vmatprep.subr.bf16.mxu0 0
    %2485 = vmatpush1.bf16.msra.mxu0 %v2458
    %2486 = vmatprep.subr.bf16.mxu0 0
    %2487 = vmatpush2.bf16.msra.mxu0 0
    %2488 = vmatprep.subr.bf16.mxu0 0
    %2489 = vmatpush2.bf16.msra.mxu0 0
    %2490 = vmatprep.subr.bf16.mxu0 0
    %2491 = vmatpush2.bf16.msra.mxu0 0
    %2492 = vmatprep.subr.bf16.mxu0 0
    %2493 = vmatpush2.bf16.msra.mxu0 0
    %2494 = vmatprep.subr.bf16.mxu0 0
    %2495 = vmatpush2.bf16.msra.mxu0 0
    %2496 = vmatprep.subr.bf16.mxu0 0
    %2497 = vmatpush2.bf16.msra.mxu0 0
    %2498 = vmatprep.subr.bf16.mxu0 0
    %2499 = vmatpush2.bf16.msra.mxu0 0
    %2500 = vmatprep.subr.bf16.mxu0 0
    %2501 = vmatpush2.bf16.msra.mxu0 0
    %2502 = vmatprep.mubr.bf16.mxu0 0
    %2503 = vmatmul.mubr.bf16.gmra.mxu0 %v583
    %v2504 = vpop.f32.mrf.mxu0
    %v2505 = vadd.f32 0.0, %v2504
    %v2506 = vpop.f32.mrf.mxu0
    %v2507 = vpop.f32.mrf.mxu0
    %v2508 = vpop.f32.mrf.mxu0
    %2509 = vdwg.mxu0
    %v2510 = vadd.f32 %v1746, %v2505
    %2511 = vmatprep.subr.bf16.mxu0 0
    %2512 = vmatpush1.bf16.msra.mxu0 0
    %2513 = vmatprep.subr.bf16.mxu0 0
    %2514 = vmatpush1.bf16.msra.mxu0 0
    %2515 = vmatprep.subr.bf16.mxu0 0
    %2516 = vmatpush1.bf16.msra.mxu0 %v2386
    %2517 = vmatprep.subr.bf16.mxu0 0
    %2518 = vmatpush1.bf16.msra.mxu0 %v2385
    %2519 = vmatprep.subr.bf16.mxu0 0
    %2520 = vmatpush1.bf16.msra.mxu0 %v2384
    %2521 = vmatprep.subr.bf16.mxu0 0
    %2522 = vmatpush1.bf16.msra.mxu0 %v2383
    %2523 = vmatprep.subr.bf16.mxu0 0
    %2524 = vmatpush1.bf16.msra.mxu0 %v2382
    %2525 = vmatprep.subr.bf16.mxu0 0
    %2526 = vmatpush1.bf16.msra.mxu0 %v2381
    %2527 = vmatprep.subr.bf16.mxu0 0
    %2528 = vmatpush2.bf16.msra.mxu0 0
    %2529 = vmatprep.subr.bf16.mxu0 0
    %2530 = vmatpush2.bf16.msra.mxu0 0
    %2531 = vmatprep.subr.bf16.mxu0 0
    %2532 = vmatpush2.bf16.msra.mxu0 0
    %2533 = vmatprep.subr.bf16.mxu0 0
    %2534 = vmatpush2.bf16.msra.mxu0 0
    %2535 = vmatprep.subr.bf16.mxu0 0
    %2536 = vmatpush2.bf16.msra.mxu0 0
    %2537 = vmatprep.subr.bf16.mxu0 0
    %2538 = vmatpush2.bf16.msra.mxu0 0
    %2539 = vmatprep.subr.bf16.mxu0 0
    %2540 = vmatpush2.bf16.msra.mxu0 0
    %2541 = vmatprep.subr.bf16.mxu0 0
    %2542 = vmatpush2.bf16.msra.mxu0 0
    %2543 = vmatprep.mubr.bf16.mxu0 0
    %2544 = vmatmul.mubr.bf16.gmra.mxu0 %v748
    %v2545 = vpop.f32.mrf.mxu0
    %v2546 = vadd.f32 0.0, %v2545
    %v2547 = vpop.f32.mrf.mxu0
    %v2548 = vpop.f32.mrf.mxu0
    %v2549 = vpop.f32.mrf.mxu0
    %2550 = vdwg.mxu0
    %v2551 = vadd.f32 %v1787, %v2546
    %2552 = vmatprep.subr.bf16.mxu0 0
    %2553 = vmatpush1.bf16.msra.mxu0 0
    %2554 = vmatprep.subr.bf16.mxu0 0
    %2555 = vmatpush1.bf16.msra.mxu0 0
    %2556 = vmatprep.subr.bf16.mxu0 0
    %2557 = vmatpush1.bf16.msra.mxu0 %v2463
    %2558 = vmatprep.subr.bf16.mxu0 0
    %2559 = vmatpush1.bf16.msra.mxu0 %v2462
    %2560 = vmatprep.subr.bf16.mxu0 0
    %2561 = vmatpush1.bf16.msra.mxu0 %v2461
    %2562 = vmatprep.subr.bf16.mxu0 0
    %2563 = vmatpush1.bf16.msra.mxu0 %v2460
    %2564 = vmatprep.subr.bf16.mxu0 0
    %2565 = vmatpush1.bf16.msra.mxu0 %v2459
    %2566 = vmatprep.subr.bf16.mxu0 0
    %2567 = vmatpush1.bf16.msra.mxu0 %v2458
    %2568 = vmatprep.subr.bf16.mxu0 0
    %2569 = vmatpush2.bf16.msra.mxu0 0
    %2570 = vmatprep.subr.bf16.mxu0 0
    %2571 = vmatpush2.bf16.msra.mxu0 0
    %2572 = vmatprep.subr.bf16.mxu0 0
    %2573 = vmatpush2.bf16.msra.mxu0 0
    %2574 = vmatprep.subr.bf16.mxu0 0
    %2575 = vmatpush2.bf16.msra.mxu0 0
    %2576 = vmatprep.subr.bf16.mxu0 0
    %2577 = vmatpush2.bf16.msra.mxu0 0
    %2578 = vmatprep.subr.bf16.mxu0 0
    %2579 = vmatpush2.bf16.msra.mxu0 0
    %2580 = vmatprep.subr.bf16.mxu0 0
    %2581 = vmatpush2.bf16.msra.mxu0 0
    %2582 = vmatprep.subr.bf16.mxu0 0
    %2583 = vmatpush2.bf16.msra.mxu0 0
    %2584 = vmatprep.mubr.bf16.mxu0 0
    %2585 = vmatmul.mubr.bf16.gmra.mxu0 %v748
    %v2586 = vpop.f32.mrf.mxu0
    %v2587 = vadd.f32 0.0, %v2586
    %v2588 = vpop.f32.mrf.mxu0
    %v2589 = vpop.f32.mrf.mxu0
    %v2590 = vpop.f32.mrf.mxu0
    %2591 = vdwg.mxu0
    %v2592 = vadd.f32 %v1828, %v2587
    %2593 = vmatprep.subr.bf16.mxu0 0
    %2594 = vmatpush1.bf16.msra.mxu0 0
    %2595 = vmatprep.subr.bf16.mxu0 0
    %2596 = vmatpush1.bf16.msra.mxu0 0
    %2597 = vmatprep.subr.bf16.mxu0 0
    %2598 = vmatpush1.bf16.msra.mxu0 %v2386
    %2599 = vmatprep.subr.bf16.mxu0 0
    %2600 = vmatpush1.bf16.msra.mxu0 %v2385
    %2601 = vmatprep.subr.bf16.mxu0 0
    %2602 = vmatpush1.bf16.msra.mxu0 %v2384
    %2603 = vmatprep.subr.bf16.mxu0 0
    %2604 = vmatpush1.bf16.msra.mxu0 %v2383
    %2605 = vmatprep.subr.bf16.mxu0 0
    %2606 = vmatpush1.bf16.msra.mxu0 %v2382
    %2607 = vmatprep.subr.bf16.mxu0 0
    %2608 = vmatpush1.bf16.msra.mxu0 %v2381
    %2609 = vmatprep.subr.bf16.mxu0 0
    %2610 = vmatpush2.bf16.msra.mxu0 0
    %2611 = vmatprep.subr.bf16.mxu0 0
    %2612 = vmatpush2.bf16.msra.mxu0 0
    %2613 = vmatprep.subr.bf16.mxu0 0
    %2614 = vmatpush2.bf16.msra.mxu0 0
    %2615 = vmatprep.subr.bf16.mxu0 0
    %2616 = vmatpush2.bf16.msra.mxu0 0
    %2617 = vmatprep.subr.bf16.mxu0 0
    %2618 = vmatpush2.bf16.msra.mxu0 0
    %2619 = vmatprep.subr.bf16.mxu0 0
    %2620 = vmatpush2.bf16.msra.mxu0 0
    %2621 = vmatprep.subr.bf16.mxu0 0
    %2622 = vmatpush2.bf16.msra.mxu0 0
    %2623 = vmatprep.subr.bf16.mxu0 0
    %2624 = vmatpush2.bf16.msra.mxu0 0
    %2625 = vmatprep.mubr.bf16.mxu0 0
    %2626 = vmatmul.mubr.bf16.gmra.mxu0 %v1914
    %v2627 = vpop.f32.mrf.mxu0
    %v2628 = vadd.f32 0.0, %v2627
    %v2629 = vpop.f32.mrf.mxu0
    %v2630 = vpop.f32.mrf.mxu0
    %v2631 = vpop.f32.mrf.mxu0
    %2632 = vdwg.mxu0
    %v2633 = vadd.f32 %v1869, %v2628
    %2634 = vmatprep.subr.bf16.mxu0 0
    %2635 = vmatpush1.bf16.msra.mxu0 0
    %2636 = vmatprep.subr.bf16.mxu0 0
    %2637 = vmatpush1.bf16.msra.mxu0 0
    %2638 = vmatprep.subr.bf16.mxu0 0
    %2639 = vmatpush1.bf16.msra.mxu0 %v2463
    %2640 = vmatprep.subr.bf16.mxu0 0
    %2641 = vmatpush1.bf16.msra.mxu0 %v2462
    %2642 = vmatprep.subr.bf16.mxu0 0
    %2643 = vmatpush1.bf16.msra.mxu0 %v2461
    %2644 = vmatprep.subr.bf16.mxu0 0
    %2645 = vmatpush1.bf16.msra.mxu0 %v2460
    %2646 = vmatprep.subr.bf16.mxu0 0
    %2647 = vmatpush1.bf16.msra.mxu0 %v2459
    %2648 = vmatprep.subr.bf16.mxu0 0
    %2649 = vmatpush1.bf16.msra.mxu0 %v2458
    %2650 = vmatprep.subr.bf16.mxu0 0
    %2651 = vmatpush2.bf16.msra.mxu0 0
    %2652 = vmatprep.subr.bf16.mxu0 0
    %2653 = vmatpush2.bf16.msra.mxu0 0
    %2654 = vmatprep.subr.bf16.mxu0 0
    %2655 = vmatpush2.bf16.msra.mxu0 0
    %2656 = vmatprep.subr.bf16.mxu0 0
    %2657 = vmatpush2.bf16.msra.mxu0 0
    %2658 = vmatprep.subr.bf16.mxu0 0
    %2659 = vmatpush2.bf16.msra.mxu0 0
    %2660 = vmatprep.subr.bf16.mxu0 0
    %2661 = vmatpush2.bf16.msra.mxu0 0
    %2662 = vmatprep.subr.bf16.mxu0 0
    %2663 = vmatpush2.bf16.msra.mxu0 0
    %2664 = vmatprep.subr.bf16.mxu0 0
    %2665 = vmatpush2.bf16.msra.mxu0 0
    %2666 = vmatprep.mubr.bf16.mxu0 0
    %2667 = vmatmul.mubr.bf16.gmra.mxu0 %v1914
    %v2668 = vpop.f32.mrf.mxu0
    %v2669 = vadd.f32 0.0, %v2668
    %v2670 = vpop.f32.mrf.mxu0
    %v2671 = vpop.f32.mrf.mxu0
    %v2672 = vpop.f32.mrf.mxu0
    %2673 = vdwg.mxu0
    %v2674 = vadd.f32 %v1910, %v2669
    %v2675 = vld [vmem:[%s0 + $0x13] sm:$0xff]
    %v2676 = vpack.c.bf16 %v2675, %v2675
    %v2678 = vsel %vm144, %v2676, 0
    %2680 = vmatprep.subr.bf16.mxu0 0
    %2681 = vmatpush1.bf16.msra.mxu0 0
    %2682 = vmatprep.subr.bf16.mxu0 0
    %2683 = vmatpush1.bf16.msra.mxu0 0
    %2684 = vmatprep.subr.bf16.mxu0 0
    %2685 = vmatpush1.bf16.msra.mxu0 %v2386
    %2686 = vmatprep.subr.bf16.mxu0 0
    %2687 = vmatpush1.bf16.msra.mxu0 %v2385
    %2688 = vmatprep.subr.bf16.mxu0 0
    %2689 = vmatpush1.bf16.msra.mxu0 %v2384
    %2690 = vmatprep.subr.bf16.mxu0 0
    %2691 = vmatpush1.bf16.msra.mxu0 %v2383
    %2692 = vmatprep.subr.bf16.mxu0 0
    %2693 = vmatpush1.bf16.msra.mxu0 %v2382
    %2694 = vmatprep.subr.bf16.mxu0 0
    %2695 = vmatpush1.bf16.msra.mxu0 %v2381
    %2696 = vmatprep.subr.bf16.mxu0 0
    %2697 = vmatpush2.bf16.msra.mxu0 0
    %2698 = vmatprep.subr.bf16.mxu0 0
    %2699 = vmatpush2.bf16.msra.mxu0 0
    %2700 = vmatprep.subr.bf16.mxu0 0
    %2701 = vmatpush2.bf16.msra.mxu0 0
    %2702 = vmatprep.subr.bf16.mxu0 0
    %2703 = vmatpush2.bf16.msra.mxu0 0
    %2704 = vmatprep.subr.bf16.mxu0 0
    %2705 = vmatpush2.bf16.msra.mxu0 0
    %2706 = vmatprep.subr.bf16.mxu0 0
    %2707 = vmatpush2.bf16.msra.mxu0 0
    %2708 = vmatprep.subr.bf16.mxu0 0
    %2709 = vmatpush2.bf16.msra.mxu0 0
    %2710 = vmatprep.subr.bf16.mxu0 0
    %2711 = vmatpush2.bf16.msra.mxu0 0
    %2712 = vmatprep.mubr.bf16.mxu0 0
    %2713 = vmatmul.mubr.bf16.gmra.mxu0 %v2678
    %v2714 = vpop.f32.mrf.mxu0
    %v2715 = vadd.f32 0.0, %v2714
    %v2716 = vpop.f32.mrf.mxu0
    %v2717 = vpop.f32.mrf.mxu0
    %v2718 = vpop.f32.mrf.mxu0
    %2719 = vdwg.mxu0
    %v2720 = vadd.f32 %v1956, %v2715
    %2721 = vmatprep.subr.bf16.mxu0 0
    %2722 = vmatpush1.bf16.msra.mxu0 0
    %2723 = vmatprep.subr.bf16.mxu0 0
    %2724 = vmatpush1.bf16.msra.mxu0 0
    %2725 = vmatprep.subr.bf16.mxu0 0
    %2726 = vmatpush1.bf16.msra.mxu0 %v2463
    %2727 = vmatprep.subr.bf16.mxu0 0
    %2728 = vmatpush1.bf16.msra.mxu0 %v2462
    %2729 = vmatprep.subr.bf16.mxu0 0
    %2730 = vmatpush1.bf16.msra.mxu0 %v2461
    %2731 = vmatprep.subr.bf16.mxu0 0
    %2732 = vmatpush1.bf16.msra.mxu0 %v2460
    %2733 = vmatprep.subr.bf16.mxu0 0
    %2734 = vmatpush1.bf16.msra.mxu0 %v2459
    %2735 = vmatprep.subr.bf16.mxu0 0
    %2736 = vmatpush1.bf16.msra.mxu0 %v2458
    %2737 = vmatprep.subr.bf16.mxu0 0
    %2738 = vmatpush2.bf16.msra.mxu0 0
    %2739 = vmatprep.subr.bf16.mxu0 0
    %2740 = vmatpush2.bf16.msra.mxu0 0
    %2741 = vmatprep.subr.bf16.mxu0 0
    %2742 = vmatpush2.bf16.msra.mxu0 0
    %2743 = vmatprep.subr.bf16.mxu0 0
    %2744 = vmatpush2.bf16.msra.mxu0 0
    %2745 = vmatprep.subr.bf16.mxu0 0
    %2746 = vmatpush2.bf16.msra.mxu0 0
    %2747 = vmatprep.subr.bf16.mxu0 0
    %2748 = vmatpush2.bf16.msra.mxu0 0
    %2749 = vmatprep.subr.bf16.mxu0 0
    %2750 = vmatpush2.bf16.msra.mxu0 0
    %2751 = vmatprep.subr.bf16.mxu0 0
    %2752 = vmatpush2.bf16.msra.mxu0 0
    %2753 = vmatprep.mubr.bf16.mxu0 0
    %2754 = vmatmul.mubr.bf16.gmra.mxu0 %v2678
    %v2755 = vpop.f32.mrf.mxu0
    %v2756 = vadd.f32 0.0, %v2755
    %v2757 = vpop.f32.mrf.mxu0
    %v2758 = vpop.f32.mrf.mxu0
    %v2759 = vpop.f32.mrf.mxu0
    %2760 = vdwg.mxu0
    %v2761 = vadd.f32 %v1997, %v2756
    %2762 = vmatprep.subr.bf16.mxu0 0
    %2763 = vmatpush1.bf16.msra.mxu0 0
    %2764 = vmatprep.subr.bf16.mxu0 0
    %2765 = vmatpush1.bf16.msra.mxu0 0
    %2766 = vmatprep.subr.bf16.mxu0 0
    %2767 = vmatpush1.bf16.msra.mxu0 %v2386
    %2768 = vmatprep.subr.bf16.mxu0 0
    %2769 = vmatpush1.bf16.msra.mxu0 %v2385
    %2770 = vmatprep.subr.bf16.mxu0 0
    %2771 = vmatpush1.bf16.msra.mxu0 %v2384
    %2772 = vmatprep.subr.bf16.mxu0 0
    %2773 = vmatpush1.bf16.msra.mxu0 %v2383
    %2774 = vmatprep.subr.bf16.mxu0 0
    %2775 = vmatpush1.bf16.msra.mxu0 %v2382
    %2776 = vmatprep.subr.bf16.mxu0 0
    %2777 = vmatpush1.bf16.msra.mxu0 %v2381
    %2778 = vmatprep.subr.bf16.mxu0 0
    %2779 = vmatpush2.bf16.msra.mxu0 0
    %2780 = vmatprep.subr.bf16.mxu0 0
    %2781 = vmatpush2.bf16.msra.mxu0 0
    %2782 = vmatprep.subr.bf16.mxu0 0
    %2783 = vmatpush2.bf16.msra.mxu0 0
    %2784 = vmatprep.subr.bf16.mxu0 0
    %2785 = vmatpush2.bf16.msra.mxu0 0
    %2786 = vmatprep.subr.bf16.mxu0 0
    %2787 = vmatpush2.bf16.msra.mxu0 0
    %2788 = vmatprep.subr.bf16.mxu0 0
    %2789 = vmatpush2.bf16.msra.mxu0 0
    %2790 = vmatprep.subr.bf16.mxu0 0
    %2791 = vmatpush2.bf16.msra.mxu0 0
    %2792 = vmatprep.subr.bf16.mxu0 0
    %2793 = vmatpush2.bf16.msra.mxu0 0
    %2794 = vmatprep.mubr.bf16.mxu0 0
    %2795 = vmatmul.mubr.bf16.gmra.mxu0 %v1240
    %v2796 = vpop.f32.mrf.mxu0
    %v2797 = vadd.f32 0.0, %v2796
    %v2798 = vpop.f32.mrf.mxu0
    %v2799 = vpop.f32.mrf.mxu0
    %v2800 = vpop.f32.mrf.mxu0
    %2801 = vdwg.mxu0
    %v2802 = vadd.f32 %v2038, %v2797
    %2803 = vmatprep.subr.bf16.mxu0 0
    %2804 = vmatpush1.bf16.msra.mxu0 0
    %2805 = vmatprep.subr.bf16.mxu0 0
    %2806 = vmatpush1.bf16.msra.mxu0 0
    %2807 = vmatprep.subr.bf16.mxu0 0
    %2808 = vmatpush1.bf16.msra.mxu0 %v2463
    %2809 = vmatprep.subr.bf16.mxu0 0
    %2810 = vmatpush1.bf16.msra.mxu0 %v2462
    %2811 = vmatprep.subr.bf16.mxu0 0
    %2812 = vmatpush1.bf16.msra.mxu0 %v2461
    %2813 = vmatprep.subr.bf16.mxu0 0
    %2814 = vmatpush1.bf16.msra.mxu0 %v2460
    %2815 = vmatprep.subr.bf16.mxu0 0
    %2816 = vmatpush1.bf16.msra.mxu0 %v2459
    %2817 = vmatprep.subr.bf16.mxu0 0
    %2818 = vmatpush1.bf16.msra.mxu0 %v2458
    %2819 = vmatprep.subr.bf16.mxu0 0
    %2820 = vmatpush2.bf16.msra.mxu0 0
    %2821 = vmatprep.subr.bf16.mxu0 0
    %2822 = vmatpush2.bf16.msra.mxu0 0
    %2823 = vmatprep.subr.bf16.mxu0 0
    %2824 = vmatpush2.bf16.msra.mxu0 0
    %2825 = vmatprep.subr.bf16.mxu0 0
    %2826 = vmatpush2.bf16.msra.mxu0 0
    %2827 = vmatprep.subr.bf16.mxu0 0
    %2828 = vmatpush2.bf16.msra.mxu0 0
    %2829 = vmatprep.subr.bf16.mxu0 0
    %2830 = vmatpush2.bf16.msra.mxu0 0
    %2831 = vmatprep.subr.bf16.mxu0 0
    %2832 = vmatpush2.bf16.msra.mxu0 0
    %2833 = vmatprep.subr.bf16.mxu0 0
    %2834 = vmatpush2.bf16.msra.mxu0 0
    %2835 = vmatprep.mubr.bf16.mxu0 0
    %2836 = vmatmul.mubr.bf16.gmra.mxu0 %v1240
    %v2837 = vpop.f32.mrf.mxu0
    %v2838 = vadd.f32 0.0, %v2837
    %v2839 = vpop.f32.mrf.mxu0
    %v2840 = vpop.f32.mrf.mxu0
    %v2841 = vpop.f32.mrf.mxu0
    %2842 = vdwg.mxu0
    %v2843 = vadd.f32 %v2079, %v2838
    %2844 = vmatprep.subr.bf16.mxu0 0
    %2845 = vmatpush1.bf16.msra.mxu0 0
    %2846 = vmatprep.subr.bf16.mxu0 0
    %2847 = vmatpush1.bf16.msra.mxu0 0
    %2848 = vmatprep.subr.bf16.mxu0 0
    %2849 = vmatpush1.bf16.msra.mxu0 %v2386
    %2850 = vmatprep.subr.bf16.mxu0 0
    %2851 = vmatpush1.bf16.msra.mxu0 %v2385
    %2852 = vmatprep.subr.bf16.mxu0 0
    %2853 = vmatpush1.bf16.msra.mxu0 %v2384
    %2854 = vmatprep.subr.bf16.mxu0 0
    %2855 = vmatpush1.bf16.msra.mxu0 %v2383
    %2856 = vmatprep.subr.bf16.mxu0 0
    %2857 = vmatpush1.bf16.msra.mxu0 %v2382
    %2858 = vmatprep.subr.bf16.mxu0 0
    %2859 = vmatpush1.bf16.msra.mxu0 %v2381
    %2860 = vmatprep.subr.bf16.mxu0 0
    %2861 = vmatpush2.bf16.msra.mxu0 0
    %2862 = vmatprep.subr.bf16.mxu0 0
    %2863 = vmatpush2.bf16.msra.mxu0 0
    %2864 = vmatprep.subr.bf16.mxu0 0
    %2865 = vmatpush2.bf16.msra.mxu0 0
    %2866 = vmatprep.subr.bf16.mxu0 0
    %2867 = vmatpush2.bf16.msra.mxu0 0
    %2868 = vmatprep.subr.bf16.mxu0 0
    %2869 = vmatpush2.bf16.msra.mxu0 0
    %2870 = vmatprep.subr.bf16.mxu0 0
    %2871 = vmatpush2.bf16.msra.mxu0 0
    %2872 = vmatprep.subr.bf16.mxu0 0
    %2873 = vmatpush2.bf16.msra.mxu0 0
    %2874 = vmatprep.subr.bf16.mxu0 0
    %2875 = vmatpush2.bf16.msra.mxu0 0
    %2876 = vmatprep.mubr.bf16.mxu0 0
    %2877 = vmatmul.mubr.bf16.gmra.mxu0 %v1405
    %v2878 = vpop.f32.mrf.mxu0
    %v2879 = vadd.f32 0.0, %v2878
    %v2880 = vpop.f32.mrf.mxu0
    %v2881 = vpop.f32.mrf.mxu0
    %v2882 = vpop.f32.mrf.mxu0
    %2883 = vdwg.mxu0
    %v2884 = vadd.f32 %v2120, %v2879
    %2885 = vmatprep.subr.bf16.mxu0 0
    %2886 = vmatpush1.bf16.msra.mxu0 0
    %2887 = vmatprep.subr.bf16.mxu0 0
    %2888 = vmatpush1.bf16.msra.mxu0 0
    %2889 = vmatprep.subr.bf16.mxu0 0
    %2890 = vmatpush1.bf16.msra.mxu0 %v2463
    %2891 = vmatprep.subr.bf16.mxu0 0
    %2892 = vmatpush1.bf16.msra.mxu0 %v2462
    %2893 = vmatprep.subr.bf16.mxu0 0
    %2894 = vmatpush1.bf16.msra.mxu0 %v2461
    %2895 = vmatprep.subr.bf16.mxu0 0
    %2896 = vmatpush1.bf16.msra.mxu0 %v2460
    %2897 = vmatprep.subr.bf16.mxu0 0
    %2898 = vmatpush1.bf16.msra.mxu0 %v2459
    %2899 = vmatprep.subr.bf16.mxu0 0
    %2900 = vmatpush1.bf16.msra.mxu0 %v2458
    %2901 = vmatprep.subr.bf16.mxu0 0
    %2902 = vmatpush2.bf16.msra.mxu0 0
    %2903 = vmatprep.subr.bf16.mxu0 0
    %2904 = vmatpush2.bf16.msra.mxu0 0
    %2905 = vmatprep.subr.bf16.mxu0 0
    %2906 = vmatpush2.bf16.msra.mxu0 0
    %2907 = vmatprep.subr.bf16.mxu0 0
    %2908 = vmatpush2.bf16.msra.mxu0 0
    %2909 = vmatprep.subr.bf16.mxu0 0
    %2910 = vmatpush2.bf16.msra.mxu0 0
    %2911 = vmatprep.subr.bf16.mxu0 0
    %2912 = vmatpush2.bf16.msra.mxu0 0
    %2913 = vmatprep.subr.bf16.mxu0 0
    %2914 = vmatpush2.bf16.msra.mxu0 0
    %2915 = vmatprep.subr.bf16.mxu0 0
    %2916 = vmatpush2.bf16.msra.mxu0 0
    %2917 = vmatprep.mubr.bf16.mxu0 0
    %2918 = vmatmul.mubr.bf16.gmra.mxu0 %v1405
    %v2919 = vpop.f32.mrf.mxu0
    %v2920 = vadd.f32 0.0, %v2919
    %v2921 = vpop.f32.mrf.mxu0
    %v2922 = vpop.f32.mrf.mxu0
    %v2923 = vpop.f32.mrf.mxu0
    %2924 = vdwg.mxu0
    %v2925 = vadd.f32 %v2161, %v2920
    %2926 = vmatprep.subr.bf16.mxu0 0
    %2927 = vmatpush1.bf16.msra.mxu0 0
    %2928 = vmatprep.subr.bf16.mxu0 0
    %2929 = vmatpush1.bf16.msra.mxu0 0
    %2930 = vmatprep.subr.bf16.mxu0 0
    %2931 = vmatpush1.bf16.msra.mxu0 %v2386
    %2932 = vmatprep.subr.bf16.mxu0 0
    %2933 = vmatpush1.bf16.msra.mxu0 %v2385
    %2934 = vmatprep.subr.bf16.mxu0 0
    %2935 = vmatpush1.bf16.msra.mxu0 %v2384
    %2936 = vmatprep.subr.bf16.mxu0 0
    %2937 = vmatpush1.bf16.msra.mxu0 %v2383
    %2938 = vmatprep.subr.bf16.mxu0 0
    %2939 = vmatpush1.bf16.msra.mxu0 %v2382
    %2940 = vmatprep.subr.bf16.mxu0 0
    %2941 = vmatpush1.bf16.msra.mxu0 %v2381
    %2942 = vmatprep.subr.bf16.mxu0 0
    %2943 = vmatpush2.bf16.msra.mxu0 0
    %2944 = vmatprep.subr.bf16.mxu0 0
    %2945 = vmatpush2.bf16.msra.mxu0 0
    %2946 = vmatprep.subr.bf16.mxu0 0
    %2947 = vmatpush2.bf16.msra.mxu0 0
    %2948 = vmatprep.subr.bf16.mxu0 0
    %2949 = vmatpush2.bf16.msra.mxu0 0
    %2950 = vmatprep.subr.bf16.mxu0 0
    %2951 = vmatpush2.bf16.msra.mxu0 0
    %2952 = vmatprep.subr.bf16.mxu0 0
    %2953 = vmatpush2.bf16.msra.mxu0 0
    %2954 = vmatprep.subr.bf16.mxu0 0
    %2955 = vmatpush2.bf16.msra.mxu0 0
    %2956 = vmatprep.subr.bf16.mxu0 0
    %2957 = vmatpush2.bf16.msra.mxu0 0
    %2958 = vmatprep.mubr.bf16.mxu0 0
    %2959 = vmatmul.mubr.bf16.gmra.mxu0 %v2247
    %v2960 = vpop.f32.mrf.mxu0
    %v2961 = vadd.f32 0.0, %v2960
    %v2962 = vpop.f32.mrf.mxu0
    %v2963 = vpop.f32.mrf.mxu0
    %v2964 = vpop.f32.mrf.mxu0
    %2965 = vdwg.mxu0
    %v2966 = vadd.f32 %v2202, %v2961
    %2967 = vmatprep.subr.bf16.mxu0 0
    %2968 = vmatpush1.bf16.msra.mxu0 0
    %2969 = vmatprep.subr.bf16.mxu0 0
    %2970 = vmatpush1.bf16.msra.mxu0 0
    %2971 = vmatprep.subr.bf16.mxu0 0
    %2972 = vmatpush1.bf16.msra.mxu0 %v2463
    %2973 = vmatprep.subr.bf16.mxu0 0
    %2974 = vmatpush1.bf16.msra.mxu0 %v2462
    %2975 = vmatprep.subr.bf16.mxu0 0
    %2976 = vmatpush1.bf16.msra.mxu0 %v2461
    %2977 = vmatprep.subr.bf16.mxu0 0
    %2978 = vmatpush1.bf16.msra.mxu0 %v2460
    %2979 = vmatprep.subr.bf16.mxu0 0
    %2980 = vmatpush1.bf16.msra.mxu0 %v2459
    %2981 = vmatprep.subr.bf16.mxu0 0
    %2982 = vmatpush1.bf16.msra.mxu0 %v2458
    %2983 = vmatprep.subr.bf16.mxu0 0
    %2984 = vmatpush2.bf16.msra.mxu0 0
    %2985 = vmatprep.subr.bf16.mxu0 0
    %2986 = vmatpush2.bf16.msra.mxu0 0
    %2987 = vmatprep.subr.bf16.mxu0 0
    %2988 = vmatpush2.bf16.msra.mxu0 0
    %2989 = vmatprep.subr.bf16.mxu0 0
    %2990 = vmatpush2.bf16.msra.mxu0 0
    %2991 = vmatprep.subr.bf16.mxu0 0
    %2992 = vmatpush2.bf16.msra.mxu0 0
    %2993 = vmatprep.subr.bf16.mxu0 0
    %2994 = vmatpush2.bf16.msra.mxu0 0
    %2995 = vmatprep.subr.bf16.mxu0 0
    %2996 = vmatpush2.bf16.msra.mxu0 0
    %2997 = vmatprep.subr.bf16.mxu0 0
    %2998 = vmatpush2.bf16.msra.mxu0 0
    %2999 = vmatprep.mubr.bf16.mxu0 0
    %3000 = vmatmul.mubr.bf16.gmra.mxu0 %v2247
    %v3001 = vpop.f32.mrf.mxu0
    %v3002 = vadd.f32 0.0, %v3001
    %v3003 = vpop.f32.mrf.mxu0
    %v3004 = vpop.f32.mrf.mxu0
    %v3005 = vpop.f32.mrf.mxu0
    %3006 = vdwg.mxu0
    %v3007 = vadd.f32 %v2243, %v3002
    %v3008 = vld [vmem:[%s73 + $0x13] sm:$0xff]
    %v3009 = vpack.c.bf16 %v3008, %v3008
    %v3011 = vsel %vm144, %v3009, 0
    %3013 = vmatprep.subr.bf16.mxu0 0
    %3014 = vmatpush1.bf16.msra.mxu0 0
    %3015 = vmatprep.subr.bf16.mxu0 0
    %3016 = vmatpush1.bf16.msra.mxu0 0
    %3017 = vmatprep.subr.bf16.mxu0 0
    %3018 = vmatpush1.bf16.msra.mxu0 %v2386
    %3019 = vmatprep.subr.bf16.mxu0 0
    %3020 = vmatpush1.bf16.msra.mxu0 %v2385
    %3021 = vmatprep.subr.bf16.mxu0 0
    %3022 = vmatpush1.bf16.msra.mxu0 %v2384
    %3023 = vmatprep.subr.bf16.mxu0 0
    %3024 = vmatpush1.bf16.msra.mxu0 %v2383
    %3025 = vmatprep.subr.bf16.mxu0 0
    %3026 = vmatpush1.bf16.msra.mxu0 %v2382
    %3027 = vmatprep.subr.bf16.mxu0 0
    %3028 = vmatpush1.bf16.msra.mxu0 %v2381
    %3029 = vmatprep.subr.bf16.mxu0 0
    %3030 = vmatpush2.bf16.msra.mxu0 0
    %3031 = vmatprep.subr.bf16.mxu0 0
    %3032 = vmatpush2.bf16.msra.mxu0 0
    %3033 = vmatprep.subr.bf16.mxu0 0
    %3034 = vmatpush2.bf16.msra.mxu0 0
    %3035 = vmatprep.subr.bf16.mxu0 0
    %3036 = vmatpush2.bf16.msra.mxu0 0
    %3037 = vmatprep.subr.bf16.mxu0 0
    %3038 = vmatpush2.bf16.msra.mxu0 0
    %3039 = vmatprep.subr.bf16.mxu0 0
    %3040 = vmatpush2.bf16.msra.mxu0 0
    %3041 = vmatprep.subr.bf16.mxu0 0
    %3042 = vmatpush2.bf16.msra.mxu0 0
    %3043 = vmatprep.subr.bf16.mxu0 0
    %3044 = vmatpush2.bf16.msra.mxu0 0
    %3045 = vmatprep.mubr.bf16.mxu0 0
    %3046 = vmatmul.mubr.bf16.gmra.mxu0 %v3011
    %v3047 = vpop.f32.mrf.mxu0
    %v3048 = vadd.f32 0.0, %v3047
    %v3049 = vpop.f32.mrf.mxu0
    %v3050 = vpop.f32.mrf.mxu0
    %v3051 = vpop.f32.mrf.mxu0
    %3052 = vdwg.mxu0
    %v3053 = vadd.f32 %v2289, %v3048
    %3054 = vmatprep.subr.bf16.mxu0 0
    %3055 = vmatpush1.bf16.msra.mxu0 0
    %3056 = vmatprep.subr.bf16.mxu0 0
    %3057 = vmatpush1.bf16.msra.mxu0 0
    %3058 = vmatprep.subr.bf16.mxu0 0
    %3059 = vmatpush1.bf16.msra.mxu0 %v2463
    %3060 = vmatprep.subr.bf16.mxu0 0
    %3061 = vmatpush1.bf16.msra.mxu0 %v2462
    %3062 = vmatprep.subr.bf16.mxu0 0
    %3063 = vmatpush1.bf16.msra.mxu0 %v2461
    %3064 = vmatprep.subr.bf16.mxu0 0
    %3065 = vmatpush1.bf16.msra.mxu0 %v2460
    %3066 = vmatprep.subr.bf16.mxu0 0
    %3067 = vmatpush1.bf16.msra.mxu0 %v2459
    %3068 = vmatprep.subr.bf16.mxu0 0
    %3069 = vmatpush1.bf16.msra.mxu0 %v2458
    %3070 = vmatprep.subr.bf16.mxu0 0
    %3071 = vmatpush2.bf16.msra.mxu0 0
    %3072 = vmatprep.subr.bf16.mxu0 0
    %3073 = vmatpush2.bf16.msra.mxu0 0
    %3074 = vmatprep.subr.bf16.mxu0 0
    %3075 = vmatpush2.bf16.msra.mxu0 0
    %3076 = vmatprep.subr.bf16.mxu0 0
    %3077 = vmatpush2.bf16.msra.mxu0 0
    %3078 = vmatprep.subr.bf16.mxu0 0
    %3079 = vmatpush2.bf16.msra.mxu0 0
    %3080 = vmatprep.subr.bf16.mxu0 0
    %3081 = vmatpush2.bf16.msra.mxu0 0
    %3082 = vmatprep.subr.bf16.mxu0 0
    %3083 = vmatpush2.bf16.msra.mxu0 0
    %3084 = vmatprep.subr.bf16.mxu0 0
    %3085 = vmatpush2.bf16.msra.mxu0 0
    %3086 = vmatprep.mubr.bf16.mxu0 0
    %3087 = vmatmul.mubr.bf16.gmra.mxu0 %v3011
    %v3088 = vpop.f32.mrf.mxu0
    %v3089 = vadd.f32 0.0, %v3088
    %v3090 = vpop.f32.mrf.mxu0
    %v3091 = vpop.f32.mrf.mxu0
    %v3092 = vpop.f32.mrf.mxu0
    %3093 = vdwg.mxu0
    %v3094 = vadd.f32 %v2330, %v3089
    %s3095 = scalar_lea.vmem %s1, 384
    %v3096 = vld [vmem:[%s3095] sm:$0xf]
    %v3097 = vld [vmem:[%s3095 + $0x4] sm:$0xf]
    %v3098 = vld [vmem:[%s3095 + $0x8] sm:$0xf]
    %v3099 = vld [vmem:[%s3095 + $0xc] sm:$0xf]
    %v3100 = vld [vmem:[%s3095 + $0x10] sm:$0xf]
    %v3101 = vld [vmem:[%s3095 + $0x14] sm:$0xf]
    %v3102 = vld [vmem:[%s3095 + $0x18] sm:$0xf]
    %v3103 = vld [vmem:[%s3095 + $0x1c] sm:$0xf]
    %v3104 = vld [vmem:[%s3095 + $0x20] sm:$0xf]
    %v3105 = vld [vmem:[%s3095 + $0x24] sm:$0xf]
    %v3106 = vld [vmem:[%s3095 + $0x28] sm:$0xf]
    %v3107 = vld [vmem:[%s3095 + $0x2c] sm:$0xf]
    %s3108 = scalar_lea.vmem %s1, 432
    %v3109 = vld [vmem:[%s3108] sm:$0xf]
    %v3110 = vld [vmem:[%s3108 + $0x4] sm:$0xf]
    %v3111 = vld [vmem:[%s3108 + $0x8] sm:$0xf]
    %v3112 = vld [vmem:[%s3108 + $0xc] sm:$0xf]
    %v3113 = vld [vmem:[%s3108 + $0x10] sm:$0xf]
    %v3114 = vld [vmem:[%s3108 + $0x14] sm:$0xf]
    %v3115 = vld [vmem:[%s3108 + $0x18] sm:$0xf]
    %v3116 = vld [vmem:[%s3108 + $0x1c] sm:$0xf]
    %v3117 = vld [vmem:[%s3108 + $0x20] sm:$0xf]
    %v3118 = vld [vmem:[%s3108 + $0x24] sm:$0xf]
    %v3119 = vld [vmem:[%s3108 + $0x28] sm:$0xf]
    %v3120 = vld [vmem:[%s3108 + $0x2c] sm:$0xf]
    %v3133 = vunpack.c.l.b16 %v3096
    %v3134 = vunpack.c.l.b16 %v3097
    %v3135 = vunpack.c.l.b16 %v3098
    %v3136 = vunpack.c.l.b16 %v3099
    %v3137 = vunpack.c.l.b16 %v3100
    %v3138 = vunpack.c.l.b16 %v3101
    %v3139 = vunpack.c.l.b16 %v3102
    %v3140 = vunpack.c.l.b16 %v3103
    %v3141 = vunpack.c.l.b16 %v3104
    %v3142 = vunpack.c.l.b16 %v3105
    %v3143 = vunpack.c.l.b16 %v3106
    %v3144 = vunpack.c.l.b16 %v3107
    %v3145 = vpack.c.b16 %v3134, %v3133
    %v3146 = vpack.c.b16 %v3136, %v3135
    %v3147 = vpack.c.b16 %v3138, %v3137
    %v3148 = vpack.c.b16 %v3140, %v3139
    %v3149 = vpack.c.b16 %v3142, %v3141
    %v3150 = vpack.c.b16 %v3144, %v3143
    %3157 = vmatprep.subr.bf16.mxu0 0
    %3158 = vmatpush1.bf16.msra.mxu0 0
    %3159 = vmatprep.subr.bf16.mxu0 0
    %3160 = vmatpush1.bf16.msra.mxu0 0
    %3161 = vmatprep.subr.bf16.mxu0 0
    %3162 = vmatpush1.bf16.msra.mxu0 %v3150
    %3163 = vmatprep.subr.bf16.mxu0 0
    %3164 = vmatpush1.bf16.msra.mxu0 %v3149
    %3165 = vmatprep.subr.bf16.mxu0 0
    %3166 = vmatpush1.bf16.msra.mxu0 %v3148
    %3167 = vmatprep.subr.bf16.mxu0 0
    %3168 = vmatpush1.bf16.msra.mxu0 %v3147
    %3169 = vmatprep.subr.bf16.mxu0 0
    %3170 = vmatpush1.bf16.msra.mxu0 %v3146
    %3171 = vmatprep.subr.bf16.mxu0 0
    %3172 = vmatpush1.bf16.msra.mxu0 %v3145
    %3173 = vmatprep.subr.bf16.mxu0 0
    %3174 = vmatpush2.bf16.msra.mxu0 0
    %3175 = vmatprep.subr.bf16.mxu0 0
    %3176 = vmatpush2.bf16.msra.mxu0 0
    %3177 = vmatprep.subr.bf16.mxu0 0
    %3178 = vmatpush2.bf16.msra.mxu0 0
    %3179 = vmatprep.subr.bf16.mxu0 0
    %3180 = vmatpush2.bf16.msra.mxu0 0
    %3181 = vmatprep.subr.bf16.mxu0 0
    %3182 = vmatpush2.bf16.msra.mxu0 0
    %3183 = vmatprep.subr.bf16.mxu0 0
    %3184 = vmatpush2.bf16.msra.mxu0 0
    %3185 = vmatprep.subr.bf16.mxu0 0
    %3186 = vmatpush2.bf16.msra.mxu0 0
    %3187 = vmatprep.subr.bf16.mxu0 0
    %3188 = vmatpush2.bf16.msra.mxu0 0
    %3189 = vmatprep.mubr.bf16.mxu0 0
    %3190 = vmatmul.mubr.bf16.gmra.mxu0 %v748
    %v3191 = vpop.f32.mrf.mxu0
    %v3192 = vadd.f32 0.0, %v3191
    %v3193 = vpop.f32.mrf.mxu0
    %v3194 = vpop.f32.mrf.mxu0
    %v3195 = vpop.f32.mrf.mxu0
    %3196 = vdwg.mxu0
    %v3197 = vadd.f32 %v2433, %v3192
    %v3210 = vunpack.c.l.b16 %v3109
    %v3211 = vunpack.c.l.b16 %v3110
    %v3212 = vunpack.c.l.b16 %v3111
    %v3213 = vunpack.c.l.b16 %v3112
    %v3214 = vunpack.c.l.b16 %v3113
    %v3215 = vunpack.c.l.b16 %v3114
    %v3216 = vunpack.c.l.b16 %v3115
    %v3217 = vunpack.c.l.b16 %v3116
    %v3218 = vunpack.c.l.b16 %v3117
    %v3219 = vunpack.c.l.b16 %v3118
    %v3220 = vunpack.c.l.b16 %v3119
    %v3221 = vunpack.c.l.b16 %v3120
    %v3222 = vpack.c.b16 %v3211, %v3210
    %v3223 = vpack.c.b16 %v3213, %v3212
    %v3224 = vpack.c.b16 %v3215, %v3214
    %v3225 = vpack.c.b16 %v3217, %v3216
    %v3226 = vpack.c.b16 %v3219, %v3218
    %v3227 = vpack.c.b16 %v3221, %v3220
    %3234 = vmatprep.subr.bf16.mxu0 0
    %3235 = vmatpush1.bf16.msra.mxu0 0
    %3236 = vmatprep.subr.bf16.mxu0 0
    %3237 = vmatpush1.bf16.msra.mxu0 0
    %3238 = vmatprep.subr.bf16.mxu0 0
    %3239 = vmatpush1.bf16.msra.mxu0 %v3227
    %3240 = vmatprep.subr.bf16.mxu0 0
    %3241 = vmatpush1.bf16.msra.mxu0 %v3226
    %3242 = vmatprep.subr.bf16.mxu0 0
    %3243 = vmatpush1.bf16.msra.mxu0 %v3225
    %3244 = vmatprep.subr.bf16.mxu0 0
    %3245 = vmatpush1.bf16.msra.mxu0 %v3224
    %3246 = vmatprep.subr.bf16.mxu0 0
    %3247 = vmatpush1.bf16.msra.mxu0 %v3223
    %3248 = vmatprep.subr.bf16.mxu0 0
    %3249 = vmatpush1.bf16.msra.mxu0 %v3222
    %3250 = vmatprep.subr.bf16.mxu0 0
    %3251 = vmatpush2.bf16.msra.mxu0 0
    %3252 = vmatprep.subr.bf16.mxu0 0
    %3253 = vmatpush2.bf16.msra.mxu0 0
    %3254 = vmatprep.subr.bf16.mxu0 0
    %3255 = vmatpush2.bf16.msra.mxu0 0
    %3256 = vmatprep.subr.bf16.mxu0 0
    %3257 = vmatpush2.bf16.msra.mxu0 0
    %3258 = vmatprep.subr.bf16.mxu0 0
    %3259 = vmatpush2.bf16.msra.mxu0 0
    %3260 = vmatprep.subr.bf16.mxu0 0
    %3261 = vmatpush2.bf16.msra.mxu0 0
    %3262 = vmatprep.subr.bf16.mxu0 0
    %3263 = vmatpush2.bf16.msra.mxu0 0
    %3264 = vmatprep.subr.bf16.mxu0 0
    %3265 = vmatpush2.bf16.msra.mxu0 0
    %3266 = vmatprep.mubr.bf16.mxu0 0
    %3267 = vmatmul.mubr.bf16.gmra.mxu0 %v748
    %v3268 = vpop.f32.mrf.mxu0
    %v3269 = vadd.f32 0.0, %v3268
    %v3270 = vpop.f32.mrf.mxu0
    %v3271 = vpop.f32.mrf.mxu0
    %v3272 = vpop.f32.mrf.mxu0
    %3273 = vdwg.mxu0
    %v3274 = vadd.f32 %v2510, %v3269
    %3275 = vmatprep.subr.bf16.mxu0 0
    %3276 = vmatpush1.bf16.msra.mxu0 0
    %3277 = vmatprep.subr.bf16.mxu0 0
    %3278 = vmatpush1.bf16.msra.mxu0 0
    %3279 = vmatprep.subr.bf16.mxu0 0
    %3280 = vmatpush1.bf16.msra.mxu0 %v3150
    %3281 = vmatprep.subr.bf16.mxu0 0
    %3282 = vmatpush1.bf16.msra.mxu0 %v3149
    %3283 = vmatprep.subr.bf16.mxu0 0
    %3284 = vmatpush1.bf16.msra.mxu0 %v3148
    %3285 = vmatprep.subr.bf16.mxu0 0
    %3286 = vmatpush1.bf16.msra.mxu0 %v3147
    %3287 = vmatprep.subr.bf16.mxu0 0
    %3288 = vmatpush1.bf16.msra.mxu0 %v3146
    %3289 = vmatprep.subr.bf16.mxu0 0
    %3290 = vmatpush1.bf16.msra.mxu0 %v3145
    %3291 = vmatprep.subr.bf16.mxu0 0
    %3292 = vmatpush2.bf16.msra.mxu0 0
    %3293 = vmatprep.subr.bf16.mxu0 0
    %3294 = vmatpush2.bf16.msra.mxu0 0
    %3295 = vmatprep.subr.bf16.mxu0 0
    %3296 = vmatpush2.bf16.msra.mxu0 0
    %3297 = vmatprep.subr.bf16.mxu0 0
    %3298 = vmatpush2.bf16.msra.mxu0 0
    %3299 = vmatprep.subr.bf16.mxu0 0
    %3300 = vmatpush2.bf16.msra.mxu0 0
    %3301 = vmatprep.subr.bf16.mxu0 0
    %3302 = vmatpush2.bf16.msra.mxu0 0
    %3303 = vmatprep.subr.bf16.mxu0 0
    %3304 = vmatpush2.bf16.msra.mxu0 0
    %3305 = vmatprep.subr.bf16.mxu0 0
    %3306 = vmatpush2.bf16.msra.mxu0 0
    %3307 = vmatprep.mubr.bf16.mxu0 0
    %3308 = vmatmul.mubr.bf16.gmra.mxu0 %v1914
    %v3309 = vpop.f32.mrf.mxu0
    %v3310 = vadd.f32 0.0, %v3309
    %v3311 = vpop.f32.mrf.mxu0
    %v3312 = vpop.f32.mrf.mxu0
    %v3313 = vpop.f32.mrf.mxu0
    %3314 = vdwg.mxu0
    %v3315 = vadd.f32 %v2551, %v3310
    %3316 = vmatprep.subr.bf16.mxu0 0
    %3317 = vmatpush1.bf16.msra.mxu0 0
    %3318 = vmatprep.subr.bf16.mxu0 0
    %3319 = vmatpush1.bf16.msra.mxu0 0
    %3320 = vmatprep.subr.bf16.mxu0 0
    %3321 = vmatpush1.bf16.msra.mxu0 %v3227
    %3322 = vmatprep.subr.bf16.mxu0 0
    %3323 = vmatpush1.bf16.msra.mxu0 %v3226
    %3324 = vmatprep.subr.bf16.mxu0 0
    %3325 = vmatpush1.bf16.msra.mxu0 %v3225
    %3326 = vmatprep.subr.bf16.mxu0 0
    %3327 = vmatpush1.bf16.msra.mxu0 %v3224
    %3328 = vmatprep.subr.bf16.mxu0 0
    %3329 = vmatpush1.bf16.msra.mxu0 %v3223
    %3330 = vmatprep.subr.bf16.mxu0 0
    %3331 = vmatpush1.bf16.msra.mxu0 %v3222
    %3332 = vmatprep.subr.bf16.mxu0 0
    %3333 = vmatpush2.bf16.msra.mxu0 0
    %3334 = vmatprep.subr.bf16.mxu0 0
    %3335 = vmatpush2.bf16.msra.mxu0 0
    %3336 = vmatprep.subr.bf16.mxu0 0
    %3337 = vmatpush2.bf16.msra.mxu0 0
    %3338 = vmatprep.subr.bf16.mxu0 0
    %3339 = vmatpush2.bf16.msra.mxu0 0
    %3340 = vmatprep.subr.bf16.mxu0 0
    %3341 = vmatpush2.bf16.msra.mxu0 0
    %3342 = vmatprep.subr.bf16.mxu0 0
    %3343 = vmatpush2.bf16.msra.mxu0 0
    %3344 = vmatprep.subr.bf16.mxu0 0
    %3345 = vmatpush2.bf16.msra.mxu0 0
    %3346 = vmatprep.subr.bf16.mxu0 0
    %3347 = vmatpush2.bf16.msra.mxu0 0
    %3348 = vmatprep.mubr.bf16.mxu0 0
    %3349 = vmatmul.mubr.bf16.gmra.mxu0 %v1914
    %v3350 = vpop.f32.mrf.mxu0
    %v3351 = vadd.f32 0.0, %v3350
    %v3352 = vpop.f32.mrf.mxu0
    %v3353 = vpop.f32.mrf.mxu0
    %v3354 = vpop.f32.mrf.mxu0
    %3355 = vdwg.mxu0
    %v3356 = vadd.f32 %v2592, %v3351
    %3357 = vmatprep.subr.bf16.mxu0 0
    %3358 = vmatpush1.bf16.msra.mxu0 0
    %3359 = vmatprep.subr.bf16.mxu0 0
    %3360 = vmatpush1.bf16.msra.mxu0 0
    %3361 = vmatprep.subr.bf16.mxu0 0
    %3362 = vmatpush1.bf16.msra.mxu0 %v3150
    %3363 = vmatprep.subr.bf16.mxu0 0
    %3364 = vmatpush1.bf16.msra.mxu0 %v3149
    %3365 = vmatprep.subr.bf16.mxu0 0
    %3366 = vmatpush1.bf16.msra.mxu0 %v3148
    %3367 = vmatprep.subr.bf16.mxu0 0
    %3368 = vmatpush1.bf16.msra.mxu0 %v3147
    %3369 = vmatprep.subr.bf16.mxu0 0
    %3370 = vmatpush1.bf16.msra.mxu0 %v3146
    %3371 = vmatprep.subr.bf16.mxu0 0
    %3372 = vmatpush1.bf16.msra.mxu0 %v3145
    %3373 = vmatprep.subr.bf16.mxu0 0
    %3374 = vmatpush2.bf16.msra.mxu0 0
    %3375 = vmatprep.subr.bf16.mxu0 0
    %3376 = vmatpush2.bf16.msra.mxu0 0
    %3377 = vmatprep.subr.bf16.mxu0 0
    %3378 = vmatpush2.bf16.msra.mxu0 0
    %3379 = vmatprep.subr.bf16.mxu0 0
    %3380 = vmatpush2.bf16.msra.mxu0 0
    %3381 = vmatprep.subr.bf16.mxu0 0
    %3382 = vmatpush2.bf16.msra.mxu0 0
    %3383 = vmatprep.subr.bf16.mxu0 0
    %3384 = vmatpush2.bf16.msra.mxu0 0
    %3385 = vmatprep.subr.bf16.mxu0 0
    %3386 = vmatpush2.bf16.msra.mxu0 0
    %3387 = vmatprep.subr.bf16.mxu0 0
    %3388 = vmatpush2.bf16.msra.mxu0 0
    %3389 = vmatprep.mubr.bf16.mxu0 0
    %3390 = vmatmul.mubr.bf16.gmra.mxu0 %v2678
    %v3391 = vpop.f32.mrf.mxu0
    %v3392 = vadd.f32 0.0, %v3391
    %v3393 = vpop.f32.mrf.mxu0
    %v3394 = vpop.f32.mrf.mxu0
    %v3395 = vpop.f32.mrf.mxu0
    %3396 = vdwg.mxu0
    %v3397 = vadd.f32 %v2633, %v3392
    %3398 = vmatprep.subr.bf16.mxu0 0
    %3399 = vmatpush1.bf16.msra.mxu0 0
    %3400 = vmatprep.subr.bf16.mxu0 0
    %3401 = vmatpush1.bf16.msra.mxu0 0
    %3402 = vmatprep.subr.bf16.mxu0 0
    %3403 = vmatpush1.bf16.msra.mxu0 %v3227
    %3404 = vmatprep.subr.bf16.mxu0 0
    %3405 = vmatpush1.bf16.msra.mxu0 %v3226
    %3406 = vmatprep.subr.bf16.mxu0 0
    %3407 = vmatpush1.bf16.msra.mxu0 %v3225
    %3408 = vmatprep.subr.bf16.mxu0 0
    %3409 = vmatpush1.bf16.msra.mxu0 %v3224
    %3410 = vmatprep.subr.bf16.mxu0 0
    %3411 = vmatpush1.bf16.msra.mxu0 %v3223
    %3412 = vmatprep.subr.bf16.mxu0 0
    %3413 = vmatpush1.bf16.msra.mxu0 %v3222
    %3414 = vmatprep.subr.bf16.mxu0 0
    %3415 = vmatpush2.bf16.msra.mxu0 0
    %3416 = vmatprep.subr.bf16.mxu0 0
    %3417 = vmatpush2.bf16.msra.mxu0 0
    %3418 = vmatprep.subr.bf16.mxu0 0
    %3419 = vmatpush2.bf16.msra.mxu0 0
    %3420 = vmatprep.subr.bf16.mxu0 0
    %3421 = vmatpush2.bf16.msra.mxu0 0
    %3422 = vmatprep.subr.bf16.mxu0 0
    %3423 = vmatpush2.bf16.msra.mxu0 0
    %3424 = vmatprep.subr.bf16.mxu0 0
    %3425 = vmatpush2.bf16.msra.mxu0 0
    %3426 = vmatprep.subr.bf16.mxu0 0
    %3427 = vmatpush2.bf16.msra.mxu0 0
    %3428 = vmatprep.subr.bf16.mxu0 0
    %3429 = vmatpush2.bf16.msra.mxu0 0
    %3430 = vmatprep.mubr.bf16.mxu0 0
    %3431 = vmatmul.mubr.bf16.gmra.mxu0 %v2678
    %v3432 = vpop.f32.mrf.mxu0
    %v3433 = vadd.f32 0.0, %v3432
    %v3434 = vpop.f32.mrf.mxu0
    %v3435 = vpop.f32.mrf.mxu0
    %v3436 = vpop.f32.mrf.mxu0
    %3437 = vdwg.mxu0
    %v3438 = vadd.f32 %v2674, %v3433
    %v3439 = vld [vmem:[%s0 + $0x1c] sm:$0xff]
    %v3440 = vpack.c.bf16 %v3439, %v3439
    %v3442 = vsel %vm144, %v3440, 0
    %3444 = vmatprep.subr.bf16.mxu0 0
    %3445 = vmatpush1.bf16.msra.mxu0 0
    %3446 = vmatprep.subr.bf16.mxu0 0
    %3447 = vmatpush1.bf16.msra.mxu0 0
    %3448 = vmatprep.subr.bf16.mxu0 0
    %3449 = vmatpush1.bf16.msra.mxu0 %v3150
    %3450 = vmatprep.subr.bf16.mxu0 0
    %3451 = vmatpush1.bf16.msra.mxu0 %v3149
    %3452 = vmatprep.subr.bf16.mxu0 0
    %3453 = vmatpush1.bf16.msra.mxu0 %v3148
    %3454 = vmatprep.subr.bf16.mxu0 0
    %3455 = vmatpush1.bf16.msra.mxu0 %v3147
    %3456 = vmatprep.subr.bf16.mxu0 0
    %3457 = vmatpush1.bf16.msra.mxu0 %v3146
    %3458 = vmatprep.subr.bf16.mxu0 0
    %3459 = vmatpush1.bf16.msra.mxu0 %v3145
    %3460 = vmatprep.subr.bf16.mxu0 0
    %3461 = vmatpush2.bf16.msra.mxu0 0
    %3462 = vmatprep.subr.bf16.mxu0 0
    %3463 = vmatpush2.bf16.msra.mxu0 0
    %3464 = vmatprep.subr.bf16.mxu0 0
    %3465 = vmatpush2.bf16.msra.mxu0 0
    %3466 = vmatprep.subr.bf16.mxu0 0
    %3467 = vmatpush2.bf16.msra.mxu0 0
    %3468 = vmatprep.subr.bf16.mxu0 0
    %3469 = vmatpush2.bf16.msra.mxu0 0
    %3470 = vmatprep.subr.bf16.mxu0 0
    %3471 = vmatpush2.bf16.msra.mxu0 0
    %3472 = vmatprep.subr.bf16.mxu0 0
    %3473 = vmatpush2.bf16.msra.mxu0 0
    %3474 = vmatprep.subr.bf16.mxu0 0
    %3475 = vmatpush2.bf16.msra.mxu0 0
    %3476 = vmatprep.mubr.bf16.mxu0 0
    %3477 = vmatmul.mubr.bf16.gmra.mxu0 %v3442
    %v3478 = vpop.f32.mrf.mxu0
    %v3479 = vadd.f32 0.0, %v3478
    %v3480 = vpop.f32.mrf.mxu0
    %v3481 = vpop.f32.mrf.mxu0
    %v3482 = vpop.f32.mrf.mxu0
    %3483 = vdwg.mxu0
    %v3484 = vadd.f32 %v2720, %v3479
    %3485 = vmatprep.subr.bf16.mxu0 0
    %3486 = vmatpush1.bf16.msra.mxu0 0
    %3487 = vmatprep.subr.bf16.mxu0 0
    %3488 = vmatpush1.bf16.msra.mxu0 0
    %3489 = vmatprep.subr.bf16.mxu0 0
    %3490 = vmatpush1.bf16.msra.mxu0 %v3227
    %3491 = vmatprep.subr.bf16.mxu0 0
    %3492 = vmatpush1.bf16.msra.mxu0 %v3226
    %3493 = vmatprep.subr.bf16.mxu0 0
    %3494 = vmatpush1.bf16.msra.mxu0 %v3225
    %3495 = vmatprep.subr.bf16.mxu0 0
    %3496 = vmatpush1.bf16.msra.mxu0 %v3224
    %3497 = vmatprep.subr.bf16.mxu0 0
    %3498 = vmatpush1.bf16.msra.mxu0 %v3223
    %3499 = vmatprep.subr.bf16.mxu0 0
    %3500 = vmatpush1.bf16.msra.mxu0 %v3222
    %3501 = vmatprep.subr.bf16.mxu0 0
    %3502 = vmatpush2.bf16.msra.mxu0 0
    %3503 = vmatprep.subr.bf16.mxu0 0
    %3504 = vmatpush2.bf16.msra.mxu0 0
    %3505 = vmatprep.subr.bf16.mxu0 0
    %3506 = vmatpush2.bf16.msra.mxu0 0
    %3507 = vmatprep.subr.bf16.mxu0 0
    %3508 = vmatpush2.bf16.msra.mxu0 0
    %3509 = vmatprep.subr.bf16.mxu0 0
    %3510 = vmatpush2.bf16.msra.mxu0 0
    %3511 = vmatprep.subr.bf16.mxu0 0
    %3512 = vmatpush2.bf16.msra.mxu0 0
    %3513 = vmatprep.subr.bf16.mxu0 0
    %3514 = vmatpush2.bf16.msra.mxu0 0
    %3515 = vmatprep.subr.bf16.mxu0 0
    %3516 = vmatpush2.bf16.msra.mxu0 0
    %3517 = vmatprep.mubr.bf16.mxu0 0
    %3518 = vmatmul.mubr.bf16.gmra.mxu0 %v3442
    %v3519 = vpop.f32.mrf.mxu0
    %v3520 = vadd.f32 0.0, %v3519
    %v3521 = vpop.f32.mrf.mxu0
    %v3522 = vpop.f32.mrf.mxu0
    %v3523 = vpop.f32.mrf.mxu0
    %3524 = vdwg.mxu0
    %v3525 = vadd.f32 %v2761, %v3520
    %3526 = vmatprep.subr.bf16.mxu0 0
    %3527 = vmatpush1.bf16.msra.mxu0 0
    %3528 = vmatprep.subr.bf16.mxu0 0
    %3529 = vmatpush1.bf16.msra.mxu0 0
    %3530 = vmatprep.subr.bf16.mxu0 0
    %3531 = vmatpush1.bf16.msra.mxu0 %v3150
    %3532 = vmatprep.subr.bf16.mxu0 0
    %3533 = vmatpush1.bf16.msra.mxu0 %v3149
    %3534 = vmatprep.subr.bf16.mxu0 0
    %3535 = vmatpush1.bf16.msra.mxu0 %v3148
    %3536 = vmatprep.subr.bf16.mxu0 0
    %3537 = vmatpush1.bf16.msra.mxu0 %v3147
    %3538 = vmatprep.subr.bf16.mxu0 0
    %3539 = vmatpush1.bf16.msra.mxu0 %v3146
    %3540 = vmatprep.subr.bf16.mxu0 0
    %3541 = vmatpush1.bf16.msra.mxu0 %v3145
    %3542 = vmatprep.subr.bf16.mxu0 0
    %3543 = vmatpush2.bf16.msra.mxu0 0
    %3544 = vmatprep.subr.bf16.mxu0 0
    %3545 = vmatpush2.bf16.msra.mxu0 0
    %3546 = vmatprep.subr.bf16.mxu0 0
    %3547 = vmatpush2.bf16.msra.mxu0 0
    %3548 = vmatprep.subr.bf16.mxu0 0
    %3549 = vmatpush2.bf16.msra.mxu0 0
    %3550 = vmatprep.subr.bf16.mxu0 0
    %3551 = vmatpush2.bf16.msra.mxu0 0
    %3552 = vmatprep.subr.bf16.mxu0 0
    %3553 = vmatpush2.bf16.msra.mxu0 0
    %3554 = vmatprep.subr.bf16.mxu0 0
    %3555 = vmatpush2.bf16.msra.mxu0 0
    %3556 = vmatprep.subr.bf16.mxu0 0
    %3557 = vmatpush2.bf16.msra.mxu0 0
    %3558 = vmatprep.mubr.bf16.mxu0 0
    %3559 = vmatmul.mubr.bf16.gmra.mxu0 %v1405
    %v3560 = vpop.f32.mrf.mxu0
    %v3561 = vadd.f32 0.0, %v3560
    %v3562 = vpop.f32.mrf.mxu0
    %v3563 = vpop.f32.mrf.mxu0
    %v3564 = vpop.f32.mrf.mxu0
    %3565 = vdwg.mxu0
    %v3566 = vadd.f32 %v2802, %v3561
    %3567 = vmatprep.subr.bf16.mxu0 0
    %3568 = vmatpush1.bf16.msra.mxu0 0
    %3569 = vmatprep.subr.bf16.mxu0 0
    %3570 = vmatpush1.bf16.msra.mxu0 0
    %3571 = vmatprep.subr.bf16.mxu0 0
    %3572 = vmatpush1.bf16.msra.mxu0 %v3227
    %3573 = vmatprep.subr.bf16.mxu0 0
    %3574 = vmatpush1.bf16.msra.mxu0 %v3226
    %3575 = vmatprep.subr.bf16.mxu0 0
    %3576 = vmatpush1.bf16.msra.mxu0 %v3225
    %3577 = vmatprep.subr.bf16.mxu0 0
    %3578 = vmatpush1.bf16.msra.mxu0 %v3224
    %3579 = vmatprep.subr.bf16.mxu0 0
    %3580 = vmatpush1.bf16.msra.mxu0 %v3223
    %3581 = vmatprep.subr.bf16.mxu0 0
    %3582 = vmatpush1.bf16.msra.mxu0 %v3222
    %3583 = vmatprep.subr.bf16.mxu0 0
    %3584 = vmatpush2.bf16.msra.mxu0 0
    %3585 = vmatprep.subr.bf16.mxu0 0
    %3586 = vmatpush2.bf16.msra.mxu0 0
    %3587 = vmatprep.subr.bf16.mxu0 0
    %3588 = vmatpush2.bf16.msra.mxu0 0
    %3589 = vmatprep.subr.bf16.mxu0 0
    %3590 = vmatpush2.bf16.msra.mxu0 0
    %3591 = vmatprep.subr.bf16.mxu0 0
    %3592 = vmatpush2.bf16.msra.mxu0 0
    %3593 = vmatprep.subr.bf16.mxu0 0
    %3594 = vmatpush2.bf16.msra.mxu0 0
    %3595 = vmatprep.subr.bf16.mxu0 0
    %3596 = vmatpush2.bf16.msra.mxu0 0
    %3597 = vmatprep.subr.bf16.mxu0 0
    %3598 = vmatpush2.bf16.msra.mxu0 0
    %3599 = vmatprep.mubr.bf16.mxu0 0
    %3600 = vmatmul.mubr.bf16.gmra.mxu0 %v1405
    %v3601 = vpop.f32.mrf.mxu0
    %v3602 = vadd.f32 0.0, %v3601
    %v3603 = vpop.f32.mrf.mxu0
    %v3604 = vpop.f32.mrf.mxu0
    %v3605 = vpop.f32.mrf.mxu0
    %3606 = vdwg.mxu0
    %v3607 = vadd.f32 %v2843, %v3602
    %3608 = vmatprep.subr.bf16.mxu0 0
    %3609 = vmatpush1.bf16.msra.mxu0 0
    %3610 = vmatprep.subr.bf16.mxu0 0
    %3611 = vmatpush1.bf16.msra.mxu0 0
    %3612 = vmatprep.subr.bf16.mxu0 0
    %3613 = vmatpush1.bf16.msra.mxu0 %v3150
    %3614 = vmatprep.subr.bf16.mxu0 0
    %3615 = vmatpush1.bf16.msra.mxu0 %v3149
    %3616 = vmatprep.subr.bf16.mxu0 0
    %3617 = vmatpush1.bf16.msra.mxu0 %v3148
    %3618 = vmatprep.subr.bf16.mxu0 0
    %3619 = vmatpush1.bf16.msra.mxu0 %v3147
    %3620 = vmatprep.subr.bf16.mxu0 0
    %3621 = vmatpush1.bf16.msra.mxu0 %v3146
    %3622 = vmatprep.subr.bf16.mxu0 0
    %3623 = vmatpush1.bf16.msra.mxu0 %v3145
    %3624 = vmatprep.subr.bf16.mxu0 0
    %3625 = vmatpush2.bf16.msra.mxu0 0
    %3626 = vmatprep.subr.bf16.mxu0 0
    %3627 = vmatpush2.bf16.msra.mxu0 0
    %3628 = vmatprep.subr.bf16.mxu0 0
    %3629 = vmatpush2.bf16.msra.mxu0 0
    %3630 = vmatprep.subr.bf16.mxu0 0
    %3631 = vmatpush2.bf16.msra.mxu0 0
    %3632 = vmatprep.subr.bf16.mxu0 0
    %3633 = vmatpush2.bf16.msra.mxu0 0
    %3634 = vmatprep.subr.bf16.mxu0 0
    %3635 = vmatpush2.bf16.msra.mxu0 0
    %3636 = vmatprep.subr.bf16.mxu0 0
    %3637 = vmatpush2.bf16.msra.mxu0 0
    %3638 = vmatprep.subr.bf16.mxu0 0
    %3639 = vmatpush2.bf16.msra.mxu0 0
    %3640 = vmatprep.mubr.bf16.mxu0 0
    %3641 = vmatmul.mubr.bf16.gmra.mxu0 %v2247
    %v3642 = vpop.f32.mrf.mxu0
    %v3643 = vadd.f32 0.0, %v3642
    %v3644 = vpop.f32.mrf.mxu0
    %v3645 = vpop.f32.mrf.mxu0
    %v3646 = vpop.f32.mrf.mxu0
    %3647 = vdwg.mxu0
    %v3648 = vadd.f32 %v2884, %v3643
    %3649 = vmatprep.subr.bf16.mxu0 0
    %3650 = vmatpush1.bf16.msra.mxu0 0
    %3651 = vmatprep.subr.bf16.mxu0 0
    %3652 = vmatpush1.bf16.msra.mxu0 0
    %3653 = vmatprep.subr.bf16.mxu0 0
    %3654 = vmatpush1.bf16.msra.mxu0 %v3227
    %3655 = vmatprep.subr.bf16.mxu0 0
    %3656 = vmatpush1.bf16.msra.mxu0 %v3226
    %3657 = vmatprep.subr.bf16.mxu0 0
    %3658 = vmatpush1.bf16.msra.mxu0 %v3225
    %3659 = vmatprep.subr.bf16.mxu0 0
    %3660 = vmatpush1.bf16.msra.mxu0 %v3224
    %3661 = vmatprep.subr.bf16.mxu0 0
    %3662 = vmatpush1.bf16.msra.mxu0 %v3223
    %3663 = vmatprep.subr.bf16.mxu0 0
    %3664 = vmatpush1.bf16.msra.mxu0 %v3222
    %3665 = vmatprep.subr.bf16.mxu0 0
    %3666 = vmatpush2.bf16.msra.mxu0 0
    %3667 = vmatprep.subr.bf16.mxu0 0
    %3668 = vmatpush2.bf16.msra.mxu0 0
    %3669 = vmatprep.subr.bf16.mxu0 0
    %3670 = vmatpush2.bf16.msra.mxu0 0
    %3671 = vmatprep.subr.bf16.mxu0 0
    %3672 = vmatpush2.bf16.msra.mxu0 0
    %3673 = vmatprep.subr.bf16.mxu0 0
    %3674 = vmatpush2.bf16.msra.mxu0 0
    %3675 = vmatprep.subr.bf16.mxu0 0
    %3676 = vmatpush2.bf16.msra.mxu0 0
    %3677 = vmatprep.subr.bf16.mxu0 0
    %3678 = vmatpush2.bf16.msra.mxu0 0
    %3679 = vmatprep.subr.bf16.mxu0 0
    %3680 = vmatpush2.bf16.msra.mxu0 0
    %3681 = vmatprep.mubr.bf16.mxu0 0
    %3682 = vmatmul.mubr.bf16.gmra.mxu0 %v2247
    %v3683 = vpop.f32.mrf.mxu0
    %v3684 = vadd.f32 0.0, %v3683
    %v3685 = vpop.f32.mrf.mxu0
    %v3686 = vpop.f32.mrf.mxu0
    %v3687 = vpop.f32.mrf.mxu0
    %3688 = vdwg.mxu0
    %v3689 = vadd.f32 %v2925, %v3684
    %3690 = vmatprep.subr.bf16.mxu0 0
    %3691 = vmatpush1.bf16.msra.mxu0 0
    %3692 = vmatprep.subr.bf16.mxu0 0
    %3693 = vmatpush1.bf16.msra.mxu0 0
    %3694 = vmatprep.subr.bf16.mxu0 0
    %3695 = vmatpush1.bf16.msra.mxu0 %v3150
    %3696 = vmatprep.subr.bf16.mxu0 0
    %3697 = vmatpush1.bf16.msra.mxu0 %v3149
    %3698 = vmatprep.subr.bf16.mxu0 0
    %3699 = vmatpush1.bf16.msra.mxu0 %v3148
    %3700 = vmatprep.subr.bf16.mxu0 0
    %3701 = vmatpush1.bf16.msra.mxu0 %v3147
    %3702 = vmatprep.subr.bf16.mxu0 0
    %3703 = vmatpush1.bf16.msra.mxu0 %v3146
    %3704 = vmatprep.subr.bf16.mxu0 0
    %3705 = vmatpush1.bf16.msra.mxu0 %v3145
    %3706 = vmatprep.subr.bf16.mxu0 0
    %3707 = vmatpush2.bf16.msra.mxu0 0
    %3708 = vmatprep.subr.bf16.mxu0 0
    %3709 = vmatpush2.bf16.msra.mxu0 0
    %3710 = vmatprep.subr.bf16.mxu0 0
    %3711 = vmatpush2.bf16.msra.mxu0 0
    %3712 = vmatprep.subr.bf16.mxu0 0
    %3713 = vmatpush2.bf16.msra.mxu0 0
    %3714 = vmatprep.subr.bf16.mxu0 0
    %3715 = vmatpush2.bf16.msra.mxu0 0
    %3716 = vmatprep.subr.bf16.mxu0 0
    %3717 = vmatpush2.bf16.msra.mxu0 0
    %3718 = vmatprep.subr.bf16.mxu0 0
    %3719 = vmatpush2.bf16.msra.mxu0 0
    %3720 = vmatprep.subr.bf16.mxu0 0
    %3721 = vmatpush2.bf16.msra.mxu0 0
    %3722 = vmatprep.mubr.bf16.mxu0 0
    %3723 = vmatmul.mubr.bf16.gmra.mxu0 %v3011
    %v3724 = vpop.f32.mrf.mxu0
    %v3725 = vadd.f32 0.0, %v3724
    %v3726 = vpop.f32.mrf.mxu0
    %v3727 = vpop.f32.mrf.mxu0
    %v3728 = vpop.f32.mrf.mxu0
    %3729 = vdwg.mxu0
    %v3730 = vadd.f32 %v2966, %v3725
    %3731 = vmatprep.subr.bf16.mxu0 0
    %3732 = vmatpush1.bf16.msra.mxu0 0
    %3733 = vmatprep.subr.bf16.mxu0 0
    %3734 = vmatpush1.bf16.msra.mxu0 0
    %3735 = vmatprep.subr.bf16.mxu0 0
    %3736 = vmatpush1.bf16.msra.mxu0 %v3227
    %3737 = vmatprep.subr.bf16.mxu0 0
    %3738 = vmatpush1.bf16.msra.mxu0 %v3226
    %3739 = vmatprep.subr.bf16.mxu0 0
    %3740 = vmatpush1.bf16.msra.mxu0 %v3225
    %3741 = vmatprep.subr.bf16.mxu0 0
    %3742 = vmatpush1.bf16.msra.mxu0 %v3224
    %3743 = vmatprep.subr.bf16.mxu0 0
    %3744 = vmatpush1.bf16.msra.mxu0 %v3223
    %3745 = vmatprep.subr.bf16.mxu0 0
    %3746 = vmatpush1.bf16.msra.mxu0 %v3222
    %3747 = vmatprep.subr.bf16.mxu0 0
    %3748 = vmatpush2.bf16.msra.mxu0 0
    %3749 = vmatprep.subr.bf16.mxu0 0
    %3750 = vmatpush2.bf16.msra.mxu0 0
    %3751 = vmatprep.subr.bf16.mxu0 0
    %3752 = vmatpush2.bf16.msra.mxu0 0
    %3753 = vmatprep.subr.bf16.mxu0 0
    %3754 = vmatpush2.bf16.msra.mxu0 0
    %3755 = vmatprep.subr.bf16.mxu0 0
    %3756 = vmatpush2.bf16.msra.mxu0 0
    %3757 = vmatprep.subr.bf16.mxu0 0
    %3758 = vmatpush2.bf16.msra.mxu0 0
    %3759 = vmatprep.subr.bf16.mxu0 0
    %3760 = vmatpush2.bf16.msra.mxu0 0
    %3761 = vmatprep.subr.bf16.mxu0 0
    %3762 = vmatpush2.bf16.msra.mxu0 0
    %3763 = vmatprep.mubr.bf16.mxu0 0
    %3764 = vmatmul.mubr.bf16.gmra.mxu0 %v3011
    %v3765 = vpop.f32.mrf.mxu0
    %v3766 = vadd.f32 0.0, %v3765
    %v3767 = vpop.f32.mrf.mxu0
    %v3768 = vpop.f32.mrf.mxu0
    %v3769 = vpop.f32.mrf.mxu0
    %3770 = vdwg.mxu0
    %v3771 = vadd.f32 %v3007, %v3766
    %v3772 = vld [vmem:[%s73 + $0x1c] sm:$0xff]
    %v3773 = vpack.c.bf16 %v3772, %v3772
    %v3775 = vsel %vm144, %v3773, 0
    %3777 = vmatprep.subr.bf16.mxu0 0
    %3778 = vmatpush1.bf16.msra.mxu0 0
    %3779 = vmatprep.subr.bf16.mxu0 0
    %3780 = vmatpush1.bf16.msra.mxu0 0
    %3781 = vmatprep.subr.bf16.mxu0 0
    %3782 = vmatpush1.bf16.msra.mxu0 %v3150
    %3783 = vmatprep.subr.bf16.mxu0 0
    %3784 = vmatpush1.bf16.msra.mxu0 %v3149
    %3785 = vmatprep.subr.bf16.mxu0 0
    %3786 = vmatpush1.bf16.msra.mxu0 %v3148
    %3787 = vmatprep.subr.bf16.mxu0 0
    %3788 = vmatpush1.bf16.msra.mxu0 %v3147
    %3789 = vmatprep.subr.bf16.mxu0 0
    %3790 = vmatpush1.bf16.msra.mxu0 %v3146
    %3791 = vmatprep.subr.bf16.mxu0 0
    %3792 = vmatpush1.bf16.msra.mxu0 %v3145
    %3793 = vmatprep.subr.bf16.mxu0 0
    %3794 = vmatpush2.bf16.msra.mxu0 0
    %3795 = vmatprep.subr.bf16.mxu0 0
    %3796 = vmatpush2.bf16.msra.mxu0 0
    %3797 = vmatprep.subr.bf16.mxu0 0
    %3798 = vmatpush2.bf16.msra.mxu0 0
    %3799 = vmatprep.subr.bf16.mxu0 0
    %3800 = vmatpush2.bf16.msra.mxu0 0
    %3801 = vmatprep.subr.bf16.mxu0 0
    %3802 = vmatpush2.bf16.msra.mxu0 0
    %3803 = vmatprep.subr.bf16.mxu0 0
    %3804 = vmatpush2.bf16.msra.mxu0 0
    %3805 = vmatprep.subr.bf16.mxu0 0
    %3806 = vmatpush2.bf16.msra.mxu0 0
    %3807 = vmatprep.subr.bf16.mxu0 0
    %3808 = vmatpush2.bf16.msra.mxu0 0
    %3809 = vmatprep.mubr.bf16.mxu0 0
    %3810 = vmatmul.mubr.bf16.gmra.mxu0 %v3775
    %v3811 = vpop.f32.mrf.mxu0
    %v3812 = vadd.f32 0.0, %v3811
    %v3813 = vpop.f32.mrf.mxu0
    %v3814 = vpop.f32.mrf.mxu0
    %v3815 = vpop.f32.mrf.mxu0
    %3816 = vdwg.mxu0
    %v3817 = vadd.f32 %v3053, %v3812
    %3818 = vmatprep.subr.bf16.mxu0 0
    %3819 = vmatpush1.bf16.msra.mxu0 0
    %3820 = vmatprep.subr.bf16.mxu0 0
    %3821 = vmatpush1.bf16.msra.mxu0 0
    %3822 = vmatprep.subr.bf16.mxu0 0
    %3823 = vmatpush1.bf16.msra.mxu0 %v3227
    %3824 = vmatprep.subr.bf16.mxu0 0
    %3825 = vmatpush1.bf16.msra.mxu0 %v3226
    %3826 = vmatprep.subr.bf16.mxu0 0
    %3827 = vmatpush1.bf16.msra.mxu0 %v3225
    %3828 = vmatprep.subr.bf16.mxu0 0
    %3829 = vmatpush1.bf16.msra.mxu0 %v3224
    %3830 = vmatprep.subr.bf16.mxu0 0
    %3831 = vmatpush1.bf16.msra.mxu0 %v3223
    %3832 = vmatprep.subr.bf16.mxu0 0
    %3833 = vmatpush1.bf16.msra.mxu0 %v3222
    %3834 = vmatprep.subr.bf16.mxu0 0
    %3835 = vmatpush2.bf16.msra.mxu0 0
    %3836 = vmatprep.subr.bf16.mxu0 0
    %3837 = vmatpush2.bf16.msra.mxu0 0
    %3838 = vmatprep.subr.bf16.mxu0 0
    %3839 = vmatpush2.bf16.msra.mxu0 0
    %3840 = vmatprep.subr.bf16.mxu0 0
    %3841 = vmatpush2.bf16.msra.mxu0 0
    %3842 = vmatprep.subr.bf16.mxu0 0
    %3843 = vmatpush2.bf16.msra.mxu0 0
    %3844 = vmatprep.subr.bf16.mxu0 0
    %3845 = vmatpush2.bf16.msra.mxu0 0
    %3846 = vmatprep.subr.bf16.mxu0 0
    %3847 = vmatpush2.bf16.msra.mxu0 0
    %3848 = vmatprep.subr.bf16.mxu0 0
    %3849 = vmatpush2.bf16.msra.mxu0 0
    %3850 = vmatprep.mubr.bf16.mxu0 0
    %3851 = vmatmul.mubr.bf16.gmra.mxu0 %v3775
    %v3852 = vpop.f32.mrf.mxu0
    %v3853 = vadd.f32 0.0, %v3852
    %v3854 = vpop.f32.mrf.mxu0
    %v3855 = vpop.f32.mrf.mxu0
    %v3856 = vpop.f32.mrf.mxu0
    %3857 = vdwg.mxu0
    %v3858 = vadd.f32 %v3094, %v3853
    %v3859 = vld [vmem:[%s2] sm:$0x1]
    %v3861 = vlaneseq
    %v3862 = vshrl.u32 %v3861, 7
    %v3863 = vsub.s32 0, %v3862
    %v3864 = vrot.slane %v3859, %v3863
    %v3866 = vadd.f32 %v3197, %v3864
    %v3867 = vmax.f32 %v3866, 0.0
    %v3868 = vsel %vm144, %v3867, 0.0
    %v3869 = vrot.slane %v3868, 4
    %v3870 = vadd.f32 %v3868, %v3869
    %v3871 = vrot.slane %v3870, 2
    %v3872 = vadd.f32 %v3870, %v3871
    %v3873 = vrot.slane %v3872, 1
    %v3874 = vadd.f32 %v3872, %v3873
    %v3875 = vadd.f32 %v3874, 0.0
    %v3876 = vmul.f32 %v3867, %v3867
    %v3877 = vsel %vm144, %v3876, 0.0
    %v3878 = vrot.slane %v3877, 4
    %v3879 = vadd.f32 %v3877, %v3878
    %v3880 = vrot.slane %v3879, 2
    %v3881 = vadd.f32 %v3879, %v3880
    %v3882 = vrot.slane %v3881, 1
    %v3883 = vadd.f32 %v3881, %v3882
    %v3884 = vadd.f32 %v3883, 0.0
    %v3885 = vadd.f32 %v3274, %v3864
    %v3886 = vmax.f32 %v3885, 0.0
    %v3887 = vsel %vm144, %v3886, 0.0
    %v3888 = vrot.slane %v3887, 4
    %v3889 = vadd.f32 %v3887, %v3888
    %v3890 = vrot.slane %v3889, 2
    %v3891 = vadd.f32 %v3889, %v3890
    %v3892 = vrot.slane %v3891, 1
    %v3893 = vadd.f32 %v3891, %v3892
    %v3894 = vadd.f32 %v3875, %v3893
    %v3895 = vmul.f32 %v3886, %v3886
    %v3896 = vsel %vm144, %v3895, 0.0
    %v3897 = vrot.slane %v3896, 4
    %v3898 = vadd.f32 %v3896, %v3897
    %v3899 = vrot.slane %v3898, 2
    %v3900 = vadd.f32 %v3898, %v3899
    %v3901 = vrot.slane %v3900, 1
    %v3902 = vadd.f32 %v3900, %v3901
    %v3903 = vadd.f32 %v3884, %v3902
    %v3904 = vadd.f32 %v3315, %v3864
    %v3905 = vmax.f32 %v3904, 0.0
    %v3906 = vsel %vm144, %v3905, 0.0
    %v3907 = vrot.slane %v3906, 4
    %v3908 = vadd.f32 %v3906, %v3907
    %v3909 = vrot.slane %v3908, 2
    %v3910 = vadd.f32 %v3908, %v3909
    %v3911 = vrot.slane %v3910, 1
    %v3912 = vadd.f32 %v3910, %v3911
    %v3913 = vadd.f32 %v3894, %v3912
    %v3914 = vmul.f32 %v3905, %v3905
    %v3915 = vsel %vm144, %v3914, 0.0
    %v3916 = vrot.slane %v3915, 4
    %v3917 = vadd.f32 %v3915, %v3916
    %v3918 = vrot.slane %v3917, 2
    %v3919 = vadd.f32 %v3917, %v3918
    %v3920 = vrot.slane %v3919, 1
    %v3921 = vadd.f32 %v3919, %v3920
    %v3922 = vadd.f32 %v3903, %v3921
    %v3923 = vadd.f32 %v3356, %v3864
    %v3924 = vmax.f32 %v3923, 0.0
    %v3925 = vsel %vm144, %v3924, 0.0
    %v3926 = vrot.slane %v3925, 4
    %v3927 = vadd.f32 %v3925, %v3926
    %v3928 = vrot.slane %v3927, 2
    %v3929 = vadd.f32 %v3927, %v3928
    %v3930 = vrot.slane %v3929, 1
    %v3931 = vadd.f32 %v3929, %v3930
    %v3932 = vadd.f32 %v3913, %v3931
    %v3933 = vmul.f32 %v3924, %v3924
    %v3934 = vsel %vm144, %v3933, 0.0
    %v3935 = vrot.slane %v3934, 4
    %v3936 = vadd.f32 %v3934, %v3935
    %v3937 = vrot.slane %v3936, 2
    %v3938 = vadd.f32 %v3936, %v3937
    %v3939 = vrot.slane %v3938, 1
    %v3940 = vadd.f32 %v3938, %v3939
    %v3941 = vadd.f32 %v3922, %v3940
    %v3942 = vadd.f32 %v3397, %v3864
    %v3943 = vmax.f32 %v3942, 0.0
    %v3944 = vsel %vm144, %v3943, 0.0
    %v3945 = vrot.slane %v3944, 4
    %v3946 = vadd.f32 %v3944, %v3945
    %v3947 = vrot.slane %v3946, 2
    %v3948 = vadd.f32 %v3946, %v3947
    %v3949 = vrot.slane %v3948, 1
    %v3950 = vadd.f32 %v3948, %v3949
    %v3951 = vadd.f32 %v3932, %v3950
    %v3952 = vmul.f32 %v3943, %v3943
    %v3953 = vsel %vm144, %v3952, 0.0
    %v3954 = vrot.slane %v3953, 4
    %v3955 = vadd.f32 %v3953, %v3954
    %v3956 = vrot.slane %v3955, 2
    %v3957 = vadd.f32 %v3955, %v3956
    %v3958 = vrot.slane %v3957, 1
    %v3959 = vadd.f32 %v3957, %v3958
    %v3960 = vadd.f32 %v3941, %v3959
    %v3961 = vadd.f32 %v3438, %v3864
    %v3962 = vmax.f32 %v3961, 0.0
    %v3963 = vsel %vm144, %v3962, 0.0
    %v3964 = vrot.slane %v3963, 4
    %v3965 = vadd.f32 %v3963, %v3964
    %v3966 = vrot.slane %v3965, 2
    %v3967 = vadd.f32 %v3965, %v3966
    %v3968 = vrot.slane %v3967, 1
    %v3969 = vadd.f32 %v3967, %v3968
    %v3970 = vadd.f32 %v3951, %v3969
    %v3971 = vmul.f32 %v3962, %v3962
    %v3972 = vsel %vm144, %v3971, 0.0
    %v3973 = vrot.slane %v3972, 4
    %v3974 = vadd.f32 %v3972, %v3973
    %v3975 = vrot.slane %v3974, 2
    %v3976 = vadd.f32 %v3974, %v3975
    %v3977 = vrot.slane %v3976, 1
    %v3978 = vadd.f32 %v3976, %v3977
    %v3979 = vadd.f32 %v3960, %v3978
    %v3980 = vadd.f32 %v3484, %v3864
    %v3981 = vmax.f32 %v3980, 0.0
    %v3982 = vsel %vm144, %v3981, 0.0
    %v3983 = vrot.slane %v3982, 4
    %v3984 = vadd.f32 %v3982, %v3983
    %v3985 = vrot.slane %v3984, 2
    %v3986 = vadd.f32 %v3984, %v3985
    %v3987 = vrot.slane %v3986, 1
    %v3988 = vadd.f32 %v3986, %v3987
    %v3989 = vadd.f32 %v3970, %v3988
    %v3990 = vmul.f32 %v3981, %v3981
    %v3991 = vsel %vm144, %v3990, 0.0
    %v3992 = vrot.slane %v3991, 4
    %v3993 = vadd.f32 %v3991, %v3992
    %v3994 = vrot.slane %v3993, 2
    %v3995 = vadd.f32 %v3993, %v3994
    %v3996 = vrot.slane %v3995, 1
    %v3997 = vadd.f32 %v3995, %v3996
    %v3998 = vadd.f32 %v3979, %v3997
    %v3999 = vadd.f32 %v3525, %v3864
    %v4000 = vmax.f32 %v3999, 0.0
    %v4001 = vsel %vm144, %v4000, 0.0
    %v4002 = vrot.slane %v4001, 4
    %v4003 = vadd.f32 %v4001, %v4002
    %v4004 = vrot.slane %v4003, 2
    %v4005 = vadd.f32 %v4003, %v4004
    %v4006 = vrot.slane %v4005, 1
    %v4007 = vadd.f32 %v4005, %v4006
    %v4008 = vadd.f32 %v3989, %v4007
    %v4009 = vmul.f32 %v4000, %v4000
    %v4010 = vsel %vm144, %v4009, 0.0
    %v4011 = vrot.slane %v4010, 4
    %v4012 = vadd.f32 %v4010, %v4011
    %v4013 = vrot.slane %v4012, 2
    %v4014 = vadd.f32 %v4012, %v4013
    %v4015 = vrot.slane %v4014, 1
    %v4016 = vadd.f32 %v4014, %v4015
    %v4017 = vadd.f32 %v3998, %v4016
    %v4018 = vadd.f32 %v3566, %v3864
    %v4019 = vmax.f32 %v4018, 0.0
    %v4020 = vsel %vm144, %v4019, 0.0
    %v4021 = vrot.slane %v4020, 4
    %v4022 = vadd.f32 %v4020, %v4021
    %v4023 = vrot.slane %v4022, 2
    %v4024 = vadd.f32 %v4022, %v4023
    %v4025 = vrot.slane %v4024, 1
    %v4026 = vadd.f32 %v4024, %v4025
    %v4027 = vadd.f32 %v4008, %v4026
    %v4028 = vmul.f32 %v4019, %v4019
    %v4029 = vsel %vm144, %v4028, 0.0
    %v4030 = vrot.slane %v4029, 4
    %v4031 = vadd.f32 %v4029, %v4030
    %v4032 = vrot.slane %v4031, 2
    %v4033 = vadd.f32 %v4031, %v4032
    %v4034 = vrot.slane %v4033, 1
    %v4035 = vadd.f32 %v4033, %v4034
    %v4036 = vadd.f32 %v4017, %v4035
    %v4037 = vadd.f32 %v3607, %v3864
    %v4038 = vmax.f32 %v4037, 0.0
    %v4039 = vsel %vm144, %v4038, 0.0
    %v4040 = vrot.slane %v4039, 4
    %v4041 = vadd.f32 %v4039, %v4040
    %v4042 = vrot.slane %v4041, 2
    %v4043 = vadd.f32 %v4041, %v4042
    %v4044 = vrot.slane %v4043, 1
    %v4045 = vadd.f32 %v4043, %v4044
    %v4046 = vadd.f32 %v4027, %v4045
    %v4047 = vmul.f32 %v4038, %v4038
    %v4048 = vsel %vm144, %v4047, 0.0
    %v4049 = vrot.slane %v4048, 4
    %v4050 = vadd.f32 %v4048, %v4049
    %v4051 = vrot.slane %v4050, 2
    %v4052 = vadd.f32 %v4050, %v4051
    %v4053 = vrot.slane %v4052, 1
    %v4054 = vadd.f32 %v4052, %v4053
    %v4055 = vadd.f32 %v4036, %v4054
    %v4056 = vadd.f32 %v3648, %v3864
    %v4057 = vmax.f32 %v4056, 0.0
    %v4058 = vsel %vm144, %v4057, 0.0
    %v4059 = vrot.slane %v4058, 4
    %v4060 = vadd.f32 %v4058, %v4059
    %v4061 = vrot.slane %v4060, 2
    %v4062 = vadd.f32 %v4060, %v4061
    %v4063 = vrot.slane %v4062, 1
    %v4064 = vadd.f32 %v4062, %v4063
    %v4065 = vadd.f32 %v4046, %v4064
    %v4066 = vmul.f32 %v4057, %v4057
    %v4067 = vsel %vm144, %v4066, 0.0
    %v4068 = vrot.slane %v4067, 4
    %v4069 = vadd.f32 %v4067, %v4068
    %v4070 = vrot.slane %v4069, 2
    %v4071 = vadd.f32 %v4069, %v4070
    %v4072 = vrot.slane %v4071, 1
    %v4073 = vadd.f32 %v4071, %v4072
    %v4074 = vadd.f32 %v4055, %v4073
    %v4075 = vadd.f32 %v3689, %v3864
    %v4076 = vmax.f32 %v4075, 0.0
    %v4077 = vsel %vm144, %v4076, 0.0
    %v4078 = vrot.slane %v4077, 4
    %v4079 = vadd.f32 %v4077, %v4078
    %v4080 = vrot.slane %v4079, 2
    %v4081 = vadd.f32 %v4079, %v4080
    %v4082 = vrot.slane %v4081, 1
    %v4083 = vadd.f32 %v4081, %v4082
    %v4084 = vadd.f32 %v4065, %v4083
    %v4085 = vmul.f32 %v4076, %v4076
    %v4086 = vsel %vm144, %v4085, 0.0
    %v4087 = vrot.slane %v4086, 4
    %v4088 = vadd.f32 %v4086, %v4087
    %v4089 = vrot.slane %v4088, 2
    %v4090 = vadd.f32 %v4088, %v4089
    %v4091 = vrot.slane %v4090, 1
    %v4092 = vadd.f32 %v4090, %v4091
    %v4093 = vadd.f32 %v4074, %v4092
    %v4094 = vadd.f32 %v3730, %v3864
    %v4095 = vmax.f32 %v4094, 0.0
    %v4096 = vsel %vm144, %v4095, 0.0
    %v4097 = vrot.slane %v4096, 4
    %v4098 = vadd.f32 %v4096, %v4097
    %v4099 = vrot.slane %v4098, 2
    %v4100 = vadd.f32 %v4098, %v4099
    %v4101 = vrot.slane %v4100, 1
    %v4102 = vadd.f32 %v4100, %v4101
    %v4103 = vadd.f32 %v4084, %v4102
    %v4104 = vmul.f32 %v4095, %v4095
    %v4105 = vsel %vm144, %v4104, 0.0
    %v4106 = vrot.slane %v4105, 4
    %v4107 = vadd.f32 %v4105, %v4106
    %v4108 = vrot.slane %v4107, 2
    %v4109 = vadd.f32 %v4107, %v4108
    %v4110 = vrot.slane %v4109, 1
    %v4111 = vadd.f32 %v4109, %v4110
    %v4112 = vadd.f32 %v4093, %v4111
    %v4113 = vadd.f32 %v3771, %v3864
    %v4114 = vmax.f32 %v4113, 0.0
    %v4115 = vsel %vm144, %v4114, 0.0
    %v4116 = vrot.slane %v4115, 4
    %v4117 = vadd.f32 %v4115, %v4116
    %v4118 = vrot.slane %v4117, 2
    %v4119 = vadd.f32 %v4117, %v4118
    %v4120 = vrot.slane %v4119, 1
    %v4121 = vadd.f32 %v4119, %v4120
    %v4122 = vadd.f32 %v4103, %v4121
    %v4123 = vmul.f32 %v4114, %v4114
    %v4124 = vsel %vm144, %v4123, 0.0
    %v4125 = vrot.slane %v4124, 4
    %v4126 = vadd.f32 %v4124, %v4125
    %v4127 = vrot.slane %v4126, 2
    %v4128 = vadd.f32 %v4126, %v4127
    %v4129 = vrot.slane %v4128, 1
    %v4130 = vadd.f32 %v4128, %v4129
    %v4131 = vadd.f32 %v4112, %v4130
    %v4132 = vadd.f32 %v3817, %v3864
    %v4133 = vmax.f32 %v4132, 0.0
    %v4134 = vsel %vm144, %v4133, 0.0
    %v4135 = vrot.slane %v4134, 4
    %v4136 = vadd.f32 %v4134, %v4135
    %v4137 = vrot.slane %v4136, 2
    %v4138 = vadd.f32 %v4136, %v4137
    %v4139 = vrot.slane %v4138, 1
    %v4140 = vadd.f32 %v4138, %v4139
    %v4141 = vadd.f32 %v4122, %v4140
    %v4142 = vmul.f32 %v4133, %v4133
    %v4143 = vsel %vm144, %v4142, 0.0
    %v4144 = vrot.slane %v4143, 4
    %v4145 = vadd.f32 %v4143, %v4144
    %v4146 = vrot.slane %v4145, 2
    %v4147 = vadd.f32 %v4145, %v4146
    %v4148 = vrot.slane %v4147, 1
    %v4149 = vadd.f32 %v4147, %v4148
    %v4150 = vadd.f32 %v4131, %v4149
    %v4151 = vadd.f32 %v3858, %v3864
    %v4152 = vmax.f32 %v4151, 0.0
    %v4153 = vsel %vm144, %v4152, 0.0
    %v4154 = vrot.slane %v4153, 4
    %v4155 = vadd.f32 %v4153, %v4154
    %v4156 = vrot.slane %v4155, 2
    %v4157 = vadd.f32 %v4155, %v4156
    %v4158 = vrot.slane %v4157, 1
    %v4159 = vadd.f32 %v4157, %v4158
    %v4160 = vadd.f32 %v4141, %v4159
    %v4161 = vmul.f32 %v4152, %v4152
    %v4162 = vsel %vm144, %v4161, 0.0
    %v4163 = vrot.slane %v4162, 4
    %v4164 = vadd.f32 %v4162, %v4163
    %v4165 = vrot.slane %v4164, 2
    %v4166 = vadd.f32 %v4164, %v4165
    %v4167 = vrot.slane %v4166, 1
    %v4168 = vadd.f32 %v4166, %v4167
    %v4169 = vadd.f32 %v4150, %v4168
    %v4170 = vld [vmem:[%s3] sm:$0xff]
    %v4171 = vld [vmem:[%s3 + $0x8] sm:$0xff]
    %v4172 = vld [vmem:[%s3 + $0x10] sm:$0xff]
    %v4173 = vld [vmem:[%s3 + $0x18] sm:$0xff]
    %v4174 = vld [vmem:[%s3 + $0x20] sm:$0xff]
    %v4175 = vld [vmem:[%s3 + $0x28] sm:$0xff]
    %v4176 = vld [vmem:[%s3 + $0x30] sm:$0xff]
    %v4177 = vld [vmem:[%s3 + $0x38] sm:$0xff]
    %v4178 = vld [vmem:[%s3 + $0x40] sm:$0xff]
    %v4179 = vld [vmem:[%s3 + $0x48] sm:$0xff]
    %v4180 = vld [vmem:[%s3 + $0x50] sm:$0xff]
    %v4181 = vld [vmem:[%s3 + $0x58] sm:$0xff]
    %v4183 = vsel %vm144, %v4160, 0
    %4185 = vmatprep.subr.mxu0 0.0
    %4186 = vmatpush1.msra.mxu0 0.0
    %4187 = vmatprep.subr.mxu0 0.0
    %4188 = vmatpush1.msra.mxu0 0.0
    %4189 = vmatprep.subr.mxu0 0.0
    %4190 = vmatpush1.msra.mxu0 0.0
    %4191 = vmatprep.subr.mxu0 0.0
    %4192 = vmatpush1.msra.mxu0 0.0
    %4193 = vmatprep.subr.mxu0 0.0
    %4194 = vmatpush1.msra.mxu0 %v4181
    %4195 = vmatprep.subr.mxu0 0.0
    %4196 = vmatpush1.msra.mxu0 %v4180
    %4197 = vmatprep.subr.mxu0 0.0
    %4198 = vmatpush1.msra.mxu0 %v4179
    %4199 = vmatprep.subr.mxu0 0.0
    %4200 = vmatpush1.msra.mxu0 %v4178
    %4201 = vmatprep.subr.mxu0 0.0
    %4202 = vmatpush1.msra.mxu0 %v4177
    %4203 = vmatprep.subr.mxu0 0.0
    %4204 = vmatpush1.msra.mxu0 %v4176
    %4205 = vmatprep.subr.mxu0 0.0
    %4206 = vmatpush1.msra.mxu0 %v4175
    %4207 = vmatprep.subr.mxu0 0.0
    %4208 = vmatpush1.msra.mxu0 %v4174
    %4209 = vmatprep.subr.mxu0 0.0
    %4210 = vmatpush1.msra.mxu0 %v4173
    %4211 = vmatprep.subr.mxu0 0.0
    %4212 = vmatpush1.msra.mxu0 %v4172
    %4213 = vmatprep.subr.mxu0 0.0
    %4214 = vmatpush1.msra.mxu0 %v4171
    %4215 = vmatprep.subr.mxu0 0.0
    %4216 = vmatpush1.msra.mxu0 %v4170
    %4217 = vmatprep.subr.mxu0 0.0
    %4218 = vmatpush2.msra.mxu0 0.0
    %4219 = vmatprep.subr.mxu0 0.0
    %4220 = vmatpush2.msra.mxu0 0.0
    %4221 = vmatprep.subr.mxu0 0.0
    %4222 = vmatpush2.msra.mxu0 0.0
    %4223 = vmatprep.subr.mxu0 0.0
    %4224 = vmatpush2.msra.mxu0 0.0
    %4225 = vmatprep.subr.mxu0 0.0
    %4226 = vmatpush2.msra.mxu0 0.0
    %4227 = vmatprep.subr.mxu0 0.0
    %4228 = vmatpush2.msra.mxu0 0.0
    %4229 = vmatprep.subr.mxu0 0.0
    %4230 = vmatpush2.msra.mxu0 0.0
    %4231 = vmatprep.subr.mxu0 0.0
    %4232 = vmatpush2.msra.mxu0 0.0
    %4233 = vmatprep.subr.mxu0 0.0
    %4234 = vmatpush2.msra.mxu0 0.0
    %4235 = vmatprep.subr.mxu0 0.0
    %4236 = vmatpush2.msra.mxu0 0.0
    %4237 = vmatprep.subr.mxu0 0.0
    %4238 = vmatpush2.msra.mxu0 0.0
    %4239 = vmatprep.subr.mxu0 0.0
    %4240 = vmatpush2.msra.mxu0 0.0
    %4241 = vmatprep.subr.mxu0 0.0
    %4242 = vmatpush2.msra.mxu0 0.0
    %4243 = vmatprep.subr.mxu0 0.0
    %4244 = vmatpush2.msra.mxu0 0.0
    %4245 = vmatprep.subr.mxu0 0.0
    %4246 = vmatpush2.msra.mxu0 0.0
    %4247 = vmatprep.subr.mxu0 0.0
    %4248 = vmatpush2.msra.mxu0 0.0
    %4249 = vmatprep.mubr.f32.mxu0 0.0
    %4250 = vmatmul.mubr.f32.gmra.mxu0 %v4183
    %v4251 = vpop.f32.mrf.mxu0
    %v4252 = vadd.f32 0.0, %v4251
    %v4253 = vpop.f32.mrf.mxu0
    %4254 = vdwg.mxu0
    %v4256 = vsel %vm144, %v4169, 0
    %4258 = vmatprep.subr.mxu0 0.0
    %4259 = vmatpush1.msra.mxu0 0.0
    %4260 = vmatprep.subr.mxu0 0.0
    %4261 = vmatpush1.msra.mxu0 0.0
    %4262 = vmatprep.subr.mxu0 0.0
    %4263 = vmatpush1.msra.mxu0 0.0
    %4264 = vmatprep.subr.mxu0 0.0
    %4265 = vmatpush1.msra.mxu0 0.0
    %4266 = vmatprep.subr.mxu0 0.0
    %4267 = vmatpush1.msra.mxu0 %v4181
    %4268 = vmatprep.subr.mxu0 0.0
    %4269 = vmatpush1.msra.mxu0 %v4180
    %4270 = vmatprep.subr.mxu0 0.0
    %4271 = vmatpush1.msra.mxu0 %v4179
    %4272 = vmatprep.subr.mxu0 0.0
    %4273 = vmatpush1.msra.mxu0 %v4178
    %4274 = vmatprep.subr.mxu0 0.0
    %4275 = vmatpush1.msra.mxu0 %v4177
    %4276 = vmatprep.subr.mxu0 0.0
    %4277 = vmatpush1.msra.mxu0 %v4176
    %4278 = vmatprep.subr.mxu0 0.0
    %4279 = vmatpush1.msra.mxu0 %v4175
    %4280 = vmatprep.subr.mxu0 0.0
    %4281 = vmatpush1.msra.mxu0 %v4174
    %4282 = vmatprep.subr.mxu0 0.0
    %4283 = vmatpush1.msra.mxu0 %v4173
    %4284 = vmatprep.subr.mxu0 0.0
    %4285 = vmatpush1.msra.mxu0 %v4172
    %4286 = vmatprep.subr.mxu0 0.0
    %4287 = vmatpush1.msra.mxu0 %v4171
    %4288 = vmatprep.subr.mxu0 0.0
    %4289 = vmatpush1.msra.mxu0 %v4170
    %4290 = vmatprep.subr.mxu0 0.0
    %4291 = vmatpush2.msra.mxu0 0.0
    %4292 = vmatprep.subr.mxu0 0.0
    %4293 = vmatpush2.msra.mxu0 0.0
    %4294 = vmatprep.subr.mxu0 0.0
    %4295 = vmatpush2.msra.mxu0 0.0
    %4296 = vmatprep.subr.mxu0 0.0
    %4297 = vmatpush2.msra.mxu0 0.0
    %4298 = vmatprep.subr.mxu0 0.0
    %4299 = vmatpush2.msra.mxu0 0.0
    %4300 = vmatprep.subr.mxu0 0.0
    %4301 = vmatpush2.msra.mxu0 0.0
    %4302 = vmatprep.subr.mxu0 0.0
    %4303 = vmatpush2.msra.mxu0 0.0
    %4304 = vmatprep.subr.mxu0 0.0
    %4305 = vmatpush2.msra.mxu0 0.0
    %4306 = vmatprep.subr.mxu0 0.0
    %4307 = vmatpush2.msra.mxu0 0.0
    %4308 = vmatprep.subr.mxu0 0.0
    %4309 = vmatpush2.msra.mxu0 0.0
    %4310 = vmatprep.subr.mxu0 0.0
    %4311 = vmatpush2.msra.mxu0 0.0
    %4312 = vmatprep.subr.mxu0 0.0
    %4313 = vmatpush2.msra.mxu0 0.0
    %4314 = vmatprep.subr.mxu0 0.0
    %4315 = vmatpush2.msra.mxu0 0.0
    %4316 = vmatprep.subr.mxu0 0.0
    %4317 = vmatpush2.msra.mxu0 0.0
    %4318 = vmatprep.subr.mxu0 0.0
    %4319 = vmatpush2.msra.mxu0 0.0
    %4320 = vmatprep.subr.mxu0 0.0
    %4321 = vmatpush2.msra.mxu0 0.0
    %4322 = vmatprep.mubr.f32.mxu0 0.0
    %4323 = vmatmul.mubr.f32.gmra.mxu0 %v4256
    %v4324 = vpop.f32.mrf.mxu0
    %v4325 = vadd.f32 0.0, %v4324
    %v4326 = vpop.f32.mrf.mxu0
    %4327 = vdwg.mxu0
    %v4328 = vrcp.pop 2048.0
    %v4329 = vmul.f32 %v4252, %v4328
    %v4330 = vmul.f32 %v4325, %v4328
    %v4331 = vmul.f32 %v4329, %v4329
    %v4332 = vsub.f32 %v4330, %v4331
    %v4333 = vmax.f32 %v4332, 0.0
    %v4334 = vadd.f32 %v4333, 1e-05
    %v4335 = vrsqrt.pop %v4334
    %v4336 = vld [vmem:[%s5] sm:$0x1]
    %v4337 = vmul.f32 %v4336, %v4335
    %v4338 = vld [vmem:[%s6] sm:$0x1]
    %v4339 = vmul.f32 %v4329, %v4337
    %v4340 = vsub.f32 %v4338, %v4339
    %v4341 = vld [vmem:[%s4] sm:$0xff]
    %vm4342 = vcmask 64512
    %v4344 = vsel %vm4342, %v4337, 0
    %4346 = vmatprep.subr.mxu0 0.0
    %4347 = vmatpush1.msra.mxu0 0.0
    %4348 = vmatprep.subr.mxu0 0.0
    %4349 = vmatpush1.msra.mxu0 0.0
    %4350 = vmatprep.subr.mxu0 0.0
    %4351 = vmatpush1.msra.mxu0 0.0
    %4352 = vmatprep.subr.mxu0 0.0
    %4353 = vmatpush1.msra.mxu0 0.0
    %4354 = vmatprep.subr.mxu0 0.0
    %4355 = vmatpush1.msra.mxu0 0.0
    %4356 = vmatprep.subr.mxu0 0.0
    %4357 = vmatpush1.msra.mxu0 0.0
    %4358 = vmatprep.subr.mxu0 0.0
    %4359 = vmatpush1.msra.mxu0 0.0
    %4360 = vmatprep.subr.mxu0 0.0
    %4361 = vmatpush1.msra.mxu0 0.0
    %4362 = vmatprep.subr.mxu0 0.0
    %4363 = vmatpush1.msra.mxu0 0.0
    %4364 = vmatprep.subr.mxu0 0.0
    %4365 = vmatpush1.msra.mxu0 0.0
    %4366 = vmatprep.subr.mxu0 0.0
    %4367 = vmatpush1.msra.mxu0 0.0
    %4368 = vmatprep.subr.mxu0 0.0
    %4369 = vmatpush1.msra.mxu0 0.0
    %4370 = vmatprep.subr.mxu0 0.0
    %4371 = vmatpush1.msra.mxu0 0.0
    %4372 = vmatprep.subr.mxu0 0.0
    %4373 = vmatpush1.msra.mxu0 0.0
    %4374 = vmatprep.subr.mxu0 0.0
    %4375 = vmatpush1.msra.mxu0 0.0
    %4376 = vmatprep.subr.mxu0 0.0
    %4377 = vmatpush1.msra.mxu0 %v4341
    %4378 = vmatprep.subr.mxu0 0.0
    %4379 = vmatpush2.msra.mxu0 0.0
    %4380 = vmatprep.subr.mxu0 0.0
    %4381 = vmatpush2.msra.mxu0 0.0
    %4382 = vmatprep.subr.mxu0 0.0
    %4383 = vmatpush2.msra.mxu0 0.0
    %4384 = vmatprep.subr.mxu0 0.0
    %4385 = vmatpush2.msra.mxu0 0.0
    %4386 = vmatprep.subr.mxu0 0.0
    %4387 = vmatpush2.msra.mxu0 0.0
    %4388 = vmatprep.subr.mxu0 0.0
    %4389 = vmatpush2.msra.mxu0 0.0
    %4390 = vmatprep.subr.mxu0 0.0
    %4391 = vmatpush2.msra.mxu0 0.0
    %4392 = vmatprep.subr.mxu0 0.0
    %4393 = vmatpush2.msra.mxu0 0.0
    %4394 = vmatprep.subr.mxu0 0.0
    %4395 = vmatpush2.msra.mxu0 0.0
    %4396 = vmatprep.subr.mxu0 0.0
    %4397 = vmatpush2.msra.mxu0 0.0
    %4398 = vmatprep.subr.mxu0 0.0
    %4399 = vmatpush2.msra.mxu0 0.0
    %4400 = vmatprep.subr.mxu0 0.0
    %4401 = vmatpush2.msra.mxu0 0.0
    %4402 = vmatprep.subr.mxu0 0.0
    %4403 = vmatpush2.msra.mxu0 0.0
    %4404 = vmatprep.subr.mxu0 0.0
    %4405 = vmatpush2.msra.mxu0 0.0
    %4406 = vmatprep.subr.mxu0 0.0
    %4407 = vmatpush2.msra.mxu0 0.0
    %4408 = vmatprep.subr.mxu0 0.0
    %4409 = vmatpush2.msra.mxu0 0.0
    %4410 = vmatprep.mubr.f32.mxu0 0.0
    %4411 = vmatmul.mubr.f32.gmra.mxu0 %v4344
    %v4412 = vpop.f32.mrf.mxu0
    %v4413 = vadd.f32 0.0, %v4412
    %v4414 = vpop.f32.mrf.mxu0
    %4415 = vdwg.mxu0
    %v4417 = vsel %vm4342, %v4340, 0
    %4419 = vmatprep.subr.mxu0 0.0
    %4420 = vmatpush1.msra.mxu0 0.0
    %4421 = vmatprep.subr.mxu0 0.0
    %4422 = vmatpush1.msra.mxu0 0.0
    %4423 = vmatprep.subr.mxu0 0.0
    %4424 = vmatpush1.msra.mxu0 0.0
    %4425 = vmatprep.subr.mxu0 0.0
    %4426 = vmatpush1.msra.mxu0 0.0
    %4427 = vmatprep.subr.mxu0 0.0
    %4428 = vmatpush1.msra.mxu0 0.0
    %4429 = vmatprep.subr.mxu0 0.0
    %4430 = vmatpush1.msra.mxu0 0.0
    %4431 = vmatprep.subr.mxu0 0.0
    %4432 = vmatpush1.msra.mxu0 0.0
    %4433 = vmatprep.subr.mxu0 0.0
    %4434 = vmatpush1.msra.mxu0 0.0
    %4435 = vmatprep.subr.mxu0 0.0
    %4436 = vmatpush1.msra.mxu0 0.0
    %4437 = vmatprep.subr.mxu0 0.0
    %4438 = vmatpush1.msra.mxu0 0.0
    %4439 = vmatprep.subr.mxu0 0.0
    %4440 = vmatpush1.msra.mxu0 0.0
    %4441 = vmatprep.subr.mxu0 0.0
    %4442 = vmatpush1.msra.mxu0 0.0
    %4443 = vmatprep.subr.mxu0 0.0
    %4444 = vmatpush1.msra.mxu0 0.0
    %4445 = vmatprep.subr.mxu0 0.0
    %4446 = vmatpush1.msra.mxu0 0.0
    %4447 = vmatprep.subr.mxu0 0.0
    %4448 = vmatpush1.msra.mxu0 0.0
    %4449 = vmatprep.subr.mxu0 0.0
    %4450 = vmatpush1.msra.mxu0 %v4341
    %4451 = vmatprep.subr.mxu0 0.0
    %4452 = vmatpush2.msra.mxu0 0.0
    %4453 = vmatprep.subr.mxu0 0.0
    %4454 = vmatpush2.msra.mxu0 0.0
    %4455 = vmatprep.subr.mxu0 0.0
    %4456 = vmatpush2.msra.mxu0 0.0
    %4457 = vmatprep.subr.mxu0 0.0
    %4458 = vmatpush2.msra.mxu0 0.0
    %4459 = vmatprep.subr.mxu0 0.0
    %4460 = vmatpush2.msra.mxu0 0.0
    %4461 = vmatprep.subr.mxu0 0.0
    %4462 = vmatpush2.msra.mxu0 0.0
    %4463 = vmatprep.subr.mxu0 0.0
    %4464 = vmatpush2.msra.mxu0 0.0
    %4465 = vmatprep.subr.mxu0 0.0
    %4466 = vmatpush2.msra.mxu0 0.0
    %4467 = vmatprep.subr.mxu0 0.0
    %4468 = vmatpush2.msra.mxu0 0.0
    %4469 = vmatprep.subr.mxu0 0.0
    %4470 = vmatpush2.msra.mxu0 0.0
    %4471 = vmatprep.subr.mxu0 0.0
    %4472 = vmatpush2.msra.mxu0 0.0
    %4473 = vmatprep.subr.mxu0 0.0
    %4474 = vmatpush2.msra.mxu0 0.0
    %4475 = vmatprep.subr.mxu0 0.0
    %4476 = vmatpush2.msra.mxu0 0.0
    %4477 = vmatprep.subr.mxu0 0.0
    %4478 = vmatpush2.msra.mxu0 0.0
    %4479 = vmatprep.subr.mxu0 0.0
    %4480 = vmatpush2.msra.mxu0 0.0
    %4481 = vmatprep.subr.mxu0 0.0
    %4482 = vmatpush2.msra.mxu0 0.0
    %4483 = vmatprep.mubr.f32.mxu0 0.0
    %4484 = vmatmul.mubr.f32.gmra.mxu0 %v4417
    %v4485 = vpop.f32.mrf.mxu0
    %v4486 = vadd.f32 0.0, %v4485
    %v4487 = vpop.f32.mrf.mxu0
    %4488 = vdwg.mxu0
    %v4489 = vlaneseq
    %v4490 = vshrl.u32 %v4489, 7
    %v4491 = vsub.s32 0, %v4490
    %v4492 = vrot.slane %v4413, %v4491
    %v4493 = vmul.f32 %v3867, %v4492
    %v4494 = vlaneseq
    %v4495 = vshrl.u32 %v4494, 7
    %v4496 = vsub.s32 0, %v4495
    %v4497 = vrot.slane %v4486, %v4496
    %v4498 = vadd.f32 %v4493, %v4497
    %v4499 = vmul.f32 %v3886, %v4492
    %v4500 = vadd.f32 %v4499, %v4497
    %v4501 = vmul.f32 %v3905, %v4492
    %v4502 = vadd.f32 %v4501, %v4497
    %v4503 = vmul.f32 %v3924, %v4492
    %v4504 = vadd.f32 %v4503, %v4497
    %v4505 = vmul.f32 %v3943, %v4492
    %v4506 = vadd.f32 %v4505, %v4497
    %v4507 = vmul.f32 %v3962, %v4492
    %v4508 = vadd.f32 %v4507, %v4497
    %v4509 = vmul.f32 %v3981, %v4492
    %v4510 = vadd.f32 %v4509, %v4497
    %v4511 = vmul.f32 %v4000, %v4492
    %v4512 = vadd.f32 %v4511, %v4497
    %v4513 = vmax.f32 %v4498, %v4500
    %v4514 = vmax.f32 %v4502, %v4504
    %v4515 = vmax.f32 %v4513, %v4514
    %v4516 = vmax.f32 %v4506, %v4508
    %v4517 = vmax.f32 %v4510, %v4512
    %v4518 = vmax.f32 %v4516, %v4517
    %4519 = vst.msk [vmem:[#allocation2] sm:$0xff] %vm144, 0.0
    %vm4520 = vcmask 779264
    %4521 = vst.msk [vmem:[#allocation2 + $0x8] sm:$0x3] %vm4520, 0.0
    %s4522 = scalar_lea.vmem [#allocation2], 16
    %4523 = vst.msk [vmem:[%s4522] sm:$0xff] %vm144, 0.0
    %4524 = vst.msk [vmem:[%s4522 + $0x8] sm:$0x3] %vm4520, 0.0
    %4525 = vst.msk [vmem:[#allocation2 + $0x1] sm:$0xff] %vm144, %v4515
    %4526 = vst.msk [vmem:[%s4522 + $0x1] sm:$0xff] %vm144, %v4518
    %v4527 = vmul.f32 %v4019, %v4492
    %v4528 = vadd.f32 %v4527, %v4497
    %v4529 = vmul.f32 %v4038, %v4492
    %v4530 = vadd.f32 %v4529, %v4497
    %v4531 = vmul.f32 %v4057, %v4492
    %v4532 = vadd.f32 %v4531, %v4497
    %v4533 = vmul.f32 %v4076, %v4492
    %v4534 = vadd.f32 %v4533, %v4497
    %v4535 = vmul.f32 %v4095, %v4492
    %v4536 = vadd.f32 %v4535, %v4497
    %v4537 = vmul.f32 %v4114, %v4492
    %v4538 = vadd.f32 %v4537, %v4497
    %v4539 = vmul.f32 %v4133, %v4492
    %v4540 = vadd.f32 %v4539, %v4497
    %v4541 = vmul.f32 %v4152, %v4492
    %v4542 = vadd.f32 %v4541, %v4497
    %v4543 = vmax.f32 %v4528, %v4530
    %v4544 = vmax.f32 %v4532, %v4534
    %v4545 = vmax.f32 %v4543, %v4544
    %v4546 = vmax.f32 %v4536, %v4538
    %v4547 = vmax.f32 %v4540, %v4542
    %v4548 = vmax.f32 %v4546, %v4547
    %s4549 = scalar_lea.vmem [#allocation2], 32
    %4550 = vst.msk [vmem:[%s4549] sm:$0xff] %vm144, 0.0
    %4551 = vst.msk [vmem:[%s4549 + $0x8] sm:$0x3] %vm4520, 0.0
    %s4552 = scalar_lea.vmem [#allocation2], 48
    %4553 = vst.msk [vmem:[%s4552] sm:$0xff] %vm144, 0.0
    %4554 = vst.msk [vmem:[%s4552 + $0x8] sm:$0x3] %vm4520, 0.0
    %4555 = vst.msk [vmem:[%s4549 + $0x1] sm:$0xff] %vm144, %v4545
    %4556 = vst.msk [vmem:[%s4552 + $0x1] sm:$0xff] %vm144, %v4548
    %v4557 = vld [vmem:[%s7] sm:$0xf]
    %v4558 = vld [vmem:[%s7 + $0x4] sm:$0xf]
    %v4559 = vld [vmem:[%s7 + $0x8] sm:$0xf]
    %v4560 = vld [vmem:[%s7 + $0xc] sm:$0xf]
    %v4561 = vld [vmem:[%s7 + $0x10] sm:$0xf]
    %v4562 = vld [vmem:[%s7 + $0x14] sm:$0xf]
    %v4563 = vld [vmem:[%s7 + $0x18] sm:$0xf]
    %v4564 = vld [vmem:[%s7 + $0x1c] sm:$0xf]
    %v4565 = vld [vmem:[%s7 + $0x20] sm:$0xf]
    %v4566 = vld [vmem:[%s7 + $0x24] sm:$0xf]
    %v4567 = vld [vmem:[%s7 + $0x28] sm:$0xf]
    %v4568 = vld [vmem:[%s7 + $0x2c] sm:$0xf]
    %s4569 = scalar_lea.vmem %s7, 48
    %v4570 = vld [vmem:[%s4569] sm:$0xf]
    %v4571 = vld [vmem:[%s4569 + $0x4] sm:$0xf]
    %v4572 = vld [vmem:[%s4569 + $0x8] sm:$0xf]
    %v4573 = vld [vmem:[%s4569 + $0xc] sm:$0xf]
    %v4574 = vld [vmem:[%s4569 + $0x10] sm:$0xf]
    %v4575 = vld [vmem:[%s4569 + $0x14] sm:$0xf]
    %v4576 = vld [vmem:[%s4569 + $0x18] sm:$0xf]
    %v4577 = vld [vmem:[%s4569 + $0x1c] sm:$0xf]
    %v4578 = vld [vmem:[%s4569 + $0x20] sm:$0xf]
    %v4579 = vld [vmem:[%s4569 + $0x24] sm:$0xf]
    %v4580 = vld [vmem:[%s4569 + $0x28] sm:$0xf]
    %v4581 = vld [vmem:[%s4569 + $0x2c] sm:$0xf]
    %v4582 = vld [vmem:[#allocation2] sm:$0xff]
    %v4583 = vpack.c.bf16 %v4582, %v4582
    %v4584 = vld [vmem:[%s4522] sm:$0xff]
    %v4585 = vpack.c.bf16 %v4584, %v4584
    %v4586 = vld [vmem:[%s4549] sm:$0xff]
    %v4587 = vpack.c.bf16 %v4586, %v4586
    %v4588 = vld [vmem:[%s4552] sm:$0xff]
    %v4589 = vpack.c.bf16 %v4588, %v4588
    %s4590 = scalar_lea.vmem %s7, 96
    %v4591 = vld [vmem:[%s4590] sm:$0xf]
    %v4592 = vld [vmem:[%s4590 + $0x4] sm:$0xf]
    %v4593 = vld [vmem:[%s4590 + $0x8] sm:$0xf]
    %v4594 = vld [vmem:[%s4590 + $0xc] sm:$0xf]
    %v4595 = vld [vmem:[%s4590 + $0x10] sm:$0xf]
    %v4596 = vld [vmem:[%s4590 + $0x14] sm:$0xf]
    %v4597 = vld [vmem:[%s4590 + $0x18] sm:$0xf]
    %v4598 = vld [vmem:[%s4590 + $0x1c] sm:$0xf]
    %v4599 = vld [vmem:[%s4590 + $0x20] sm:$0xf]
    %v4600 = vld [vmem:[%s4590 + $0x24] sm:$0xf]
    %v4601 = vld [vmem:[%s4590 + $0x28] sm:$0xf]
    %v4602 = vld [vmem:[%s4590 + $0x2c] sm:$0xf]
    %s4603 = scalar_lea.vmem %s7, 144
    %v4604 = vld [vmem:[%s4603] sm:$0xf]
    %v4605 = vld [vmem:[%s4603 + $0x4] sm:$0xf]
    %v4606 = vld [vmem:[%s4603 + $0x8] sm:$0xf]
    %v4607 = vld [vmem:[%s4603 + $0xc] sm:$0xf]
    %v4608 = vld [vmem:[%s4603 + $0x10] sm:$0xf]
    %v4609 = vld [vmem:[%s4603 + $0x14] sm:$0xf]
    %v4610 = vld [vmem:[%s4603 + $0x18] sm:$0xf]
    %v4611 = vld [vmem:[%s4603 + $0x1c] sm:$0xf]
    %v4612 = vld [vmem:[%s4603 + $0x20] sm:$0xf]
    %v4613 = vld [vmem:[%s4603 + $0x24] sm:$0xf]
    %v4614 = vld [vmem:[%s4603 + $0x28] sm:$0xf]
    %v4615 = vld [vmem:[%s4603 + $0x2c] sm:$0xf]
    %v4628 = vunpack.c.l.b16 %v4591
    %v4629 = vunpack.c.l.b16 %v4592
    %v4630 = vunpack.c.l.b16 %v4593
    %v4631 = vunpack.c.l.b16 %v4594
    %v4632 = vunpack.c.l.b16 %v4595
    %v4633 = vunpack.c.l.b16 %v4596
    %v4634 = vunpack.c.l.b16 %v4597
    %v4635 = vunpack.c.l.b16 %v4598
    %v4636 = vunpack.c.l.b16 %v4599
    %v4637 = vunpack.c.l.b16 %v4600
    %v4638 = vunpack.c.l.b16 %v4601
    %v4639 = vunpack.c.l.b16 %v4602
    %v4640 = vpack.c.b16 %v4629, %v4628
    %v4641 = vpack.c.b16 %v4631, %v4630
    %v4642 = vpack.c.b16 %v4633, %v4632
    %v4643 = vpack.c.b16 %v4635, %v4634
    %v4644 = vpack.c.b16 %v4637, %v4636
    %v4645 = vpack.c.b16 %v4639, %v4638
    %v4653 = vsel %vm144, %v4585, 0
    %4655 = vmatprep.subr.bf16.mxu0 0
    %4656 = vmatpush1.bf16.msra.mxu0 0
    %4657 = vmatprep.subr.bf16.mxu0 0
    %4658 = vmatpush1.bf16.msra.mxu0 0
    %4659 = vmatprep.subr.bf16.mxu0 0
    %4660 = vmatpush1.bf16.msra.mxu0 %v4645
    %4661 = vmatprep.subr.bf16.mxu0 0
    %4662 = vmatpush1.bf16.msra.mxu0 %v4644
    %4663 = vmatprep.subr.bf16.mxu0 0
    %4664 = vmatpush1.bf16.msra.mxu0 %v4643
    %4665 = vmatprep.subr.bf16.mxu0 0
    %4666 = vmatpush1.bf16.msra.mxu0 %v4642
    %4667 = vmatprep.subr.bf16.mxu0 0
    %4668 = vmatpush1.bf16.msra.mxu0 %v4641
    %4669 = vmatprep.subr.bf16.mxu0 0
    %4670 = vmatpush1.bf16.msra.mxu0 %v4640
    %4671 = vmatprep.subr.bf16.mxu0 0
    %4672 = vmatpush2.bf16.msra.mxu0 0
    %4673 = vmatprep.subr.bf16.mxu0 0
    %4674 = vmatpush2.bf16.msra.mxu0 0
    %4675 = vmatprep.subr.bf16.mxu0 0
    %4676 = vmatpush2.bf16.msra.mxu0 0
    %4677 = vmatprep.subr.bf16.mxu0 0
    %4678 = vmatpush2.bf16.msra.mxu0 0
    %4679 = vmatprep.subr.bf16.mxu0 0
    %4680 = vmatpush2.bf16.msra.mxu0 0
    %4681 = vmatprep.subr.bf16.mxu0 0
    %4682 = vmatpush2.bf16.msra.mxu0 0
    %4683 = vmatprep.subr.bf16.mxu0 0
    %4684 = vmatpush2.bf16.msra.mxu0 0
    %4685 = vmatprep.subr.bf16.mxu0 0
    %4686 = vmatpush2.bf16.msra.mxu0 0
    %4687 = vmatprep.mubr.bf16.mxu0 0
    %4688 = vmatmul.mubr.bf16.gmra.mxu0 %v4653
    %v4689 = vpop.f32.mrf.mxu0
    %v4690 = vadd.f32 0.0, %v4689
    %v4691 = vpop.f32.mrf.mxu0
    %v4692 = vpop.f32.mrf.mxu0
    %v4693 = vpop.f32.mrf.mxu0
    %4694 = vdwg.mxu0
    %v4707 = vunpack.c.l.b16 %v4557
    %v4708 = vunpack.c.l.b16 %v4558
    %v4709 = vunpack.c.l.b16 %v4559
    %v4710 = vunpack.c.l.b16 %v4560
    %v4711 = vunpack.c.l.b16 %v4561
    %v4712 = vunpack.c.l.b16 %v4562
    %v4713 = vunpack.c.l.b16 %v4563
    %v4714 = vunpack.c.l.b16 %v4564
    %v4715 = vunpack.c.l.b16 %v4565
    %v4716 = vunpack.c.l.b16 %v4566
    %v4717 = vunpack.c.l.b16 %v4567
    %v4718 = vunpack.c.l.b16 %v4568
    %v4719 = vpack.c.b16 %v4708, %v4707
    %v4720 = vpack.c.b16 %v4710, %v4709
    %v4721 = vpack.c.b16 %v4712, %v4711
    %v4722 = vpack.c.b16 %v4714, %v4713
    %v4723 = vpack.c.b16 %v4716, %v4715
    %v4724 = vpack.c.b16 %v4718, %v4717
    %v4732 = vsel %vm144, %v4583, 0
    %4734 = vmatprep.subr.bf16.mxu0 0
    %4735 = vmatpush1.bf16.msra.mxu0 0
    %4736 = vmatprep.subr.bf16.mxu0 0
    %4737 = vmatpush1.bf16.msra.mxu0 0
    %4738 = vmatprep.subr.bf16.mxu0 0
    %4739 = vmatpush1.bf16.msra.mxu0 %v4724
    %4740 = vmatprep.subr.bf16.mxu0 0
    %4741 = vmatpush1.bf16.msra.mxu0 %v4723
    %4742 = vmatprep.subr.bf16.mxu0 0
    %4743 = vmatpush1.bf16.msra.mxu0 %v4722
    %4744 = vmatprep.subr.bf16.mxu0 0
    %4745 = vmatpush1.bf16.msra.mxu0 %v4721
    %4746 = vmatprep.subr.bf16.mxu0 0
    %4747 = vmatpush1.bf16.msra.mxu0 %v4720
    %4748 = vmatprep.subr.bf16.mxu0 0
    %4749 = vmatpush1.bf16.msra.mxu0 %v4719
    %4750 = vmatprep.subr.bf16.mxu0 0
    %4751 = vmatpush2.bf16.msra.mxu0 0
    %4752 = vmatprep.subr.bf16.mxu0 0
    %4753 = vmatpush2.bf16.msra.mxu0 0
    %4754 = vmatprep.subr.bf16.mxu0 0
    %4755 = vmatpush2.bf16.msra.mxu0 0
    %4756 = vmatprep.subr.bf16.mxu0 0
    %4757 = vmatpush2.bf16.msra.mxu0 0
    %4758 = vmatprep.subr.bf16.mxu0 0
    %4759 = vmatpush2.bf16.msra.mxu0 0
    %4760 = vmatprep.subr.bf16.mxu0 0
    %4761 = vmatpush2.bf16.msra.mxu0 0
    %4762 = vmatprep.subr.bf16.mxu0 0
    %4763 = vmatpush2.bf16.msra.mxu0 0
    %4764 = vmatprep.subr.bf16.mxu0 0
    %4765 = vmatpush2.bf16.msra.mxu0 0
    %4766 = vmatprep.mubr.bf16.mxu0 0
    %4767 = vmatmul.mubr.bf16.gmra.mxu0 %v4732
    %v4768 = vpop.f32.mrf.mxu0
    %v4769 = vadd.f32 %v4690, %v4768
    %v4770 = vpop.f32.mrf.mxu0
    %v4771 = vpop.f32.mrf.mxu0
    %v4772 = vpop.f32.mrf.mxu0
    %4773 = vdwg.mxu0
    %v4786 = vunpack.c.l.b16 %v4604
    %v4787 = vunpack.c.l.b16 %v4605
    %v4788 = vunpack.c.l.b16 %v4606
    %v4789 = vunpack.c.l.b16 %v4607
    %v4790 = vunpack.c.l.b16 %v4608
    %v4791 = vunpack.c.l.b16 %v4609
    %v4792 = vunpack.c.l.b16 %v4610
    %v4793 = vunpack.c.l.b16 %v4611
    %v4794 = vunpack.c.l.b16 %v4612
    %v4795 = vunpack.c.l.b16 %v4613
    %v4796 = vunpack.c.l.b16 %v4614
    %v4797 = vunpack.c.l.b16 %v4615
    %v4798 = vpack.c.b16 %v4787, %v4786
    %v4799 = vpack.c.b16 %v4789, %v4788
    %v4800 = vpack.c.b16 %v4791, %v4790
    %v4801 = vpack.c.b16 %v4793, %v4792
    %v4802 = vpack.c.b16 %v4795, %v4794
    %v4803 = vpack.c.b16 %v4797, %v4796
    %4810 = vmatprep.subr.bf16.mxu0 0
    %4811 = vmatpush1.bf16.msra.mxu0 0
    %4812 = vmatprep.subr.bf16.mxu0 0
    %4813 = vmatpush1.bf16.msra.mxu0 0
    %4814 = vmatprep.subr.bf16.mxu0 0
    %4815 = vmatpush1.bf16.msra.mxu0 %v4803
    %4816 = vmatprep.subr.bf16.mxu0 0
    %4817 = vmatpush1.bf16.msra.mxu0 %v4802
    %4818 = vmatprep.subr.bf16.mxu0 0
    %4819 = vmatpush1.bf16.msra.mxu0 %v4801
    %4820 = vmatprep.subr.bf16.mxu0 0
    %4821 = vmatpush1.bf16.msra.mxu0 %v4800
    %4822 = vmatprep.subr.bf16.mxu0 0
    %4823 = vmatpush1.bf16.msra.mxu0 %v4799
    %4824 = vmatprep.subr.bf16.mxu0 0
    %4825 = vmatpush1.bf16.msra.mxu0 %v4798
    %4826 = vmatprep.subr.bf16.mxu0 0
    %4827 = vmatpush2.bf16.msra.mxu0 0
    %4828 = vmatprep.subr.bf16.mxu0 0
    %4829 = vmatpush2.bf16.msra.mxu0 0
    %4830 = vmatprep.subr.bf16.mxu0 0
    %4831 = vmatpush2.bf16.msra.mxu0 0
    %4832 = vmatprep.subr.bf16.mxu0 0
    %4833 = vmatpush2.bf16.msra.mxu0 0
    %4834 = vmatprep.subr.bf16.mxu0 0
    %4835 = vmatpush2.bf16.msra.mxu0 0
    %4836 = vmatprep.subr.bf16.mxu0 0
    %4837 = vmatpush2.bf16.msra.mxu0 0
    %4838 = vmatprep.subr.bf16.mxu0 0
    %4839 = vmatpush2.bf16.msra.mxu0 0
    %4840 = vmatprep.subr.bf16.mxu0 0
    %4841 = vmatpush2.bf16.msra.mxu0 0
    %4842 = vmatprep.mubr.bf16.mxu0 0
    %4843 = vmatmul.mubr.bf16.gmra.mxu0 %v4653
    %v4844 = vpop.f32.mrf.mxu0
    %v4845 = vadd.f32 0.0, %v4844
    %v4846 = vpop.f32.mrf.mxu0
    %v4847 = vpop.f32.mrf.mxu0
    %v4848 = vpop.f32.mrf.mxu0
    %4849 = vdwg.mxu0
    %v4862 = vunpack.c.l.b16 %v4570
    %v4863 = vunpack.c.l.b16 %v4571
    %v4864 = vunpack.c.l.b16 %v4572
    %v4865 = vunpack.c.l.b16 %v4573
    %v4866 = vunpack.c.l.b16 %v4574
    %v4867 = vunpack.c.l.b16 %v4575
    %v4868 = vunpack.c.l.b16 %v4576
    %v4869 = vunpack.c.l.b16 %v4577
    %v4870 = vunpack.c.l.b16 %v4578
    %v4871 = vunpack.c.l.b16 %v4579
    %v4872 = vunpack.c.l.b16 %v4580
    %v4873 = vunpack.c.l.b16 %v4581
    %v4874 = vpack.c.b16 %v4863, %v4862
    %v4875 = vpack.c.b16 %v4865, %v4864
    %v4876 = vpack.c.b16 %v4867, %v4866
    %v4877 = vpack.c.b16 %v4869, %v4868
    %v4878 = vpack.c.b16 %v4871, %v4870
    %v4879 = vpack.c.b16 %v4873, %v4872
    %4886 = vmatprep.subr.bf16.mxu0 0
    %4887 = vmatpush1.bf16.msra.mxu0 0
    %4888 = vmatprep.subr.bf16.mxu0 0
    %4889 = vmatpush1.bf16.msra.mxu0 0
    %4890 = vmatprep.subr.bf16.mxu0 0
    %4891 = vmatpush1.bf16.msra.mxu0 %v4879
    %4892 = vmatprep.subr.bf16.mxu0 0
    %4893 = vmatpush1.bf16.msra.mxu0 %v4878
    %4894 = vmatprep.subr.bf16.mxu0 0
    %4895 = vmatpush1.bf16.msra.mxu0 %v4877
    %4896 = vmatprep.subr.bf16.mxu0 0
    %4897 = vmatpush1.bf16.msra.mxu0 %v4876
    %4898 = vmatprep.subr.bf16.mxu0 0
    %4899 = vmatpush1.bf16.msra.mxu0 %v4875
    %4900 = vmatprep.subr.bf16.mxu0 0
    %4901 = vmatpush1.bf16.msra.mxu0 %v4874
    %4902 = vmatprep.subr.bf16.mxu0 0
    %4903 = vmatpush2.bf16.msra.mxu0 0
    %4904 = vmatprep.subr.bf16.mxu0 0
    %4905 = vmatpush2.bf16.msra.mxu0 0
    %4906 = vmatprep.subr.bf16.mxu0 0
    %4907 = vmatpush2.bf16.msra.mxu0 0
    %4908 = vmatprep.subr.bf16.mxu0 0
    %4909 = vmatpush2.bf16.msra.mxu0 0
    %4910 = vmatprep.subr.bf16.mxu0 0
    %4911 = vmatpush2.bf16.msra.mxu0 0
    %4912 = vmatprep.subr.bf16.mxu0 0
    %4913 = vmatpush2.bf16.msra.mxu0 0
    %4914 = vmatprep.subr.bf16.mxu0 0
    %4915 = vmatpush2.bf16.msra.mxu0 0
    %4916 = vmatprep.subr.bf16.mxu0 0
    %4917 = vmatpush2.bf16.msra.mxu0 0
    %4918 = vmatprep.mubr.bf16.mxu0 0
    %4919 = vmatmul.mubr.bf16.gmra.mxu0 %v4732
    %v4920 = vpop.f32.mrf.mxu0
    %v4921 = vadd.f32 %v4845, %v4920
    %v4922 = vpop.f32.mrf.mxu0
    %v4923 = vpop.f32.mrf.mxu0
    %v4924 = vpop.f32.mrf.mxu0
    %4925 = vdwg.mxu0
    %v4926 = vld [vmem:[#allocation2 + $0x1] sm:$0xff]
    %v4927 = vpack.c.bf16 %v4926, %v4926
    %v4929 = vsel %vm144, %v4927, 0
    %4931 = vmatprep.subr.bf16.mxu0 0
    %4932 = vmatpush1.bf16.msra.mxu0 0
    %4933 = vmatprep.subr.bf16.mxu0 0
    %4934 = vmatpush1.bf16.msra.mxu0 0
    %4935 = vmatprep.subr.bf16.mxu0 0
    %4936 = vmatpush1.bf16.msra.mxu0 %v4645
    %4937 = vmatprep.subr.bf16.mxu0 0
    %4938 = vmatpush1.bf16.msra.mxu0 %v4644
    %4939 = vmatprep.subr.bf16.mxu0 0
    %4940 = vmatpush1.bf16.msra.mxu0 %v4643
    %4941 = vmatprep.subr.bf16.mxu0 0
    %4942 = vmatpush1.bf16.msra.mxu0 %v4642
    %4943 = vmatprep.subr.bf16.mxu0 0
    %4944 = vmatpush1.bf16.msra.mxu0 %v4641
    %4945 = vmatprep.subr.bf16.mxu0 0
    %4946 = vmatpush1.bf16.msra.mxu0 %v4640
    %4947 = vmatprep.subr.bf16.mxu0 0
    %4948 = vmatpush2.bf16.msra.mxu0 0
    %4949 = vmatprep.subr.bf16.mxu0 0
    %4950 = vmatpush2.bf16.msra.mxu0 0
    %4951 = vmatprep.subr.bf16.mxu0 0
    %4952 = vmatpush2.bf16.msra.mxu0 0
    %4953 = vmatprep.subr.bf16.mxu0 0
    %4954 = vmatpush2.bf16.msra.mxu0 0
    %4955 = vmatprep.subr.bf16.mxu0 0
    %4956 = vmatpush2.bf16.msra.mxu0 0
    %4957 = vmatprep.subr.bf16.mxu0 0
    %4958 = vmatpush2.bf16.msra.mxu0 0
    %4959 = vmatprep.subr.bf16.mxu0 0
    %4960 = vmatpush2.bf16.msra.mxu0 0
    %4961 = vmatprep.subr.bf16.mxu0 0
    %4962 = vmatpush2.bf16.msra.mxu0 0
    %4963 = vmatprep.mubr.bf16.mxu0 0
    %4964 = vmatmul.mubr.bf16.gmra.mxu0 %v4929
    %v4965 = vpop.f32.mrf.mxu0
    %v4966 = vadd.f32 0.0, %v4965
    %v4967 = vpop.f32.mrf.mxu0
    %v4968 = vpop.f32.mrf.mxu0
    %v4969 = vpop.f32.mrf.mxu0
    %4970 = vdwg.mxu0
    %4971 = vmatprep.subr.bf16.mxu0 0
    %4972 = vmatpush1.bf16.msra.mxu0 0
    %4973 = vmatprep.subr.bf16.mxu0 0
    %4974 = vmatpush1.bf16.msra.mxu0 0
    %4975 = vmatprep.subr.bf16.mxu0 0
    %4976 = vmatpush1.bf16.msra.mxu0 %v4724
    %4977 = vmatprep.subr.bf16.mxu0 0
    %4978 = vmatpush1.bf16.msra.mxu0 %v4723
    %4979 = vmatprep.subr.bf16.mxu0 0
    %4980 = vmatpush1.bf16.msra.mxu0 %v4722
    %4981 = vmatprep.subr.bf16.mxu0 0
    %4982 = vmatpush1.bf16.msra.mxu0 %v4721
    %4983 = vmatprep.subr.bf16.mxu0 0
    %4984 = vmatpush1.bf16.msra.mxu0 %v4720
    %4985 = vmatprep.subr.bf16.mxu0 0
    %4986 = vmatpush1.bf16.msra.mxu0 %v4719
    %4987 = vmatprep.subr.bf16.mxu0 0
    %4988 = vmatpush2.bf16.msra.mxu0 0
    %4989 = vmatprep.subr.bf16.mxu0 0
    %4990 = vmatpush2.bf16.msra.mxu0 0
    %4991 = vmatprep.subr.bf16.mxu0 0
    %4992 = vmatpush2.bf16.msra.mxu0 0
    %4993 = vmatprep.subr.bf16.mxu0 0
    %4994 = vmatpush2.bf16.msra.mxu0 0
    %4995 = vmatprep.subr.bf16.mxu0 0
    %4996 = vmatpush2.bf16.msra.mxu0 0
    %4997 = vmatprep.subr.bf16.mxu0 0
    %4998 = vmatpush2.bf16.msra.mxu0 0
    %4999 = vmatprep.subr.bf16.mxu0 0
    %5000 = vmatpush2.bf16.msra.mxu0 0
    %5001 = vmatprep.subr.bf16.mxu0 0
    %5002 = vmatpush2.bf16.msra.mxu0 0
    %5003 = vmatprep.mubr.bf16.mxu0 0
    %5004 = vmatmul.mubr.bf16.gmra.mxu0 %v4653
    %v5005 = vpop.f32.mrf.mxu0
    %v5006 = vadd.f32 %v4966, %v5005
    %v5007 = vpop.f32.mrf.mxu0
    %v5008 = vpop.f32.mrf.mxu0
    %v5009 = vpop.f32.mrf.mxu0
    %5010 = vdwg.mxu0
    %5011 = vmatprep.subr.bf16.mxu0 0
    %5012 = vmatpush1.bf16.msra.mxu0 0
    %5013 = vmatprep.subr.bf16.mxu0 0
    %5014 = vmatpush1.bf16.msra.mxu0 0
    %5015 = vmatprep.subr.bf16.mxu0 0
    %5016 = vmatpush1.bf16.msra.mxu0 %v4803
    %5017 = vmatprep.subr.bf16.mxu0 0
    %5018 = vmatpush1.bf16.msra.mxu0 %v4802
    %5019 = vmatprep.subr.bf16.mxu0 0
    %5020 = vmatpush1.bf16.msra.mxu0 %v4801
    %5021 = vmatprep.subr.bf16.mxu0 0
    %5022 = vmatpush1.bf16.msra.mxu0 %v4800
    %5023 = vmatprep.subr.bf16.mxu0 0
    %5024 = vmatpush1.bf16.msra.mxu0 %v4799
    %5025 = vmatprep.subr.bf16.mxu0 0
    %5026 = vmatpush1.bf16.msra.mxu0 %v4798
    %5027 = vmatprep.subr.bf16.mxu0 0
    %5028 = vmatpush2.bf16.msra.mxu0 0
    %5029 = vmatprep.subr.bf16.mxu0 0
    %5030 = vmatpush2.bf16.msra.mxu0 0
    %5031 = vmatprep.subr.bf16.mxu0 0
    %5032 = vmatpush2.bf16.msra.mxu0 0
    %5033 = vmatprep.subr.bf16.mxu0 0
    %5034 = vmatpush2.bf16.msra.mxu0 0
    %5035 = vmatprep.subr.bf16.mxu0 0
    %5036 = vmatpush2.bf16.msra.mxu0 0
    %5037 = vmatprep.subr.bf16.mxu0 0
    %5038 = vmatpush2.bf16.msra.mxu0 0
    %5039 = vmatprep.subr.bf16.mxu0 0
    %5040 = vmatpush2.bf16.msra.mxu0 0
    %5041 = vmatprep.subr.bf16.mxu0 0
    %5042 = vmatpush2.bf16.msra.mxu0 0
    %5043 = vmatprep.mubr.bf16.mxu0 0
    %5044 = vmatmul.mubr.bf16.gmra.mxu0 %v4929
    %v5045 = vpop.f32.mrf.mxu0
    %v5046 = vadd.f32 0.0, %v5045
    %v5047 = vpop.f32.mrf.mxu0
    %v5048 = vpop.f32.mrf.mxu0
    %v5049 = vpop.f32.mrf.mxu0
    %5050 = vdwg.mxu0
    %5051 = vmatprep.subr.bf16.mxu0 0
    %5052 = vmatpush1.bf16.msra.mxu0 0
    %5053 = vmatprep.subr.bf16.mxu0 0
    %5054 = vmatpush1.bf16.msra.mxu0 0
    %5055 = vmatprep.subr.bf16.mxu0 0
    %5056 = vmatpush1.bf16.msra.mxu0 %v4879
    %5057 = vmatprep.subr.bf16.mxu0 0
    %5058 = vmatpush1.bf16.msra.mxu0 %v4878
    %5059 = vmatprep.subr.bf16.mxu0 0
    %5060 = vmatpush1.bf16.msra.mxu0 %v4877
    %5061 = vmatprep.subr.bf16.mxu0 0
    %5062 = vmatpush1.bf16.msra.mxu0 %v4876
    %5063 = vmatprep.subr.bf16.mxu0 0
    %5064 = vmatpush1.bf16.msra.mxu0 %v4875
    %5065 = vmatprep.subr.bf16.mxu0 0
    %5066 = vmatpush1.bf16.msra.mxu0 %v4874
    %5067 = vmatprep.subr.bf16.mxu0 0
    %5068 = vmatpush2.bf16.msra.mxu0 0
    %5069 = vmatprep.subr.bf16.mxu0 0
    %5070 = vmatpush2.bf16.msra.mxu0 0
    %5071 = vmatprep.subr.bf16.mxu0 0
    %5072 = vmatpush2.bf16.msra.mxu0 0
    %5073 = vmatprep.subr.bf16.mxu0 0
    %5074 = vmatpush2.bf16.msra.mxu0 0
    %5075 = vmatprep.subr.bf16.mxu0 0
    %5076 = vmatpush2.bf16.msra.mxu0 0
    %5077 = vmatprep.subr.bf16.mxu0 0
    %5078 = vmatpush2.bf16.msra.mxu0 0
    %5079 = vmatprep.subr.bf16.mxu0 0
    %5080 = vmatpush2.bf16.msra.mxu0 0
    %5081 = vmatprep.subr.bf16.mxu0 0
    %5082 = vmatpush2.bf16.msra.mxu0 0
    %5083 = vmatprep.mubr.bf16.mxu0 0
    %5084 = vmatmul.mubr.bf16.gmra.mxu0 %v4653
    %v5085 = vpop.f32.mrf.mxu0
    %v5086 = vadd.f32 %v5046, %v5085
    %v5087 = vpop.f32.mrf.mxu0
    %v5088 = vpop.f32.mrf.mxu0
    %v5089 = vpop.f32.mrf.mxu0
    %5090 = vdwg.mxu0
    %v5092 = vsel %vm144, %v4589, 0
    %5094 = vmatprep.subr.bf16.mxu0 0
    %5095 = vmatpush1.bf16.msra.mxu0 0
    %5096 = vmatprep.subr.bf16.mxu0 0
    %5097 = vmatpush1.bf16.msra.mxu0 0
    %5098 = vmatprep.subr.bf16.mxu0 0
    %5099 = vmatpush1.bf16.msra.mxu0 %v4645
    %5100 = vmatprep.subr.bf16.mxu0 0
    %5101 = vmatpush1.bf16.msra.mxu0 %v4644
    %5102 = vmatprep.subr.bf16.mxu0 0
    %5103 = vmatpush1.bf16.msra.mxu0 %v4643
    %5104 = vmatprep.subr.bf16.mxu0 0
    %5105 = vmatpush1.bf16.msra.mxu0 %v4642
    %5106 = vmatprep.subr.bf16.mxu0 0
    %5107 = vmatpush1.bf16.msra.mxu0 %v4641
    %5108 = vmatprep.subr.bf16.mxu0 0
    %5109 = vmatpush1.bf16.msra.mxu0 %v4640
    %5110 = vmatprep.subr.bf16.mxu0 0
    %5111 = vmatpush2.bf16.msra.mxu0 0
    %5112 = vmatprep.subr.bf16.mxu0 0
    %5113 = vmatpush2.bf16.msra.mxu0 0
    %5114 = vmatprep.subr.bf16.mxu0 0
    %5115 = vmatpush2.bf16.msra.mxu0 0
    %5116 = vmatprep.subr.bf16.mxu0 0
    %5117 = vmatpush2.bf16.msra.mxu0 0
    %5118 = vmatprep.subr.bf16.mxu0 0
    %5119 = vmatpush2.bf16.msra.mxu0 0
    %5120 = vmatprep.subr.bf16.mxu0 0
    %5121 = vmatpush2.bf16.msra.mxu0 0
    %5122 = vmatprep.subr.bf16.mxu0 0
    %5123 = vmatpush2.bf16.msra.mxu0 0
    %5124 = vmatprep.subr.bf16.mxu0 0
    %5125 = vmatpush2.bf16.msra.mxu0 0
    %5126 = vmatprep.mubr.bf16.mxu0 0
    %5127 = vmatmul.mubr.bf16.gmra.mxu0 %v5092
    %v5128 = vpop.f32.mrf.mxu0
    %v5129 = vadd.f32 0.0, %v5128
    %v5130 = vpop.f32.mrf.mxu0
    %v5131 = vpop.f32.mrf.mxu0
    %v5132 = vpop.f32.mrf.mxu0
    %5133 = vdwg.mxu0
    %v5135 = vsel %vm144, %v4587, 0
    %5137 = vmatprep.subr.bf16.mxu0 0
    %5138 = vmatpush1.bf16.msra.mxu0 0
    %5139 = vmatprep.subr.bf16.mxu0 0
    %5140 = vmatpush1.bf16.msra.mxu0 0
    %5141 = vmatprep.subr.bf16.mxu0 0
    %5142 = vmatpush1.bf16.msra.mxu0 %v4724
    %5143 = vmatprep.subr.bf16.mxu0 0
    %5144 = vmatpush1.bf16.msra.mxu0 %v4723
    %5145 = vmatprep.subr.bf16.mxu0 0
    %5146 = vmatpush1.bf16.msra.mxu0 %v4722
    %5147 = vmatprep.subr.bf16.mxu0 0
    %5148 = vmatpush1.bf16.msra.mxu0 %v4721
    %5149 = vmatprep.subr.bf16.mxu0 0
    %5150 = vmatpush1.bf16.msra.mxu0 %v4720
    %5151 = vmatprep.subr.bf16.mxu0 0
    %5152 = vmatpush1.bf16.msra.mxu0 %v4719
    %5153 = vmatprep.subr.bf16.mxu0 0
    %5154 = vmatpush2.bf16.msra.mxu0 0
    %5155 = vmatprep.subr.bf16.mxu0 0
    %5156 = vmatpush2.bf16.msra.mxu0 0
    %5157 = vmatprep.subr.bf16.mxu0 0
    %5158 = vmatpush2.bf16.msra.mxu0 0
    %5159 = vmatprep.subr.bf16.mxu0 0
    %5160 = vmatpush2.bf16.msra.mxu0 0
    %5161 = vmatprep.subr.bf16.mxu0 0
    %5162 = vmatpush2.bf16.msra.mxu0 0
    %5163 = vmatprep.subr.bf16.mxu0 0
    %5164 = vmatpush2.bf16.msra.mxu0 0
    %5165 = vmatprep.subr.bf16.mxu0 0
    %5166 = vmatpush2.bf16.msra.mxu0 0
    %5167 = vmatprep.subr.bf16.mxu0 0
    %5168 = vmatpush2.bf16.msra.mxu0 0
    %5169 = vmatprep.mubr.bf16.mxu0 0
    %5170 = vmatmul.mubr.bf16.gmra.mxu0 %v5135
    %v5171 = vpop.f32.mrf.mxu0
    %v5172 = vadd.f32 %v5129, %v5171
    %v5173 = vpop.f32.mrf.mxu0
    %v5174 = vpop.f32.mrf.mxu0
    %v5175 = vpop.f32.mrf.mxu0
    %5176 = vdwg.mxu0
    %5177 = vmatprep.subr.bf16.mxu0 0
    %5178 = vmatpush1.bf16.msra.mxu0 0
    %5179 = vmatprep.subr.bf16.mxu0 0
    %5180 = vmatpush1.bf16.msra.mxu0 0
    %5181 = vmatprep.subr.bf16.mxu0 0
    %5182 = vmatpush1.bf16.msra.mxu0 %v4803
    %5183 = vmatprep.subr.bf16.mxu0 0
    %5184 = vmatpush1.bf16.msra.mxu0 %v4802
    %5185 = vmatprep.subr.bf16.mxu0 0
    %5186 = vmatpush1.bf16.msra.mxu0 %v4801
    %5187 = vmatprep.subr.bf16.mxu0 0
    %5188 = vmatpush1.bf16.msra.mxu0 %v4800
    %5189 = vmatprep.subr.bf16.mxu0 0
    %5190 = vmatpush1.bf16.msra.mxu0 %v4799
    %5191 = vmatprep.subr.bf16.mxu0 0
    %5192 = vmatpush1.bf16.msra.mxu0 %v4798
    %5193 = vmatprep.subr.bf16.mxu0 0
    %5194 = vmatpush2.bf16.msra.mxu0 0
    %5195 = vmatprep.subr.bf16.mxu0 0
    %5196 = vmatpush2.bf16.msra.mxu0 0
    %5197 = vmatprep.subr.bf16.mxu0 0
    %5198 = vmatpush2.bf16.msra.mxu0 0
    %5199 = vmatprep.subr.bf16.mxu0 0
    %5200 = vmatpush2.bf16.msra.mxu0 0
    %5201 = vmatprep.subr.bf16.mxu0 0
    %5202 = vmatpush2.bf16.msra.mxu0 0
    %5203 = vmatprep.subr.bf16.mxu0 0
    %5204 = vmatpush2.bf16.msra.mxu0 0
    %5205 = vmatprep.subr.bf16.mxu0 0
    %5206 = vmatpush2.bf16.msra.mxu0 0
    %5207 = vmatprep.subr.bf16.mxu0 0
    %5208 = vmatpush2.bf16.msra.mxu0 0
    %5209 = vmatprep.mubr.bf16.mxu0 0
    %5210 = vmatmul.mubr.bf16.gmra.mxu0 %v5092
    %v5211 = vpop.f32.mrf.mxu0
    %v5212 = vadd.f32 0.0, %v5211
    %v5213 = vpop.f32.mrf.mxu0
    %v5214 = vpop.f32.mrf.mxu0
    %v5215 = vpop.f32.mrf.mxu0
    %5216 = vdwg.mxu0
    %5217 = vmatprep.subr.bf16.mxu0 0
    %5218 = vmatpush1.bf16.msra.mxu0 0
    %5219 = vmatprep.subr.bf16.mxu0 0
    %5220 = vmatpush1.bf16.msra.mxu0 0
    %5221 = vmatprep.subr.bf16.mxu0 0
    %5222 = vmatpush1.bf16.msra.mxu0 %v4879
    %5223 = vmatprep.subr.bf16.mxu0 0
    %5224 = vmatpush1.bf16.msra.mxu0 %v4878
    %5225 = vmatprep.subr.bf16.mxu0 0
    %5226 = vmatpush1.bf16.msra.mxu0 %v4877
    %5227 = vmatprep.subr.bf16.mxu0 0
    %5228 = vmatpush1.bf16.msra.mxu0 %v4876
    %5229 = vmatprep.subr.bf16.mxu0 0
    %5230 = vmatpush1.bf16.msra.mxu0 %v4875
    %5231 = vmatprep.subr.bf16.mxu0 0
    %5232 = vmatpush1.bf16.msra.mxu0 %v4874
    %5233 = vmatprep.subr.bf16.mxu0 0
    %5234 = vmatpush2.bf16.msra.mxu0 0
    %5235 = vmatprep.subr.bf16.mxu0 0
    %5236 = vmatpush2.bf16.msra.mxu0 0
    %5237 = vmatprep.subr.bf16.mxu0 0
    %5238 = vmatpush2.bf16.msra.mxu0 0
    %5239 = vmatprep.subr.bf16.mxu0 0
    %5240 = vmatpush2.bf16.msra.mxu0 0
    %5241 = vmatprep.subr.bf16.mxu0 0
    %5242 = vmatpush2.bf16.msra.mxu0 0
    %5243 = vmatprep.subr.bf16.mxu0 0
    %5244 = vmatpush2.bf16.msra.mxu0 0
    %5245 = vmatprep.subr.bf16.mxu0 0
    %5246 = vmatpush2.bf16.msra.mxu0 0
    %5247 = vmatprep.subr.bf16.mxu0 0
    %5248 = vmatpush2.bf16.msra.mxu0 0
    %5249 = vmatprep.mubr.bf16.mxu0 0
    %5250 = vmatmul.mubr.bf16.gmra.mxu0 %v5135
    %v5251 = vpop.f32.mrf.mxu0
    %v5252 = vadd.f32 %v5212, %v5251
    %v5253 = vpop.f32.mrf.mxu0
    %v5254 = vpop.f32.mrf.mxu0
    %v5255 = vpop.f32.mrf.mxu0
    %5256 = vdwg.mxu0
    %v5257 = vld [vmem:[%s4549 + $0x1] sm:$0xff]
    %v5258 = vpack.c.bf16 %v5257, %v5257
    %v5260 = vsel %vm144, %v5258, 0
    %5262 = vmatprep.subr.bf16.mxu0 0
    %5263 = vmatpush1.bf16.msra.mxu0 0
    %5264 = vmatprep.subr.bf16.mxu0 0
    %5265 = vmatpush1.bf16.msra.mxu0 0
    %5266 = vmatprep.subr.bf16.mxu0 0
    %5267 = vmatpush1.bf16.msra.mxu0 %v4645
    %5268 = vmatprep.subr.bf16.mxu0 0
    %5269 = vmatpush1.bf16.msra.mxu0 %v4644
    %5270 = vmatprep.subr.bf16.mxu0 0
    %5271 = vmatpush1.bf16.msra.mxu0 %v4643
    %5272 = vmatprep.subr.bf16.mxu0 0
    %5273 = vmatpush1.bf16.msra.mxu0 %v4642
    %5274 = vmatprep.subr.bf16.mxu0 0
    %5275 = vmatpush1.bf16.msra.mxu0 %v4641
    %5276 = vmatprep.subr.bf16.mxu0 0
    %5277 = vmatpush1.bf16.msra.mxu0 %v4640
    %5278 = vmatprep.subr.bf16.mxu0 0
    %5279 = vmatpush2.bf16.msra.mxu0 0
    %5280 = vmatprep.subr.bf16.mxu0 0
    %5281 = vmatpush2.bf16.msra.mxu0 0
    %5282 = vmatprep.subr.bf16.mxu0 0
    %5283 = vmatpush2.bf16.msra.mxu0 0
    %5284 = vmatprep.subr.bf16.mxu0 0
    %5285 = vmatpush2.bf16.msra.mxu0 0
    %5286 = vmatprep.subr.bf16.mxu0 0
    %5287 = vmatpush2.bf16.msra.mxu0 0
    %5288 = vmatprep.subr.bf16.mxu0 0
    %5289 = vmatpush2.bf16.msra.mxu0 0
    %5290 = vmatprep.subr.bf16.mxu0 0
    %5291 = vmatpush2.bf16.msra.mxu0 0
    %5292 = vmatprep.subr.bf16.mxu0 0
    %5293 = vmatpush2.bf16.msra.mxu0 0
    %5294 = vmatprep.mubr.bf16.mxu0 0
    %5295 = vmatmul.mubr.bf16.gmra.mxu0 %v5260
    %v5296 = vpop.f32.mrf.mxu0
    %v5297 = vadd.f32 0.0, %v5296
    %v5298 = vpop.f32.mrf.mxu0
    %v5299 = vpop.f32.mrf.mxu0
    %v5300 = vpop.f32.mrf.mxu0
    %5301 = vdwg.mxu0
    %5302 = vmatprep.subr.bf16.mxu0 0
    %5303 = vmatpush1.bf16.msra.mxu0 0
    %5304 = vmatprep.subr.bf16.mxu0 0
    %5305 = vmatpush1.bf16.msra.mxu0 0
    %5306 = vmatprep.subr.bf16.mxu0 0
    %5307 = vmatpush1.bf16.msra.mxu0 %v4724
    %5308 = vmatprep.subr.bf16.mxu0 0
    %5309 = vmatpush1.bf16.msra.mxu0 %v4723
    %5310 = vmatprep.subr.bf16.mxu0 0
    %5311 = vmatpush1.bf16.msra.mxu0 %v4722
    %5312 = vmatprep.subr.bf16.mxu0 0
    %5313 = vmatpush1.bf16.msra.mxu0 %v4721
    %5314 = vmatprep.subr.bf16.mxu0 0
    %5315 = vmatpush1.bf16.msra.mxu0 %v4720
    %5316 = vmatprep.subr.bf16.mxu0 0
    %5317 = vmatpush1.bf16.msra.mxu0 %v4719
    %5318 = vmatprep.subr.bf16.mxu0 0
    %5319 = vmatpush2.bf16.msra.mxu0 0
    %5320 = vmatprep.subr.bf16.mxu0 0
    %5321 = vmatpush2.bf16.msra.mxu0 0
    %5322 = vmatprep.subr.bf16.mxu0 0
    %5323 = vmatpush2.bf16.msra.mxu0 0
    %5324 = vmatprep.subr.bf16.mxu0 0
    %5325 = vmatpush2.bf16.msra.mxu0 0
    %5326 = vmatprep.subr.bf16.mxu0 0
    %5327 = vmatpush2.bf16.msra.mxu0 0
    %5328 = vmatprep.subr.bf16.mxu0 0
    %5329 = vmatpush2.bf16.msra.mxu0 0
    %5330 = vmatprep.subr.bf16.mxu0 0
    %5331 = vmatpush2.bf16.msra.mxu0 0
    %5332 = vmatprep.subr.bf16.mxu0 0
    %5333 = vmatpush2.bf16.msra.mxu0 0
    %5334 = vmatprep.mubr.bf16.mxu0 0
    %5335 = vmatmul.mubr.bf16.gmra.mxu0 %v5092
    %v5336 = vpop.f32.mrf.mxu0
    %v5337 = vadd.f32 %v5297, %v5336
    %v5338 = vpop.f32.mrf.mxu0
    %v5339 = vpop.f32.mrf.mxu0
    %v5340 = vpop.f32.mrf.mxu0
    %5341 = vdwg.mxu0
    %5342 = vmatprep.subr.bf16.mxu0 0
    %5343 = vmatpush1.bf16.msra.mxu0 0
    %5344 = vmatprep.subr.bf16.mxu0 0
    %5345 = vmatpush1.bf16.msra.mxu0 0
    %5346 = vmatprep.subr.bf16.mxu0 0
    %5347 = vmatpush1.bf16.msra.mxu0 %v4803
    %5348 = vmatprep.subr.bf16.mxu0 0
    %5349 = vmatpush1.bf16.msra.mxu0 %v4802
    %5350 = vmatprep.subr.bf16.mxu0 0
    %5351 = vmatpush1.bf16.msra.mxu0 %v4801
    %5352 = vmatprep.subr.bf16.mxu0 0
    %5353 = vmatpush1.bf16.msra.mxu0 %v4800
    %5354 = vmatprep.subr.bf16.mxu0 0
    %5355 = vmatpush1.bf16.msra.mxu0 %v4799
    %5356 = vmatprep.subr.bf16.mxu0 0
    %5357 = vmatpush1.bf16.msra.mxu0 %v4798
    %5358 = vmatprep.subr.bf16.mxu0 0
    %5359 = vmatpush2.bf16.msra.mxu0 0
    %5360 = vmatprep.subr.bf16.mxu0 0
    %5361 = vmatpush2.bf16.msra.mxu0 0
    %5362 = vmatprep.subr.bf16.mxu0 0
    %5363 = vmatpush2.bf16.msra.mxu0 0
    %5364 = vmatprep.subr.bf16.mxu0 0
    %5365 = vmatpush2.bf16.msra.mxu0 0
    %5366 = vmatprep.subr.bf16.mxu0 0
    %5367 = vmatpush2.bf16.msra.mxu0 0
    %5368 = vmatprep.subr.bf16.mxu0 0
    %5369 = vmatpush2.bf16.msra.mxu0 0
    %5370 = vmatprep.subr.bf16.mxu0 0
    %5371 = vmatpush2.bf16.msra.mxu0 0
    %5372 = vmatprep.subr.bf16.mxu0 0
    %5373 = vmatpush2.bf16.msra.mxu0 0
    %5374 = vmatprep.mubr.bf16.mxu0 0
    %5375 = vmatmul.mubr.bf16.gmra.mxu0 %v5260
    %v5376 = vpop.f32.mrf.mxu0
    %v5377 = vadd.f32 0.0, %v5376
    %v5378 = vpop.f32.mrf.mxu0
    %v5379 = vpop.f32.mrf.mxu0
    %v5380 = vpop.f32.mrf.mxu0
    %5381 = vdwg.mxu0
    %5382 = vmatprep.subr.bf16.mxu0 0
    %5383 = vmatpush1.bf16.msra.mxu0 0
    %5384 = vmatprep.subr.bf16.mxu0 0
    %5385 = vmatpush1.bf16.msra.mxu0 0
    %5386 = vmatprep.subr.bf16.mxu0 0
    %5387 = vmatpush1.bf16.msra.mxu0 %v4879
    %5388 = vmatprep.subr.bf16.mxu0 0
    %5389 = vmatpush1.bf16.msra.mxu0 %v4878
    %5390 = vmatprep.subr.bf16.mxu0 0
    %5391 = vmatpush1.bf16.msra.mxu0 %v4877
    %5392 = vmatprep.subr.bf16.mxu0 0
    %5393 = vmatpush1.bf16.msra.mxu0 %v4876
    %5394 = vmatprep.subr.bf16.mxu0 0
    %5395 = vmatpush1.bf16.msra.mxu0 %v4875
    %5396 = vmatprep.subr.bf16.mxu0 0
    %5397 = vmatpush1.bf16.msra.mxu0 %v4874
    %5398 = vmatprep.subr.bf16.mxu0 0
    %5399 = vmatpush2.bf16.msra.mxu0 0
    %5400 = vmatprep.subr.bf16.mxu0 0
    %5401 = vmatpush2.bf16.msra.mxu0 0
    %5402 = vmatprep.subr.bf16.mxu0 0
    %5403 = vmatpush2.bf16.msra.mxu0 0
    %5404 = vmatprep.subr.bf16.mxu0 0
    %5405 = vmatpush2.bf16.msra.mxu0 0
    %5406 = vmatprep.subr.bf16.mxu0 0
    %5407 = vmatpush2.bf16.msra.mxu0 0
    %5408 = vmatprep.subr.bf16.mxu0 0
    %5409 = vmatpush2.bf16.msra.mxu0 0
    %5410 = vmatprep.subr.bf16.mxu0 0
    %5411 = vmatpush2.bf16.msra.mxu0 0
    %5412 = vmatprep.subr.bf16.mxu0 0
    %5413 = vmatpush2.bf16.msra.mxu0 0
    %5414 = vmatprep.mubr.bf16.mxu0 0
    %5415 = vmatmul.mubr.bf16.gmra.mxu0 %v5092
    %v5416 = vpop.f32.mrf.mxu0
    %v5417 = vadd.f32 %v5377, %v5416
    %v5418 = vpop.f32.mrf.mxu0
    %v5419 = vpop.f32.mrf.mxu0
    %v5420 = vpop.f32.mrf.mxu0
    %5421 = vdwg.mxu0
    %s5422 = scalar_lea.vmem %s7, 192
    %v5423 = vld [vmem:[%s5422] sm:$0xf]
    %v5424 = vld [vmem:[%s5422 + $0x4] sm:$0xf]
    %v5425 = vld [vmem:[%s5422 + $0x8] sm:$0xf]
    %v5426 = vld [vmem:[%s5422 + $0xc] sm:$0xf]
    %v5427 = vld [vmem:[%s5422 + $0x10] sm:$0xf]
    %v5428 = vld [vmem:[%s5422 + $0x14] sm:$0xf]
    %v5429 = vld [vmem:[%s5422 + $0x18] sm:$0xf]
    %v5430 = vld [vmem:[%s5422 + $0x1c] sm:$0xf]
    %v5431 = vld [vmem:[%s5422 + $0x20] sm:$0xf]
    %v5432 = vld [vmem:[%s5422 + $0x24] sm:$0xf]
    %v5433 = vld [vmem:[%s5422 + $0x28] sm:$0xf]
    %v5434 = vld [vmem:[%s5422 + $0x2c] sm:$0xf]
    %s5435 = scalar_lea.vmem %s7, 240
    %v5436 = vld [vmem:[%s5435] sm:$0xf]
    %v5437 = vld [vmem:[%s5435 + $0x4] sm:$0xf]
    %v5438 = vld [vmem:[%s5435 + $0x8] sm:$0xf]
    %v5439 = vld [vmem:[%s5435 + $0xc] sm:$0xf]
    %v5440 = vld [vmem:[%s5435 + $0x10] sm:$0xf]
    %v5441 = vld [vmem:[%s5435 + $0x14] sm:$0xf]
    %v5442 = vld [vmem:[%s5435 + $0x18] sm:$0xf]
    %v5443 = vld [vmem:[%s5435 + $0x1c] sm:$0xf]
    %v5444 = vld [vmem:[%s5435 + $0x20] sm:$0xf]
    %v5445 = vld [vmem:[%s5435 + $0x24] sm:$0xf]
    %v5446 = vld [vmem:[%s5435 + $0x28] sm:$0xf]
    %v5447 = vld [vmem:[%s5435 + $0x2c] sm:$0xf]
    %v5460 = vunpack.c.l.b16 %v5423
    %v5461 = vunpack.c.l.b16 %v5424
    %v5462 = vunpack.c.l.b16 %v5425
    %v5463 = vunpack.c.l.b16 %v5426
    %v5464 = vunpack.c.l.b16 %v5427
    %v5465 = vunpack.c.l.b16 %v5428
    %v5466 = vunpack.c.l.b16 %v5429
    %v5467 = vunpack.c.l.b16 %v5430
    %v5468 = vunpack.c.l.b16 %v5431
    %v5469 = vunpack.c.l.b16 %v5432
    %v5470 = vunpack.c.l.b16 %v5433
    %v5471 = vunpack.c.l.b16 %v5434
    %v5472 = vpack.c.b16 %v5461, %v5460
    %v5473 = vpack.c.b16 %v5463, %v5462
    %v5474 = vpack.c.b16 %v5465, %v5464
    %v5475 = vpack.c.b16 %v5467, %v5466
    %v5476 = vpack.c.b16 %v5469, %v5468
    %v5477 = vpack.c.b16 %v5471, %v5470
    %5484 = vmatprep.subr.bf16.mxu0 0
    %5485 = vmatpush1.bf16.msra.mxu0 0
    %5486 = vmatprep.subr.bf16.mxu0 0
    %5487 = vmatpush1.bf16.msra.mxu0 0
    %5488 = vmatprep.subr.bf16.mxu0 0
    %5489 = vmatpush1.bf16.msra.mxu0 %v5477
    %5490 = vmatprep.subr.bf16.mxu0 0
    %5491 = vmatpush1.bf16.msra.mxu0 %v5476
    %5492 = vmatprep.subr.bf16.mxu0 0
    %5493 = vmatpush1.bf16.msra.mxu0 %v5475
    %5494 = vmatprep.subr.bf16.mxu0 0
    %5495 = vmatpush1.bf16.msra.mxu0 %v5474
    %5496 = vmatprep.subr.bf16.mxu0 0
    %5497 = vmatpush1.bf16.msra.mxu0 %v5473
    %5498 = vmatprep.subr.bf16.mxu0 0
    %5499 = vmatpush1.bf16.msra.mxu0 %v5472
    %5500 = vmatprep.subr.bf16.mxu0 0
    %5501 = vmatpush2.bf16.msra.mxu0 0
    %5502 = vmatprep.subr.bf16.mxu0 0
    %5503 = vmatpush2.bf16.msra.mxu0 0
    %5504 = vmatprep.subr.bf16.mxu0 0
    %5505 = vmatpush2.bf16.msra.mxu0 0
    %5506 = vmatprep.subr.bf16.mxu0 0
    %5507 = vmatpush2.bf16.msra.mxu0 0
    %5508 = vmatprep.subr.bf16.mxu0 0
    %5509 = vmatpush2.bf16.msra.mxu0 0
    %5510 = vmatprep.subr.bf16.mxu0 0
    %5511 = vmatpush2.bf16.msra.mxu0 0
    %5512 = vmatprep.subr.bf16.mxu0 0
    %5513 = vmatpush2.bf16.msra.mxu0 0
    %5514 = vmatprep.subr.bf16.mxu0 0
    %5515 = vmatpush2.bf16.msra.mxu0 0
    %5516 = vmatprep.mubr.bf16.mxu0 0
    %5517 = vmatmul.mubr.bf16.gmra.mxu0 %v4929
    %v5518 = vpop.f32.mrf.mxu0
    %v5519 = vadd.f32 0.0, %v5518
    %v5520 = vpop.f32.mrf.mxu0
    %v5521 = vpop.f32.mrf.mxu0
    %v5522 = vpop.f32.mrf.mxu0
    %5523 = vdwg.mxu0
    %v5524 = vadd.f32 %v4769, %v5519
    %v5537 = vunpack.c.l.b16 %v5436
    %v5538 = vunpack.c.l.b16 %v5437
    %v5539 = vunpack.c.l.b16 %v5438
    %v5540 = vunpack.c.l.b16 %v5439
    %v5541 = vunpack.c.l.b16 %v5440
    %v5542 = vunpack.c.l.b16 %v5441
    %v5543 = vunpack.c.l.b16 %v5442
    %v5544 = vunpack.c.l.b16 %v5443
    %v5545 = vunpack.c.l.b16 %v5444
    %v5546 = vunpack.c.l.b16 %v5445
    %v5547 = vunpack.c.l.b16 %v5446
    %v5548 = vunpack.c.l.b16 %v5447
    %v5549 = vpack.c.b16 %v5538, %v5537
    %v5550 = vpack.c.b16 %v5540, %v5539
    %v5551 = vpack.c.b16 %v5542, %v5541
    %v5552 = vpack.c.b16 %v5544, %v5543
    %v5553 = vpack.c.b16 %v5546, %v5545
    %v5554 = vpack.c.b16 %v5548, %v5547
    %5561 = vmatprep.subr.bf16.mxu0 0
    %5562 = vmatpush1.bf16.msra.mxu0 0
    %5563 = vmatprep.subr.bf16.mxu0 0
    %5564 = vmatpush1.bf16.msra.mxu0 0
    %5565 = vmatprep.subr.bf16.mxu0 0
    %5566 = vmatpush1.bf16.msra.mxu0 %v5554
    %5567 = vmatprep.subr.bf16.mxu0 0
    %5568 = vmatpush1.bf16.msra.mxu0 %v5553
    %5569 = vmatprep.subr.bf16.mxu0 0
    %5570 = vmatpush1.bf16.msra.mxu0 %v5552
    %5571 = vmatprep.subr.bf16.mxu0 0
    %5572 = vmatpush1.bf16.msra.mxu0 %v5551
    %5573 = vmatprep.subr.bf16.mxu0 0
    %5574 = vmatpush1.bf16.msra.mxu0 %v5550
    %5575 = vmatprep.subr.bf16.mxu0 0
    %5576 = vmatpush1.bf16.msra.mxu0 %v5549
    %5577 = vmatprep.subr.bf16.mxu0 0
    %5578 = vmatpush2.bf16.msra.mxu0 0
    %5579 = vmatprep.subr.bf16.mxu0 0
    %5580 = vmatpush2.bf16.msra.mxu0 0
    %5581 = vmatprep.subr.bf16.mxu0 0
    %5582 = vmatpush2.bf16.msra.mxu0 0
    %5583 = vmatprep.subr.bf16.mxu0 0
    %5584 = vmatpush2.bf16.msra.mxu0 0
    %5585 = vmatprep.subr.bf16.mxu0 0
    %5586 = vmatpush2.bf16.msra.mxu0 0
    %5587 = vmatprep.subr.bf16.mxu0 0
    %5588 = vmatpush2.bf16.msra.mxu0 0
    %5589 = vmatprep.subr.bf16.mxu0 0
    %5590 = vmatpush2.bf16.msra.mxu0 0
    %5591 = vmatprep.subr.bf16.mxu0 0
    %5592 = vmatpush2.bf16.msra.mxu0 0
    %5593 = vmatprep.mubr.bf16.mxu0 0
    %5594 = vmatmul.mubr.bf16.gmra.mxu0 %v4929
    %v5595 = vpop.f32.mrf.mxu0
    %v5596 = vadd.f32 0.0, %v5595
    %v5597 = vpop.f32.mrf.mxu0
    %v5598 = vpop.f32.mrf.mxu0
    %v5599 = vpop.f32.mrf.mxu0
    %5600 = vdwg.mxu0
    %v5601 = vadd.f32 %v4921, %v5596
    %v5602 = vld [vmem:[%s4522 + $0x1] sm:$0xff]
    %v5603 = vpack.c.bf16 %v5602, %v5602
    %v5605 = vsel %vm144, %v5603, 0
    %5607 = vmatprep.subr.bf16.mxu0 0
    %5608 = vmatpush1.bf16.msra.mxu0 0
    %5609 = vmatprep.subr.bf16.mxu0 0
    %5610 = vmatpush1.bf16.msra.mxu0 0
    %5611 = vmatprep.subr.bf16.mxu0 0
    %5612 = vmatpush1.bf16.msra.mxu0 %v5477
    %5613 = vmatprep.subr.bf16.mxu0 0
    %5614 = vmatpush1.bf16.msra.mxu0 %v5476
    %5615 = vmatprep.subr.bf16.mxu0 0
    %5616 = vmatpush1.bf16.msra.mxu0 %v5475
    %5617 = vmatprep.subr.bf16.mxu0 0
    %5618 = vmatpush1.bf16.msra.mxu0 %v5474
    %5619 = vmatprep.subr.bf16.mxu0 0
    %5620 = vmatpush1.bf16.msra.mxu0 %v5473
    %5621 = vmatprep.subr.bf16.mxu0 0
    %5622 = vmatpush1.bf16.msra.mxu0 %v5472
    %5623 = vmatprep.subr.bf16.mxu0 0
    %5624 = vmatpush2.bf16.msra.mxu0 0
    %5625 = vmatprep.subr.bf16.mxu0 0
    %5626 = vmatpush2.bf16.msra.mxu0 0
    %5627 = vmatprep.subr.bf16.mxu0 0
    %5628 = vmatpush2.bf16.msra.mxu0 0
    %5629 = vmatprep.subr.bf16.mxu0 0
    %5630 = vmatpush2.bf16.msra.mxu0 0
    %5631 = vmatprep.subr.bf16.mxu0 0
    %5632 = vmatpush2.bf16.msra.mxu0 0
    %5633 = vmatprep.subr.bf16.mxu0 0
    %5634 = vmatpush2.bf16.msra.mxu0 0
    %5635 = vmatprep.subr.bf16.mxu0 0
    %5636 = vmatpush2.bf16.msra.mxu0 0
    %5637 = vmatprep.subr.bf16.mxu0 0
    %5638 = vmatpush2.bf16.msra.mxu0 0
    %5639 = vmatprep.mubr.bf16.mxu0 0
    %5640 = vmatmul.mubr.bf16.gmra.mxu0 %v5605
    %v5641 = vpop.f32.mrf.mxu0
    %v5642 = vadd.f32 0.0, %v5641
    %v5643 = vpop.f32.mrf.mxu0
    %v5644 = vpop.f32.mrf.mxu0
    %v5645 = vpop.f32.mrf.mxu0
    %5646 = vdwg.mxu0
    %v5647 = vadd.f32 %v5006, %v5642
    %5648 = vmatprep.subr.bf16.mxu0 0
    %5649 = vmatpush1.bf16.msra.mxu0 0
    %5650 = vmatprep.subr.bf16.mxu0 0
    %5651 = vmatpush1.bf16.msra.mxu0 0
    %5652 = vmatprep.subr.bf16.mxu0 0
    %5653 = vmatpush1.bf16.msra.mxu0 %v5554
    %5654 = vmatprep.subr.bf16.mxu0 0
    %5655 = vmatpush1.bf16.msra.mxu0 %v5553
    %5656 = vmatprep.subr.bf16.mxu0 0
    %5657 = vmatpush1.bf16.msra.mxu0 %v5552
    %5658 = vmatprep.subr.bf16.mxu0 0
    %5659 = vmatpush1.bf16.msra.mxu0 %v5551
    %5660 = vmatprep.subr.bf16.mxu0 0
    %5661 = vmatpush1.bf16.msra.mxu0 %v5550
    %5662 = vmatprep.subr.bf16.mxu0 0
    %5663 = vmatpush1.bf16.msra.mxu0 %v5549
    %5664 = vmatprep.subr.bf16.mxu0 0
    %5665 = vmatpush2.bf16.msra.mxu0 0
    %5666 = vmatprep.subr.bf16.mxu0 0
    %5667 = vmatpush2.bf16.msra.mxu0 0
    %5668 = vmatprep.subr.bf16.mxu0 0
    %5669 = vmatpush2.bf16.msra.mxu0 0
    %5670 = vmatprep.subr.bf16.mxu0 0
    %5671 = vmatpush2.bf16.msra.mxu0 0
    %5672 = vmatprep.subr.bf16.mxu0 0
    %5673 = vmatpush2.bf16.msra.mxu0 0
    %5674 = vmatprep.subr.bf16.mxu0 0
    %5675 = vmatpush2.bf16.msra.mxu0 0
    %5676 = vmatprep.subr.bf16.mxu0 0
    %5677 = vmatpush2.bf16.msra.mxu0 0
    %5678 = vmatprep.subr.bf16.mxu0 0
    %5679 = vmatpush2.bf16.msra.mxu0 0
    %5680 = vmatprep.mubr.bf16.mxu0 0
    %5681 = vmatmul.mubr.bf16.gmra.mxu0 %v5605
    %v5682 = vpop.f32.mrf.mxu0
    %v5683 = vadd.f32 0.0, %v5682
    %v5684 = vpop.f32.mrf.mxu0
    %v5685 = vpop.f32.mrf.mxu0
    %v5686 = vpop.f32.mrf.mxu0
    %5687 = vdwg.mxu0
    %v5688 = vadd.f32 %v5086, %v5683
    %5689 = vmatprep.subr.bf16.mxu0 0
    %5690 = vmatpush1.bf16.msra.mxu0 0
    %5691 = vmatprep.subr.bf16.mxu0 0
    %5692 = vmatpush1.bf16.msra.mxu0 0
    %5693 = vmatprep.subr.bf16.mxu0 0
    %5694 = vmatpush1.bf16.msra.mxu0 %v5477
    %5695 = vmatprep.subr.bf16.mxu0 0
    %5696 = vmatpush1.bf16.msra.mxu0 %v5476
    %5697 = vmatprep.subr.bf16.mxu0 0
    %5698 = vmatpush1.bf16.msra.mxu0 %v5475
    %5699 = vmatprep.subr.bf16.mxu0 0
    %5700 = vmatpush1.bf16.msra.mxu0 %v5474
    %5701 = vmatprep.subr.bf16.mxu0 0
    %5702 = vmatpush1.bf16.msra.mxu0 %v5473
    %5703 = vmatprep.subr.bf16.mxu0 0
    %5704 = vmatpush1.bf16.msra.mxu0 %v5472
    %5705 = vmatprep.subr.bf16.mxu0 0
    %5706 = vmatpush2.bf16.msra.mxu0 0
    %5707 = vmatprep.subr.bf16.mxu0 0
    %5708 = vmatpush2.bf16.msra.mxu0 0
    %5709 = vmatprep.subr.bf16.mxu0 0
    %5710 = vmatpush2.bf16.msra.mxu0 0
    %5711 = vmatprep.subr.bf16.mxu0 0
    %5712 = vmatpush2.bf16.msra.mxu0 0
    %5713 = vmatprep.subr.bf16.mxu0 0
    %5714 = vmatpush2.bf16.msra.mxu0 0
    %5715 = vmatprep.subr.bf16.mxu0 0
    %5716 = vmatpush2.bf16.msra.mxu0 0
    %5717 = vmatprep.subr.bf16.mxu0 0
    %5718 = vmatpush2.bf16.msra.mxu0 0
    %5719 = vmatprep.subr.bf16.mxu0 0
    %5720 = vmatpush2.bf16.msra.mxu0 0
    %5721 = vmatprep.mubr.bf16.mxu0 0
    %5722 = vmatmul.mubr.bf16.gmra.mxu0 %v5260
    %v5723 = vpop.f32.mrf.mxu0
    %v5724 = vadd.f32 0.0, %v5723
    %v5725 = vpop.f32.mrf.mxu0
    %v5726 = vpop.f32.mrf.mxu0
    %v5727 = vpop.f32.mrf.mxu0
    %5728 = vdwg.mxu0
    %v5729 = vadd.f32 %v5172, %v5724
    %5730 = vmatprep.subr.bf16.mxu0 0
    %5731 = vmatpush1.bf16.msra.mxu0 0
    %5732 = vmatprep.subr.bf16.mxu0 0
    %5733 = vmatpush1.bf16.msra.mxu0 0
    %5734 = vmatprep.subr.bf16.mxu0 0
    %5735 = vmatpush1.bf16.msra.mxu0 %v5554
    %5736 = vmatprep.subr.bf16.mxu0 0
    %5737 = vmatpush1.bf16.msra.mxu0 %v5553
    %5738 = vmatprep.subr.bf16.mxu0 0
    %5739 = vmatpush1.bf16.msra.mxu0 %v5552
    %5740 = vmatprep.subr.bf16.mxu0 0
    %5741 = vmatpush1.bf16.msra.mxu0 %v5551
    %5742 = vmatprep.subr.bf16.mxu0 0
    %5743 = vmatpush1.bf16.msra.mxu0 %v5550
    %5744 = vmatprep.subr.bf16.mxu0 0
    %5745 = vmatpush1.bf16.msra.mxu0 %v5549
    %5746 = vmatprep.subr.bf16.mxu0 0
    %5747 = vmatpush2.bf16.msra.mxu0 0
    %5748 = vmatprep.subr.bf16.mxu0 0
    %5749 = vmatpush2.bf16.msra.mxu0 0
    %5750 = vmatprep.subr.bf16.mxu0 0
    %5751 = vmatpush2.bf16.msra.mxu0 0
    %5752 = vmatprep.subr.bf16.mxu0 0
    %5753 = vmatpush2.bf16.msra.mxu0 0
    %5754 = vmatprep.subr.bf16.mxu0 0
    %5755 = vmatpush2.bf16.msra.mxu0 0
    %5756 = vmatprep.subr.bf16.mxu0 0
    %5757 = vmatpush2.bf16.msra.mxu0 0
    %5758 = vmatprep.subr.bf16.mxu0 0
    %5759 = vmatpush2.bf16.msra.mxu0 0
    %5760 = vmatprep.subr.bf16.mxu0 0
    %5761 = vmatpush2.bf16.msra.mxu0 0
    %5762 = vmatprep.mubr.bf16.mxu0 0
    %5763 = vmatmul.mubr.bf16.gmra.mxu0 %v5260
    %v5764 = vpop.f32.mrf.mxu0
    %v5765 = vadd.f32 0.0, %v5764
    %v5766 = vpop.f32.mrf.mxu0
    %v5767 = vpop.f32.mrf.mxu0
    %v5768 = vpop.f32.mrf.mxu0
    %5769 = vdwg.mxu0
    %v5770 = vadd.f32 %v5252, %v5765
    %v5771 = vld [vmem:[%s4552 + $0x1] sm:$0xff]
    %v5772 = vpack.c.bf16 %v5771, %v5771
    %v5774 = vsel %vm144, %v5772, 0
    %5776 = vmatprep.subr.bf16.mxu0 0
    %5777 = vmatpush1.bf16.msra.mxu0 0
    %5778 = vmatprep.subr.bf16.mxu0 0
    %5779 = vmatpush1.bf16.msra.mxu0 0
    %5780 = vmatprep.subr.bf16.mxu0 0
    %5781 = vmatpush1.bf16.msra.mxu0 %v5477
    %5782 = vmatprep.subr.bf16.mxu0 0
    %5783 = vmatpush1.bf16.msra.mxu0 %v5476
    %5784 = vmatprep.subr.bf16.mxu0 0
    %5785 = vmatpush1.bf16.msra.mxu0 %v5475
    %5786 = vmatprep.subr.bf16.mxu0 0
    %5787 = vmatpush1.bf16.msra.mxu0 %v5474
    %5788 = vmatprep.subr.bf16.mxu0 0
    %5789 = vmatpush1.bf16.msra.mxu0 %v5473
    %5790 = vmatprep.subr.bf16.mxu0 0
    %5791 = vmatpush1.bf16.msra.mxu0 %v5472
    %5792 = vmatprep.subr.bf16.mxu0 0
    %5793 = vmatpush2.bf16.msra.mxu0 0
    %5794 = vmatprep.subr.bf16.mxu0 0
    %5795 = vmatpush2.bf16.msra.mxu0 0
    %5796 = vmatprep.subr.bf16.mxu0 0
    %5797 = vmatpush2.bf16.msra.mxu0 0
    %5798 = vmatprep.subr.bf16.mxu0 0
    %5799 = vmatpush2.bf16.msra.mxu0 0
    %5800 = vmatprep.subr.bf16.mxu0 0
    %5801 = vmatpush2.bf16.msra.mxu0 0
    %5802 = vmatprep.subr.bf16.mxu0 0
    %5803 = vmatpush2.bf16.msra.mxu0 0
    %5804 = vmatprep.subr.bf16.mxu0 0
    %5805 = vmatpush2.bf16.msra.mxu0 0
    %5806 = vmatprep.subr.bf16.mxu0 0
    %5807 = vmatpush2.bf16.msra.mxu0 0
    %5808 = vmatprep.mubr.bf16.mxu0 0
    %5809 = vmatmul.mubr.bf16.gmra.mxu0 %v5774
    %v5810 = vpop.f32.mrf.mxu0
    %v5811 = vadd.f32 0.0, %v5810
    %v5812 = vpop.f32.mrf.mxu0
    %v5813 = vpop.f32.mrf.mxu0
    %v5814 = vpop.f32.mrf.mxu0
    %5815 = vdwg.mxu0
    %v5816 = vadd.f32 %v5337, %v5811
    %5817 = vmatprep.subr.bf16.mxu0 0
    %5818 = vmatpush1.bf16.msra.mxu0 0
    %5819 = vmatprep.subr.bf16.mxu0 0
    %5820 = vmatpush1.bf16.msra.mxu0 0
    %5821 = vmatprep.subr.bf16.mxu0 0
    %5822 = vmatpush1.bf16.msra.mxu0 %v5554
    %5823 = vmatprep.subr.bf16.mxu0 0
    %5824 = vmatpush1.bf16.msra.mxu0 %v5553
    %5825 = vmatprep.subr.bf16.mxu0 0
    %5826 = vmatpush1.bf16.msra.mxu0 %v5552
    %5827 = vmatprep.subr.bf16.mxu0 0
    %5828 = vmatpush1.bf16.msra.mxu0 %v5551
    %5829 = vmatprep.subr.bf16.mxu0 0
    %5830 = vmatpush1.bf16.msra.mxu0 %v5550
    %5831 = vmatprep.subr.bf16.mxu0 0
    %5832 = vmatpush1.bf16.msra.mxu0 %v5549
    %5833 = vmatprep.subr.bf16.mxu0 0
    %5834 = vmatpush2.bf16.msra.mxu0 0
    %5835 = vmatprep.subr.bf16.mxu0 0
    %5836 = vmatpush2.bf16.msra.mxu0 0
    %5837 = vmatprep.subr.bf16.mxu0 0
    %5838 = vmatpush2.bf16.msra.mxu0 0
    %5839 = vmatprep.subr.bf16.mxu0 0
    %5840 = vmatpush2.bf16.msra.mxu0 0
    %5841 = vmatprep.subr.bf16.mxu0 0
    %5842 = vmatpush2.bf16.msra.mxu0 0
    %5843 = vmatprep.subr.bf16.mxu0 0
    %5844 = vmatpush2.bf16.msra.mxu0 0
    %5845 = vmatprep.subr.bf16.mxu0 0
    %5846 = vmatpush2.bf16.msra.mxu0 0
    %5847 = vmatprep.subr.bf16.mxu0 0
    %5848 = vmatpush2.bf16.msra.mxu0 0
    %5849 = vmatprep.mubr.bf16.mxu0 0
    %5850 = vmatmul.mubr.bf16.gmra.mxu0 %v5774
    %v5851 = vpop.f32.mrf.mxu0
    %v5852 = vadd.f32 0.0, %v5851
    %v5853 = vpop.f32.mrf.mxu0
    %v5854 = vpop.f32.mrf.mxu0
    %v5855 = vpop.f32.mrf.mxu0
    %5856 = vdwg.mxu0
    %v5857 = vadd.f32 %v5417, %v5852
    %s5858 = scalar_lea.vmem %s7, 288
    %v5859 = vld [vmem:[%s5858] sm:$0xf]
    %v5860 = vld [vmem:[%s5858 + $0x4] sm:$0xf]
    %v5861 = vld [vmem:[%s5858 + $0x8] sm:$0xf]
    %v5862 = vld [vmem:[%s5858 + $0xc] sm:$0xf]
    %v5863 = vld [vmem:[%s5858 + $0x10] sm:$0xf]
    %v5864 = vld [vmem:[%s5858 + $0x14] sm:$0xf]
    %v5865 = vld [vmem:[%s5858 + $0x18] sm:$0xf]
    %v5866 = vld [vmem:[%s5858 + $0x1c] sm:$0xf]
    %v5867 = vld [vmem:[%s5858 + $0x20] sm:$0xf]
    %v5868 = vld [vmem:[%s5858 + $0x24] sm:$0xf]
    %v5869 = vld [vmem:[%s5858 + $0x28] sm:$0xf]
    %v5870 = vld [vmem:[%s5858 + $0x2c] sm:$0xf]
    %s5871 = scalar_lea.vmem %s7, 336
    %v5872 = vld [vmem:[%s5871] sm:$0xf]
    %v5873 = vld [vmem:[%s5871 + $0x4] sm:$0xf]
    %v5874 = vld [vmem:[%s5871 + $0x8] sm:$0xf]
    %v5875 = vld [vmem:[%s5871 + $0xc] sm:$0xf]
    %v5876 = vld [vmem:[%s5871 + $0x10] sm:$0xf]
    %v5877 = vld [vmem:[%s5871 + $0x14] sm:$0xf]
    %v5878 = vld [vmem:[%s5871 + $0x18] sm:$0xf]
    %v5879 = vld [vmem:[%s5871 + $0x1c] sm:$0xf]
    %v5880 = vld [vmem:[%s5871 + $0x20] sm:$0xf]
    %v5881 = vld [vmem:[%s5871 + $0x24] sm:$0xf]
    %v5882 = vld [vmem:[%s5871 + $0x28] sm:$0xf]
    %v5883 = vld [vmem:[%s5871 + $0x2c] sm:$0xf]
    %v5896 = vunpack.c.l.b16 %v5859
    %v5897 = vunpack.c.l.b16 %v5860
    %v5898 = vunpack.c.l.b16 %v5861
    %v5899 = vunpack.c.l.b16 %v5862
    %v5900 = vunpack.c.l.b16 %v5863
    %v5901 = vunpack.c.l.b16 %v5864
    %v5902 = vunpack.c.l.b16 %v5865
    %v5903 = vunpack.c.l.b16 %v5866
    %v5904 = vunpack.c.l.b16 %v5867
    %v5905 = vunpack.c.l.b16 %v5868
    %v5906 = vunpack.c.l.b16 %v5869
    %v5907 = vunpack.c.l.b16 %v5870
    %v5908 = vpack.c.b16 %v5897, %v5896
    %v5909 = vpack.c.b16 %v5899, %v5898
    %v5910 = vpack.c.b16 %v5901, %v5900
    %v5911 = vpack.c.b16 %v5903, %v5902
    %v5912 = vpack.c.b16 %v5905, %v5904
    %v5913 = vpack.c.b16 %v5907, %v5906
    %5920 = vmatprep.subr.bf16.mxu0 0
    %5921 = vmatpush1.bf16.msra.mxu0 0
    %5922 = vmatprep.subr.bf16.mxu0 0
    %5923 = vmatpush1.bf16.msra.mxu0 0
    %5924 = vmatprep.subr.bf16.mxu0 0
    %5925 = vmatpush1.bf16.msra.mxu0 %v5913
    %5926 = vmatprep.subr.bf16.mxu0 0
    %5927 = vmatpush1.bf16.msra.mxu0 %v5912
    %5928 = vmatprep.subr.bf16.mxu0 0
    %5929 = vmatpush1.bf16.msra.mxu0 %v5911
    %5930 = vmatprep.subr.bf16.mxu0 0
    %5931 = vmatpush1.bf16.msra.mxu0 %v5910
    %5932 = vmatprep.subr.bf16.mxu0 0
    %5933 = vmatpush1.bf16.msra.mxu0 %v5909
    %5934 = vmatprep.subr.bf16.mxu0 0
    %5935 = vmatpush1.bf16.msra.mxu0 %v5908
    %5936 = vmatprep.subr.bf16.mxu0 0
    %5937 = vmatpush2.bf16.msra.mxu0 0
    %5938 = vmatprep.subr.bf16.mxu0 0
    %5939 = vmatpush2.bf16.msra.mxu0 0
    %5940 = vmatprep.subr.bf16.mxu0 0
    %5941 = vmatpush2.bf16.msra.mxu0 0
    %5942 = vmatprep.subr.bf16.mxu0 0
    %5943 = vmatpush2.bf16.msra.mxu0 0
    %5944 = vmatprep.subr.bf16.mxu0 0
    %5945 = vmatpush2.bf16.msra.mxu0 0
    %5946 = vmatprep.subr.bf16.mxu0 0
    %5947 = vmatpush2.bf16.msra.mxu0 0
    %5948 = vmatprep.subr.bf16.mxu0 0
    %5949 = vmatpush2.bf16.msra.mxu0 0
    %5950 = vmatprep.subr.bf16.mxu0 0
    %5951 = vmatpush2.bf16.msra.mxu0 0
    %5952 = vmatprep.mubr.bf16.mxu0 0
    %5953 = vmatmul.mubr.bf16.gmra.mxu0 %v5605
    %v5954 = vpop.f32.mrf.mxu0
    %v5955 = vadd.f32 0.0, %v5954
    %v5956 = vpop.f32.mrf.mxu0
    %v5957 = vpop.f32.mrf.mxu0
    %v5958 = vpop.f32.mrf.mxu0
    %5959 = vdwg.mxu0
    %v5960 = vadd.f32 %v5524, %v5955
    %v5973 = vunpack.c.l.b16 %v5872
    %v5974 = vunpack.c.l.b16 %v5873
    %v5975 = vunpack.c.l.b16 %v5874
    %v5976 = vunpack.c.l.b16 %v5875
    %v5977 = vunpack.c.l.b16 %v5876
    %v5978 = vunpack.c.l.b16 %v5877
    %v5979 = vunpack.c.l.b16 %v5878
    %v5980 = vunpack.c.l.b16 %v5879
    %v5981 = vunpack.c.l.b16 %v5880
    %v5982 = vunpack.c.l.b16 %v5881
    %v5983 = vunpack.c.l.b16 %v5882
    %v5984 = vunpack.c.l.b16 %v5883
    %v5985 = vpack.c.b16 %v5974, %v5973
    %v5986 = vpack.c.b16 %v5976, %v5975
    %v5987 = vpack.c.b16 %v5978, %v5977
    %v5988 = vpack.c.b16 %v5980, %v5979
    %v5989 = vpack.c.b16 %v5982, %v5981
    %v5990 = vpack.c.b16 %v5984, %v5983
    %5997 = vmatprep.subr.bf16.mxu0 0
    %5998 = vmatpush1.bf16.msra.mxu0 0
    %5999 = vmatprep.subr.bf16.mxu0 0
    %6000 = vmatpush1.bf16.msra.mxu0 0
    %6001 = vmatprep.subr.bf16.mxu0 0
    %6002 = vmatpush1.bf16.msra.mxu0 %v5990
    %6003 = vmatprep.subr.bf16.mxu0 0
    %6004 = vmatpush1.bf16.msra.mxu0 %v5989
    %6005 = vmatprep.subr.bf16.mxu0 0
    %6006 = vmatpush1.bf16.msra.mxu0 %v5988
    %6007 = vmatprep.subr.bf16.mxu0 0
    %6008 = vmatpush1.bf16.msra.mxu0 %v5987
    %6009 = vmatprep.subr.bf16.mxu0 0
    %6010 = vmatpush1.bf16.msra.mxu0 %v5986
    %6011 = vmatprep.subr.bf16.mxu0 0
    %6012 = vmatpush1.bf16.msra.mxu0 %v5985
    %6013 = vmatprep.subr.bf16.mxu0 0
    %6014 = vmatpush2.bf16.msra.mxu0 0
    %6015 = vmatprep.subr.bf16.mxu0 0
    %6016 = vmatpush2.bf16.msra.mxu0 0
    %6017 = vmatprep.subr.bf16.mxu0 0
    %6018 = vmatpush2.bf16.msra.mxu0 0
    %6019 = vmatprep.subr.bf16.mxu0 0
    %6020 = vmatpush2.bf16.msra.mxu0 0
    %6021 = vmatprep.subr.bf16.mxu0 0
    %6022 = vmatpush2.bf16.msra.mxu0 0
    %6023 = vmatprep.subr.bf16.mxu0 0
    %6024 = vmatpush2.bf16.msra.mxu0 0
    %6025 = vmatprep.subr.bf16.mxu0 0
    %6026 = vmatpush2.bf16.msra.mxu0 0
    %6027 = vmatprep.subr.bf16.mxu0 0
    %6028 = vmatpush2.bf16.msra.mxu0 0
    %6029 = vmatprep.mubr.bf16.mxu0 0
    %6030 = vmatmul.mubr.bf16.gmra.mxu0 %v5605
    %v6031 = vpop.f32.mrf.mxu0
    %v6032 = vadd.f32 0.0, %v6031
    %v6033 = vpop.f32.mrf.mxu0
    %v6034 = vpop.f32.mrf.mxu0
    %v6035 = vpop.f32.mrf.mxu0
    %6036 = vdwg.mxu0
    %v6037 = vadd.f32 %v5601, %v6032
    %v6038 = vld [vmem:[#allocation2 + $0x2] sm:$0xff]
    %v6039 = vpack.c.bf16 %v6038, %v6038
    %v6041 = vsel %vm144, %v6039, 0
    %6043 = vmatprep.subr.bf16.mxu0 0
    %6044 = vmatpush1.bf16.msra.mxu0 0
    %6045 = vmatprep.subr.bf16.mxu0 0
    %6046 = vmatpush1.bf16.msra.mxu0 0
    %6047 = vmatprep.subr.bf16.mxu0 0
    %6048 = vmatpush1.bf16.msra.mxu0 %v5913
    %6049 = vmatprep.subr.bf16.mxu0 0
    %6050 = vmatpush1.bf16.msra.mxu0 %v5912
    %6051 = vmatprep.subr.bf16.mxu0 0
    %6052 = vmatpush1.bf16.msra.mxu0 %v5911
    %6053 = vmatprep.subr.bf16.mxu0 0
    %6054 = vmatpush1.bf16.msra.mxu0 %v5910
    %6055 = vmatprep.subr.bf16.mxu0 0
    %6056 = vmatpush1.bf16.msra.mxu0 %v5909
    %6057 = vmatprep.subr.bf16.mxu0 0
    %6058 = vmatpush1.bf16.msra.mxu0 %v5908
    %6059 = vmatprep.subr.bf16.mxu0 0
    %6060 = vmatpush2.bf16.msra.mxu0 0
    %6061 = vmatprep.subr.bf16.mxu0 0
    %6062 = vmatpush2.bf16.msra.mxu0 0
    %6063 = vmatprep.subr.bf16.mxu0 0
    %6064 = vmatpush2.bf16.msra.mxu0 0
    %6065 = vmatprep.subr.bf16.mxu0 0
    %6066 = vmatpush2.bf16.msra.mxu0 0
    %6067 = vmatprep.subr.bf16.mxu0 0
    %6068 = vmatpush2.bf16.msra.mxu0 0
    %6069 = vmatprep.subr.bf16.mxu0 0
    %6070 = vmatpush2.bf16.msra.mxu0 0
    %6071 = vmatprep.subr.bf16.mxu0 0
    %6072 = vmatpush2.bf16.msra.mxu0 0
    %6073 = vmatprep.subr.bf16.mxu0 0
    %6074 = vmatpush2.bf16.msra.mxu0 0
    %6075 = vmatprep.mubr.bf16.mxu0 0
    %6076 = vmatmul.mubr.bf16.gmra.mxu0 %v6041
    %v6077 = vpop.f32.mrf.mxu0
    %v6078 = vadd.f32 0.0, %v6077
    %v6079 = vpop.f32.mrf.mxu0
    %v6080 = vpop.f32.mrf.mxu0
    %v6081 = vpop.f32.mrf.mxu0
    %6082 = vdwg.mxu0
    %v6083 = vadd.f32 %v5647, %v6078
    %6084 = vmatprep.subr.bf16.mxu0 0
    %6085 = vmatpush1.bf16.msra.mxu0 0
    %6086 = vmatprep.subr.bf16.mxu0 0
    %6087 = vmatpush1.bf16.msra.mxu0 0
    %6088 = vmatprep.subr.bf16.mxu0 0
    %6089 = vmatpush1.bf16.msra.mxu0 %v5990
    %6090 = vmatprep.subr.bf16.mxu0 0
    %6091 = vmatpush1.bf16.msra.mxu0 %v5989
    %6092 = vmatprep.subr.bf16.mxu0 0
    %6093 = vmatpush1.bf16.msra.mxu0 %v5988
    %6094 = vmatprep.subr.bf16.mxu0 0
    %6095 = vmatpush1.bf16.msra.mxu0 %v5987
    %6096 = vmatprep.subr.bf16.mxu0 0
    %6097 = vmatpush1.bf16.msra.mxu0 %v5986
    %6098 = vmatprep.subr.bf16.mxu0 0
    %6099 = vmatpush1.bf16.msra.mxu0 %v5985
    %6100 = vmatprep.subr.bf16.mxu0 0
    %6101 = vmatpush2.bf16.msra.mxu0 0
    %6102 = vmatprep.subr.bf16.mxu0 0
    %6103 = vmatpush2.bf16.msra.mxu0 0
    %6104 = vmatprep.subr.bf16.mxu0 0
    %6105 = vmatpush2.bf16.msra.mxu0 0
    %6106 = vmatprep.subr.bf16.mxu0 0
    %6107 = vmatpush2.bf16.msra.mxu0 0
    %6108 = vmatprep.subr.bf16.mxu0 0
    %6109 = vmatpush2.bf16.msra.mxu0 0
    %6110 = vmatprep.subr.bf16.mxu0 0
    %6111 = vmatpush2.bf16.msra.mxu0 0
    %6112 = vmatprep.subr.bf16.mxu0 0
    %6113 = vmatpush2.bf16.msra.mxu0 0
    %6114 = vmatprep.subr.bf16.mxu0 0
    %6115 = vmatpush2.bf16.msra.mxu0 0
    %6116 = vmatprep.mubr.bf16.mxu0 0
    %6117 = vmatmul.mubr.bf16.gmra.mxu0 %v6041
    %v6118 = vpop.f32.mrf.mxu0
    %v6119 = vadd.f32 0.0, %v6118
    %v6120 = vpop.f32.mrf.mxu0
    %v6121 = vpop.f32.mrf.mxu0
    %v6122 = vpop.f32.mrf.mxu0
    %6123 = vdwg.mxu0
    %v6124 = vadd.f32 %v5688, %v6119
    %6125 = vmatprep.subr.bf16.mxu0 0
    %6126 = vmatpush1.bf16.msra.mxu0 0
    %6127 = vmatprep.subr.bf16.mxu0 0
    %6128 = vmatpush1.bf16.msra.mxu0 0
    %6129 = vmatprep.subr.bf16.mxu0 0
    %6130 = vmatpush1.bf16.msra.mxu0 %v5913
    %6131 = vmatprep.subr.bf16.mxu0 0
    %6132 = vmatpush1.bf16.msra.mxu0 %v5912
    %6133 = vmatprep.subr.bf16.mxu0 0
    %6134 = vmatpush1.bf16.msra.mxu0 %v5911
    %6135 = vmatprep.subr.bf16.mxu0 0
    %6136 = vmatpush1.bf16.msra.mxu0 %v5910
    %6137 = vmatprep.subr.bf16.mxu0 0
    %6138 = vmatpush1.bf16.msra.mxu0 %v5909
    %6139 = vmatprep.subr.bf16.mxu0 0
    %6140 = vmatpush1.bf16.msra.mxu0 %v5908
    %6141 = vmatprep.subr.bf16.mxu0 0
    %6142 = vmatpush2.bf16.msra.mxu0 0
    %6143 = vmatprep.subr.bf16.mxu0 0
    %6144 = vmatpush2.bf16.msra.mxu0 0
    %6145 = vmatprep.subr.bf16.mxu0 0
    %6146 = vmatpush2.bf16.msra.mxu0 0
    %6147 = vmatprep.subr.bf16.mxu0 0
    %6148 = vmatpush2.bf16.msra.mxu0 0
    %6149 = vmatprep.subr.bf16.mxu0 0
    %6150 = vmatpush2.bf16.msra.mxu0 0
    %6151 = vmatprep.subr.bf16.mxu0 0
    %6152 = vmatpush2.bf16.msra.mxu0 0
    %6153 = vmatprep.subr.bf16.mxu0 0
    %6154 = vmatpush2.bf16.msra.mxu0 0
    %6155 = vmatprep.subr.bf16.mxu0 0
    %6156 = vmatpush2.bf16.msra.mxu0 0
    %6157 = vmatprep.mubr.bf16.mxu0 0
    %6158 = vmatmul.mubr.bf16.gmra.mxu0 %v5774
    %v6159 = vpop.f32.mrf.mxu0
    %v6160 = vadd.f32 0.0, %v6159
    %v6161 = vpop.f32.mrf.mxu0
    %v6162 = vpop.f32.mrf.mxu0
    %v6163 = vpop.f32.mrf.mxu0
    %6164 = vdwg.mxu0
    %v6165 = vadd.f32 %v5729, %v6160
    %6166 = vmatprep.subr.bf16.mxu0 0
    %6167 = vmatpush1.bf16.msra.mxu0 0
    %6168 = vmatprep.subr.bf16.mxu0 0
    %6169 = vmatpush1.bf16.msra.mxu0 0
    %6170 = vmatprep.subr.bf16.mxu0 0
    %6171 = vmatpush1.bf16.msra.mxu0 %v5990
    %6172 = vmatprep.subr.bf16.mxu0 0
    %6173 = vmatpush1.bf16.msra.mxu0 %v5989
    %6174 = vmatprep.subr.bf16.mxu0 0
    %6175 = vmatpush1.bf16.msra.mxu0 %v5988
    %6176 = vmatprep.subr.bf16.mxu0 0
    %6177 = vmatpush1.bf16.msra.mxu0 %v5987
    %6178 = vmatprep.subr.bf16.mxu0 0
    %6179 = vmatpush1.bf16.msra.mxu0 %v5986
    %6180 = vmatprep.subr.bf16.mxu0 0
    %6181 = vmatpush1.bf16.msra.mxu0 %v5985
    %6182 = vmatprep.subr.bf16.mxu0 0
    %6183 = vmatpush2.bf16.msra.mxu0 0
    %6184 = vmatprep.subr.bf16.mxu0 0
    %6185 = vmatpush2.bf16.msra.mxu0 0
    %6186 = vmatprep.subr.bf16.mxu0 0
    %6187 = vmatpush2.bf16.msra.mxu0 0
    %6188 = vmatprep.subr.bf16.mxu0 0
    %6189 = vmatpush2.bf16.msra.mxu0 0
    %6190 = vmatprep.subr.bf16.mxu0 0
    %6191 = vmatpush2.bf16.msra.mxu0 0
    %6192 = vmatprep.subr.bf16.mxu0 0
    %6193 = vmatpush2.bf16.msra.mxu0 0
    %6194 = vmatprep.subr.bf16.mxu0 0
    %6195 = vmatpush2.bf16.msra.mxu0 0
    %6196 = vmatprep.subr.bf16.mxu0 0
    %6197 = vmatpush2.bf16.msra.mxu0 0
    %6198 = vmatprep.mubr.bf16.mxu0 0
    %6199 = vmatmul.mubr.bf16.gmra.mxu0 %v5774
    %v6200 = vpop.f32.mrf.mxu0
    %v6201 = vadd.f32 0.0, %v6200
    %v6202 = vpop.f32.mrf.mxu0
    %v6203 = vpop.f32.mrf.mxu0
    %v6204 = vpop.f32.mrf.mxu0
    %6205 = vdwg.mxu0
    %v6206 = vadd.f32 %v5770, %v6201
    %v6207 = vld [vmem:[%s4549 + $0x2] sm:$0xff]
    %v6208 = vpack.c.bf16 %v6207, %v6207
    %v6210 = vsel %vm144, %v6208, 0
    %6212 = vmatprep.subr.bf16.mxu0 0
    %6213 = vmatpush1.bf16.msra.mxu0 0
    %6214 = vmatprep.subr.bf16.mxu0 0
    %6215 = vmatpush1.bf16.msra.mxu0 0
    %6216 = vmatprep.subr.bf16.mxu0 0
    %6217 = vmatpush1.bf16.msra.mxu0 %v5913
    %6218 = vmatprep.subr.bf16.mxu0 0
    %6219 = vmatpush1.bf16.msra.mxu0 %v5912
    %6220 = vmatprep.subr.bf16.mxu0 0
    %6221 = vmatpush1.bf16.msra.mxu0 %v5911
    %6222 = vmatprep.subr.bf16.mxu0 0
    %6223 = vmatpush1.bf16.msra.mxu0 %v5910
    %6224 = vmatprep.subr.bf16.mxu0 0
    %6225 = vmatpush1.bf16.msra.mxu0 %v5909
    %6226 = vmatprep.subr.bf16.mxu0 0
    %6227 = vmatpush1.bf16.msra.mxu0 %v5908
    %6228 = vmatprep.subr.bf16.mxu0 0
    %6229 = vmatpush2.bf16.msra.mxu0 0
    %6230 = vmatprep.subr.bf16.mxu0 0
    %6231 = vmatpush2.bf16.msra.mxu0 0
    %6232 = vmatprep.subr.bf16.mxu0 0
    %6233 = vmatpush2.bf16.msra.mxu0 0
    %6234 = vmatprep.subr.bf16.mxu0 0
    %6235 = vmatpush2.bf16.msra.mxu0 0
    %6236 = vmatprep.subr.bf16.mxu0 0
    %6237 = vmatpush2.bf16.msra.mxu0 0
    %6238 = vmatprep.subr.bf16.mxu0 0
    %6239 = vmatpush2.bf16.msra.mxu0 0
    %6240 = vmatprep.subr.bf16.mxu0 0
    %6241 = vmatpush2.bf16.msra.mxu0 0
    %6242 = vmatprep.subr.bf16.mxu0 0
    %6243 = vmatpush2.bf16.msra.mxu0 0
    %6244 = vmatprep.mubr.bf16.mxu0 0
    %6245 = vmatmul.mubr.bf16.gmra.mxu0 %v6210
    %v6246 = vpop.f32.mrf.mxu0
    %v6247 = vadd.f32 0.0, %v6246
    %v6248 = vpop.f32.mrf.mxu0
    %v6249 = vpop.f32.mrf.mxu0
    %v6250 = vpop.f32.mrf.mxu0
    %6251 = vdwg.mxu0
    %v6252 = vadd.f32 %v5816, %v6247
    %6253 = vmatprep.subr.bf16.mxu0 0
    %6254 = vmatpush1.bf16.msra.mxu0 0
    %6255 = vmatprep.subr.bf16.mxu0 0
    %6256 = vmatpush1.bf16.msra.mxu0 0
    %6257 = vmatprep.subr.bf16.mxu0 0
    %6258 = vmatpush1.bf16.msra.mxu0 %v5990
    %6259 = vmatprep.subr.bf16.mxu0 0
    %6260 = vmatpush1.bf16.msra.mxu0 %v5989
    %6261 = vmatprep.subr.bf16.mxu0 0
    %6262 = vmatpush1.bf16.msra.mxu0 %v5988
    %6263 = vmatprep.subr.bf16.mxu0 0
    %6264 = vmatpush1.bf16.msra.mxu0 %v5987
    %6265 = vmatprep.subr.bf16.mxu0 0
    %6266 = vmatpush1.bf16.msra.mxu0 %v5986
    %6267 = vmatprep.subr.bf16.mxu0 0
    %6268 = vmatpush1.bf16.msra.mxu0 %v5985
    %6269 = vmatprep.subr.bf16.mxu0 0
    %6270 = vmatpush2.bf16.msra.mxu0 0
    %6271 = vmatprep.subr.bf16.mxu0 0
    %6272 = vmatpush2.bf16.msra.mxu0 0
    %6273 = vmatprep.subr.bf16.mxu0 0
    %6274 = vmatpush2.bf16.msra.mxu0 0
    %6275 = vmatprep.subr.bf16.mxu0 0
    %6276 = vmatpush2.bf16.msra.mxu0 0
    %6277 = vmatprep.subr.bf16.mxu0 0
    %6278 = vmatpush2.bf16.msra.mxu0 0
    %6279 = vmatprep.subr.bf16.mxu0 0
    %6280 = vmatpush2.bf16.msra.mxu0 0
    %6281 = vmatprep.subr.bf16.mxu0 0
    %6282 = vmatpush2.bf16.msra.mxu0 0
    %6283 = vmatprep.subr.bf16.mxu0 0
    %6284 = vmatpush2.bf16.msra.mxu0 0
    %6285 = vmatprep.mubr.bf16.mxu0 0
    %6286 = vmatmul.mubr.bf16.gmra.mxu0 %v6210
    %v6287 = vpop.f32.mrf.mxu0
    %v6288 = vadd.f32 0.0, %v6287
    %v6289 = vpop.f32.mrf.mxu0
    %v6290 = vpop.f32.mrf.mxu0
    %v6291 = vpop.f32.mrf.mxu0
    %6292 = vdwg.mxu0
    %v6293 = vadd.f32 %v5857, %v6288
    %s6294 = scalar_lea.vmem %s7, 384
    %v6295 = vld [vmem:[%s6294] sm:$0xf]
    %v6296 = vld [vmem:[%s6294 + $0x4] sm:$0xf]
    %v6297 = vld [vmem:[%s6294 + $0x8] sm:$0xf]
    %v6298 = vld [vmem:[%s6294 + $0xc] sm:$0xf]
    %v6299 = vld [vmem:[%s6294 + $0x10] sm:$0xf]
    %v6300 = vld [vmem:[%s6294 + $0x14] sm:$0xf]
    %v6301 = vld [vmem:[%s6294 + $0x18] sm:$0xf]
    %v6302 = vld [vmem:[%s6294 + $0x1c] sm:$0xf]
    %v6303 = vld [vmem:[%s6294 + $0x20] sm:$0xf]
    %v6304 = vld [vmem:[%s6294 + $0x24] sm:$0xf]
    %v6305 = vld [vmem:[%s6294 + $0x28] sm:$0xf]
    %v6306 = vld [vmem:[%s6294 + $0x2c] sm:$0xf]
    %s6307 = scalar_lea.vmem %s7, 432
    %v6308 = vld [vmem:[%s6307] sm:$0xf]
    %v6309 = vld [vmem:[%s6307 + $0x4] sm:$0xf]
    %v6310 = vld [vmem:[%s6307 + $0x8] sm:$0xf]
    %v6311 = vld [vmem:[%s6307 + $0xc] sm:$0xf]
    %v6312 = vld [vmem:[%s6307 + $0x10] sm:$0xf]
    %v6313 = vld [vmem:[%s6307 + $0x14] sm:$0xf]
    %v6314 = vld [vmem:[%s6307 + $0x18] sm:$0xf]
    %v6315 = vld [vmem:[%s6307 + $0x1c] sm:$0xf]
    %v6316 = vld [vmem:[%s6307 + $0x20] sm:$0xf]
    %v6317 = vld [vmem:[%s6307 + $0x24] sm:$0xf]
    %v6318 = vld [vmem:[%s6307 + $0x28] sm:$0xf]
    %v6319 = vld [vmem:[%s6307 + $0x2c] sm:$0xf]
    %v6332 = vunpack.c.l.b16 %v6295
    %v6333 = vunpack.c.l.b16 %v6296
    %v6334 = vunpack.c.l.b16 %v6297
    %v6335 = vunpack.c.l.b16 %v6298
    %v6336 = vunpack.c.l.b16 %v6299
    %v6337 = vunpack.c.l.b16 %v6300
    %v6338 = vunpack.c.l.b16 %v6301
    %v6339 = vunpack.c.l.b16 %v6302
    %v6340 = vunpack.c.l.b16 %v6303
    %v6341 = vunpack.c.l.b16 %v6304
    %v6342 = vunpack.c.l.b16 %v6305
    %v6343 = vunpack.c.l.b16 %v6306
    %v6344 = vpack.c.b16 %v6333, %v6332
    %v6345 = vpack.c.b16 %v6335, %v6334
    %v6346 = vpack.c.b16 %v6337, %v6336
    %v6347 = vpack.c.b16 %v6339, %v6338
    %v6348 = vpack.c.b16 %v6341, %v6340
    %v6349 = vpack.c.b16 %v6343, %v6342
    %6356 = vmatprep.subr.bf16.mxu0 0
    %6357 = vmatpush1.bf16.msra.mxu0 0
    %6358 = vmatprep.subr.bf16.mxu0 0
    %6359 = vmatpush1.bf16.msra.mxu0 0
    %6360 = vmatprep.subr.bf16.mxu0 0
    %6361 = vmatpush1.bf16.msra.mxu0 %v6349
    %6362 = vmatprep.subr.bf16.mxu0 0
    %6363 = vmatpush1.bf16.msra.mxu0 %v6348
    %6364 = vmatprep.subr.bf16.mxu0 0
    %6365 = vmatpush1.bf16.msra.mxu0 %v6347
    %6366 = vmatprep.subr.bf16.mxu0 0
    %6367 = vmatpush1.bf16.msra.mxu0 %v6346
    %6368 = vmatprep.subr.bf16.mxu0 0
    %6369 = vmatpush1.bf16.msra.mxu0 %v6345
    %6370 = vmatprep.subr.bf16.mxu0 0
    %6371 = vmatpush1.bf16.msra.mxu0 %v6344
    %6372 = vmatprep.subr.bf16.mxu0 0
    %6373 = vmatpush2.bf16.msra.mxu0 0
    %6374 = vmatprep.subr.bf16.mxu0 0
    %6375 = vmatpush2.bf16.msra.mxu0 0
    %6376 = vmatprep.subr.bf16.mxu0 0
    %6377 = vmatpush2.bf16.msra.mxu0 0
    %6378 = vmatprep.subr.bf16.mxu0 0
    %6379 = vmatpush2.bf16.msra.mxu0 0
    %6380 = vmatprep.subr.bf16.mxu0 0
    %6381 = vmatpush2.bf16.msra.mxu0 0
    %6382 = vmatprep.subr.bf16.mxu0 0
    %6383 = vmatpush2.bf16.msra.mxu0 0
    %6384 = vmatprep.subr.bf16.mxu0 0
    %6385 = vmatpush2.bf16.msra.mxu0 0
    %6386 = vmatprep.subr.bf16.mxu0 0
    %6387 = vmatpush2.bf16.msra.mxu0 0
    %6388 = vmatprep.mubr.bf16.mxu0 0
    %6389 = vmatmul.mubr.bf16.gmra.mxu0 %v6041
    %v6390 = vpop.f32.mrf.mxu0
    %v6391 = vadd.f32 0.0, %v6390
    %v6392 = vpop.f32.mrf.mxu0
    %v6393 = vpop.f32.mrf.mxu0
    %v6394 = vpop.f32.mrf.mxu0
    %6395 = vdwg.mxu0
    %v6396 = vadd.f32 %v5960, %v6391
    %v6409 = vunpack.c.l.b16 %v6308
    %v6410 = vunpack.c.l.b16 %v6309
    %v6411 = vunpack.c.l.b16 %v6310
    %v6412 = vunpack.c.l.b16 %v6311
    %v6413 = vunpack.c.l.b16 %v6312
    %v6414 = vunpack.c.l.b16 %v6313
    %v6415 = vunpack.c.l.b16 %v6314
    %v6416 = vunpack.c.l.b16 %v6315
    %v6417 = vunpack.c.l.b16 %v6316
    %v6418 = vunpack.c.l.b16 %v6317
    %v6419 = vunpack.c.l.b16 %v6318
    %v6420 = vunpack.c.l.b16 %v6319
    %v6421 = vpack.c.b16 %v6410, %v6409
    %v6422 = vpack.c.b16 %v6412, %v6411
    %v6423 = vpack.c.b16 %v6414, %v6413
    %v6424 = vpack.c.b16 %v6416, %v6415
    %v6425 = vpack.c.b16 %v6418, %v6417
    %v6426 = vpack.c.b16 %v6420, %v6419
    %6433 = vmatprep.subr.bf16.mxu0 0
    %6434 = vmatpush1.bf16.msra.mxu0 0
    %6435 = vmatprep.subr.bf16.mxu0 0
    %6436 = vmatpush1.bf16.msra.mxu0 0
    %6437 = vmatprep.subr.bf16.mxu0 0
    %6438 = vmatpush1.bf16.msra.mxu0 %v6426
    %6439 = vmatprep.subr.bf16.mxu0 0
    %6440 = vmatpush1.bf16.msra.mxu0 %v6425
    %6441 = vmatprep.subr.bf16.mxu0 0
    %6442 = vmatpush1.bf16.msra.mxu0 %v6424
    %6443 = vmatprep.subr.bf16.mxu0 0
    %6444 = vmatpush1.bf16.msra.mxu0 %v6423
    %6445 = vmatprep.subr.bf16.mxu0 0
    %6446 = vmatpush1.bf16.msra.mxu0 %v6422
    %6447 = vmatprep.subr.bf16.mxu0 0
    %6448 = vmatpush1.bf16.msra.mxu0 %v6421
    %6449 = vmatprep.subr.bf16.mxu0 0
    %6450 = vmatpush2.bf16.msra.mxu0 0
    %6451 = vmatprep.subr.bf16.mxu0 0
    %6452 = vmatpush2.bf16.msra.mxu0 0
    %6453 = vmatprep.subr.bf16.mxu0 0
    %6454 = vmatpush2.bf16.msra.mxu0 0
    %6455 = vmatprep.subr.bf16.mxu0 0
    %6456 = vmatpush2.bf16.msra.mxu0 0
    %6457 = vmatprep.subr.bf16.mxu0 0
    %6458 = vmatpush2.bf16.msra.mxu0 0
    %6459 = vmatprep.subr.bf16.mxu0 0
    %6460 = vmatpush2.bf16.msra.mxu0 0
    %6461 = vmatprep.subr.bf16.mxu0 0
    %6462 = vmatpush2.bf16.msra.mxu0 0
    %6463 = vmatprep.subr.bf16.mxu0 0
    %6464 = vmatpush2.bf16.msra.mxu0 0
    %6465 = vmatprep.mubr.bf16.mxu0 0
    %6466 = vmatmul.mubr.bf16.gmra.mxu0 %v6041
    %v6467 = vpop.f32.mrf.mxu0
    %v6468 = vadd.f32 0.0, %v6467
    %v6469 = vpop.f32.mrf.mxu0
    %v6470 = vpop.f32.mrf.mxu0
    %v6471 = vpop.f32.mrf.mxu0
    %6472 = vdwg.mxu0
    %v6473 = vadd.f32 %v6037, %v6468
    %v6474 = vld [vmem:[%s4522 + $0x2] sm:$0xff]
    %v6475 = vpack.c.bf16 %v6474, %v6474
    %v6477 = vsel %vm144, %v6475, 0
    %6479 = vmatprep.subr.bf16.mxu0 0
    %6480 = vmatpush1.bf16.msra.mxu0 0
    %6481 = vmatprep.subr.bf16.mxu0 0
    %6482 = vmatpush1.bf16.msra.mxu0 0
    %6483 = vmatprep.subr.bf16.mxu0 0
    %6484 = vmatpush1.bf16.msra.mxu0 %v6349
    %6485 = vmatprep.subr.bf16.mxu0 0
    %6486 = vmatpush1.bf16.msra.mxu0 %v6348
    %6487 = vmatprep.subr.bf16.mxu0 0
    %6488 = vmatpush1.bf16.msra.mxu0 %v6347
    %6489 = vmatprep.subr.bf16.mxu0 0
    %6490 = vmatpush1.bf16.msra.mxu0 %v6346
    %6491 = vmatprep.subr.bf16.mxu0 0
    %6492 = vmatpush1.bf16.msra.mxu0 %v6345
    %6493 = vmatprep.subr.bf16.mxu0 0
    %6494 = vmatpush1.bf16.msra.mxu0 %v6344
    %6495 = vmatprep.subr.bf16.mxu0 0
    %6496 = vmatpush2.bf16.msra.mxu0 0
    %6497 = vmatprep.subr.bf16.mxu0 0
    %6498 = vmatpush2.bf16.msra.mxu0 0
    %6499 = vmatprep.subr.bf16.mxu0 0
    %6500 = vmatpush2.bf16.msra.mxu0 0
    %6501 = vmatprep.subr.bf16.mxu0 0
    %6502 = vmatpush2.bf16.msra.mxu0 0
    %6503 = vmatprep.subr.bf16.mxu0 0
    %6504 = vmatpush2.bf16.msra.mxu0 0
    %6505 = vmatprep.subr.bf16.mxu0 0
    %6506 = vmatpush2.bf16.msra.mxu0 0
    %6507 = vmatprep.subr.bf16.mxu0 0
    %6508 = vmatpush2.bf16.msra.mxu0 0
    %6509 = vmatprep.subr.bf16.mxu0 0
    %6510 = vmatpush2.bf16.msra.mxu0 0
    %6511 = vmatprep.mubr.bf16.mxu0 0
    %6512 = vmatmul.mubr.bf16.gmra.mxu0 %v6477
    %v6513 = vpop.f32.mrf.mxu0
    %v6514 = vadd.f32 0.0, %v6513
    %v6515 = vpop.f32.mrf.mxu0
    %v6516 = vpop.f32.mrf.mxu0
    %v6517 = vpop.f32.mrf.mxu0
    %6518 = vdwg.mxu0
    %v6519 = vadd.f32 %v6083, %v6514
    %6520 = vmatprep.subr.bf16.mxu0 0
    %6521 = vmatpush1.bf16.msra.mxu0 0
    %6522 = vmatprep.subr.bf16.mxu0 0
    %6523 = vmatpush1.bf16.msra.mxu0 0
    %6524 = vmatprep.subr.bf16.mxu0 0
    %6525 = vmatpush1.bf16.msra.mxu0 %v6426
    %6526 = vmatprep.subr.bf16.mxu0 0
    %6527 = vmatpush1.bf16.msra.mxu0 %v6425
    %6528 = vmatprep.subr.bf16.mxu0 0
    %6529 = vmatpush1.bf16.msra.mxu0 %v6424
    %6530 = vmatprep.subr.bf16.mxu0 0
    %6531 = vmatpush1.bf16.msra.mxu0 %v6423
    %6532 = vmatprep.subr.bf16.mxu0 0
    %6533 = vmatpush1.bf16.msra.mxu0 %v6422
    %6534 = vmatprep.subr.bf16.mxu0 0
    %6535 = vmatpush1.bf16.msra.mxu0 %v6421
    %6536 = vmatprep.subr.bf16.mxu0 0
    %6537 = vmatpush2.bf16.msra.mxu0 0
    %6538 = vmatprep.subr.bf16.mxu0 0
    %6539 = vmatpush2.bf16.msra.mxu0 0
    %6540 = vmatprep.subr.bf16.mxu0 0
    %6541 = vmatpush2.bf16.msra.mxu0 0
    %6542 = vmatprep.subr.bf16.mxu0 0
    %6543 = vmatpush2.bf16.msra.mxu0 0
    %6544 = vmatprep.subr.bf16.mxu0 0
    %6545 = vmatpush2.bf16.msra.mxu0 0
    %6546 = vmatprep.subr.bf16.mxu0 0
    %6547 = vmatpush2.bf16.msra.mxu0 0
    %6548 = vmatprep.subr.bf16.mxu0 0
    %6549 = vmatpush2.bf16.msra.mxu0 0
    %6550 = vmatprep.subr.bf16.mxu0 0
    %6551 = vmatpush2.bf16.msra.mxu0 0
    %6552 = vmatprep.mubr.bf16.mxu0 0
    %6553 = vmatmul.mubr.bf16.gmra.mxu0 %v6477
    %v6554 = vpop.f32.mrf.mxu0
    %v6555 = vadd.f32 0.0, %v6554
    %v6556 = vpop.f32.mrf.mxu0
    %v6557 = vpop.f32.mrf.mxu0
    %v6558 = vpop.f32.mrf.mxu0
    %6559 = vdwg.mxu0
    %v6560 = vadd.f32 %v6124, %v6555
    %6561 = vmatprep.subr.bf16.mxu0 0
    %6562 = vmatpush1.bf16.msra.mxu0 0
    %6563 = vmatprep.subr.bf16.mxu0 0
    %6564 = vmatpush1.bf16.msra.mxu0 0
    %6565 = vmatprep.subr.bf16.mxu0 0
    %6566 = vmatpush1.bf16.msra.mxu0 %v6349
    %6567 = vmatprep.subr.bf16.mxu0 0
    %6568 = vmatpush1.bf16.msra.mxu0 %v6348
    %6569 = vmatprep.subr.bf16.mxu0 0
    %6570 = vmatpush1.bf16.msra.mxu0 %v6347
    %6571 = vmatprep.subr.bf16.mxu0 0
    %6572 = vmatpush1.bf16.msra.mxu0 %v6346
    %6573 = vmatprep.subr.bf16.mxu0 0
    %6574 = vmatpush1.bf16.msra.mxu0 %v6345
    %6575 = vmatprep.subr.bf16.mxu0 0
    %6576 = vmatpush1.bf16.msra.mxu0 %v6344
    %6577 = vmatprep.subr.bf16.mxu0 0
    %6578 = vmatpush2.bf16.msra.mxu0 0
    %6579 = vmatprep.subr.bf16.mxu0 0
    %6580 = vmatpush2.bf16.msra.mxu0 0
    %6581 = vmatprep.subr.bf16.mxu0 0
    %6582 = vmatpush2.bf16.msra.mxu0 0
    %6583 = vmatprep.subr.bf16.mxu0 0
    %6584 = vmatpush2.bf16.msra.mxu0 0
    %6585 = vmatprep.subr.bf16.mxu0 0
    %6586 = vmatpush2.bf16.msra.mxu0 0
    %6587 = vmatprep.subr.bf16.mxu0 0
    %6588 = vmatpush2.bf16.msra.mxu0 0
    %6589 = vmatprep.subr.bf16.mxu0 0
    %6590 = vmatpush2.bf16.msra.mxu0 0
    %6591 = vmatprep.subr.bf16.mxu0 0
    %6592 = vmatpush2.bf16.msra.mxu0 0
    %6593 = vmatprep.mubr.bf16.mxu0 0
    %6594 = vmatmul.mubr.bf16.gmra.mxu0 %v6210
    %v6595 = vpop.f32.mrf.mxu0
    %v6596 = vadd.f32 0.0, %v6595
    %v6597 = vpop.f32.mrf.mxu0
    %v6598 = vpop.f32.mrf.mxu0
    %v6599 = vpop.f32.mrf.mxu0
    %6600 = vdwg.mxu0
    %v6601 = vadd.f32 %v6165, %v6596
    %6602 = vmatprep.subr.bf16.mxu0 0
    %6603 = vmatpush1.bf16.msra.mxu0 0
    %6604 = vmatprep.subr.bf16.mxu0 0
    %6605 = vmatpush1.bf16.msra.mxu0 0
    %6606 = vmatprep.subr.bf16.mxu0 0
    %6607 = vmatpush1.bf16.msra.mxu0 %v6426
    %6608 = vmatprep.subr.bf16.mxu0 0
    %6609 = vmatpush1.bf16.msra.mxu0 %v6425
    %6610 = vmatprep.subr.bf16.mxu0 0
    %6611 = vmatpush1.bf16.msra.mxu0 %v6424
    %6612 = vmatprep.subr.bf16.mxu0 0
    %6613 = vmatpush1.bf16.msra.mxu0 %v6423
    %6614 = vmatprep.subr.bf16.mxu0 0
    %6615 = vmatpush1.bf16.msra.mxu0 %v6422
    %6616 = vmatprep.subr.bf16.mxu0 0
    %6617 = vmatpush1.bf16.msra.mxu0 %v6421
    %6618 = vmatprep.subr.bf16.mxu0 0
    %6619 = vmatpush2.bf16.msra.mxu0 0
    %6620 = vmatprep.subr.bf16.mxu0 0
    %6621 = vmatpush2.bf16.msra.mxu0 0
    %6622 = vmatprep.subr.bf16.mxu0 0
    %6623 = vmatpush2.bf16.msra.mxu0 0
    %6624 = vmatprep.subr.bf16.mxu0 0
    %6625 = vmatpush2.bf16.msra.mxu0 0
    %6626 = vmatprep.subr.bf16.mxu0 0
    %6627 = vmatpush2.bf16.msra.mxu0 0
    %6628 = vmatprep.subr.bf16.mxu0 0
    %6629 = vmatpush2.bf16.msra.mxu0 0
    %6630 = vmatprep.subr.bf16.mxu0 0
    %6631 = vmatpush2.bf16.msra.mxu0 0
    %6632 = vmatprep.subr.bf16.mxu0 0
    %6633 = vmatpush2.bf16.msra.mxu0 0
    %6634 = vmatprep.mubr.bf16.mxu0 0
    %6635 = vmatmul.mubr.bf16.gmra.mxu0 %v6210
    %v6636 = vpop.f32.mrf.mxu0
    %v6637 = vadd.f32 0.0, %v6636
    %v6638 = vpop.f32.mrf.mxu0
    %v6639 = vpop.f32.mrf.mxu0
    %v6640 = vpop.f32.mrf.mxu0
    %6641 = vdwg.mxu0
    %v6642 = vadd.f32 %v6206, %v6637
    %v6643 = vld [vmem:[%s4552 + $0x2] sm:$0xff]
    %v6644 = vpack.c.bf16 %v6643, %v6643
    %v6646 = vsel %vm144, %v6644, 0
    %6648 = vmatprep.subr.bf16.mxu0 0
    %6649 = vmatpush1.bf16.msra.mxu0 0
    %6650 = vmatprep.subr.bf16.mxu0 0
    %6651 = vmatpush1.bf16.msra.mxu0 0
    %6652 = vmatprep.subr.bf16.mxu0 0
    %6653 = vmatpush1.bf16.msra.mxu0 %v6349
    %6654 = vmatprep.subr.bf16.mxu0 0
    %6655 = vmatpush1.bf16.msra.mxu0 %v6348
    %6656 = vmatprep.subr.bf16.mxu0 0
    %6657 = vmatpush1.bf16.msra.mxu0 %v6347
    %6658 = vmatprep.subr.bf16.mxu0 0
    %6659 = vmatpush1.bf16.msra.mxu0 %v6346
    %6660 = vmatprep.subr.bf16.mxu0 0
    %6661 = vmatpush1.bf16.msra.mxu0 %v6345
    %6662 = vmatprep.subr.bf16.mxu0 0
    %6663 = vmatpush1.bf16.msra.mxu0 %v6344
    %6664 = vmatprep.subr.bf16.mxu0 0
    %6665 = vmatpush2.bf16.msra.mxu0 0
    %6666 = vmatprep.subr.bf16.mxu0 0
    %6667 = vmatpush2.bf16.msra.mxu0 0
    %6668 = vmatprep.subr.bf16.mxu0 0
    %6669 = vmatpush2.bf16.msra.mxu0 0
    %6670 = vmatprep.subr.bf16.mxu0 0
    %6671 = vmatpush2.bf16.msra.mxu0 0
    %6672 = vmatprep.subr.bf16.mxu0 0
    %6673 = vmatpush2.bf16.msra.mxu0 0
    %6674 = vmatprep.subr.bf16.mxu0 0
    %6675 = vmatpush2.bf16.msra.mxu0 0
    %6676 = vmatprep.subr.bf16.mxu0 0
    %6677 = vmatpush2.bf16.msra.mxu0 0
    %6678 = vmatprep.subr.bf16.mxu0 0
    %6679 = vmatpush2.bf16.msra.mxu0 0
    %6680 = vmatprep.mubr.bf16.mxu0 0
    %6681 = vmatmul.mubr.bf16.gmra.mxu0 %v6646
    %v6682 = vpop.f32.mrf.mxu0
    %v6683 = vadd.f32 0.0, %v6682
    %v6684 = vpop.f32.mrf.mxu0
    %v6685 = vpop.f32.mrf.mxu0
    %v6686 = vpop.f32.mrf.mxu0
    %6687 = vdwg.mxu0
    %v6688 = vadd.f32 %v6252, %v6683
    %6689 = vmatprep.subr.bf16.mxu0 0
    %6690 = vmatpush1.bf16.msra.mxu0 0
    %6691 = vmatprep.subr.bf16.mxu0 0
    %6692 = vmatpush1.bf16.msra.mxu0 0
    %6693 = vmatprep.subr.bf16.mxu0 0
    %6694 = vmatpush1.bf16.msra.mxu0 %v6426
    %6695 = vmatprep.subr.bf16.mxu0 0
    %6696 = vmatpush1.bf16.msra.mxu0 %v6425
    %6697 = vmatprep.subr.bf16.mxu0 0
    %6698 = vmatpush1.bf16.msra.mxu0 %v6424
    %6699 = vmatprep.subr.bf16.mxu0 0
    %6700 = vmatpush1.bf16.msra.mxu0 %v6423
    %6701 = vmatprep.subr.bf16.mxu0 0
    %6702 = vmatpush1.bf16.msra.mxu0 %v6422
    %6703 = vmatprep.subr.bf16.mxu0 0
    %6704 = vmatpush1.bf16.msra.mxu0 %v6421
    %6705 = vmatprep.subr.bf16.mxu0 0
    %6706 = vmatpush2.bf16.msra.mxu0 0
    %6707 = vmatprep.subr.bf16.mxu0 0
    %6708 = vmatpush2.bf16.msra.mxu0 0
    %6709 = vmatprep.subr.bf16.mxu0 0
    %6710 = vmatpush2.bf16.msra.mxu0 0
    %6711 = vmatprep.subr.bf16.mxu0 0
    %6712 = vmatpush2.bf16.msra.mxu0 0
    %6713 = vmatprep.subr.bf16.mxu0 0
    %6714 = vmatpush2.bf16.msra.mxu0 0
    %6715 = vmatprep.subr.bf16.mxu0 0
    %6716 = vmatpush2.bf16.msra.mxu0 0
    %6717 = vmatprep.subr.bf16.mxu0 0
    %6718 = vmatpush2.bf16.msra.mxu0 0
    %6719 = vmatprep.subr.bf16.mxu0 0
    %6720 = vmatpush2.bf16.msra.mxu0 0
    %6721 = vmatprep.mubr.bf16.mxu0 0
    %6722 = vmatmul.mubr.bf16.gmra.mxu0 %v6646
    %v6723 = vpop.f32.mrf.mxu0
    %v6724 = vadd.f32 0.0, %v6723
    %v6725 = vpop.f32.mrf.mxu0
    %v6726 = vpop.f32.mrf.mxu0
    %v6727 = vpop.f32.mrf.mxu0
    %6728 = vdwg.mxu0
    %v6729 = vadd.f32 %v6293, %v6724
    %v6730 = vld [vmem:[%s8] sm:$0x1]
    %v6732 = vlaneseq
    %v6733 = vshrl.u32 %v6732, 7
    %v6734 = vsub.s32 0, %v6733
    %v6735 = vrot.slane %v6730, %v6734
    %v6737 = vadd.f32 %v6396, %v6735
    %v6738 = vmax.f32 %v6737, 0.0
    %v6739 = vadd.f32 %v6473, %v6735
    %v6740 = vmax.f32 %v6739, 0.0
    %v6741 = vadd.f32 %v6519, %v6735
    %v6742 = vmax.f32 %v6741, 0.0
    %v6743 = vadd.f32 %v6560, %v6735
    %v6744 = vmax.f32 %v6743, 0.0
    %v6745 = vmax.f32 %v6738, %v6740
    %v6746 = vmax.f32 %v6742, %v6744
    %v6747 = vmax.f32 %v6745, %v6746
    %v6748 = vadd.f32 %v6601, %v6735
    %v6749 = vmax.f32 %v6748, 0.0
    %v6750 = vadd.f32 %v6642, %v6735
    %v6751 = vmax.f32 %v6750, 0.0
    %v6752 = vadd.f32 %v6688, %v6735
    %v6753 = vmax.f32 %v6752, 0.0
    %v6754 = vadd.f32 %v6729, %v6735
    %v6755 = vmax.f32 %v6754, 0.0
    %v6756 = vmax.f32 %v6749, %v6751
    %v6757 = vmax.f32 %v6753, %v6755
    %v6758 = vmax.f32 %v6756, %v6757
    %v6759 = vld [vmem:[%s10] sm:$0x1]
    %v6760 = vld [vmem:[%s9] sm:$0xff]
    %v6761 = vld [vmem:[%s9 + $0x8] sm:$0xff]
    %v6762 = vld [vmem:[%s9 + $0x10] sm:$0xff]
    %v6763 = vld [vmem:[%s9 + $0x18] sm:$0xff]
    %v6764 = vld [vmem:[%s9 + $0x20] sm:$0xff]
    %v6765 = vld [vmem:[%s9 + $0x28] sm:$0xff]
    %v6766 = vld [vmem:[%s9 + $0x30] sm:$0xff]
    %v6767 = vld [vmem:[%s9 + $0x38] sm:$0xff]
    %v6768 = vld [vmem:[%s9 + $0x40] sm:$0xff]
    %v6769 = vld [vmem:[%s9 + $0x48] sm:$0xff]
    %v6770 = vld [vmem:[%s9 + $0x50] sm:$0xff]
    %v6771 = vld [vmem:[%s9 + $0x58] sm:$0xff]
    %v6773 = vsel %vm144, %v6747, 0
    %6775 = vmatprep.subr.mxu0 0.0
    %6776 = vmatpush1.msra.mxu0 0.0
    %6777 = vmatprep.subr.mxu0 0.0
    %6778 = vmatpush1.msra.mxu0 0.0
    %6779 = vmatprep.subr.mxu0 0.0
    %6780 = vmatpush1.msra.mxu0 0.0
    %6781 = vmatprep.subr.mxu0 0.0
    %6782 = vmatpush1.msra.mxu0 0.0
    %6783 = vmatprep.subr.mxu0 0.0
    %6784 = vmatpush1.msra.mxu0 %v6771
    %6785 = vmatprep.subr.mxu0 0.0
    %6786 = vmatpush1.msra.mxu0 %v6770
    %6787 = vmatprep.subr.mxu0 0.0
    %6788 = vmatpush1.msra.mxu0 %v6769
    %6789 = vmatprep.subr.mxu0 0.0
    %6790 = vmatpush1.msra.mxu0 %v6768
    %6791 = vmatprep.subr.mxu0 0.0
    %6792 = vmatpush1.msra.mxu0 %v6767
    %6793 = vmatprep.subr.mxu0 0.0
    %6794 = vmatpush1.msra.mxu0 %v6766
    %6795 = vmatprep.subr.mxu0 0.0
    %6796 = vmatpush1.msra.mxu0 %v6765
    %6797 = vmatprep.subr.mxu0 0.0
    %6798 = vmatpush1.msra.mxu0 %v6764
    %6799 = vmatprep.subr.mxu0 0.0
    %6800 = vmatpush1.msra.mxu0 %v6763
    %6801 = vmatprep.subr.mxu0 0.0
    %6802 = vmatpush1.msra.mxu0 %v6762
    %6803 = vmatprep.subr.mxu0 0.0
    %6804 = vmatpush1.msra.mxu0 %v6761
    %6805 = vmatprep.subr.mxu0 0.0
    %6806 = vmatpush1.msra.mxu0 %v6760
    %6807 = vmatprep.subr.mxu0 0.0
    %6808 = vmatpush2.msra.mxu0 0.0
    %6809 = vmatprep.subr.mxu0 0.0
    %6810 = vmatpush2.msra.mxu0 0.0
    %6811 = vmatprep.subr.mxu0 0.0
    %6812 = vmatpush2.msra.mxu0 0.0
    %6813 = vmatprep.subr.mxu0 0.0
    %6814 = vmatpush2.msra.mxu0 0.0
    %6815 = vmatprep.subr.mxu0 0.0
    %6816 = vmatpush2.msra.mxu0 0.0
    %6817 = vmatprep.subr.mxu0 0.0
    %6818 = vmatpush2.msra.mxu0 0.0
    %6819 = vmatprep.subr.mxu0 0.0
    %6820 = vmatpush2.msra.mxu0 0.0
    %6821 = vmatprep.subr.mxu0 0.0
    %6822 = vmatpush2.msra.mxu0 0.0
    %6823 = vmatprep.subr.mxu0 0.0
    %6824 = vmatpush2.msra.mxu0 0.0
    %6825 = vmatprep.subr.mxu0 0.0
    %6826 = vmatpush2.msra.mxu0 0.0
    %6827 = vmatprep.subr.mxu0 0.0
    %6828 = vmatpush2.msra.mxu0 0.0
    %6829 = vmatprep.subr.mxu0 0.0
    %6830 = vmatpush2.msra.mxu0 0.0
    %6831 = vmatprep.subr.mxu0 0.0
    %6832 = vmatpush2.msra.mxu0 0.0
    %6833 = vmatprep.subr.mxu0 0.0
    %6834 = vmatpush2.msra.mxu0 0.0
    %6835 = vmatprep.subr.mxu0 0.0
    %6836 = vmatpush2.msra.mxu0 0.0
    %6837 = vmatprep.subr.mxu0 0.0
    %6838 = vmatpush2.msra.mxu0 0.0
    %6839 = vmatprep.mubr.f32.mxu0 0.0
    %6840 = vmatmul.mubr.f32.gmra.mxu0 %v6773
    %v6841 = vpop.f32.mrf.mxu0
    %v6842 = vadd.f32 0.0, %v6841
    %v6843 = vpop.f32.mrf.mxu0
    %6844 = vdwg.mxu0
    %v6845 = vadd.f32 %v6759, %v6842
    %v6847 = vsel %vm144, %v6758, 0
    %6849 = vmatprep.subr.mxu0 0.0
    %6850 = vmatpush1.msra.mxu0 0.0
    %6851 = vmatprep.subr.mxu0 0.0
    %6852 = vmatpush1.msra.mxu0 0.0
    %6853 = vmatprep.subr.mxu0 0.0
    %6854 = vmatpush1.msra.mxu0 0.0
    %6855 = vmatprep.subr.mxu0 0.0
    %6856 = vmatpush1.msra.mxu0 0.0
    %6857 = vmatprep.subr.mxu0 0.0
    %6858 = vmatpush1.msra.mxu0 %v6771
    %6859 = vmatprep.subr.mxu0 0.0
    %6860 = vmatpush1.msra.mxu0 %v6770
    %6861 = vmatprep.subr.mxu0 0.0
    %6862 = vmatpush1.msra.mxu0 %v6769
    %6863 = vmatprep.subr.mxu0 0.0
    %6864 = vmatpush1.msra.mxu0 %v6768
    %6865 = vmatprep.subr.mxu0 0.0
    %6866 = vmatpush1.msra.mxu0 %v6767
    %6867 = vmatprep.subr.mxu0 0.0
    %6868 = vmatpush1.msra.mxu0 %v6766
    %6869 = vmatprep.subr.mxu0 0.0
    %6870 = vmatpush1.msra.mxu0 %v6765
    %6871 = vmatprep.subr.mxu0 0.0
    %6872 = vmatpush1.msra.mxu0 %v6764
    %6873 = vmatprep.subr.mxu0 0.0
    %6874 = vmatpush1.msra.mxu0 %v6763
    %6875 = vmatprep.subr.mxu0 0.0
    %6876 = vmatpush1.msra.mxu0 %v6762
    %6877 = vmatprep.subr.mxu0 0.0
    %6878 = vmatpush1.msra.mxu0 %v6761
    %6879 = vmatprep.subr.mxu0 0.0
    %6880 = vmatpush1.msra.mxu0 %v6760
    %6881 = vmatprep.subr.mxu0 0.0
    %6882 = vmatpush2.msra.mxu0 0.0
    %6883 = vmatprep.subr.mxu0 0.0
    %6884 = vmatpush2.msra.mxu0 0.0
    %6885 = vmatprep.subr.mxu0 0.0
    %6886 = vmatpush2.msra.mxu0 0.0
    %6887 = vmatprep.subr.mxu0 0.0
    %6888 = vmatpush2.msra.mxu0 0.0
    %6889 = vmatprep.subr.mxu0 0.0
    %6890 = vmatpush2.msra.mxu0 0.0
    %6891 = vmatprep.subr.mxu0 0.0
    %6892 = vmatpush2.msra.mxu0 0.0
    %6893 = vmatprep.subr.mxu0 0.0
    %6894 = vmatpush2.msra.mxu0 0.0
    %6895 = vmatprep.subr.mxu0 0.0
    %6896 = vmatpush2.msra.mxu0 0.0
    %6897 = vmatprep.subr.mxu0 0.0
    %6898 = vmatpush2.msra.mxu0 0.0
    %6899 = vmatprep.subr.mxu0 0.0
    %6900 = vmatpush2.msra.mxu0 0.0
    %6901 = vmatprep.subr.mxu0 0.0
    %6902 = vmatpush2.msra.mxu0 0.0
    %6903 = vmatprep.subr.mxu0 0.0
    %6904 = vmatpush2.msra.mxu0 0.0
    %6905 = vmatprep.subr.mxu0 0.0
    %6906 = vmatpush2.msra.mxu0 0.0
    %6907 = vmatprep.subr.mxu0 0.0
    %6908 = vmatpush2.msra.mxu0 0.0
    %6909 = vmatprep.subr.mxu0 0.0
    %6910 = vmatpush2.msra.mxu0 0.0
    %6911 = vmatprep.subr.mxu0 0.0
    %6912 = vmatpush2.msra.mxu0 0.0
    %6913 = vmatprep.mubr.f32.mxu0 0.0
    %6914 = vmatmul.mubr.f32.gmra.mxu0 %v6847
    %v6915 = vpop.f32.mrf.mxu0
    %v6916 = vadd.f32 0.0, %v6915
    %v6917 = vpop.f32.mrf.mxu0
    %6918 = vdwg.mxu0
    %v6919 = vadd.f32 %v6759, %v6916
    %s6920 = scalar_lea.vmem %s9, 96
    %v6921 = vld [vmem:[%s6920] sm:$0xff]
    %v6922 = vld [vmem:[%s6920 + $0x8] sm:$0xff]
    %v6923 = vld [vmem:[%s6920 + $0x10] sm:$0xff]
    %v6924 = vld [vmem:[%s6920 + $0x18] sm:$0xff]
    %v6925 = vld [vmem:[%s6920 + $0x20] sm:$0xff]
    %v6926 = vld [vmem:[%s6920 + $0x28] sm:$0xff]
    %v6927 = vld [vmem:[%s6920 + $0x30] sm:$0xff]
    %v6928 = vld [vmem:[%s6920 + $0x38] sm:$0xff]
    %v6929 = vld [vmem:[%s6920 + $0x40] sm:$0xff]
    %v6930 = vld [vmem:[%s6920 + $0x48] sm:$0xff]
    %v6931 = vld [vmem:[%s6920 + $0x50] sm:$0xff]
    %v6932 = vld [vmem:[%s6920 + $0x58] sm:$0xff]
    %v6933 = vrot.slane %v6747, 1
    %v6934 = vsel %vm144, %v6933, 0
    %6936 = vmatprep.subr.mxu0 0.0
    %6937 = vmatpush1.msra.mxu0 0.0
    %6938 = vmatprep.subr.mxu0 0.0
    %6939 = vmatpush1.msra.mxu0 0.0
    %6940 = vmatprep.subr.mxu0 0.0
    %6941 = vmatpush1.msra.mxu0 0.0
    %6942 = vmatprep.subr.mxu0 0.0
    %6943 = vmatpush1.msra.mxu0 0.0
    %6944 = vmatprep.subr.mxu0 0.0
    %6945 = vmatpush1.msra.mxu0 %v6932
    %6946 = vmatprep.subr.mxu0 0.0
    %6947 = vmatpush1.msra.mxu0 %v6931
    %6948 = vmatprep.subr.mxu0 0.0
    %6949 = vmatpush1.msra.mxu0 %v6930
    %6950 = vmatprep.subr.mxu0 0.0
    %6951 = vmatpush1.msra.mxu0 %v6929
    %6952 = vmatprep.subr.mxu0 0.0
    %6953 = vmatpush1.msra.mxu0 %v6928
    %6954 = vmatprep.subr.mxu0 0.0
    %6955 = vmatpush1.msra.mxu0 %v6927
    %6956 = vmatprep.subr.mxu0 0.0
    %6957 = vmatpush1.msra.mxu0 %v6926
    %6958 = vmatprep.subr.mxu0 0.0
    %6959 = vmatpush1.msra.mxu0 %v6925
    %6960 = vmatprep.subr.mxu0 0.0
    %6961 = vmatpush1.msra.mxu0 %v6924
    %6962 = vmatprep.subr.mxu0 0.0
    %6963 = vmatpush1.msra.mxu0 %v6923
    %6964 = vmatprep.subr.mxu0 0.0
    %6965 = vmatpush1.msra.mxu0 %v6922
    %6966 = vmatprep.subr.mxu0 0.0
    %6967 = vmatpush1.msra.mxu0 %v6921
    %6968 = vmatprep.subr.mxu0 0.0
    %6969 = vmatpush2.msra.mxu0 0.0
    %6970 = vmatprep.subr.mxu0 0.0
    %6971 = vmatpush2.msra.mxu0 0.0
    %6972 = vmatprep.subr.mxu0 0.0
    %6973 = vmatpush2.msra.mxu0 0.0
    %6974 = vmatprep.subr.mxu0 0.0
    %6975 = vmatpush2.msra.mxu0 0.0
    %6976 = vmatprep.subr.mxu0 0.0
    %6977 = vmatpush2.msra.mxu0 0.0
    %6978 = vmatprep.subr.mxu0 0.0
    %6979 = vmatpush2.msra.mxu0 0.0
    %6980 = vmatprep.subr.mxu0 0.0
    %6981 = vmatpush2.msra.mxu0 0.0
    %6982 = vmatprep.subr.mxu0 0.0
    %6983 = vmatpush2.msra.mxu0 0.0
    %6984 = vmatprep.subr.mxu0 0.0
    %6985 = vmatpush2.msra.mxu0 0.0
    %6986 = vmatprep.subr.mxu0 0.0
    %6987 = vmatpush2.msra.mxu0 0.0
    %6988 = vmatprep.subr.mxu0 0.0
    %6989 = vmatpush2.msra.mxu0 0.0
    %6990 = vmatprep.subr.mxu0 0.0
    %6991 = vmatpush2.msra.mxu0 0.0
    %6992 = vmatprep.subr.mxu0 0.0
    %6993 = vmatpush2.msra.mxu0 0.0
    %6994 = vmatprep.subr.mxu0 0.0
    %6995 = vmatpush2.msra.mxu0 0.0
    %6996 = vmatprep.subr.mxu0 0.0
    %6997 = vmatpush2.msra.mxu0 0.0
    %6998 = vmatprep.subr.mxu0 0.0
    %6999 = vmatpush2.msra.mxu0 0.0
    %7000 = vmatprep.mubr.f32.mxu0 0.0
    %7001 = vmatmul.mubr.f32.gmra.mxu0 %v6934
    %v7002 = vpop.f32.mrf.mxu0
    %v7003 = vadd.f32 0.0, %v7002
    %v7004 = vpop.f32.mrf.mxu0
    %7005 = vdwg.mxu0
    %v7006 = vadd.f32 %v6845, %v7003
    %v7007 = vrot.slane %v6758, 1
    %v7008 = vsel %vm144, %v7007, 0
    %7010 = vmatprep.subr.mxu0 0.0
    %7011 = vmatpush1.msra.mxu0 0.0
    %7012 = vmatprep.subr.mxu0 0.0
    %7013 = vmatpush1.msra.mxu0 0.0
    %7014 = vmatprep.subr.mxu0 0.0
    %7015 = vmatpush1.msra.mxu0 0.0
    %7016 = vmatprep.subr.mxu0 0.0
    %7017 = vmatpush1.msra.mxu0 0.0
    %7018 = vmatprep.subr.mxu0 0.0
    %7019 = vmatpush1.msra.mxu0 %v6932
    %7020 = vmatprep.subr.mxu0 0.0
    %7021 = vmatpush1.msra.mxu0 %v6931
    %7022 = vmatprep.subr.mxu0 0.0
    %7023 = vmatpush1.msra.mxu0 %v6930
    %7024 = vmatprep.subr.mxu0 0.0
    %7025 = vmatpush1.msra.mxu0 %v6929
    %7026 = vmatprep.subr.mxu0 0.0
    %7027 = vmatpush1.msra.mxu0 %v6928
    %7028 = vmatprep.subr.mxu0 0.0
    %7029 = vmatpush1.msra.mxu0 %v6927
    %7030 = vmatprep.subr.mxu0 0.0
    %7031 = vmatpush1.msra.mxu0 %v6926
    %7032 = vmatprep.subr.mxu0 0.0
    %7033 = vmatpush1.msra.mxu0 %v6925
    %7034 = vmatprep.subr.mxu0 0.0
    %7035 = vmatpush1.msra.mxu0 %v6924
    %7036 = vmatprep.subr.mxu0 0.0
    %7037 = vmatpush1.msra.mxu0 %v6923
    %7038 = vmatprep.subr.mxu0 0.0
    %7039 = vmatpush1.msra.mxu0 %v6922
    %7040 = vmatprep.subr.mxu0 0.0
    %7041 = vmatpush1.msra.mxu0 %v6921
    %7042 = vmatprep.subr.mxu0 0.0
    %7043 = vmatpush2.msra.mxu0 0.0
    %7044 = vmatprep.subr.mxu0 0.0
    %7045 = vmatpush2.msra.mxu0 0.0
    %7046 = vmatprep.subr.mxu0 0.0
    %7047 = vmatpush2.msra.mxu0 0.0
    %7048 = vmatprep.subr.mxu0 0.0
    %7049 = vmatpush2.msra.mxu0 0.0
    %7050 = vmatprep.subr.mxu0 0.0
    %7051 = vmatpush2.msra.mxu0 0.0
    %7052 = vmatprep.subr.mxu0 0.0
    %7053 = vmatpush2.msra.mxu0 0.0
    %7054 = vmatprep.subr.mxu0 0.0
    %7055 = vmatpush2.msra.mxu0 0.0
    %7056 = vmatprep.subr.mxu0 0.0
    %7057 = vmatpush2.msra.mxu0 0.0
    %7058 = vmatprep.subr.mxu0 0.0
    %7059 = vmatpush2.msra.mxu0 0.0
    %7060 = vmatprep.subr.mxu0 0.0
    %7061 = vmatpush2.msra.mxu0 0.0
    %7062 = vmatprep.subr.mxu0 0.0
    %7063 = vmatpush2.msra.mxu0 0.0
    %7064 = vmatprep.subr.mxu0 0.0
    %7065 = vmatpush2.msra.mxu0 0.0
    %7066 = vmatprep.subr.mxu0 0.0
    %7067 = vmatpush2.msra.mxu0 0.0
    %7068 = vmatprep.subr.mxu0 0.0
    %7069 = vmatpush2.msra.mxu0 0.0
    %7070 = vmatprep.subr.mxu0 0.0
    %7071 = vmatpush2.msra.mxu0 0.0
    %7072 = vmatprep.subr.mxu0 0.0
    %7073 = vmatpush2.msra.mxu0 0.0
    %7074 = vmatprep.mubr.f32.mxu0 0.0
    %7075 = vmatmul.mubr.f32.gmra.mxu0 %v7008
    %v7076 = vpop.f32.mrf.mxu0
    %v7077 = vadd.f32 0.0, %v7076
    %v7078 = vpop.f32.mrf.mxu0
    %7079 = vdwg.mxu0
    %v7080 = vadd.f32 %v6919, %v7077
    %s7081 = scalar_lea.vmem %s9, 192
    %v7082 = vld [vmem:[%s7081] sm:$0xff]
    %v7083 = vld [vmem:[%s7081 + $0x8] sm:$0xff]
    %v7084 = vld [vmem:[%s7081 + $0x10] sm:$0xff]
    %v7085 = vld [vmem:[%s7081 + $0x18] sm:$0xff]
    %v7086 = vld [vmem:[%s7081 + $0x20] sm:$0xff]
    %v7087 = vld [vmem:[%s7081 + $0x28] sm:$0xff]
    %v7088 = vld [vmem:[%s7081 + $0x30] sm:$0xff]
    %v7089 = vld [vmem:[%s7081 + $0x38] sm:$0xff]
    %v7090 = vld [vmem:[%s7081 + $0x40] sm:$0xff]
    %v7091 = vld [vmem:[%s7081 + $0x48] sm:$0xff]
    %v7092 = vld [vmem:[%s7081 + $0x50] sm:$0xff]
    %v7093 = vld [vmem:[%s7081 + $0x58] sm:$0xff]
    %v7094 = vrot.slane %v6747, 2
    %v7095 = vsel %vm144, %v7094, 0
    %7097 = vmatprep.subr.mxu0 0.0
    %7098 = vmatpush1.msra.mxu0 0.0
    %7099 = vmatprep.subr.mxu0 0.0
    %7100 = vmatpush1.msra.mxu0 0.0
    %7101 = vmatprep.subr.mxu0 0.0
    %7102 = vmatpush1.msra.mxu0 0.0
    %7103 = vmatprep.subr.mxu0 0.0
    %7104 = vmatpush1.msra.mxu0 0.0
    %7105 = vmatprep.subr.mxu0 0.0
    %7106 = vmatpush1.msra.mxu0 %v7093
    %7107 = vmatprep.subr.mxu0 0.0
    %7108 = vmatpush1.msra.mxu0 %v7092
    %7109 = vmatprep.subr.mxu0 0.0
    %7110 = vmatpush1.msra.mxu0 %v7091
    %7111 = vmatprep.subr.mxu0 0.0
    %7112 = vmatpush1.msra.mxu0 %v7090
    %7113 = vmatprep.subr.mxu0 0.0
    %7114 = vmatpush1.msra.mxu0 %v7089
    %7115 = vmatprep.subr.mxu0 0.0
    %7116 = vmatpush1.msra.mxu0 %v7088
    %7117 = vmatprep.subr.mxu0 0.0
    %7118 = vmatpush1.msra.mxu0 %v7087
    %7119 = vmatprep.subr.mxu0 0.0
    %7120 = vmatpush1.msra.mxu0 %v7086
    %7121 = vmatprep.subr.mxu0 0.0
    %7122 = vmatpush1.msra.mxu0 %v7085
    %7123 = vmatprep.subr.mxu0 0.0
    %7124 = vmatpush1.msra.mxu0 %v7084
    %7125 = vmatprep.subr.mxu0 0.0
    %7126 = vmatpush1.msra.mxu0 %v7083
    %7127 = vmatprep.subr.mxu0 0.0
    %7128 = vmatpush1.msra.mxu0 %v7082
    %7129 = vmatprep.subr.mxu0 0.0
    %7130 = vmatpush2.msra.mxu0 0.0
    %7131 = vmatprep.subr.mxu0 0.0
    %7132 = vmatpush2.msra.mxu0 0.0
    %7133 = vmatprep.subr.mxu0 0.0
    %7134 = vmatpush2.msra.mxu0 0.0
    %7135 = vmatprep.subr.mxu0 0.0
    %7136 = vmatpush2.msra.mxu0 0.0
    %7137 = vmatprep.subr.mxu0 0.0
    %7138 = vmatpush2.msra.mxu0 0.0
    %7139 = vmatprep.subr.mxu0 0.0
    %7140 = vmatpush2.msra.mxu0 0.0
    %7141 = vmatprep.subr.mxu0 0.0
    %7142 = vmatpush2.msra.mxu0 0.0
    %7143 = vmatprep.subr.mxu0 0.0
    %7144 = vmatpush2.msra.mxu0 0.0
    %7145 = vmatprep.subr.mxu0 0.0
    %7146 = vmatpush2.msra.mxu0 0.0
    %7147 = vmatprep.subr.mxu0 0.0
    %7148 = vmatpush2.msra.mxu0 0.0
    %7149 = vmatprep.subr.mxu0 0.0
    %7150 = vmatpush2.msra.mxu0 0.0
    %7151 = vmatprep.subr.mxu0 0.0
    %7152 = vmatpush2.msra.mxu0 0.0
    %7153 = vmatprep.subr.mxu0 0.0
    %7154 = vmatpush2.msra.mxu0 0.0
    %7155 = vmatprep.subr.mxu0 0.0
    %7156 = vmatpush2.msra.mxu0 0.0
    %7157 = vmatprep.subr.mxu0 0.0
    %7158 = vmatpush2.msra.mxu0 0.0
    %7159 = vmatprep.subr.mxu0 0.0
    %7160 = vmatpush2.msra.mxu0 0.0
    %7161 = vmatprep.mubr.f32.mxu0 0.0
    %7162 = vmatmul.mubr.f32.gmra.mxu0 %v7095
    %v7163 = vpop.f32.mrf.mxu0
    %v7164 = vadd.f32 0.0, %v7163
    %v7165 = vpop.f32.mrf.mxu0
    %7166 = vdwg.mxu0
    %v7167 = vadd.f32 %v7006, %v7164
    %v7168 = vrot.slane %v6758, 2
    %v7169 = vsel %vm144, %v7168, 0
    %7171 = vmatprep.subr.mxu0 0.0
    %7172 = vmatpush1.msra.mxu0 0.0
    %7173 = vmatprep.subr.mxu0 0.0
    %7174 = vmatpush1.msra.mxu0 0.0
    %7175 = vmatprep.subr.mxu0 0.0
    %7176 = vmatpush1.msra.mxu0 0.0
    %7177 = vmatprep.subr.mxu0 0.0
    %7178 = vmatpush1.msra.mxu0 0.0
    %7179 = vmatprep.subr.mxu0 0.0
    %7180 = vmatpush1.msra.mxu0 %v7093
    %7181 = vmatprep.subr.mxu0 0.0
    %7182 = vmatpush1.msra.mxu0 %v7092
    %7183 = vmatprep.subr.mxu0 0.0
    %7184 = vmatpush1.msra.mxu0 %v7091
    %7185 = vmatprep.subr.mxu0 0.0
    %7186 = vmatpush1.msra.mxu0 %v7090
    %7187 = vmatprep.subr.mxu0 0.0
    %7188 = vmatpush1.msra.mxu0 %v7089
    %7189 = vmatprep.subr.mxu0 0.0
    %7190 = vmatpush1.msra.mxu0 %v7088
    %7191 = vmatprep.subr.mxu0 0.0
    %7192 = vmatpush1.msra.mxu0 %v7087
    %7193 = vmatprep.subr.mxu0 0.0
    %7194 = vmatpush1.msra.mxu0 %v7086
    %7195 = vmatprep.subr.mxu0 0.0
    %7196 = vmatpush1.msra.mxu0 %v7085
    %7197 = vmatprep.subr.mxu0 0.0
    %7198 = vmatpush1.msra.mxu0 %v7084
    %7199 = vmatprep.subr.mxu0 0.0
    %7200 = vmatpush1.msra.mxu0 %v7083
    %7201 = vmatprep.subr.mxu0 0.0
    %7202 = vmatpush1.msra.mxu0 %v7082
    %7203 = vmatprep.subr.mxu0 0.0
    %7204 = vmatpush2.msra.mxu0 0.0
    %7205 = vmatprep.subr.mxu0 0.0
    %7206 = vmatpush2.msra.mxu0 0.0
    %7207 = vmatprep.subr.mxu0 0.0
    %7208 = vmatpush2.msra.mxu0 0.0
    %7209 = vmatprep.subr.mxu0 0.0
    %7210 = vmatpush2.msra.mxu0 0.0
    %7211 = vmatprep.subr.mxu0 0.0
    %7212 = vmatpush2.msra.mxu0 0.0
    %7213 = vmatprep.subr.mxu0 0.0
    %7214 = vmatpush2.msra.mxu0 0.0
    %7215 = vmatprep.subr.mxu0 0.0
    %7216 = vmatpush2.msra.mxu0 0.0
    %7217 = vmatprep.subr.mxu0 0.0
    %7218 = vmatpush2.msra.mxu0 0.0
    %7219 = vmatprep.subr.mxu0 0.0
    %7220 = vmatpush2.msra.mxu0 0.0
    %7221 = vmatprep.subr.mxu0 0.0
    %7222 = vmatpush2.msra.mxu0 0.0
    %7223 = vmatprep.subr.mxu0 0.0
    %7224 = vmatpush2.msra.mxu0 0.0
    %7225 = vmatprep.subr.mxu0 0.0
    %7226 = vmatpush2.msra.mxu0 0.0
    %7227 = vmatprep.subr.mxu0 0.0
    %7228 = vmatpush2.msra.mxu0 0.0
    %7229 = vmatprep.subr.mxu0 0.0
    %7230 = vmatpush2.msra.mxu0 0.0
    %7231 = vmatprep.subr.mxu0 0.0
    %7232 = vmatpush2.msra.mxu0 0.0
    %7233 = vmatprep.subr.mxu0 0.0
    %7234 = vmatpush2.msra.mxu0 0.0
    %7235 = vmatprep.mubr.f32.mxu0 0.0
    %7236 = vmatmul.mubr.f32.gmra.mxu0 %v7169
    %v7237 = vpop.f32.mrf.mxu0
    %v7238 = vadd.f32 0.0, %v7237
    %v7239 = vpop.f32.mrf.mxu0
    %7240 = vdwg.mxu0
    %v7241 = vadd.f32 %v7080, %v7238
    %s7242 = scalar_lea.vmem %s9, 288
    %v7243 = vld [vmem:[%s7242] sm:$0xff]
    %v7244 = vld [vmem:[%s7242 + $0x8] sm:$0xff]
    %v7245 = vld [vmem:[%s7242 + $0x10] sm:$0xff]
    %v7246 = vld [vmem:[%s7242 + $0x18] sm:$0xff]
    %v7247 = vld [vmem:[%s7242 + $0x20] sm:$0xff]
    %v7248 = vld [vmem:[%s7242 + $0x28] sm:$0xff]
    %v7249 = vld [vmem:[%s7242 + $0x30] sm:$0xff]
    %v7250 = vld [vmem:[%s7242 + $0x38] sm:$0xff]
    %v7251 = vld [vmem:[%s7242 + $0x40] sm:$0xff]
    %v7252 = vld [vmem:[%s7242 + $0x48] sm:$0xff]
    %v7253 = vld [vmem:[%s7242 + $0x50] sm:$0xff]
    %v7254 = vld [vmem:[%s7242 + $0x58] sm:$0xff]
    %v7255 = vrot.slane %v6747, 3
    %v7256 = vsel %vm144, %v7255, 0
    %7258 = vmatprep.subr.mxu0 0.0
    %7259 = vmatpush1.msra.mxu0 0.0
    %7260 = vmatprep.subr.mxu0 0.0
    %7261 = vmatpush1.msra.mxu0 0.0
    %7262 = vmatprep.subr.mxu0 0.0
    %7263 = vmatpush1.msra.mxu0 0.0
    %7264 = vmatprep.subr.mxu0 0.0
    %7265 = vmatpush1.msra.mxu0 0.0
    %7266 = vmatprep.subr.mxu0 0.0
    %7267 = vmatpush1.msra.mxu0 %v7254
    %7268 = vmatprep.subr.mxu0 0.0
    %7269 = vmatpush1.msra.mxu0 %v7253
    %7270 = vmatprep.subr.mxu0 0.0
    %7271 = vmatpush1.msra.mxu0 %v7252
    %7272 = vmatprep.subr.mxu0 0.0
    %7273 = vmatpush1.msra.mxu0 %v7251
    %7274 = vmatprep.subr.mxu0 0.0
    %7275 = vmatpush1.msra.mxu0 %v7250
    %7276 = vmatprep.subr.mxu0 0.0
    %7277 = vmatpush1.msra.mxu0 %v7249
    %7278 = vmatprep.subr.mxu0 0.0
    %7279 = vmatpush1.msra.mxu0 %v7248
    %7280 = vmatprep.subr.mxu0 0.0
    %7281 = vmatpush1.msra.mxu0 %v7247
    %7282 = vmatprep.subr.mxu0 0.0
    %7283 = vmatpush1.msra.mxu0 %v7246
    %7284 = vmatprep.subr.mxu0 0.0
    %7285 = vmatpush1.msra.mxu0 %v7245
    %7286 = vmatprep.subr.mxu0 0.0
    %7287 = vmatpush1.msra.mxu0 %v7244
    %7288 = vmatprep.subr.mxu0 0.0
    %7289 = vmatpush1.msra.mxu0 %v7243
    %7290 = vmatprep.subr.mxu0 0.0
    %7291 = vmatpush2.msra.mxu0 0.0
    %7292 = vmatprep.subr.mxu0 0.0
    %7293 = vmatpush2.msra.mxu0 0.0
    %7294 = vmatprep.subr.mxu0 0.0
    %7295 = vmatpush2.msra.mxu0 0.0
    %7296 = vmatprep.subr.mxu0 0.0
    %7297 = vmatpush2.msra.mxu0 0.0
    %7298 = vmatprep.subr.mxu0 0.0
    %7299 = vmatpush2.msra.mxu0 0.0
    %7300 = vmatprep.subr.mxu0 0.0
    %7301 = vmatpush2.msra.mxu0 0.0
    %7302 = vmatprep.subr.mxu0 0.0
    %7303 = vmatpush2.msra.mxu0 0.0
    %7304 = vmatprep.subr.mxu0 0.0
    %7305 = vmatpush2.msra.mxu0 0.0
    %7306 = vmatprep.subr.mxu0 0.0
    %7307 = vmatpush2.msra.mxu0 0.0
    %7308 = vmatprep.subr.mxu0 0.0
    %7309 = vmatpush2.msra.mxu0 0.0
    %7310 = vmatprep.subr.mxu0 0.0
    %7311 = vmatpush2.msra.mxu0 0.0
    %7312 = vmatprep.subr.mxu0 0.0
    %7313 = vmatpush2.msra.mxu0 0.0
    %7314 = vmatprep.subr.mxu0 0.0
    %7315 = vmatpush2.msra.mxu0 0.0
    %7316 = vmatprep.subr.mxu0 0.0
    %7317 = vmatpush2.msra.mxu0 0.0
    %7318 = vmatprep.subr.mxu0 0.0
    %7319 = vmatpush2.msra.mxu0 0.0
    %7320 = vmatprep.subr.mxu0 0.0
    %7321 = vmatpush2.msra.mxu0 0.0
    %7322 = vmatprep.mubr.f32.mxu0 0.0
    %7323 = vmatmul.mubr.f32.gmra.mxu0 %v7256
    %v7324 = vpop.f32.mrf.mxu0
    %v7325 = vadd.f32 0.0, %v7324
    %v7326 = vpop.f32.mrf.mxu0
    %7327 = vdwg.mxu0
    %v7328 = vadd.f32 %v7167, %v7325
    %v7329 = vrot.slane %v6758, 3
    %v7330 = vsel %vm144, %v7329, 0
    %7332 = vmatprep.subr.mxu0 0.0
    %7333 = vmatpush1.msra.mxu0 0.0
    %7334 = vmatprep.subr.mxu0 0.0
    %7335 = vmatpush1.msra.mxu0 0.0
    %7336 = vmatprep.subr.mxu0 0.0
    %7337 = vmatpush1.msra.mxu0 0.0
    %7338 = vmatprep.subr.mxu0 0.0
    %7339 = vmatpush1.msra.mxu0 0.0
    %7340 = vmatprep.subr.mxu0 0.0
    %7341 = vmatpush1.msra.mxu0 %v7254
    %7342 = vmatprep.subr.mxu0 0.0
    %7343 = vmatpush1.msra.mxu0 %v7253
    %7344 = vmatprep.subr.mxu0 0.0
    %7345 = vmatpush1.msra.mxu0 %v7252
    %7346 = vmatprep.subr.mxu0 0.0
    %7347 = vmatpush1.msra.mxu0 %v7251
    %7348 = vmatprep.subr.mxu0 0.0
    %7349 = vmatpush1.msra.mxu0 %v7250
    %7350 = vmatprep.subr.mxu0 0.0
    %7351 = vmatpush1.msra.mxu0 %v7249
    %7352 = vmatprep.subr.mxu0 0.0
    %7353 = vmatpush1.msra.mxu0 %v7248
    %7354 = vmatprep.subr.mxu0 0.0
    %7355 = vmatpush1.msra.mxu0 %v7247
    %7356 = vmatprep.subr.mxu0 0.0
    %7357 = vmatpush1.msra.mxu0 %v7246
    %7358 = vmatprep.subr.mxu0 0.0
    %7359 = vmatpush1.msra.mxu0 %v7245
    %7360 = vmatprep.subr.mxu0 0.0
    %7361 = vmatpush1.msra.mxu0 %v7244
    %7362 = vmatprep.subr.mxu0 0.0
    %7363 = vmatpush1.msra.mxu0 %v7243
    %7364 = vmatprep.subr.mxu0 0.0
    %7365 = vmatpush2.msra.mxu0 0.0
    %7366 = vmatprep.subr.mxu0 0.0
    %7367 = vmatpush2.msra.mxu0 0.0
    %7368 = vmatprep.subr.mxu0 0.0
    %7369 = vmatpush2.msra.mxu0 0.0
    %7370 = vmatprep.subr.mxu0 0.0
    %7371 = vmatpush2.msra.mxu0 0.0
    %7372 = vmatprep.subr.mxu0 0.0
    %7373 = vmatpush2.msra.mxu0 0.0
    %7374 = vmatprep.subr.mxu0 0.0
    %7375 = vmatpush2.msra.mxu0 0.0
    %7376 = vmatprep.subr.mxu0 0.0
    %7377 = vmatpush2.msra.mxu0 0.0
    %7378 = vmatprep.subr.mxu0 0.0
    %7379 = vmatpush2.msra.mxu0 0.0
    %7380 = vmatprep.subr.mxu0 0.0
    %7381 = vmatpush2.msra.mxu0 0.0
    %7382 = vmatprep.subr.mxu0 0.0
    %7383 = vmatpush2.msra.mxu0 0.0
    %7384 = vmatprep.subr.mxu0 0.0
    %7385 = vmatpush2.msra.mxu0 0.0
    %7386 = vmatprep.subr.mxu0 0.0
    %7387 = vmatpush2.msra.mxu0 0.0
    %7388 = vmatprep.subr.mxu0 0.0
    %7389 = vmatpush2.msra.mxu0 0.0
    %7390 = vmatprep.subr.mxu0 0.0
    %7391 = vmatpush2.msra.mxu0 0.0
    %7392 = vmatprep.subr.mxu0 0.0
    %7393 = vmatpush2.msra.mxu0 0.0
    %7394 = vmatprep.subr.mxu0 0.0
    %7395 = vmatpush2.msra.mxu0 0.0
    %7396 = vmatprep.mubr.f32.mxu0 0.0
    %7397 = vmatmul.mubr.f32.gmra.mxu0 %v7330
    %v7398 = vpop.f32.mrf.mxu0
    %v7399 = vadd.f32 0.0, %v7398
    %v7400 = vpop.f32.mrf.mxu0
    %7401 = vdwg.mxu0
    %v7402 = vadd.f32 %v7241, %v7399
    %s7403 = scalar_lea.vmem %s9, 384
    %v7404 = vld [vmem:[%s7403] sm:$0xff]
    %v7405 = vld [vmem:[%s7403 + $0x8] sm:$0xff]
    %v7406 = vld [vmem:[%s7403 + $0x10] sm:$0xff]
    %v7407 = vld [vmem:[%s7403 + $0x18] sm:$0xff]
    %v7408 = vld [vmem:[%s7403 + $0x20] sm:$0xff]
    %v7409 = vld [vmem:[%s7403 + $0x28] sm:$0xff]
    %v7410 = vld [vmem:[%s7403 + $0x30] sm:$0xff]
    %v7411 = vld [vmem:[%s7403 + $0x38] sm:$0xff]
    %v7412 = vld [vmem:[%s7403 + $0x40] sm:$0xff]
    %v7413 = vld [vmem:[%s7403 + $0x48] sm:$0xff]
    %v7414 = vld [vmem:[%s7403 + $0x50] sm:$0xff]
    %v7415 = vld [vmem:[%s7403 + $0x58] sm:$0xff]
    %v7416 = vrot.slane %v6747, 4
    %v7417 = vsel %vm144, %v7416, 0
    %7419 = vmatprep.subr.mxu0 0.0
    %7420 = vmatpush1.msra.mxu0 0.0
    %7421 = vmatprep.subr.mxu0 0.0
    %7422 = vmatpush1.msra.mxu0 0.0
    %7423 = vmatprep.subr.mxu0 0.0
    %7424 = vmatpush1.msra.mxu0 0.0
    %7425 = vmatprep.subr.mxu0 0.0
    %7426 = vmatpush1.msra.mxu0 0.0
    %7427 = vmatprep.subr.mxu0 0.0
    %7428 = vmatpush1.msra.mxu0 %v7415
    %7429 = vmatprep.subr.mxu0 0.0
    %7430 = vmatpush1.msra.mxu0 %v7414
    %7431 = vmatprep.subr.mxu0 0.0
    %7432 = vmatpush1.msra.mxu0 %v7413
    %7433 = vmatprep.subr.mxu0 0.0
    %7434 = vmatpush1.msra.mxu0 %v7412
    %7435 = vmatprep.subr.mxu0 0.0
    %7436 = vmatpush1.msra.mxu0 %v7411
    %7437 = vmatprep.subr.mxu0 0.0
    %7438 = vmatpush1.msra.mxu0 %v7410
    %7439 = vmatprep.subr.mxu0 0.0
    %7440 = vmatpush1.msra.mxu0 %v7409
    %7441 = vmatprep.subr.mxu0 0.0
    %7442 = vmatpush1.msra.mxu0 %v7408
    %7443 = vmatprep.subr.mxu0 0.0
    %7444 = vmatpush1.msra.mxu0 %v7407
    %7445 = vmatprep.subr.mxu0 0.0
    %7446 = vmatpush1.msra.mxu0 %v7406
    %7447 = vmatprep.subr.mxu0 0.0
    %7448 = vmatpush1.msra.mxu0 %v7405
    %7449 = vmatprep.subr.mxu0 0.0
    %7450 = vmatpush1.msra.mxu0 %v7404
    %7451 = vmatprep.subr.mxu0 0.0
    %7452 = vmatpush2.msra.mxu0 0.0
    %7453 = vmatprep.subr.mxu0 0.0
    %7454 = vmatpush2.msra.mxu0 0.0
    %7455 = vmatprep.subr.mxu0 0.0
    %7456 = vmatpush2.msra.mxu0 0.0
    %7457 = vmatprep.subr.mxu0 0.0
    %7458 = vmatpush2.msra.mxu0 0.0
    %7459 = vmatprep.subr.mxu0 0.0
    %7460 = vmatpush2.msra.mxu0 0.0
    %7461 = vmatprep.subr.mxu0 0.0
    %7462 = vmatpush2.msra.mxu0 0.0
    %7463 = vmatprep.subr.mxu0 0.0
    %7464 = vmatpush2.msra.mxu0 0.0
    %7465 = vmatprep.subr.mxu0 0.0
    %7466 = vmatpush2.msra.mxu0 0.0
    %7467 = vmatprep.subr.mxu0 0.0
    %7468 = vmatpush2.msra.mxu0 0.0
    %7469 = vmatprep.subr.mxu0 0.0
    %7470 = vmatpush2.msra.mxu0 0.0
    %7471 = vmatprep.subr.mxu0 0.0
    %7472 = vmatpush2.msra.mxu0 0.0
    %7473 = vmatprep.subr.mxu0 0.0
    %7474 = vmatpush2.msra.mxu0 0.0
    %7475 = vmatprep.subr.mxu0 0.0
    %7476 = vmatpush2.msra.mxu0 0.0
    %7477 = vmatprep.subr.mxu0 0.0
    %7478 = vmatpush2.msra.mxu0 0.0
    %7479 = vmatprep.subr.mxu0 0.0
    %7480 = vmatpush2.msra.mxu0 0.0
    %7481 = vmatprep.subr.mxu0 0.0
    %7482 = vmatpush2.msra.mxu0 0.0
    %7483 = vmatprep.mubr.f32.mxu0 0.0
    %7484 = vmatmul.mubr.f32.gmra.mxu0 %v7417
    %v7485 = vpop.f32.mrf.mxu0
    %v7486 = vadd.f32 0.0, %v7485
    %v7487 = vpop.f32.mrf.mxu0
    %7488 = vdwg.mxu0
    %v7489 = vadd.f32 %v7328, %v7486
    %v7490 = vrot.slane %v6758, 4
    %v7491 = vsel %vm144, %v7490, 0
    %7493 = vmatprep.subr.mxu0 0.0
    %7494 = vmatpush1.msra.mxu0 0.0
    %7495 = vmatprep.subr.mxu0 0.0
    %7496 = vmatpush1.msra.mxu0 0.0
    %7497 = vmatprep.subr.mxu0 0.0
    %7498 = vmatpush1.msra.mxu0 0.0
    %7499 = vmatprep.subr.mxu0 0.0
    %7500 = vmatpush1.msra.mxu0 0.0
    %7501 = vmatprep.subr.mxu0 0.0
    %7502 = vmatpush1.msra.mxu0 %v7415
    %7503 = vmatprep.subr.mxu0 0.0
    %7504 = vmatpush1.msra.mxu0 %v7414
    %7505 = vmatprep.subr.mxu0 0.0
    %7506 = vmatpush1.msra.mxu0 %v7413
    %7507 = vmatprep.subr.mxu0 0.0
    %7508 = vmatpush1.msra.mxu0 %v7412
    %7509 = vmatprep.subr.mxu0 0.0
    %7510 = vmatpush1.msra.mxu0 %v7411
    %7511 = vmatprep.subr.mxu0 0.0
    %7512 = vmatpush1.msra.mxu0 %v7410
    %7513 = vmatprep.subr.mxu0 0.0
    %7514 = vmatpush1.msra.mxu0 %v7409
    %7515 = vmatprep.subr.mxu0 0.0
    %7516 = vmatpush1.msra.mxu0 %v7408
    %7517 = vmatprep.subr.mxu0 0.0
    %7518 = vmatpush1.msra.mxu0 %v7407
    %7519 = vmatprep.subr.mxu0 0.0
    %7520 = vmatpush1.msra.mxu0 %v7406
    %7521 = vmatprep.subr.mxu0 0.0
    %7522 = vmatpush1.msra.mxu0 %v7405
    %7523 = vmatprep.subr.mxu0 0.0
    %7524 = vmatpush1.msra.mxu0 %v7404
    %7525 = vmatprep.subr.mxu0 0.0
    %7526 = vmatpush2.msra.mxu0 0.0
    %7527 = vmatprep.subr.mxu0 0.0
    %7528 = vmatpush2.msra.mxu0 0.0
    %7529 = vmatprep.subr.mxu0 0.0
    %7530 = vmatpush2.msra.mxu0 0.0
    %7531 = vmatprep.subr.mxu0 0.0
    %7532 = vmatpush2.msra.mxu0 0.0
    %7533 = vmatprep.subr.mxu0 0.0
    %7534 = vmatpush2.msra.mxu0 0.0
    %7535 = vmatprep.subr.mxu0 0.0
    %7536 = vmatpush2.msra.mxu0 0.0
    %7537 = vmatprep.subr.mxu0 0.0
    %7538 = vmatpush2.msra.mxu0 0.0
    %7539 = vmatprep.subr.mxu0 0.0
    %7540 = vmatpush2.msra.mxu0 0.0
    %7541 = vmatprep.subr.mxu0 0.0
    %7542 = vmatpush2.msra.mxu0 0.0
    %7543 = vmatprep.subr.mxu0 0.0
    %7544 = vmatpush2.msra.mxu0 0.0
    %7545 = vmatprep.subr.mxu0 0.0
    %7546 = vmatpush2.msra.mxu0 0.0
    %7547 = vmatprep.subr.mxu0 0.0
    %7548 = vmatpush2.msra.mxu0 0.0
    %7549 = vmatprep.subr.mxu0 0.0
    %7550 = vmatpush2.msra.mxu0 0.0
    %7551 = vmatprep.subr.mxu0 0.0
    %7552 = vmatpush2.msra.mxu0 0.0
    %7553 = vmatprep.subr.mxu0 0.0
    %7554 = vmatpush2.msra.mxu0 0.0
    %7555 = vmatprep.subr.mxu0 0.0
    %7556 = vmatpush2.msra.mxu0 0.0
    %7557 = vmatprep.mubr.f32.mxu0 0.0
    %7558 = vmatmul.mubr.f32.gmra.mxu0 %v7491
    %v7559 = vpop.f32.mrf.mxu0
    %v7560 = vadd.f32 0.0, %v7559
    %v7561 = vpop.f32.mrf.mxu0
    %7562 = vdwg.mxu0
    %v7563 = vadd.f32 %v7402, %v7560
    %s7564 = scalar_lea.vmem %s9, 480
    %v7565 = vld [vmem:[%s7564] sm:$0xff]
    %v7566 = vld [vmem:[%s7564 + $0x8] sm:$0xff]
    %v7567 = vld [vmem:[%s7564 + $0x10] sm:$0xff]
    %v7568 = vld [vmem:[%s7564 + $0x18] sm:$0xff]
    %v7569 = vld [vmem:[%s7564 + $0x20] sm:$0xff]
    %v7570 = vld [vmem:[%s7564 + $0x28] sm:$0xff]
    %v7571 = vld [vmem:[%s7564 + $0x30] sm:$0xff]
    %v7572 = vld [vmem:[%s7564 + $0x38] sm:$0xff]
    %v7573 = vld [vmem:[%s7564 + $0x40] sm:$0xff]
    %v7574 = vld [vmem:[%s7564 + $0x48] sm:$0xff]
    %v7575 = vld [vmem:[%s7564 + $0x50] sm:$0xff]
    %v7576 = vld [vmem:[%s7564 + $0x58] sm:$0xff]
    %v7577 = vrot.slane %v6747, 5
    %v7578 = vsel %vm144, %v7577, 0
    %7580 = vmatprep.subr.mxu0 0.0
    %7581 = vmatpush1.msra.mxu0 0.0
    %7582 = vmatprep.subr.mxu0 0.0
    %7583 = vmatpush1.msra.mxu0 0.0
    %7584 = vmatprep.subr.mxu0 0.0
    %7585 = vmatpush1.msra.mxu0 0.0
    %7586 = vmatprep.subr.mxu0 0.0
    %7587 = vmatpush1.msra.mxu0 0.0
    %7588 = vmatprep.subr.mxu0 0.0
    %7589 = vmatpush1.msra.mxu0 %v7576
    %7590 = vmatprep.subr.mxu0 0.0
    %7591 = vmatpush1.msra.mxu0 %v7575
    %7592 = vmatprep.subr.mxu0 0.0
    %7593 = vmatpush1.msra.mxu0 %v7574
    %7594 = vmatprep.subr.mxu0 0.0
    %7595 = vmatpush1.msra.mxu0 %v7573
    %7596 = vmatprep.subr.mxu0 0.0
    %7597 = vmatpush1.msra.mxu0 %v7572
    %7598 = vmatprep.subr.mxu0 0.0
    %7599 = vmatpush1.msra.mxu0 %v7571
    %7600 = vmatprep.subr.mxu0 0.0
    %7601 = vmatpush1.msra.mxu0 %v7570
    %7602 = vmatprep.subr.mxu0 0.0
    %7603 = vmatpush1.msra.mxu0 %v7569
    %7604 = vmatprep.subr.mxu0 0.0
    %7605 = vmatpush1.msra.mxu0 %v7568
    %7606 = vmatprep.subr.mxu0 0.0
    %7607 = vmatpush1.msra.mxu0 %v7567
    %7608 = vmatprep.subr.mxu0 0.0
    %7609 = vmatpush1.msra.mxu0 %v7566
    %7610 = vmatprep.subr.mxu0 0.0
    %7611 = vmatpush1.msra.mxu0 %v7565
    %7612 = vmatprep.subr.mxu0 0.0
    %7613 = vmatpush2.msra.mxu0 0.0
    %7614 = vmatprep.subr.mxu0 0.0
    %7615 = vmatpush2.msra.mxu0 0.0
    %7616 = vmatprep.subr.mxu0 0.0
    %7617 = vmatpush2.msra.mxu0 0.0
    %7618 = vmatprep.subr.mxu0 0.0
    %7619 = vmatpush2.msra.mxu0 0.0
    %7620 = vmatprep.subr.mxu0 0.0
    %7621 = vmatpush2.msra.mxu0 0.0
    %7622 = vmatprep.subr.mxu0 0.0
    %7623 = vmatpush2.msra.mxu0 0.0
    %7624 = vmatprep.subr.mxu0 0.0
    %7625 = vmatpush2.msra.mxu0 0.0
    %7626 = vmatprep.subr.mxu0 0.0
    %7627 = vmatpush2.msra.mxu0 0.0
    %7628 = vmatprep.subr.mxu0 0.0
    %7629 = vmatpush2.msra.mxu0 0.0
    %7630 = vmatprep.subr.mxu0 0.0
    %7631 = vmatpush2.msra.mxu0 0.0
    %7632 = vmatprep.subr.mxu0 0.0
    %7633 = vmatpush2.msra.mxu0 0.0
    %7634 = vmatprep.subr.mxu0 0.0
    %7635 = vmatpush2.msra.mxu0 0.0
    %7636 = vmatprep.subr.mxu0 0.0
    %7637 = vmatpush2.msra.mxu0 0.0
    %7638 = vmatprep.subr.mxu0 0.0
    %7639 = vmatpush2.msra.mxu0 0.0
    %7640 = vmatprep.subr.mxu0 0.0
    %7641 = vmatpush2.msra.mxu0 0.0
    %7642 = vmatprep.subr.mxu0 0.0
    %7643 = vmatpush2.msra.mxu0 0.0
    %7644 = vmatprep.mubr.f32.mxu0 0.0
    %7645 = vmatmul.mubr.f32.gmra.mxu0 %v7578
    %v7646 = vpop.f32.mrf.mxu0
    %v7647 = vadd.f32 0.0, %v7646
    %v7648 = vpop.f32.mrf.mxu0
    %7649 = vdwg.mxu0
    %v7650 = vadd.f32 %v7489, %v7647
    %v7651 = vrot.slane %v6758, 5
    %v7652 = vsel %vm144, %v7651, 0
    %7654 = vmatprep.subr.mxu0 0.0
    %7655 = vmatpush1.msra.mxu0 0.0
    %7656 = vmatprep.subr.mxu0 0.0
    %7657 = vmatpush1.msra.mxu0 0.0
    %7658 = vmatprep.subr.mxu0 0.0
    %7659 = vmatpush1.msra.mxu0 0.0
    %7660 = vmatprep.subr.mxu0 0.0
    %7661 = vmatpush1.msra.mxu0 0.0
    %7662 = vmatprep.subr.mxu0 0.0
    %7663 = vmatpush1.msra.mxu0 %v7576
    %7664 = vmatprep.subr.mxu0 0.0
    %7665 = vmatpush1.msra.mxu0 %v7575
    %7666 = vmatprep.subr.mxu0 0.0
    %7667 = vmatpush1.msra.mxu0 %v7574
    %7668 = vmatprep.subr.mxu0 0.0
    %7669 = vmatpush1.msra.mxu0 %v7573
    %7670 = vmatprep.subr.mxu0 0.0
    %7671 = vmatpush1.msra.mxu0 %v7572
    %7672 = vmatprep.subr.mxu0 0.0
    %7673 = vmatpush1.msra.mxu0 %v7571
    %7674 = vmatprep.subr.mxu0 0.0
    %7675 = vmatpush1.msra.mxu0 %v7570
    %7676 = vmatprep.subr.mxu0 0.0
    %7677 = vmatpush1.msra.mxu0 %v7569
    %7678 = vmatprep.subr.mxu0 0.0
    %7679 = vmatpush1.msra.mxu0 %v7568
    %7680 = vmatprep.subr.mxu0 0.0
    %7681 = vmatpush1.msra.mxu0 %v7567
    %7682 = vmatprep.subr.mxu0 0.0
    %7683 = vmatpush1.msra.mxu0 %v7566
    %7684 = vmatprep.subr.mxu0 0.0
    %7685 = vmatpush1.msra.mxu0 %v7565
    %7686 = vmatprep.subr.mxu0 0.0
    %7687 = vmatpush2.msra.mxu0 0.0
    %7688 = vmatprep.subr.mxu0 0.0
    %7689 = vmatpush2.msra.mxu0 0.0
    %7690 = vmatprep.subr.mxu0 0.0
    %7691 = vmatpush2.msra.mxu0 0.0
    %7692 = vmatprep.subr.mxu0 0.0
    %7693 = vmatpush2.msra.mxu0 0.0
    %7694 = vmatprep.subr.mxu0 0.0
    %7695 = vmatpush2.msra.mxu0 0.0
    %7696 = vmatprep.subr.mxu0 0.0
    %7697 = vmatpush2.msra.mxu0 0.0
    %7698 = vmatprep.subr.mxu0 0.0
    %7699 = vmatpush2.msra.mxu0 0.0
    %7700 = vmatprep.subr.mxu0 0.0
    %7701 = vmatpush2.msra.mxu0 0.0
    %7702 = vmatprep.subr.mxu0 0.0
    %7703 = vmatpush2.msra.mxu0 0.0
    %7704 = vmatprep.subr.mxu0 0.0
    %7705 = vmatpush2.msra.mxu0 0.0
    %7706 = vmatprep.subr.mxu0 0.0
    %7707 = vmatpush2.msra.mxu0 0.0
    %7708 = vmatprep.subr.mxu0 0.0
    %7709 = vmatpush2.msra.mxu0 0.0
    %7710 = vmatprep.subr.mxu0 0.0
    %7711 = vmatpush2.msra.mxu0 0.0
    %7712 = vmatprep.subr.mxu0 0.0
    %7713 = vmatpush2.msra.mxu0 0.0
    %7714 = vmatprep.subr.mxu0 0.0
    %7715 = vmatpush2.msra.mxu0 0.0
    %7716 = vmatprep.subr.mxu0 0.0
    %7717 = vmatpush2.msra.mxu0 0.0
    %7718 = vmatprep.mubr.f32.mxu0 0.0
    %7719 = vmatmul.mubr.f32.gmra.mxu0 %v7652
    %v7720 = vpop.f32.mrf.mxu0
    %v7721 = vadd.f32 0.0, %v7720
    %v7722 = vpop.f32.mrf.mxu0
    %7723 = vdwg.mxu0
    %v7724 = vadd.f32 %v7563, %v7721
    %s7725 = scalar_lea.vmem %s9, 576
    %v7726 = vld [vmem:[%s7725] sm:$0xff]
    %v7727 = vld [vmem:[%s7725 + $0x8] sm:$0xff]
    %v7728 = vld [vmem:[%s7725 + $0x10] sm:$0xff]
    %v7729 = vld [vmem:[%s7725 + $0x18] sm:$0xff]
    %v7730 = vld [vmem:[%s7725 + $0x20] sm:$0xff]
    %v7731 = vld [vmem:[%s7725 + $0x28] sm:$0xff]
    %v7732 = vld [vmem:[%s7725 + $0x30] sm:$0xff]
    %v7733 = vld [vmem:[%s7725 + $0x38] sm:$0xff]
    %v7734 = vld [vmem:[%s7725 + $0x40] sm:$0xff]
    %v7735 = vld [vmem:[%s7725 + $0x48] sm:$0xff]
    %v7736 = vld [vmem:[%s7725 + $0x50] sm:$0xff]
    %v7737 = vld [vmem:[%s7725 + $0x58] sm:$0xff]
    %v7738 = vrot.slane %v6747, 6
    %v7739 = vsel %vm144, %v7738, 0
    %7741 = vmatprep.subr.mxu0 0.0
    %7742 = vmatpush1.msra.mxu0 0.0
    %7743 = vmatprep.subr.mxu0 0.0
    %7744 = vmatpush1.msra.mxu0 0.0
    %7745 = vmatprep.subr.mxu0 0.0
    %7746 = vmatpush1.msra.mxu0 0.0
    %7747 = vmatprep.subr.mxu0 0.0
    %7748 = vmatpush1.msra.mxu0 0.0
    %7749 = vmatprep.subr.mxu0 0.0
    %7750 = vmatpush1.msra.mxu0 %v7737
    %7751 = vmatprep.subr.mxu0 0.0
    %7752 = vmatpush1.msra.mxu0 %v7736
    %7753 = vmatprep.subr.mxu0 0.0
    %7754 = vmatpush1.msra.mxu0 %v7735
    %7755 = vmatprep.subr.mxu0 0.0
    %7756 = vmatpush1.msra.mxu0 %v7734
    %7757 = vmatprep.subr.mxu0 0.0
    %7758 = vmatpush1.msra.mxu0 %v7733
    %7759 = vmatprep.subr.mxu0 0.0
    %7760 = vmatpush1.msra.mxu0 %v7732
    %7761 = vmatprep.subr.mxu0 0.0
    %7762 = vmatpush1.msra.mxu0 %v7731
    %7763 = vmatprep.subr.mxu0 0.0
    %7764 = vmatpush1.msra.mxu0 %v7730
    %7765 = vmatprep.subr.mxu0 0.0
    %7766 = vmatpush1.msra.mxu0 %v7729
    %7767 = vmatprep.subr.mxu0 0.0
    %7768 = vmatpush1.msra.mxu0 %v7728
    %7769 = vmatprep.subr.mxu0 0.0
    %7770 = vmatpush1.msra.mxu0 %v7727
    %7771 = vmatprep.subr.mxu0 0.0
    %7772 = vmatpush1.msra.mxu0 %v7726
    %7773 = vmatprep.subr.mxu0 0.0
    %7774 = vmatpush2.msra.mxu0 0.0
    %7775 = vmatprep.subr.mxu0 0.0
    %7776 = vmatpush2.msra.mxu0 0.0
    %7777 = vmatprep.subr.mxu0 0.0
    %7778 = vmatpush2.msra.mxu0 0.0
    %7779 = vmatprep.subr.mxu0 0.0
    %7780 = vmatpush2.msra.mxu0 0.0
    %7781 = vmatprep.subr.mxu0 0.0
    %7782 = vmatpush2.msra.mxu0 0.0
    %7783 = vmatprep.subr.mxu0 0.0
    %7784 = vmatpush2.msra.mxu0 0.0
    %7785 = vmatprep.subr.mxu0 0.0
    %7786 = vmatpush2.msra.mxu0 0.0
    %7787 = vmatprep.subr.mxu0 0.0
    %7788 = vmatpush2.msra.mxu0 0.0
    %7789 = vmatprep.subr.mxu0 0.0
    %7790 = vmatpush2.msra.mxu0 0.0
    %7791 = vmatprep.subr.mxu0 0.0
    %7792 = vmatpush2.msra.mxu0 0.0
    %7793 = vmatprep.subr.mxu0 0.0
    %7794 = vmatpush2.msra.mxu0 0.0
    %7795 = vmatprep.subr.mxu0 0.0
    %7796 = vmatpush2.msra.mxu0 0.0
    %7797 = vmatprep.subr.mxu0 0.0
    %7798 = vmatpush2.msra.mxu0 0.0
    %7799 = vmatprep.subr.mxu0 0.0
    %7800 = vmatpush2.msra.mxu0 0.0
    %7801 = vmatprep.subr.mxu0 0.0
    %7802 = vmatpush2.msra.mxu0 0.0
    %7803 = vmatprep.subr.mxu0 0.0
    %7804 = vmatpush2.msra.mxu0 0.0
    %7805 = vmatprep.mubr.f32.mxu0 0.0
    %7806 = vmatmul.mubr.f32.gmra.mxu0 %v7739
    %v7807 = vpop.f32.mrf.mxu0
    %v7808 = vadd.f32 0.0, %v7807
    %v7809 = vpop.f32.mrf.mxu0
    %7810 = vdwg.mxu0
    %v7811 = vadd.f32 %v7650, %v7808
    %v7812 = vrot.slane %v6758, 6
    %v7813 = vsel %vm144, %v7812, 0
    %7815 = vmatprep.subr.mxu0 0.0
    %7816 = vmatpush1.msra.mxu0 0.0
    %7817 = vmatprep.subr.mxu0 0.0
    %7818 = vmatpush1.msra.mxu0 0.0
    %7819 = vmatprep.subr.mxu0 0.0
    %7820 = vmatpush1.msra.mxu0 0.0
    %7821 = vmatprep.subr.mxu0 0.0
    %7822 = vmatpush1.msra.mxu0 0.0
    %7823 = vmatprep.subr.mxu0 0.0
    %7824 = vmatpush1.msra.mxu0 %v7737
    %7825 = vmatprep.subr.mxu0 0.0
    %7826 = vmatpush1.msra.mxu0 %v7736
    %7827 = vmatprep.subr.mxu0 0.0
    %7828 = vmatpush1.msra.mxu0 %v7735
    %7829 = vmatprep.subr.mxu0 0.0
    %7830 = vmatpush1.msra.mxu0 %v7734
    %7831 = vmatprep.subr.mxu0 0.0
    %7832 = vmatpush1.msra.mxu0 %v7733
    %7833 = vmatprep.subr.mxu0 0.0
    %7834 = vmatpush1.msra.mxu0 %v7732
    %7835 = vmatprep.subr.mxu0 0.0
    %7836 = vmatpush1.msra.mxu0 %v7731
    %7837 = vmatprep.subr.mxu0 0.0
    %7838 = vmatpush1.msra.mxu0 %v7730
    %7839 = vmatprep.subr.mxu0 0.0
    %7840 = vmatpush1.msra.mxu0 %v7729
    %7841 = vmatprep.subr.mxu0 0.0
    %7842 = vmatpush1.msra.mxu0 %v7728
    %7843 = vmatprep.subr.mxu0 0.0
    %7844 = vmatpush1.msra.mxu0 %v7727
    %7845 = vmatprep.subr.mxu0 0.0
    %7846 = vmatpush1.msra.mxu0 %v7726
    %7847 = vmatprep.subr.mxu0 0.0
    %7848 = vmatpush2.msra.mxu0 0.0
    %7849 = vmatprep.subr.mxu0 0.0
    %7850 = vmatpush2.msra.mxu0 0.0
    %7851 = vmatprep.subr.mxu0 0.0
    %7852 = vmatpush2.msra.mxu0 0.0
    %7853 = vmatprep.subr.mxu0 0.0
    %7854 = vmatpush2.msra.mxu0 0.0
    %7855 = vmatprep.subr.mxu0 0.0
    %7856 = vmatpush2.msra.mxu0 0.0
    %7857 = vmatprep.subr.mxu0 0.0
    %7858 = vmatpush2.msra.mxu0 0.0
    %7859 = vmatprep.subr.mxu0 0.0
    %7860 = vmatpush2.msra.mxu0 0.0
    %7861 = vmatprep.subr.mxu0 0.0
    %7862 = vmatpush2.msra.mxu0 0.0
    %7863 = vmatprep.subr.mxu0 0.0
    %7864 = vmatpush2.msra.mxu0 0.0
    %7865 = vmatprep.subr.mxu0 0.0
    %7866 = vmatpush2.msra.mxu0 0.0
    %7867 = vmatprep.subr.mxu0 0.0
    %7868 = vmatpush2.msra.mxu0 0.0
    %7869 = vmatprep.subr.mxu0 0.0
    %7870 = vmatpush2.msra.mxu0 0.0
    %7871 = vmatprep.subr.mxu0 0.0
    %7872 = vmatpush2.msra.mxu0 0.0
    %7873 = vmatprep.subr.mxu0 0.0
    %7874 = vmatpush2.msra.mxu0 0.0
    %7875 = vmatprep.subr.mxu0 0.0
    %7876 = vmatpush2.msra.mxu0 0.0
    %7877 = vmatprep.subr.mxu0 0.0
    %7878 = vmatpush2.msra.mxu0 0.0
    %7879 = vmatprep.mubr.f32.mxu0 0.0
    %7880 = vmatmul.mubr.f32.gmra.mxu0 %v7813
    %v7881 = vpop.f32.mrf.mxu0
    %v7882 = vadd.f32 0.0, %v7881
    %v7883 = vpop.f32.mrf.mxu0
    %7884 = vdwg.mxu0
    %v7885 = vadd.f32 %v7724, %v7882
    %s7886 = scalar_lea.vmem %s9, 672
    %v7887 = vld [vmem:[%s7886] sm:$0xff]
    %v7888 = vld [vmem:[%s7886 + $0x8] sm:$0xff]
    %v7889 = vld [vmem:[%s7886 + $0x10] sm:$0xff]
    %v7890 = vld [vmem:[%s7886 + $0x18] sm:$0xff]
    %v7891 = vld [vmem:[%s7886 + $0x20] sm:$0xff]
    %v7892 = vld [vmem:[%s7886 + $0x28] sm:$0xff]
    %v7893 = vld [vmem:[%s7886 + $0x30] sm:$0xff]
    %v7894 = vld [vmem:[%s7886 + $0x38] sm:$0xff]
    %v7895 = vld [vmem:[%s7886 + $0x40] sm:$0xff]
    %v7896 = vld [vmem:[%s7886 + $0x48] sm:$0xff]
    %v7897 = vld [vmem:[%s7886 + $0x50] sm:$0xff]
    %v7898 = vld [vmem:[%s7886 + $0x58] sm:$0xff]
    %v7899 = vrot.slane %v6747, 7
    %v7900 = vsel %vm144, %v7899, 0
    %7902 = vmatprep.subr.mxu0 0.0
    %7903 = vmatpush1.msra.mxu0 0.0
    %7904 = vmatprep.subr.mxu0 0.0
    %7905 = vmatpush1.msra.mxu0 0.0
    %7906 = vmatprep.subr.mxu0 0.0
    %7907 = vmatpush1.msra.mxu0 0.0
    %7908 = vmatprep.subr.mxu0 0.0
    %7909 = vmatpush1.msra.mxu0 0.0
    %7910 = vmatprep.subr.mxu0 0.0
    %7911 = vmatpush1.msra.mxu0 %v7898
    %7912 = vmatprep.subr.mxu0 0.0
    %7913 = vmatpush1.msra.mxu0 %v7897
    %7914 = vmatprep.subr.mxu0 0.0
    %7915 = vmatpush1.msra.mxu0 %v7896
    %7916 = vmatprep.subr.mxu0 0.0
    %7917 = vmatpush1.msra.mxu0 %v7895
    %7918 = vmatprep.subr.mxu0 0.0
    %7919 = vmatpush1.msra.mxu0 %v7894
    %7920 = vmatprep.subr.mxu0 0.0
    %7921 = vmatpush1.msra.mxu0 %v7893
    %7922 = vmatprep.subr.mxu0 0.0
    %7923 = vmatpush1.msra.mxu0 %v7892
    %7924 = vmatprep.subr.mxu0 0.0
    %7925 = vmatpush1.msra.mxu0 %v7891
    %7926 = vmatprep.subr.mxu0 0.0
    %7927 = vmatpush1.msra.mxu0 %v7890
    %7928 = vmatprep.subr.mxu0 0.0
    %7929 = vmatpush1.msra.mxu0 %v7889
    %7930 = vmatprep.subr.mxu0 0.0
    %7931 = vmatpush1.msra.mxu0 %v7888
    %7932 = vmatprep.subr.mxu0 0.0
    %7933 = vmatpush1.msra.mxu0 %v7887
    %7934 = vmatprep.subr.mxu0 0.0
    %7935 = vmatpush2.msra.mxu0 0.0
    %7936 = vmatprep.subr.mxu0 0.0
    %7937 = vmatpush2.msra.mxu0 0.0
    %7938 = vmatprep.subr.mxu0 0.0
    %7939 = vmatpush2.msra.mxu0 0.0
    %7940 = vmatprep.subr.mxu0 0.0
    %7941 = vmatpush2.msra.mxu0 0.0
    %7942 = vmatprep.subr.mxu0 0.0
    %7943 = vmatpush2.msra.mxu0 0.0
    %7944 = vmatprep.subr.mxu0 0.0
    %7945 = vmatpush2.msra.mxu0 0.0
    %7946 = vmatprep.subr.mxu0 0.0
    %7947 = vmatpush2.msra.mxu0 0.0
    %7948 = vmatprep.subr.mxu0 0.0
    %7949 = vmatpush2.msra.mxu0 0.0
    %7950 = vmatprep.subr.mxu0 0.0
    %7951 = vmatpush2.msra.mxu0 0.0
    %7952 = vmatprep.subr.mxu0 0.0
    %7953 = vmatpush2.msra.mxu0 0.0
    %7954 = vmatprep.subr.mxu0 0.0
    %7955 = vmatpush2.msra.mxu0 0.0
    %7956 = vmatprep.subr.mxu0 0.0
    %7957 = vmatpush2.msra.mxu0 0.0
    %7958 = vmatprep.subr.mxu0 0.0
    %7959 = vmatpush2.msra.mxu0 0.0
    %7960 = vmatprep.subr.mxu0 0.0
    %7961 = vmatpush2.msra.mxu0 0.0
    %7962 = vmatprep.subr.mxu0 0.0
    %7963 = vmatpush2.msra.mxu0 0.0
    %7964 = vmatprep.subr.mxu0 0.0
    %7965 = vmatpush2.msra.mxu0 0.0
    %7966 = vmatprep.mubr.f32.mxu0 0.0
    %7967 = vmatmul.mubr.f32.gmra.mxu0 %v7900
    %v7968 = vpop.f32.mrf.mxu0
    %v7969 = vadd.f32 0.0, %v7968
    %v7970 = vpop.f32.mrf.mxu0
    %7971 = vdwg.mxu0
    %v7972 = vadd.f32 %v7811, %v7969
    %v7973 = vrot.slane %v6758, 7
    %v7974 = vsel %vm144, %v7973, 0
    %7976 = vmatprep.subr.mxu0 0.0
    %7977 = vmatpush1.msra.mxu0 0.0
    %7978 = vmatprep.subr.mxu0 0.0
    %7979 = vmatpush1.msra.mxu0 0.0
    %7980 = vmatprep.subr.mxu0 0.0
    %7981 = vmatpush1.msra.mxu0 0.0
    %7982 = vmatprep.subr.mxu0 0.0
    %7983 = vmatpush1.msra.mxu0 0.0
    %7984 = vmatprep.subr.mxu0 0.0
    %7985 = vmatpush1.msra.mxu0 %v7898
    %7986 = vmatprep.subr.mxu0 0.0
    %7987 = vmatpush1.msra.mxu0 %v7897
    %7988 = vmatprep.subr.mxu0 0.0
    %7989 = vmatpush1.msra.mxu0 %v7896
    %7990 = vmatprep.subr.mxu0 0.0
    %7991 = vmatpush1.msra.mxu0 %v7895
    %7992 = vmatprep.subr.mxu0 0.0
    %7993 = vmatpush1.msra.mxu0 %v7894
    %7994 = vmatprep.subr.mxu0 0.0
    %7995 = vmatpush1.msra.mxu0 %v7893
    %7996 = vmatprep.subr.mxu0 0.0
    %7997 = vmatpush1.msra.mxu0 %v7892
    %7998 = vmatprep.subr.mxu0 0.0
    %7999 = vmatpush1.msra.mxu0 %v7891
    %8000 = vmatprep.subr.mxu0 0.0
    %8001 = vmatpush1.msra.mxu0 %v7890
    %8002 = vmatprep.subr.mxu0 0.0
    %8003 = vmatpush1.msra.mxu0 %v7889
    %8004 = vmatprep.subr.mxu0 0.0
    %8005 = vmatpush1.msra.mxu0 %v7888
    %8006 = vmatprep.subr.mxu0 0.0
    %8007 = vmatpush1.msra.mxu0 %v7887
    %8008 = vmatprep.subr.mxu0 0.0
    %8009 = vmatpush2.msra.mxu0 0.0
    %8010 = vmatprep.subr.mxu0 0.0
    %8011 = vmatpush2.msra.mxu0 0.0
    %8012 = vmatprep.subr.mxu0 0.0
    %8013 = vmatpush2.msra.mxu0 0.0
    %8014 = vmatprep.subr.mxu0 0.0
    %8015 = vmatpush2.msra.mxu0 0.0
    %8016 = vmatprep.subr.mxu0 0.0
    %8017 = vmatpush2.msra.mxu0 0.0
    %8018 = vmatprep.subr.mxu0 0.0
    %8019 = vmatpush2.msra.mxu0 0.0
    %8020 = vmatprep.subr.mxu0 0.0
    %8021 = vmatpush2.msra.mxu0 0.0
    %8022 = vmatprep.subr.mxu0 0.0
    %8023 = vmatpush2.msra.mxu0 0.0
    %8024 = vmatprep.subr.mxu0 0.0
    %8025 = vmatpush2.msra.mxu0 0.0
    %8026 = vmatprep.subr.mxu0 0.0
    %8027 = vmatpush2.msra.mxu0 0.0
    %8028 = vmatprep.subr.mxu0 0.0
    %8029 = vmatpush2.msra.mxu0 0.0
    %8030 = vmatprep.subr.mxu0 0.0
    %8031 = vmatpush2.msra.mxu0 0.0
    %8032 = vmatprep.subr.mxu0 0.0
    %8033 = vmatpush2.msra.mxu0 0.0
    %8034 = vmatprep.subr.mxu0 0.0
    %8035 = vmatpush2.msra.mxu0 0.0
    %8036 = vmatprep.subr.mxu0 0.0
    %8037 = vmatpush2.msra.mxu0 0.0
    %8038 = vmatprep.subr.mxu0 0.0
    %8039 = vmatpush2.msra.mxu0 0.0
    %8040 = vmatprep.mubr.f32.mxu0 0.0
    %8041 = vmatmul.mubr.f32.gmra.mxu0 %v7974
    %v8042 = vpop.f32.mrf.mxu0
    %v8043 = vadd.f32 0.0, %v8042
    %v8044 = vpop.f32.mrf.mxu0
    %8045 = vdwg.mxu0
    %v8046 = vadd.f32 %v7885, %v8043
    %vm8047 = vcmask 73728
    %8048 = vst.msk [vmem:[#allocation3] sm:$0x1] %vm8047, %v7972
    %8049 = vst.msk [vmem:[#allocation3 + $0x1] sm:$0x1] %vm8047, %v8046
    // Predicated region
    $region46: #{my_small_cnn_forward.1} parent=1 // pred_check
      _
    $region47: #{my_small_cnn_forward.1} parent=1 // pred_check_branch
      %8051 = sbr.rel (0) target = $region49
    $region48: #{my_small_cnn_forward.1} parent=1 // pred_region
      %s8053 = ssub.s32 32, 32
      %8054 = vsyncadd [#allocation4], %s8053
      %s8056 = sshll.u32 [#allocation3], 4
      %s8057 = int_to_ptr.vmem [resolvable:$true] %s8056
      %8059 = dma.vmem_to_hbm [thread:$0]  %s8057, 32, %s11, [#allocation4]
    $region49: #{my_small_cnn_forward.1} parent=1 // pred_fallthru
      _
    // Predicated region
    $region50: #{my_small_cnn_forward.1} parent=1 // pred_check
      _
    $region51: #{my_small_cnn_forward.1} parent=1 // pred_check_branch
      %8061 = sbr.rel (0) target = $region53
    $region52: #{my_small_cnn_forward.1} parent=1 // pred_region
      %8062 = dma.done [#allocation4], 32
    $region53: #{my_small_cnn_forward.1} parent=1 // pred_fallthru
      _
    %8063 = vsyncpa [#allocation4], 1

</llo_original>
